<compile_context>
chip_gen: v5e
topology: v5e:2x2
jax: 0.10.0
libtpu: 0.0.40
codegen_flags: <defaults>
</compile_context>

<pallas_src>
import numpy as np
import jax
import jax.numpy as jnp
from jax.experimental import pallas as pl
from jax.experimental.pallas import tpu as pltpu


# ----------------------------------------------------------------------------
# Pallas kernel
# ----------------------------------------------------------------------------
def _make_kernel(T, Bp, I, H, C, Hp):
    H3 = 3 * Hp  # per-direction gate width (r | z | n), each gate lane-padded to Hp

    def gru_gates(gi, gh, h):
        # gi, gh: (Bp, 3*Hp) f32; h: (Bp, Hp) f32. PyTorch gate order: r, z, n.
        r = jax.nn.sigmoid(gi[:, :Hp] + gh[:, :Hp])
        z = jax.nn.sigmoid(gi[:, Hp:2 * Hp] + gh[:, Hp:2 * Hp])
        n = jnp.tanh(gi[:, 2 * Hp:] + r * gh[:, 2 * Hp:])
        return (1.0 - z) * n + z * h

    def kernel(len_ref, x_ref,
               wih1c_ref, bih1_ref, whh1c_ref, bhh1_ref,
               wih2c_ref, bih2_ref, whh2c_ref, bhh2_ref,
               wfcc_ref, bfc_ref,
               out_ref,
               gi_ref, out1_ref,
               wih1x_ref, whh1x_ref, wih2x_ref, whh2x_ref, wfcx_ref):
        # ----- one-time: expand compact weights into padded VMEM forms -----
        # Each gate gets its own 128-lane group; directions are packed
        # block-diagonally so the fused recurrence is a single MXU contraction.
        wih1x_ref[...] = jnp.zeros_like(wih1x_ref)
        whh1x_ref[...] = jnp.zeros_like(whh1x_ref)
        wih2x_ref[...] = jnp.zeros_like(wih2x_ref)
        whh2x_ref[...] = jnp.zeros_like(whh2x_ref)
        wfcx_ref[...] = jnp.zeros_like(wfcx_ref)
        for k in range(6):                       # k = dir*3 + gate
            d = k // 3
            wih1x_ref[0:I, k * Hp:k * Hp + H] = wih1c_ref[k]
            whh1x_ref[d * Hp:d * Hp + H, k * Hp:k * Hp + H] = whh1c_ref[k]
            whh2x_ref[d * Hp:d * Hp + H, k * Hp:k * Hp + H] = whh2c_ref[k]
            for r in range(2):                   # r = which half of the layer input
                wih2x_ref[r * Hp:r * Hp + H, k * Hp:k * Hp + H] = wih2c_ref[r * 6 + k]
        for r in range(2):
            wfcx_ref[r * Hp:r * Hp + H, 0:C] = wfcc_ref[r]

        # ----- hoisted off the serial chain: masks & bias broadcasts -----
        lengths = len_ref[...]                                   # (Bp, 1) int32
        valid = [jnp.broadcast_to(t < lengths, (Bp, Hp)) for t in range(T)]
        bhh1 = jnp.broadcast_to(bhh1_ref[...], (Bp, 6 * Hp))

        # ----- layer-1 input projection: ALL timesteps, BOTH directions, 1 GEMM -----
        gi_ref[...] = (jnp.dot(x_ref[...], wih1x_ref[...],
                               preferred_element_type=jnp.float32) + bih1_ref[...])

        # ----- layer-1 fused bidirectional recurrence (static unroll, T small) -----
        whh1 = whh1x_ref[...]                                    # (2*Hp, 6*Hp) bf16
        h_f = jnp.zeros((Bp, Hp), jnp.float32)
        h_b = jnp.zeros((Bp, Hp), jnp.float32)
        for i in range(T):
            tf, tb = i, T - 1 - i
            hcat = jnp.concatenate([h_f, h_b], axis=-1).astype(jnp.bfloat16)
            gh = jnp.dot(hcat, whh1, preferred_element_type=jnp.float32) + bhh1
            gi_f = gi_ref[tf * Bp:(tf + 1) * Bp, 0:H3]
            gi_b = gi_ref[tb * Bp:(tb + 1) * Bp, H3:2 * H3]
            h_f = jnp.where(valid[tf], gru_gates(gi_f, gh[:, :H3], h_f), h_f)
            h_b = jnp.where(valid[tb], gru_gates(gi_b, gh[:, H3:], h_b), h_b)
            out1_ref[tf * Bp:(tf + 1) * Bp, 0:Hp] = h_f          # aligned (8,128) stores
            out1_ref[tb * Bp:(tb + 1) * Bp, Hp:2 * Hp] = h_b

        # ----- layer-2 input projection on full layer-1 output buffer, 1 GEMM -----
        gi_ref[...] = (jnp.dot(out1_ref[...].astype(jnp.bfloat16), wih2x_ref[...],
                               preferred_element_type=jnp.float32) + bih2_ref[...])

        # ----- layer-2 fused bidirectional recurrence -----
        whh2 = whh2x_ref[...]
        bhh2 = jnp.broadcast_to(bhh2_ref[...], (Bp, 6 * Hp))
        h_f = jnp.zeros((Bp, Hp), jnp.float32)
        h_b = jnp.zeros((Bp, Hp), jnp.float32)
        for i in range(T):
            tf, tb = i, T - 1 - i
            hcat = jnp.concatenate([h_f, h_b], axis=-1).astype(jnp.bfloat16)
            gh = jnp.dot(hcat, whh2, preferred_element_type=jnp.float32) + bhh2
            gi_f = gi_ref[tf * Bp:(tf + 1) * Bp, 0:H3]
            gi_b = gi_ref[tb * Bp:(tb + 1) * Bp, H3:2 * H3]
            h_f = jnp.where(valid[tf], gru_gates(gi_f, gh[:, :H3], h_f), h_f)
            h_b = jnp.where(valid[tb], gru_gates(gi_b, gh[:, H3:], h_b), h_b)

        # ----- head: fc(cat(hidden[-2], hidden[-1])), single GEMM + bias -----
        hcat = jnp.concatenate([h_f, h_b], axis=-1).astype(jnp.bfloat16)
        out_ref[...] = (jnp.dot(hcat, wfcx_ref[...],
                                preferred_element_type=jnp.float32) + bfc_ref[...])

    return kernel


# ----------------------------------------------------------------------------
# Wrapper
# ----------------------------------------------------------------------------
def crypto_classifier_forward(x, lengths, params, H, C, Hp=128):
    """x: (B, T, I) float32 batch_first (PyTorch convention); lengths: (B,) int."""
    B, T, I = x.shape
    if B == 0:
        return jnp.zeros((0, C), jnp.float32)

    Bp = max(8, ((B + 7) // 8) * 8)   # pad batch to a full sublane tile
    Cp = 128                          # pad head output to a full lane tile

    # padded batch rows get length 0 so their hidden state stays exactly 0
    x_p = jnp.zeros((Bp, T, I), jnp.float32).at[:B].set(x.astype(jnp.float32))
    len_p = jnp.zeros((Bp, 1), jnp.int32).at[:B, 0].set(lengths.astype(jnp.int32))
    # time-major, flattened: row t*Bp + b holds x[b, t]
    x_tm = jnp.transpose(x_p, (1, 0, 2)).reshape(T * Bp, I)

    kernel = _make_kernel(T, Bp, I, H, C, Hp)
    vmem = pl.BlockSpec(memory_space=pltpu.MemorySpace.VMEM)
    args = (len_p, x_tm,
            params["wih1c"], params["bih1"], params["whh1c"], params["bhh1"],
            params["wih2c"], params["bih2"], params["whh2c"], params["bhh2"],
            params["wfcc"], params["bfc"])

    out = pl.pallas_call(
        kernel,
        out_shape=jax.ShapeDtypeStruct((Bp, Cp), jnp.float32),
        in_specs=[vmem] * len(args),
        out_specs=vmem,
        scratch_shapes=[
            pltpu.VMEM((T * Bp, 6 * Hp), jnp.float32),    # gate inputs (reused by layer 2)
            pltpu.VMEM((T * Bp, 2 * Hp), jnp.float32),    # layer-1 outputs [fwd | bwd]
            pltpu.VMEM((I, 6 * Hp), jnp.float32),         # expanded wih1 (K=8, stays f32)
            pltpu.VMEM((2 * Hp, 6 * Hp), jnp.bfloat16),   # expanded whh1 (block-diag)
            pltpu.VMEM((2 * Hp, 6 * Hp), jnp.bfloat16),   # expanded wih2
            pltpu.VMEM((2 * Hp, 6 * Hp), jnp.bfloat16),   # expanded whh2 (block-diag)
            pltpu.VMEM((2 * Hp, 128), jnp.bfloat16),      # expanded wfc
        ],
    )(*args)
    return out[:B, :C]


# ----------------------------------------------------------------------------
# Deterministic parameter init (PyTorch GRU/Linear layout, uniform(-1/sqrt(H), ..))
# ----------------------------------------------------------------------------
def init_pt_params(key, I, H, C):
    k = 1.0 / np.sqrt(H)
    keys = jax.random.split(key, 18)
    idx = 0
    pt = {}

    def u(kk, shape):
        return jax.random.uniform(kk, shape, jnp.float32, -k, k)

    for layer, in_dim in [(0, I), (1, 2 * H)]:
        for rev in (False, True):
            suf = f"l{layer}" + ("_reverse" if rev else "")
            pt[f"weight_ih_{suf}"] = u(keys[idx], (3 * H, in_dim)); idx += 1
            pt[f"weight_hh_{suf}"] = u(keys[idx], (3 * H, H)); idx += 1
            pt[f"bias_ih_{suf}"] = u(keys[idx], (3 * H,)); idx += 1
            pt[f"bias_hh_{suf}"] = u(keys[idx], (3 * H,)); idx += 1
    pt["fc_weight"] = u(keys[idx], (C, 2 * H)); idx += 1
    pt["fc_bias"] = u(keys[idx], (C,)); idx += 1
    return pt


# ----------------------------------------------------------------------------
# Pack PyTorch-layout params into COMPACT kernel params (expansion happens in-kernel)
# ----------------------------------------------------------------------------
def pack_kernel_params(pt, H, C, Hp=128):
    f32 = np.float32

    def g(name):
        return np.asarray(pt[name], f32)

    def gate_blocks(w):                       # torch (3H, K) -> (3, K, H): W[gate].T
        return np.stack([w[k * H:(k + 1) * H, :].T for k in range(3)], axis=0)

    def pad_bias_pair(bf, bb):                # two (3H,) -> (1, 6*Hp), per-gate lane groups
        out = np.zeros((1, 6 * Hp), f32)
        for d, b in enumerate((bf, bb)):
            for k in range(3):
                out[0, (d * 3 + k) * Hp:(d * 3 + k) * Hp + H] = b[k * H:(k + 1) * H]
        return out

    # layer-1 input weights: (6, I, H); block index = dir*3 + gate
    wih1c = np.concatenate([gate_blocks(g("weight_ih_l0")),
                            gate_blocks(g("weight_ih_l0_reverse"))], axis=0)
    # recurrent weights: (6, H, H); block index = dir*3 + gate
    whh1c = np.concatenate([gate_blocks(g("weight_hh_l0")),
                            gate_blocks(g("weight_hh_l0_reverse"))], axis=0)
    whh2c = np.concatenate([gate_blocks(g("weight_hh_l1")),
                            gate_blocks(g("weight_hh_l1_reverse"))], axis=0)
    # layer-2 input weights: (12, H, H); block index = input_half*6 + dir*3 + gate
    w2 = np.concatenate([gate_blocks(g("weight_ih_l1")),
                         gate_blocks(g("weight_ih_l1_reverse"))], axis=0)    # (6, 2H, H)
    wih2c = np.stack([w2[:, r * H:(r + 1) * H, :] for r in range(2)],
                     axis=0).reshape(12, H, H)
    # classifier head: (2, H, C); block r = rows r*H:(r+1)*H of fc_weight.T
    fcT = g("fc_weight").T                                                    # (2H, C)
    wfcc = np.stack([fcT[0:H], fcT[H:2 * H]], axis=0)

    bih1 = pad_bias_pair(g("bias_ih_l0"), g("bias_ih_l0_reverse"))
    bhh1 = pad_bias_pair(g("bias_hh_l0"), g("bias_hh_l0_reverse"))
    bih2 = pad_bias_pair(g("bias_ih_l1"), g("bias_ih_l1_reverse"))
    bhh2 = pad_bias_pair(g("bias_hh_l1"), g("bias_hh_l1_reverse"))
    bfc = np.zeros((1, 128), f32)
    bfc[0, :C] = g("fc_bias")

    bf16 = jnp.bfloat16
    return dict(
        wih1c=jnp.asarray(wih1c, jnp.float32),   # tiny K=8 GEMM, kept f32
        bih1=jnp.asarray(bih1),
        whh1c=jnp.asarray(whh1c, bf16), bhh1=jnp.asarray(bhh1),
        wih2c=jnp.asarray(wih2c, bf16), bih2=jnp.asarray(bih2),
        whh2c=jnp.asarray(whh2c, bf16), bhh2=jnp.asarray(bhh2),
        wfcc=jnp.asarray(wfcc, bf16), bfc=jnp.asarray(bfc),
    )


# ----------------------------------------------------------------------------
# Pure-numpy reference (packed-sequence semantics, per-sample loops, full f32)
# ----------------------------------------------------------------------------
def _sigmoid(v):
    return 1.0 / (1.0 + np.exp(-v))


def _run_dir(seq, Wih, Whh, bih, bhh, reverse):
    H = Whh.shape[1]
    h = np.zeros((H,), np.float32)
    L = seq.shape[0]
    order = range(L - 1, -1, -1) if reverse else range(L)
    outs = [None] * L
    for t in order:
        gi = seq[t] @ Wih.T + bih
        gh = h @ Whh.T + bhh
        r = _sigmoid(gi[:H] + gh[:H])
        z = _sigmoid(gi[H:2 * H] + gh[H:2 * H])
        n = np.tanh(gi[2 * H:] + r * gh[2 * H:])
        h = (1.0 - z) * n + z * h
        outs[t] = h
    return np.stack(outs), h


def ref_forward(x, lengths, pt):
    pt = {k: np.asarray(v) for k, v in pt.items()}
    B = x.shape[0]
    outs = []
    for b in range(B):
        L = int(lengths[b])
        seq = x[b, :L]
        of, _ = _run_dir(seq, pt["weight_ih_l0"], pt["weight_hh_l0"],
                         pt["bias_ih_l0"], pt["bias_hh_l0"], False)
        ob, _ = _run_dir(seq, pt["weight_ih_l0_reverse"], pt["weight_hh_l0_reverse"],
                         pt["bias_ih_l0_reverse"], pt["bias_hh_l0_reverse"], True)
        seq2 = np.concatenate([of, ob], axis=1)
        _, hf2 = _run_dir(seq2, pt["weight_ih_l1"], pt["weight_hh_l1"],
                          pt["bias_ih_l1"], pt["bias_hh_l1"], False)
        _, hb2 = _run_dir(seq2, pt["weight_ih_l1_reverse"], pt["weight_hh_l1_reverse"],
                          pt["bias_ih_l1_reverse"], pt["bias_hh_l1_reverse"], True)
        hcat = np.concatenate([hf2, hb2])
        outs.append(hcat @ pt["fc_weight"].T + pt["fc_bias"])
    return np.stack(outs).astype(np.float32)


# ----------------------------------------------------------------------------
if __name__ == "__main__":
    I, H, C = 8, 32, 4         # input_size, hidden_size, num_classes
    B, T = 2, 8                # batch, max sequence length

    key = jax.random.PRNGKey(0)
    k_param, k_x = jax.random.split(key)

    pt = init_pt_params(k_param, I, H, C)
    params = pack_kernel_params(pt, H, C)

    x = jax.random.normal(k_x, (B, T, I), jnp.float32)
    lengths = jnp.array([8, 5], dtype=jnp.int32)   # sorted descending (enforce_sorted=True)

    out = crypto_classifier_forward(x, lengths, params, H, C)
    out = jax.block_until_ready(out)

    ref = ref_forward(np.asarray(x), np.asarray(lengths), pt)
    assert out.shape == (B, C)
    # bf16 matmul operands (f32 accumulate) => relaxed tolerance vs the f32 reference
    assert np.allclose(np.asarray(out), ref, rtol=5e-2, atol=5e-2), "mismatch vs reference"

    print("KERNEL_OK")
</pallas_src>

<mosaic_0001>
module attributes {stable_mosaic.version = 11 : i64} {
  func.func @kernel(%arg0: memref<8x1xi32, #tpu.memory_space<vmem>>, %arg1: memref<64x8xf32, #tpu.memory_space<vmem>>, %arg2: memref<6x8x32xf32, #tpu.memory_space<vmem>>, %arg3: memref<1x768xf32, #tpu.memory_space<vmem>>, %arg4: memref<6x32x32xbf16, #tpu.memory_space<vmem>>, %arg5: memref<1x768xf32, #tpu.memory_space<vmem>>, %arg6: memref<12x32x32xbf16, #tpu.memory_space<vmem>>, %arg7: memref<1x768xf32, #tpu.memory_space<vmem>>, %arg8: memref<6x32x32xbf16, #tpu.memory_space<vmem>>, %arg9: memref<1x768xf32, #tpu.memory_space<vmem>>, %arg10: memref<2x32x4xbf16, #tpu.memory_space<vmem>>, %arg11: memref<1x128xf32, #tpu.memory_space<vmem>>, %arg12: memref<8x128xf32, #tpu.memory_space<vmem>>, %arg13: memref<64x768xf32, #tpu.memory_space<vmem>>, %arg14: memref<64x256xf32, #tpu.memory_space<vmem>>, %arg15: memref<8x768xf32, #tpu.memory_space<vmem>>, %arg16: memref<256x768xbf16, #tpu.memory_space<vmem>>, %arg17: memref<256x768xbf16, #tpu.memory_space<vmem>>, %arg18: memref<256x768xbf16, #tpu.memory_space<vmem>>, %arg19: memref<256x128xbf16, #tpu.memory_space<vmem>>) attributes {dimension_semantics = [], scalar_prefetch = 0 : i64, scratch_operands = 7 : i64, tpu.core_type = #tpu.core_type<tc>} {
    %cst = arith.constant 0.000000e+00 : f32
    %0 = vector.broadcast %cst : f32 to vector<8x768xf32>
    %c0 = arith.constant 0 : index
    %c0_0 = arith.constant 0 : index
    %1 = vector.load %arg15[%c0, %c0_0] : memref<8x768xf32, #tpu.memory_space<vmem>>, vector<8x768xf32>
    tpu.vector_store %arg15[%c0, %c0_0], %0 {strides = array<i32>} : memref<8x768xf32, #tpu.memory_space<vmem>>, vector<8x768xf32>,
    %cst_1 = arith.constant 0.000000e+00 : bf16
    %2 = vector.broadcast %cst_1 : bf16 to vector<256x768xbf16>
    %c0_2 = arith.constant 0 : index
    %c0_3 = arith.constant 0 : index
    %3 = vector.load %arg16[%c0_2, %c0_3] : memref<256x768xbf16, #tpu.memory_space<vmem>>, vector<256x768xbf16>
    tpu.vector_store %arg16[%c0_2, %c0_3], %2 {strides = array<i32>} : memref<256x768xbf16, #tpu.memory_space<vmem>>, vector<256x768xbf16>,
    %cst_4 = arith.constant 0.000000e+00 : bf16
    %4 = vector.broadcast %cst_4 : bf16 to vector<256x768xbf16>
    %c0_5 = arith.constant 0 : index
    %c0_6 = arith.constant 0 : index
    %5 = vector.load %arg17[%c0_5, %c0_6] : memref<256x768xbf16, #tpu.memory_space<vmem>>, vector<256x768xbf16>
    tpu.vector_store %arg17[%c0_5, %c0_6], %4 {strides = array<i32>} : memref<256x768xbf16, #tpu.memory_space<vmem>>, vector<256x768xbf16>,
    %cst_7 = arith.constant 0.000000e+00 : bf16
    %6 = vector.broadcast %cst_7 : bf16 to vector<256x768xbf16>
    %c0_8 = arith.constant 0 : index
    %c0_9 = arith.constant 0 : index
    %7 = vector.load %arg18[%c0_8, %c0_9] : memref<256x768xbf16, #tpu.memory_space<vmem>>, vector<256x768xbf16>
    tpu.vector_store %arg18[%c0_8, %c0_9], %6 {strides = array<i32>} : memref<256x768xbf16, #tpu.memory_space<vmem>>, vector<256x768xbf16>,
    %cst_10 = arith.constant 0.000000e+00 : bf16
    %8 = vector.broadcast %cst_10 : bf16 to vector<256x128xbf16>
    %c0_11 = arith.constant 0 : index
    %c0_12 = arith.constant 0 : index
    %9 = vector.load %arg19[%c0_11, %c0_12] : memref<256x128xbf16, #tpu.memory_space<vmem>>, vector<256x128xbf16>
    tpu.vector_store %arg19[%c0_11, %c0_12], %8 {strides = array<i32>} : memref<256x128xbf16, #tpu.memory_space<vmem>>, vector<256x128xbf16>,
    %c0_13 = arith.constant 0 : index
    %c0_14 = arith.constant 0 : index
    %c0_15 = arith.constant 0 : index
    %10 = vector.load %arg2[%c0_13, %c0_14, %c0_15] : memref<6x8x32xf32, #tpu.memory_space<vmem>>, vector<1x8x32xf32>
    %11 = vector.shape_cast %10 : vector<1x8x32xf32> to vector<8x32xf32>
    %c0_16 = arith.constant 0 : index
    %c0_17 = arith.constant 0 : index
    %12 = vector.load %arg15[%c0_16, %c0_17] : memref<8x768xf32, #tpu.memory_space<vmem>>, vector<8x32xf32>
    tpu.vector_store %arg15[%c0_16, %c0_17], %11 {strides = array<i32>} : memref<8x768xf32, #tpu.memory_space<vmem>>, vector<8x32xf32>,
    %c0_18 = arith.constant 0 : index
    %c0_19 = arith.constant 0 : index
    %c0_20 = arith.constant 0 : index
    %13 = vector.load %arg4[%c0_18, %c0_19, %c0_20] : memref<6x32x32xbf16, #tpu.memory_space<vmem>>, vector<1x32x32xbf16>
    %14 = vector.shape_cast %13 : vector<1x32x32xbf16> to vector<32x32xbf16>
    %c0_21 = arith.constant 0 : index
    %c0_22 = arith.constant 0 : index
    %15 = vector.load %arg16[%c0_21, %c0_22] : memref<256x768xbf16, #tpu.memory_space<vmem>>, vector<32x32xbf16>
    tpu.vector_store %arg16[%c0_21, %c0_22], %14 {strides = array<i32>} : memref<256x768xbf16, #tpu.memory_space<vmem>>, vector<32x32xbf16>,
    %c0_23 = arith.constant 0 : index
    %c0_24 = arith.constant 0 : index
    %c0_25 = arith.constant 0 : index
    %16 = vector.load %arg8[%c0_23, %c0_24, %c0_25] : memref<6x32x32xbf16, #tpu.memory_space<vmem>>, vector<1x32x32xbf16>
    %17 = vector.shape_cast %16 : vector<1x32x32xbf16> to vector<32x32xbf16>
    %c0_26 = arith.constant 0 : index
    %c0_27 = arith.constant 0 : index
    %18 = vector.load %arg18[%c0_26, %c0_27] : memref<256x768xbf16, #tpu.memory_space<vmem>>, vector<32x32xbf16>
    tpu.vector_store %arg18[%c0_26, %c0_27], %17 {strides = array<i32>} : memref<256x768xbf16, #tpu.memory_space<vmem>>, vector<32x32xbf16>,
    %c0_28 = arith.constant 0 : index
    %c0_29 = arith.constant 0 : index
    %c0_30 = arith.constant 0 : index
    %19 = vector.load %arg6[%c0_28, %c0_29, %c0_30] : memref<12x32x32xbf16, #tpu.memory_space<vmem>>, vector<1x32x32xbf16>
    %20 = vector.shape_cast %19 : vector<1x32x32xbf16> to vector<32x32xbf16>
    %c0_31 = arith.constant 0 : index
    %c0_32 = arith.constant 0 : index
    %21 = vector.load %arg17[%c0_31, %c0_32] : memref<256x768xbf16, #tpu.memory_space<vmem>>, vector<32x32xbf16>
    tpu.vector_store %arg17[%c0_31, %c0_32], %20 {strides = array<i32>} : memref<256x768xbf16, #tpu.memory_space<vmem>>, vector<32x32xbf16>,
    %c6 = arith.constant 6 : index
    %c0_33 = arith.constant 0 : index
    %c0_34 = arith.constant 0 : index
    %22 = vector.load %arg6[%c6, %c0_33, %c0_34] : memref<12x32x32xbf16, #tpu.memory_space<vmem>>, vector<1x32x32xbf16>
    %23 = vector.shape_cast %22 : vector<1x32x32xbf16> to vector<32x32xbf16>
    %c128 = arith.constant 128 : index
    %c0_35 = arith.constant 0 : index
    %24 = vector.load %arg17[%c128, %c0_35] : memref<256x768xbf16, #tpu.memory_space<vmem>>, vector<32x32xbf16>
    tpu.vector_store %arg17[%c128, %c0_35], %23 {strides = array<i32>} : memref<256x768xbf16, #tpu.memory_space<vmem>>, vector<32x32xbf16>,
    %c1 = arith.constant 1 : index
    %c0_36 = arith.constant 0 : index
    %c0_37 = arith.constant 0 : index
    %25 = vector.load %arg2[%c1, %c0_36, %c0_37] : memref<6x8x32xf32, #tpu.memory_space<vmem>>, vector<1x8x32xf32>
    %26 = vector.shape_cast %25 : vector<1x8x32xf32> to vector<8x32xf32>
    %c0_38 = arith.constant 0 : index
    %c128_39 = arith.constant 128 : index
    %27 = vector.load %arg15[%c0_38, %c128_39] : memref<8x768xf32, #tpu.memory_space<vmem>>, vector<8x32xf32>
    tpu.vector_store %arg15[%c0_38, %c128_39], %26 {strides = array<i32>} : memref<8x768xf32, #tpu.memory_space<vmem>>, vector<8x32xf32>,
    %c1_40 = arith.constant 1 : index
    %c0_41 = arith.constant 0 : index
    %c0_42 = arith.constant 0 : index
    %28 = vector.load %arg4[%c1_40, %c0_41, %c0_42] : memref<6x32x32xbf16, #tpu.memory_space<vmem>>, vector<1x32x32xbf16>
    %29 = vector.shape_cast %28 : vector<1x32x32xbf16> to vector<32x32xbf16>
    %c0_43 = arith.constant 0 : index
    %c128_44 = arith.constant 128 : index
    %30 = vector.load %arg16[%c0_43, %c128_44] : memref<256x768xbf16, #tpu.memory_space<vmem>>, vector<32x32xbf16>
    tpu.vector_store %arg16[%c0_43, %c128_44], %29 {strides = array<i32>} : memref<256x768xbf16, #tpu.memory_space<vmem>>, vector<32x32xbf16>,
    %c1_45 = arith.constant 1 : index
    %c0_46 = arith.constant 0 : index
    %c0_47 = arith.constant 0 : index
    %31 = vector.load %arg8[%c1_45, %c0_46, %c0_47] : memref<6x32x32xbf16, #tpu.memory_space<vmem>>, vector<1x32x32xbf16>
    %32 = vector.shape_cast %31 : vector<1x32x32xbf16> to vector<32x32xbf16>
    %c0_48 = arith.constant 0 : index
    %c128_49 = arith.constant 128 : index
    %33 = vector.load %arg18[%c0_48, %c128_49] : memref<256x768xbf16, #tpu.memory_space<vmem>>, vector<32x32xbf16>
    tpu.vector_store %arg18[%c0_48, %c128_49], %32 {strides = array<i32>} : memref<256x768xbf16, #tpu.memory_space<vmem>>, vector<32x32xbf16>,
    %c1_50 = arith.constant 1 : index
    %c0_51 = arith.constant 0 : index
    %c0_52 = arith.constant 0 : index
    %34 = vector.load %arg6[%c1_50, %c0_51, %c0_52] : memref<12x32x32xbf16, #tpu.memory_space<vmem>>, vector<1x32x32xbf16>
    %35 = vector.shape_cast %34 : vector<1x32x32xbf16> to vector<32x32xbf16>
    %c0_53 = arith.constant 0 : index
    %c128_54 = arith.constant 128 : index
    %36 = vector.load %arg17[%c0_53, %c128_54] : memref<256x768xbf16, #tpu.memory_space<vmem>>, vector<32x32xbf16>
    tpu.vector_store %arg17[%c0_53, %c128_54], %35 {strides = array<i32>} : memref<256x768xbf16, #tpu.memory_space<vmem>>, vector<32x32xbf16>,
    %c7 = arith.constant 7 : index
    %c0_55 = arith.constant 0 : index
    %c0_56 = arith.constant 0 : index
    %37 = vector.load %arg6[%c7, %c0_55, %c0_56] : memref<12x32x32xbf16, #tpu.memory_space<vmem>>, vector<1x32x32xbf16>
    %38 = vector.shape_cast %37 : vector<1x32x32xbf16> to vector<32x32xbf16>
    %c128_57 = arith.constant 128 : index
    %c128_58 = arith.constant 128 : index
    %39 = vector.load %arg17[%c128_57, %c128_58] : memref<256x768xbf16, #tpu.memory_space<vmem>>, vector<32x32xbf16>
    tpu.vector_store %arg17[%c128_57, %c128_58], %38 {strides = array<i32>} : memref<256x768xbf16, #tpu.memory_space<vmem>>, vector<32x32xbf16>,
    %c2 = arith.constant 2 : index
    %c0_59 = arith.constant 0 : index
    %c0_60 = arith.constant 0 : index
    %40 = vector.load %arg2[%c2, %c0_59, %c0_60] : memref<6x8x32xf32, #tpu.memory_space<vmem>>, vector<1x8x32xf32>
    %41 = vector.shape_cast %40 : vector<1x8x32xf32> to vector<8x32xf32>
    %c0_61 = arith.constant 0 : index
    %c256 = arith.constant 256 : index
    %42 = vector.load %arg15[%c0_61, %c256] : memref<8x768xf32, #tpu.memory_space<vmem>>, vector<8x32xf32>
    tpu.vector_store %arg15[%c0_61, %c256], %41 {strides = array<i32>} : memref<8x768xf32, #tpu.memory_space<vmem>>, vector<8x32xf32>,
    %c2_62 = arith.constant 2 : index
    %c0_63 = arith.constant 0 : index
    %c0_64 = arith.constant 0 : index
    %43 = vector.load %arg4[%c2_62, %c0_63, %c0_64] : memref<6x32x32xbf16, #tpu.memory_space<vmem>>, vector<1x32x32xbf16>
    %44 = vector.shape_cast %43 : vector<1x32x32xbf16> to vector<32x32xbf16>
    %c0_65 = arith.constant 0 : index
    %c256_66 = arith.constant 256 : index
    %45 = vector.load %arg16[%c0_65, %c256_66] : memref<256x768xbf16, #tpu.memory_space<vmem>>, vector<32x32xbf16>
    tpu.vector_store %arg16[%c0_65, %c256_66], %44 {strides = array<i32>} : memref<256x768xbf16, #tpu.memory_space<vmem>>, vector<32x32xbf16>,
    %c2_67 = arith.constant 2 : index
    %c0_68 = arith.constant 0 : index
    %c0_69 = arith.constant 0 : index
    %46 = vector.load %arg8[%c2_67, %c0_68, %c0_69] : memref<6x32x32xbf16, #tpu.memory_space<vmem>>, vector<1x32x32xbf16>
    %47 = vector.shape_cast %46 : vector<1x32x32xbf16> to vector<32x32xbf16>
    %c0_70 = arith.constant 0 : index
    %c256_71 = arith.constant 256 : index
    %48 = vector.load %arg18[%c0_70, %c256_71] : memref<256x768xbf16, #tpu.memory_space<vmem>>, vector<32x32xbf16>
    tpu.vector_store %arg18[%c0_70, %c256_71], %47 {strides = array<i32>} : memref<256x768xbf16, #tpu.memory_space<vmem>>, vector<32x32xbf16>,
    %c2_72 = arith.constant 2 : index
    %c0_73 = arith.constant 0 : index
    %c0_74 = arith.constant 0 : index
    %49 = vector.load %arg6[%c2_72, %c0_73, %c0_74] : memref<12x32x32xbf16, #tpu.memory_space<vmem>>, vector<1x32x32xbf16>
    %50 = vector.shape_cast %49 : vector<1x32x32xbf16> to vector<32x32xbf16>
    %c0_75 = arith.constant 0 : index
    %c256_76 = arith.constant 256 : index
    %51 = vector.load %arg17[%c0_75, %c256_76] : memref<256x768xbf16, #tpu.memory_space<vmem>>, vector<32x32xbf16>
    tpu.vector_store %arg17[%c0_75, %c256_76], %50 {strides = array<i32>} : memref<256x768xbf16, #tpu.memory_space<vmem>>, vector<32x32xbf16>,
    %c8 = arith.constant 8 : index
    %c0_77 = arith.constant 0 : index
    %c0_78 = arith.constant 0 : index
    %52 = vector.load %arg6[%c8, %c0_77, %c0_78] : memref<12x32x32xbf16, #tpu.memory_space<vmem>>, vector<1x32x32xbf16>
    %53 = vector.shape_cast %52 : vector<1x32x32xbf16> to vector<32x32xbf16>
    %c128_79 = arith.constant 128 : index
    %c256_80 = arith.constant 256 : index
    %54 = vector.load %arg17[%c128_79, %c256_80] : memref<256x768xbf16, #tpu.memory_space<vmem>>, vector<32x32xbf16>
    tpu.vector_store %arg17[%c128_79, %c256_80], %53 {strides = array<i32>} : memref<256x768xbf16, #tpu.memory_space<vmem>>, vector<32x32xbf16>,
    %c3 = arith.constant 3 : index
    %c0_81 = arith.constant 0 : index
    %c0_82 = arith.constant 0 : index
    %55 = vector.load %arg2[%c3, %c0_81, %c0_82] : memref<6x8x32xf32, #tpu.memory_space<vmem>>, vector<1x8x32xf32>
    %56 = vector.shape_cast %55 : vector<1x8x32xf32> to vector<8x32xf32>
    %c0_83 = arith.constant 0 : index
    %c384 = arith.constant 384 : index
    %57 = vector.load %arg15[%c0_83, %c384] : memref<8x768xf32, #tpu.memory_space<vmem>>, vector<8x32xf32>
    tpu.vector_store %arg15[%c0_83, %c384], %56 {strides = array<i32>} : memref<8x768xf32, #tpu.memory_space<vmem>>, vector<8x32xf32>,
    %c3_84 = arith.constant 3 : index
    %c0_85 = arith.constant 0 : index
    %c0_86 = arith.constant 0 : index
    %58 = vector.load %arg4[%c3_84, %c0_85, %c0_86] : memref<6x32x32xbf16, #tpu.memory_space<vmem>>, vector<1x32x32xbf16>
    %59 = vector.shape_cast %58 : vector<1x32x32xbf16> to vector<32x32xbf16>
    %c128_87 = arith.constant 128 : index
    %c384_88 = arith.constant 384 : index
    %60 = vector.load %arg16[%c128_87, %c384_88] : memref<256x768xbf16, #tpu.memory_space<vmem>>, vector<32x32xbf16>
    tpu.vector_store %arg16[%c128_87, %c384_88], %59 {strides = array<i32>} : memref<256x768xbf16, #tpu.memory_space<vmem>>, vector<32x32xbf16>,
    %c3_89 = arith.constant 3 : index
    %c0_90 = arith.constant 0 : index
    %c0_91 = arith.constant 0 : index
    %61 = vector.load %arg8[%c3_89, %c0_90, %c0_91] : memref<6x32x32xbf16, #tpu.memory_space<vmem>>, vector<1x32x32xbf16>
    %62 = vector.shape_cast %61 : vector<1x32x32xbf16> to vector<32x32xbf16>
    %c128_92 = arith.constant 128 : index
    %c384_93 = arith.constant 384 : index
    %63 = vector.load %arg18[%c128_92, %c384_93] : memref<256x768xbf16, #tpu.memory_space<vmem>>, vector<32x32xbf16>
    tpu.vector_store %arg18[%c128_92, %c384_93], %62 {strides = array<i32>} : memref<256x768xbf16, #tpu.memory_space<vmem>>, vector<32x32xbf16>,
    %c3_94 = arith.constant 3 : index
    %c0_95 = arith.constant 0 : index
    %c0_96 = arith.constant 0 : index
    %64 = vector.load %arg6[%c3_94, %c0_95, %c0_96] : memref<12x32x32xbf16, #tpu.memory_space<vmem>>, vector<1x32x32xbf16>
    %65 = vector.shape_cast %64 : vector<1x32x32xbf16> to vector<32x32xbf16>
    %c0_97 = arith.constant 0 : index
    %c384_98 = arith.constant 384 : index
    %66 = vector.load %arg17[%c0_97, %c384_98] : memref<256x768xbf16, #tpu.memory_space<vmem>>, vector<32x32xbf16>
    tpu.vector_store %arg17[%c0_97, %c384_98], %65 {strides = array<i32>} : memref<256x768xbf16, #tpu.memory_space<vmem>>, vector<32x32xbf16>,
    %c9 = arith.constant 9 : index
    %c0_99 = arith.constant 0 : index
    %c0_100 = arith.constant 0 : index
    %67 = vector.load %arg6[%c9, %c0_99, %c0_100] : memref<12x32x32xbf16, #tpu.memory_space<vmem>>, vector<1x32x32xbf16>
    %68 = vector.shape_cast %67 : vector<1x32x32xbf16> to vector<32x32xbf16>
    %c128_101 = arith.constant 128 : index
    %c384_102 = arith.constant 384 : index
    %69 = vector.load %arg17[%c128_101, %c384_102] : memref<256x768xbf16, #tpu.memory_space<vmem>>, vector<32x32xbf16>
    tpu.vector_store %arg17[%c128_101, %c384_102], %68 {strides = array<i32>} : memref<256x768xbf16, #tpu.memory_space<vmem>>, vector<32x32xbf16>,
    %c4 = arith.constant 4 : index
    %c0_103 = arith.constant 0 : index
    %c0_104 = arith.constant 0 : index
    %70 = vector.load %arg2[%c4, %c0_103, %c0_104] : memref<6x8x32xf32, #tpu.memory_space<vmem>>, vector<1x8x32xf32>
    %71 = vector.shape_cast %70 : vector<1x8x32xf32> to vector<8x32xf32>
    %c0_105 = arith.constant 0 : index
    %c512 = arith.constant 512 : index
    %72 = vector.load %arg15[%c0_105, %c512] : memref<8x768xf32, #tpu.memory_space<vmem>>, vector<8x32xf32>
    tpu.vector_store %arg15[%c0_105, %c512], %71 {strides = array<i32>} : memref<8x768xf32, #tpu.memory_space<vmem>>, vector<8x32xf32>,
    %c4_106 = arith.constant 4 : index
    %c0_107 = arith.constant 0 : index
    %c0_108 = arith.constant 0 : index
    %73 = vector.load %arg4[%c4_106, %c0_107, %c0_108] : memref<6x32x32xbf16, #tpu.memory_space<vmem>>, vector<1x32x32xbf16>
    %74 = vector.shape_cast %73 : vector<1x32x32xbf16> to vector<32x32xbf16>
    %c128_109 = arith.constant 128 : index
    %c512_110 = arith.constant 512 : index
    %75 = vector.load %arg16[%c128_109, %c512_110] : memref<256x768xbf16, #tpu.memory_space<vmem>>, vector<32x32xbf16>
    tpu.vector_store %arg16[%c128_109, %c512_110], %74 {strides = array<i32>} : memref<256x768xbf16, #tpu.memory_space<vmem>>, vector<32x32xbf16>,
    %c4_111 = arith.constant 4 : index
    %c0_112 = arith.constant 0 : index
    %c0_113 = arith.constant 0 : index
    %76 = vector.load %arg8[%c4_111, %c0_112, %c0_113] : memref<6x32x32xbf16, #tpu.memory_space<vmem>>, vector<1x32x32xbf16>
    %77 = vector.shape_cast %76 : vector<1x32x32xbf16> to vector<32x32xbf16>
    %c128_114 = arith.constant 128 : index
    %c512_115 = arith.constant 512 : index
    %78 = vector.load %arg18[%c128_114, %c512_115] : memref<256x768xbf16, #tpu.memory_space<vmem>>, vector<32x32xbf16>
    tpu.vector_store %arg18[%c128_114, %c512_115], %77 {strides = array<i32>} : memref<256x768xbf16, #tpu.memory_space<vmem>>, vector<32x32xbf16>,
    %c4_116 = arith.constant 4 : index
    %c0_117 = arith.constant 0 : index
    %c0_118 = arith.constant 0 : index
    %79 = vector.load %arg6[%c4_116, %c0_117, %c0_118] : memref<12x32x32xbf16, #tpu.memory_space<vmem>>, vector<1x32x32xbf16>
    %80 = vector.shape_cast %79 : vector<1x32x32xbf16> to vector<32x32xbf16>
    %c0_119 = arith.constant 0 : index
    %c512_120 = arith.constant 512 : index
    %81 = vector.load %arg17[%c0_119, %c512_120] : memref<256x768xbf16, #tpu.memory_space<vmem>>, vector<32x32xbf16>
    tpu.vector_store %arg17[%c0_119, %c512_120], %80 {strides = array<i32>} : memref<256x768xbf16, #tpu.memory_space<vmem>>, vector<32x32xbf16>,
    %c10 = arith.constant 10 : index
    %c0_121 = arith.constant 0 : index
    %c0_122 = arith.constant 0 : index
    %82 = vector.load %arg6[%c10, %c0_121, %c0_122] : memref<12x32x32xbf16, #tpu.memory_space<vmem>>, vector<1x32x32xbf16>
    %83 = vector.shape_cast %82 : vector<1x32x32xbf16> to vector<32x32xbf16>
    %c128_123 = arith.constant 128 : index
    %c512_124 = arith.constant 512 : index
    %84 = vector.load %arg17[%c128_123, %c512_124] : memref<256x768xbf16, #tpu.memory_space<vmem>>, vector<32x32xbf16>
    tpu.vector_store %arg17[%c128_123, %c512_124], %83 {strides = array<i32>} : memref<256x768xbf16, #tpu.memory_space<vmem>>, vector<32x32xbf16>,
    %c5 = arith.constant 5 : index
    %c0_125 = arith.constant 0 : index
    %c0_126 = arith.constant 0 : index
    %85 = vector.load %arg2[%c5, %c0_125, %c0_126] : memref<6x8x32xf32, #tpu.memory_space<vmem>>, vector<1x8x32xf32>
    %86 = vector.shape_cast %85 : vector<1x8x32xf32> to vector<8x32xf32>
    %c0_127 = arith.constant 0 : index
    %c640 = arith.constant 640 : index
    %87 = vector.load %arg15[%c0_127, %c640] : memref<8x768xf32, #tpu.memory_space<vmem>>, vector<8x32xf32>
    tpu.vector_store %arg15[%c0_127, %c640], %86 {strides = array<i32>} : memref<8x768xf32, #tpu.memory_space<vmem>>, vector<8x32xf32>,
    %c5_128 = arith.constant 5 : index
    %c0_129 = arith.constant 0 : index
    %c0_130 = arith.constant 0 : index
    %88 = vector.load %arg4[%c5_128, %c0_129, %c0_130] : memref<6x32x32xbf16, #tpu.memory_space<vmem>>, vector<1x32x32xbf16>
    %89 = vector.shape_cast %88 : vector<1x32x32xbf16> to vector<32x32xbf16>
    %c128_131 = arith.constant 128 : index
    %c640_132 = arith.constant 640 : index
    %90 = vector.load %arg16[%c128_131, %c640_132] : memref<256x768xbf16, #tpu.memory_space<vmem>>, vector<32x32xbf16>
    tpu.vector_store %arg16[%c128_131, %c640_132], %89 {strides = array<i32>} : memref<256x768xbf16, #tpu.memory_space<vmem>>, vector<32x32xbf16>,
    %c5_133 = arith.constant 5 : index
    %c0_134 = arith.constant 0 : index
    %c0_135 = arith.constant 0 : index
    %91 = vector.load %arg8[%c5_133, %c0_134, %c0_135] : memref<6x32x32xbf16, #tpu.memory_space<vmem>>, vector<1x32x32xbf16>
    %92 = vector.shape_cast %91 : vector<1x32x32xbf16> to vector<32x32xbf16>
    %c128_136 = arith.constant 128 : index
    %c640_137 = arith.constant 640 : index
    %93 = vector.load %arg18[%c128_136, %c640_137] : memref<256x768xbf16, #tpu.memory_space<vmem>>, vector<32x32xbf16>
    tpu.vector_store %arg18[%c128_136, %c640_137], %92 {strides = array<i32>} : memref<256x768xbf16, #tpu.memory_space<vmem>>, vector<32x32xbf16>,
    %c5_138 = arith.constant 5 : index
    %c0_139 = arith.constant 0 : index
    %c0_140 = arith.constant 0 : index
    %94 = vector.load %arg6[%c5_138, %c0_139, %c0_140] : memref<12x32x32xbf16, #tpu.memory_space<vmem>>, vector<1x32x32xbf16>
    %95 = vector.shape_cast %94 : vector<1x32x32xbf16> to vector<32x32xbf16>
    %c0_141 = arith.constant 0 : index
    %c640_142 = arith.constant 640 : index
    %96 = vector.load %arg17[%c0_141, %c640_142] : memref<256x768xbf16, #tpu.memory_space<vmem>>, vector<32x32xbf16>
    tpu.vector_store %arg17[%c0_141, %c640_142], %95 {strides = array<i32>} : memref<256x768xbf16, #tpu.memory_space<vmem>>, vector<32x32xbf16>,
    %c11 = arith.constant 11 : index
    %c0_143 = arith.constant 0 : index
    %c0_144 = arith.constant 0 : index
    %97 = vector.load %arg6[%c11, %c0_143, %c0_144] : memref<12x32x32xbf16, #tpu.memory_space<vmem>>, vector<1x32x32xbf16>
    %98 = vector.shape_cast %97 : vector<1x32x32xbf16> to vector<32x32xbf16>
    %c128_145 = arith.constant 128 : index
    %c640_146 = arith.constant 640 : index
    %99 = vector.load %arg17[%c128_145, %c640_146] : memref<256x768xbf16, #tpu.memory_space<vmem>>, vector<32x32xbf16>
    tpu.vector_store %arg17[%c128_145, %c640_146], %98 {strides = array<i32>} : memref<256x768xbf16, #tpu.memory_space<vmem>>, vector<32x32xbf16>,
    %c0_147 = arith.constant 0 : index
    %c0_148 = arith.constant 0 : index
    %c0_149 = arith.constant 0 : index
    %100 = vector.load %arg10[%c0_147, %c0_148, %c0_149] : memref<2x32x4xbf16, #tpu.memory_space<vmem>>, vector<1x32x4xbf16>
    %101 = vector.shape_cast %100 : vector<1x32x4xbf16> to vector<32x4xbf16>
    %c0_150 = arith.constant 0 : index
    %c0_151 = arith.constant 0 : index
    %102 = vector.load %arg19[%c0_150, %c0_151] : memref<256x128xbf16, #tpu.memory_space<vmem>>, vector<32x4xbf16>
    tpu.vector_store %arg19[%c0_150, %c0_151], %101 {strides = array<i32>} : memref<256x128xbf16, #tpu.memory_space<vmem>>, vector<32x4xbf16>,
    %c1_152 = arith.constant 1 : index
    %c0_153 = arith.constant 0 : index
    %c0_154 = arith.constant 0 : index
    %103 = vector.load %arg10[%c1_152, %c0_153, %c0_154] : memref<2x32x4xbf16, #tpu.memory_space<vmem>>, vector<1x32x4xbf16>
    %104 = vector.shape_cast %103 : vector<1x32x4xbf16> to vector<32x4xbf16>
    %c128_155 = arith.constant 128 : index
    %c0_156 = arith.constant 0 : index
    %105 = vector.load %arg19[%c128_155, %c0_156] : memref<256x128xbf16, #tpu.memory_space<vmem>>, vector<32x4xbf16>
    tpu.vector_store %arg19[%c128_155, %c0_156], %104 {strides = array<i32>} : memref<256x128xbf16, #tpu.memory_space<vmem>>, vector<32x4xbf16>,
    %c0_157 = arith.constant 0 : index
    %c0_158 = arith.constant 0 : index
    %106 = vector.load %arg0[%c0_157, %c0_158] : memref<8x1xi32, #tpu.memory_space<vmem>>, vector<8x1xi32>
    %c0_i32 = arith.constant 0 : i32
    %107 = vector.broadcast %c0_i32 : i32 to vector<8x1xi32>
    %108 = arith.cmpi sgt, %106, %107 : vector<8x1xi32>
    %109 = vector.shape_cast %108 : vector<8x1xi1> to vector<8x1xi1>
    %110 = vector.broadcast %109 : vector<8x1xi1> to vector<8x128xi1>
    %c1_i32 = arith.constant 1 : i32
    %111 = vector.broadcast %c1_i32 : i32 to vector<8x1xi32>
    %112 = arith.cmpi sgt, %106, %111 : vector<8x1xi32>
    %113 = vector.shape_cast %112 : vector<8x1xi1> to vector<8x1xi1>
    %114 = vector.broadcast %113 : vector<8x1xi1> to vector<8x128xi1>
    %c2_i32 = arith.constant 2 : i32
    %115 = vector.broadcast %c2_i32 : i32 to vector<8x1xi32>
    %116 = arith.cmpi sgt, %106, %115 : vector<8x1xi32>
    %117 = vector.shape_cast %116 : vector<8x1xi1> to vector<8x1xi1>
    %118 = vector.broadcast %117 : vector<8x1xi1> to vector<8x128xi1>
    %c3_i32 = arith.constant 3 : i32
    %119 = vector.broadcast %c3_i32 : i32 to vector<8x1xi32>
    %120 = arith.cmpi sgt, %106, %119 : vector<8x1xi32>
    %121 = vector.shape_cast %120 : vector<8x1xi1> to vector<8x1xi1>
    %122 = vector.broadcast %121 : vector<8x1xi1> to vector<8x128xi1>
    %c4_i32 = arith.constant 4 : i32
    %123 = vector.broadcast %c4_i32 : i32 to vector<8x1xi32>
    %124 = arith.cmpi sgt, %106, %123 : vector<8x1xi32>
    %125 = vector.shape_cast %124 : vector<8x1xi1> to vector<8x1xi1>
    %126 = vector.broadcast %125 : vector<8x1xi1> to vector<8x128xi1>
    %c5_i32 = arith.constant 5 : i32
    %127 = vector.broadcast %c5_i32 : i32 to vector<8x1xi32>
    %128 = arith.cmpi sgt, %106, %127 : vector<8x1xi32>
    %129 = vector.shape_cast %128 : vector<8x1xi1> to vector<8x1xi1>
    %130 = vector.broadcast %129 : vector<8x1xi1> to vector<8x128xi1>
    %c6_i32 = arith.constant 6 : i32
    %131 = vector.broadcast %c6_i32 : i32 to vector<8x1xi32>
    %132 = arith.cmpi sgt, %106, %131 : vector<8x1xi32>
    %133 = vector.shape_cast %132 : vector<8x1xi1> to vector<8x1xi1>
    %134 = vector.broadcast %133 : vector<8x1xi1> to vector<8x128xi1>
    %c7_i32 = arith.constant 7 : i32
    %135 = vector.broadcast %c7_i32 : i32 to vector<8x1xi32>
    %136 = arith.cmpi sgt, %106, %135 : vector<8x1xi32>
    %137 = vector.shape_cast %136 : vector<8x1xi1> to vector<8x1xi1>
    %138 = vector.broadcast %137 : vector<8x1xi1> to vector<8x128xi1>
    %c0_159 = arith.constant 0 : index
    %c0_160 = arith.constant 0 : index
    %139 = vector.load %arg5[%c0_159, %c0_160] : memref<1x768xf32, #tpu.memory_space<vmem>>, vector<1x768xf32>
    %140 = vector.shape_cast %139 : vector<1x768xf32> to vector<1x768xf32>
    %141 = vector.broadcast %140 : vector<1x768xf32> to vector<8x768xf32>
    %c0_161 = arith.constant 0 : index
    %c0_162 = arith.constant 0 : index
    %142 = vector.load %arg1[%c0_161, %c0_162] : memref<64x8xf32, #tpu.memory_space<vmem>>, vector<64x8xf32>
    %c0_163 = arith.constant 0 : index
    %c0_164 = arith.constant 0 : index
    %143 = vector.load %arg15[%c0_163, %c0_164] : memref<8x768xf32, #tpu.memory_space<vmem>>, vector<8x768xf32>
    %cst_165 = arith.constant dense<0.000000e+00> : vector<64x768xf32>
    %144 = tpu.matmul %142, %143, %cst_165 {dimension_numbers = #tpu.dot_dimension_numbers<[1], [0], [0], [1], [0, 0, 1, 1], [], []>} : vector<64x8xf32>, vector<8x768xf32>, vector<64x768xf32> -> vector<64x768xf32>
    %c0_166 = arith.constant 0 : index
    %c0_167 = arith.constant 0 : index
    %145 = vector.load %arg3[%c0_166, %c0_167] : memref<1x768xf32, #tpu.memory_space<vmem>>, vector<1x768xf32>
    %146 = vector.broadcast %145 : vector<1x768xf32> to vector<64x768xf32>
    %147 = arith.addf %144, %146 : vector<64x768xf32>
    %c0_168 = arith.constant 0 : index
    %c0_169 = arith.constant 0 : index
    %148 = vector.load %arg13[%c0_168, %c0_169] : memref<64x768xf32, #tpu.memory_space<vmem>>, vector<64x768xf32>
    tpu.vector_store %arg13[%c0_168, %c0_169], %147 {strides = array<i32>} : memref<64x768xf32, #tpu.memory_space<vmem>>, vector<64x768xf32>,
    %c0_170 = arith.constant 0 : index
    %c0_171 = arith.constant 0 : index
    %149 = vector.load %arg16[%c0_170, %c0_171] : memref<256x768xbf16, #tpu.memory_space<vmem>>, vector<256x768xbf16>
    %cst_172 = arith.constant 0.000000e+00 : f32
    %150 = vector.broadcast %cst_172 : f32 to vector<8x128xf32>
    %cst_173 = arith.constant 0.000000e+00 : f32
    %151 = vector.broadcast %cst_173 : f32 to vector<8x128xf32>
    %152 = tpu.concatenate %150, %151 in 1 : vector<8x128xf32>, vector<8x128xf32> -> vector<8x256xf32>
    %153 = arith.truncf %152 : vector<8x256xf32> to vector<8x256xbf16>
    %cst_174 = arith.constant dense<0.000000e+00> : vector<8x768xf32>
    %154 = tpu.matmul %153, %149, %cst_174 {dimension_numbers = #tpu.dot_dimension_numbers<[1], [0], [0], [1], [0, 0, 1, 1], [], []>} : vector<8x256xbf16>, vector<256x768xbf16>, vector<8x768xf32> -> vector<8x768xf32>
    %155 = arith.addf %154, %141 : vector<8x768xf32>
    %c0_175 = arith.constant 0 : index
    %c0_176 = arith.constant 0 : index
    %156 = vector.load %arg13[%c0_175, %c0_176] : memref<64x768xf32, #tpu.memory_space<vmem>>, vector<8x384xf32>
    %c56 = arith.constant 56 : index
    %c384_177 = arith.constant 384 : index
    %157 = vector.load %arg13[%c56, %c384_177] : memref<64x768xf32, #tpu.memory_space<vmem>>, vector<8x384xf32>
    %158 = vector.extract_strided_slice %155 {offsets = [0, 0], sizes = [8, 384], strides = [1, 1]} : vector<8x768xf32> to vector<8x384xf32>
    %159 = vector.extract_strided_slice %156 {offsets = [0, 0], sizes = [8, 128], strides = [1, 1]} : vector<8x384xf32> to vector<8x128xf32>
    %160 = vector.extract_strided_slice %158 {offsets = [0, 0], sizes = [8, 128], strides = [1, 1]} : vector<8x384xf32> to vector<8x128xf32>
    %161 = arith.addf %159, %160 : vector<8x128xf32>
    %162 = arith.negf %161 : vector<8x128xf32>
    %163 = math.exp %162 : vector<8x128xf32>
    %cst_178 = arith.constant 1.000000e+00 : f32
    %164 = vector.broadcast %cst_178 : f32 to vector<8x128xf32>
    %165 = arith.addf %164, %163 : vector<8x128xf32>
    %166 = arith.divf %164, %165 : vector<8x128xf32>
    %167 = vector.extract_strided_slice %156 {offsets = [0, 128], sizes = [8, 128], strides = [1, 1]} : vector<8x384xf32> to vector<8x128xf32>
    %168 = vector.extract_strided_slice %158 {offsets = [0, 128], sizes = [8, 128], strides = [1, 1]} : vector<8x384xf32> to vector<8x128xf32>
    %169 = arith.addf %167, %168 : vector<8x128xf32>
    %170 = arith.negf %169 : vector<8x128xf32>
    %171 = math.exp %170 : vector<8x128xf32>
    %cst_179 = arith.constant 1.000000e+00 : f32
    %172 = vector.broadcast %cst_179 : f32 to vector<8x128xf32>
    %173 = arith.addf %172, %171 : vector<8x128xf32>
    %174 = arith.divf %172, %173 : vector<8x128xf32>
    %175 = vector.extract_strided_slice %156 {offsets = [0, 256], sizes = [8, 128], strides = [1, 1]} : vector<8x384xf32> to vector<8x128xf32>
    %176 = vector.extract_strided_slice %158 {offsets = [0, 256], sizes = [8, 128], strides = [1, 1]} : vector<8x384xf32> to vector<8x128xf32>
    %177 = arith.mulf %166, %176 : vector<8x128xf32>
    %178 = arith.addf %175, %177 : vector<8x128xf32>
    %179 = math.tanh %178 : vector<8x128xf32>
    %cst_180 = arith.constant 1.000000e+00 : f32
    %180 = vector.broadcast %cst_180 : f32 to vector<8x128xf32>
    %181 = arith.subf %180, %174 : vector<8x128xf32>
    %182 = arith.mulf %181, %179 : vector<8x128xf32>
    %183 = arith.mulf %174, %150 : vector<8x128xf32>
    %184 = arith.addf %182, %183 : vector<8x128xf32>
    %185 = arith.select %110, %184, %150 : vector<8x128xi1>, vector<8x128xf32>
    %186 = vector.extract_strided_slice %155 {offsets = [0, 384], sizes = [8, 384], strides = [1, 1]} : vector<8x768xf32> to vector<8x384xf32>
    %187 = vector.extract_strided_slice %157 {offsets = [0, 0], sizes = [8, 128], strides = [1, 1]} : vector<8x384xf32> to vector<8x128xf32>
    %188 = vector.extract_strided_slice %186 {offsets = [0, 0], sizes = [8, 128], strides = [1, 1]} : vector<8x384xf32> to vector<8x128xf32>
    %189 = arith.addf %187, %188 : vector<8x128xf32>
    %190 = arith.negf %189 : vector<8x128xf32>
    %191 = math.exp %190 : vector<8x128xf32>
    %cst_181 = arith.constant 1.000000e+00 : f32
    %192 = vector.broadcast %cst_181 : f32 to vector<8x128xf32>
    %193 = arith.addf %192, %191 : vector<8x128xf32>
    %194 = arith.divf %192, %193 : vector<8x128xf32>
    %195 = vector.extract_strided_slice %157 {offsets = [0, 128], sizes = [8, 128], strides = [1, 1]} : vector<8x384xf32> to vector<8x128xf32>
    %196 = vector.extract_strided_slice %186 {offsets = [0, 128], sizes = [8, 128], strides = [1, 1]} : vector<8x384xf32> to vector<8x128xf32>
    %197 = arith.addf %195, %196 : vector<8x128xf32>
    %198 = arith.negf %197 : vector<8x128xf32>
    %199 = math.exp %198 : vector<8x128xf32>
    %cst_182 = arith.constant 1.000000e+00 : f32
    %200 = vector.broadcast %cst_182 : f32 to vector<8x128xf32>
    %201 = arith.addf %200, %199 : vector<8x128xf32>
    %202 = arith.divf %200, %201 : vector<8x128xf32>
    %203 = vector.extract_strided_slice %157 {offsets = [0, 256], sizes = [8, 128], strides = [1, 1]} : vector<8x384xf32> to vector<8x128xf32>
    %204 = vector.extract_strided_slice %186 {offsets = [0, 256], sizes = [8, 128], strides = [1, 1]} : vector<8x384xf32> to vector<8x128xf32>
    %205 = arith.mulf %194, %204 : vector<8x128xf32>
    %206 = arith.addf %203, %205 : vector<8x128xf32>
    %207 = math.tanh %206 : vector<8x128xf32>
    %cst_183 = arith.constant 1.000000e+00 : f32
    %208 = vector.broadcast %cst_183 : f32 to vector<8x128xf32>
    %209 = arith.subf %208, %202 : vector<8x128xf32>
    %210 = arith.mulf %209, %207 : vector<8x128xf32>
    %211 = arith.mulf %202, %151 : vector<8x128xf32>
    %212 = arith.addf %210, %211 : vector<8x128xf32>
    %213 = arith.select %138, %212, %151 : vector<8x128xi1>, vector<8x128xf32>
    %c0_184 = arith.constant 0 : index
    %c0_185 = arith.constant 0 : index
    %214 = vector.load %arg14[%c0_184, %c0_185] : memref<64x256xf32, #tpu.memory_space<vmem>>, vector<8x128xf32>
    tpu.vector_store %arg14[%c0_184, %c0_185], %185 {strides = array<i32>} : memref<64x256xf32, #tpu.memory_space<vmem>>, vector<8x128xf32>,
    %c56_186 = arith.constant 56 : index
    %c128_187 = arith.constant 128 : index
    %215 = vector.load %arg14[%c56_186, %c128_187] : memref<64x256xf32, #tpu.memory_space<vmem>>, vector<8x128xf32>
    tpu.vector_store %arg14[%c56_186, %c128_187], %213 {strides = array<i32>} : memref<64x256xf32, #tpu.memory_space<vmem>>, vector<8x128xf32>,
    %216 = tpu.concatenate %185, %213 in 1 : vector<8x128xf32>, vector<8x128xf32> -> vector<8x256xf32>
    %217 = arith.truncf %216 : vector<8x256xf32> to vector<8x256xbf16>
    %cst_188 = arith.constant dense<0.000000e+00> : vector<8x768xf32>
    %218 = tpu.matmul %217, %149, %cst_188 {dimension_numbers = #tpu.dot_dimension_numbers<[1], [0], [0], [1], [0, 0, 1, 1], [], []>} : vector<8x256xbf16>, vector<256x768xbf16>, vector<8x768xf32> -> vector<8x768xf32>
    %219 = arith.addf %218, %141 : vector<8x768xf32>
    %c8_189 = arith.constant 8 : index
    %c0_190 = arith.constant 0 : index
    %220 = vector.load %arg13[%c8_189, %c0_190] : memref<64x768xf32, #tpu.memory_space<vmem>>, vector<8x384xf32>
    %c48 = arith.constant 48 : index
    %c384_191 = arith.constant 384 : index
    %221 = vector.load %arg13[%c48, %c384_191] : memref<64x768xf32, #tpu.memory_space<vmem>>, vector<8x384xf32>
    %222 = vector.extract_strided_slice %219 {offsets = [0, 0], sizes = [8, 384], strides = [1, 1]} : vector<8x768xf32> to vector<8x384xf32>
    %223 = vector.extract_strided_slice %220 {offsets = [0, 0], sizes = [8, 128], strides = [1, 1]} : vector<8x384xf32> to vector<8x128xf32>
    %224 = vector.extract_strided_slice %222 {offsets = [0, 0], sizes = [8, 128], strides = [1, 1]} : vector<8x384xf32> to vector<8x128xf32>
    %225 = arith.addf %223, %224 : vector<8x128xf32>
    %226 = arith.negf %225 : vector<8x128xf32>
    %227 = math.exp %226 : vector<8x128xf32>
    %cst_192 = arith.constant 1.000000e+00 : f32
    %228 = vector.broadcast %cst_192 : f32 to vector<8x128xf32>
    %229 = arith.addf %228, %227 : vector<8x128xf32>
    %230 = arith.divf %228, %229 : vector<8x128xf32>
    %231 = vector.extract_strided_slice %220 {offsets = [0, 128], sizes = [8, 128], strides = [1, 1]} : vector<8x384xf32> to vector<8x128xf32>
    %232 = vector.extract_strided_slice %222 {offsets = [0, 128], sizes = [8, 128], strides = [1, 1]} : vector<8x384xf32> to vector<8x128xf32>
    %233 = arith.addf %231, %232 : vector<8x128xf32>
    %234 = arith.negf %233 : vector<8x128xf32>
    %235 = math.exp %234 : vector<8x128xf32>
    %cst_193 = arith.constant 1.000000e+00 : f32
    %236 = vector.broadcast %cst_193 : f32 to vector<8x128xf32>
    %237 = arith.addf %236, %235 : vector<8x128xf32>
    %238 = arith.divf %236, %237 : vector<8x128xf32>
    %239 = vector.extract_strided_slice %220 {offsets = [0, 256], sizes = [8, 128], strides = [1, 1]} : vector<8x384xf32> to vector<8x128xf32>
    %240 = vector.extract_strided_slice %222 {offsets = [0, 256], sizes = [8, 128], strides = [1, 1]} : vector<8x384xf32> to vector<8x128xf32>
    %241 = arith.mulf %230, %240 : vector<8x128xf32>
    %242 = arith.addf %239, %241 : vector<8x128xf32>
    %243 = math.tanh %242 : vector<8x128xf32>
    %cst_194 = arith.constant 1.000000e+00 : f32
    %244 = vector.broadcast %cst_194 : f32 to vector<8x128xf32>
    %245 = arith.subf %244, %238 : vector<8x128xf32>
    %246 = arith.mulf %245, %243 : vector<8x128xf32>
    %247 = arith.mulf %238, %185 : vector<8x128xf32>
    %248 = arith.addf %246, %247 : vector<8x128xf32>
    %249 = arith.select %114, %248, %185 : vector<8x128xi1>, vector<8x128xf32>
    %250 = vector.extract_strided_slice %219 {offsets = [0, 384], sizes = [8, 384], strides = [1, 1]} : vector<8x768xf32> to vector<8x384xf32>
    %251 = vector.extract_strided_slice %221 {offsets = [0, 0], sizes = [8, 128], strides = [1, 1]} : vector<8x384xf32> to vector<8x128xf32>
    %252 = vector.extract_strided_slice %250 {offsets = [0, 0], sizes = [8, 128], strides = [1, 1]} : vector<8x384xf32> to vector<8x128xf32>
    %253 = arith.addf %251, %252 : vector<8x128xf32>
    %254 = arith.negf %253 : vector<8x128xf32>
    %255 = math.exp %254 : vector<8x128xf32>
    %cst_195 = arith.constant 1.000000e+00 : f32
    %256 = vector.broadcast %cst_195 : f32 to vector<8x128xf32>
    %257 = arith.addf %256, %255 : vector<8x128xf32>
    %258 = arith.divf %256, %257 : vector<8x128xf32>
    %259 = vector.extract_strided_slice %221 {offsets = [0, 128], sizes = [8, 128], strides = [1, 1]} : vector<8x384xf32> to vector<8x128xf32>
    %260 = vector.extract_strided_slice %250 {offsets = [0, 128], sizes = [8, 128], strides = [1, 1]} : vector<8x384xf32> to vector<8x128xf32>
    %261 = arith.addf %259, %260 : vector<8x128xf32>
    %262 = arith.negf %261 : vector<8x128xf32>
    %263 = math.exp %262 : vector<8x128xf32>
    %cst_196 = arith.constant 1.000000e+00 : f32
    %264 = vector.broadcast %cst_196 : f32 to vector<8x128xf32>
    %265 = arith.addf %264, %263 : vector<8x128xf32>
    %266 = arith.divf %264, %265 : vector<8x128xf32>
    %267 = vector.extract_strided_slice %221 {offsets = [0, 256], sizes = [8, 128], strides = [1, 1]} : vector<8x384xf32> to vector<8x128xf32>
    %268 = vector.extract_strided_slice %250 {offsets = [0, 256], sizes = [8, 128], strides = [1, 1]} : vector<8x384xf32> to vector<8x128xf32>
    %269 = arith.mulf %258, %268 : vector<8x128xf32>
    %270 = arith.addf %267, %269 : vector<8x128xf32>
    %271 = math.tanh %270 : vector<8x128xf32>
    %cst_197 = arith.constant 1.000000e+00 : f32
    %272 = vector.broadcast %cst_197 : f32 to vector<8x128xf32>
    %273 = arith.subf %272, %266 : vector<8x128xf32>
    %274 = arith.mulf %273, %271 : vector<8x128xf32>
    %275 = arith.mulf %266, %213 : vector<8x128xf32>
    %276 = arith.addf %274, %275 : vector<8x128xf32>
    %277 = arith.select %134, %276, %213 : vector<8x128xi1>, vector<8x128xf32>
    %c8_198 = arith.constant 8 : index
    %c0_199 = arith.constant 0 : index
    %278 = vector.load %arg14[%c8_198, %c0_199] : memref<64x256xf32, #tpu.memory_space<vmem>>, vector<8x128xf32>
    tpu.vector_store %arg14[%c8_198, %c0_199], %249 {strides = array<i32>} : memref<64x256xf32, #tpu.memory_space<vmem>>, vector<8x128xf32>,
    %c48_200 = arith.constant 48 : index
    %c128_201 = arith.constant 128 : index
    %279 = vector.load %arg14[%c48_200, %c128_201] : memref<64x256xf32, #tpu.memory_space<vmem>>, vector<8x128xf32>
    tpu.vector_store %arg14[%c48_200, %c128_201], %277 {strides = array<i32>} : memref<64x256xf32, #tpu.memory_space<vmem>>, vector<8x128xf32>,
    %280 = tpu.concatenate %249, %277 in 1 : vector<8x128xf32>, vector<8x128xf32> -> vector<8x256xf32>
    %281 = arith.truncf %280 : vector<8x256xf32> to vector<8x256xbf16>
    %cst_202 = arith.constant dense<0.000000e+00> : vector<8x768xf32>
    %282 = tpu.matmul %281, %149, %cst_202 {dimension_numbers = #tpu.dot_dimension_numbers<[1], [0], [0], [1], [0, 0, 1, 1], [], []>} : vector<8x256xbf16>, vector<256x768xbf16>, vector<8x768xf32> -> vector<8x768xf32>
    %283 = arith.addf %282, %141 : vector<8x768xf32>
    %c16 = arith.constant 16 : index
    %c0_203 = arith.constant 0 : index
    %284 = vector.load %arg13[%c16, %c0_203] : memref<64x768xf32, #tpu.memory_space<vmem>>, vector<8x384xf32>
    %c40 = arith.constant 40 : index
    %c384_204 = arith.constant 384 : index
    %285 = vector.load %arg13[%c40, %c384_204] : memref<64x768xf32, #tpu.memory_space<vmem>>, vector<8x384xf32>
    %286 = vector.extract_strided_slice %283 {offsets = [0, 0], sizes = [8, 384], strides = [1, 1]} : vector<8x768xf32> to vector<8x384xf32>
    %287 = vector.extract_strided_slice %284 {offsets = [0, 0], sizes = [8, 128], strides = [1, 1]} : vector<8x384xf32> to vector<8x128xf32>
    %288 = vector.extract_strided_slice %286 {offsets = [0, 0], sizes = [8, 128], strides = [1, 1]} : vector<8x384xf32> to vector<8x128xf32>
    %289 = arith.addf %287, %288 : vector<8x128xf32>
    %290 = arith.negf %289 : vector<8x128xf32>
    %291 = math.exp %290 : vector<8x128xf32>
    %cst_205 = arith.constant 1.000000e+00 : f32
    %292 = vector.broadcast %cst_205 : f32 to vector<8x128xf32>
    %293 = arith.addf %292, %291 : vector<8x128xf32>
    %294 = arith.divf %292, %293 : vector<8x128xf32>
    %295 = vector.extract_strided_slice %284 {offsets = [0, 128], sizes = [8, 128], strides = [1, 1]} : vector<8x384xf32> to vector<8x128xf32>
    %296 = vector.extract_strided_slice %286 {offsets = [0, 128], sizes = [8, 128], strides = [1, 1]} : vector<8x384xf32> to vector<8x128xf32>
    %297 = arith.addf %295, %296 : vector<8x128xf32>
    %298 = arith.negf %297 : vector<8x128xf32>
    %299 = math.exp %298 : vector<8x128xf32>
    %cst_206 = arith.constant 1.000000e+00 : f32
    %300 = vector.broadcast %cst_206 : f32 to vector<8x128xf32>
    %301 = arith.addf %300, %299 : vector<8x128xf32>
    %302 = arith.divf %300, %301 : vector<8x128xf32>
    %303 = vector.extract_strided_slice %284 {offsets = [0, 256], sizes = [8, 128], strides = [1, 1]} : vector<8x384xf32> to vector<8x128xf32>
    %304 = vector.extract_strided_slice %286 {offsets = [0, 256], sizes = [8, 128], strides = [1, 1]} : vector<8x384xf32> to vector<8x128xf32>
    %305 = arith.mulf %294, %304 : vector<8x128xf32>
    %306 = arith.addf %303, %305 : vector<8x128xf32>
    %307 = math.tanh %306 : vector<8x128xf32>
    %cst_207 = arith.constant 1.000000e+00 : f32
    %308 = vector.broadcast %cst_207 : f32 to vector<8x128xf32>
    %309 = arith.subf %308, %302 : vector<8x128xf32>
    %310 = arith.mulf %309, %307 : vector<8x128xf32>
    %311 = arith.mulf %302, %249 : vector<8x128xf32>
    %312 = arith.addf %310, %311 : vector<8x128xf32>
    %313 = arith.select %118, %312, %249 : vector<8x128xi1>, vector<8x128xf32>
    %314 = vector.extract_strided_slice %283 {offsets = [0, 384], sizes = [8, 384], strides = [1, 1]} : vector<8x768xf32> to vector<8x384xf32>
    %315 = vector.extract_strided_slice %285 {offsets = [0, 0], sizes = [8, 128], strides = [1, 1]} : vector<8x384xf32> to vector<8x128xf32>
    %316 = vector.extract_strided_slice %314 {offsets = [0, 0], sizes = [8, 128], strides = [1, 1]} : vector<8x384xf32> to vector<8x128xf32>
    %317 = arith.addf %315, %316 : vector<8x128xf32>
    %318 = arith.negf %317 : vector<8x128xf32>
    %319 = math.exp %318 : vector<8x128xf32>
    %cst_208 = arith.constant 1.000000e+00 : f32
    %320 = vector.broadcast %cst_208 : f32 to vector<8x128xf32>
    %321 = arith.addf %320, %319 : vector<8x128xf32>
    %322 = arith.divf %320, %321 : vector<8x128xf32>
    %323 = vector.extract_strided_slice %285 {offsets = [0, 128], sizes = [8, 128], strides = [1, 1]} : vector<8x384xf32> to vector<8x128xf32>
    %324 = vector.extract_strided_slice %314 {offsets = [0, 128], sizes = [8, 128], strides = [1, 1]} : vector<8x384xf32> to vector<8x128xf32>
    %325 = arith.addf %323, %324 : vector<8x128xf32>
    %326 = arith.negf %325 : vector<8x128xf32>
    %327 = math.exp %326 : vector<8x128xf32>
    %cst_209 = arith.constant 1.000000e+00 : f32
    %328 = vector.broadcast %cst_209 : f32 to vector<8x128xf32>
    %329 = arith.addf %328, %327 : vector<8x128xf32>
    %330 = arith.divf %328, %329 : vector<8x128xf32>
    %331 = vector.extract_strided_slice %285 {offsets = [0, 256], sizes = [8, 128], strides = [1, 1]} : vector<8x384xf32> to vector<8x128xf32>
    %332 = vector.extract_strided_slice %314 {offsets = [0, 256], sizes = [8, 128], strides = [1, 1]} : vector<8x384xf32> to vector<8x128xf32>
    %333 = arith.mulf %322, %332 : vector<8x128xf32>
    %334 = arith.addf %331, %333 : vector<8x128xf32>
    %335 = math.tanh %334 : vector<8x128xf32>
    %cst_210 = arith.constant 1.000000e+00 : f32
    %336 = vector.broadcast %cst_210 : f32 to vector<8x128xf32>
    %337 = arith.subf %336, %330 : vector<8x128xf32>
    %338 = arith.mulf %337, %335 : vector<8x128xf32>
    %339 = arith.mulf %330, %277 : vector<8x128xf32>
    %340 = arith.addf %338, %339 : vector<8x128xf32>
    %341 = arith.select %130, %340, %277 : vector<8x128xi1>, vector<8x128xf32>
    %c16_211 = arith.constant 16 : index
    %c0_212 = arith.constant 0 : index
    %342 = vector.load %arg14[%c16_211, %c0_212] : memref<64x256xf32, #tpu.memory_space<vmem>>, vector<8x128xf32>
    tpu.vector_store %arg14[%c16_211, %c0_212], %313 {strides = array<i32>} : memref<64x256xf32, #tpu.memory_space<vmem>>, vector<8x128xf32>,
    %c40_213 = arith.constant 40 : index
    %c128_214 = arith.constant 128 : index
    %343 = vector.load %arg14[%c40_213, %c128_214] : memref<64x256xf32, #tpu.memory_space<vmem>>, vector<8x128xf32>
    tpu.vector_store %arg14[%c40_213, %c128_214], %341 {strides = array<i32>} : memref<64x256xf32, #tpu.memory_space<vmem>>, vector<8x128xf32>,
    %344 = tpu.concatenate %313, %341 in 1 : vector<8x128xf32>, vector<8x128xf32> -> vector<8x256xf32>
    %345 = arith.truncf %344 : vector<8x256xf32> to vector<8x256xbf16>
    %cst_215 = arith.constant dense<0.000000e+00> : vector<8x768xf32>
    %346 = tpu.matmul %345, %149, %cst_215 {dimension_numbers = #tpu.dot_dimension_numbers<[1], [0], [0], [1], [0, 0, 1, 1], [], []>} : vector<8x256xbf16>, vector<256x768xbf16>, vector<8x768xf32> -> vector<8x768xf32>
    %347 = arith.addf %346, %141 : vector<8x768xf32>
    %c24 = arith.constant 24 : index
    %c0_216 = arith.constant 0 : index
    %348 = vector.load %arg13[%c24, %c0_216] : memref<64x768xf32, #tpu.memory_space<vmem>>, vector<8x384xf32>
    %c32 = arith.constant 32 : index
    %c384_217 = arith.constant 384 : index
    %349 = vector.load %arg13[%c32, %c384_217] : memref<64x768xf32, #tpu.memory_space<vmem>>, vector<8x384xf32>
    %350 = vector.extract_strided_slice %347 {offsets = [0, 0], sizes = [8, 384], strides = [1, 1]} : vector<8x768xf32> to vector<8x384xf32>
    %351 = vector.extract_strided_slice %348 {offsets = [0, 0], sizes = [8, 128], strides = [1, 1]} : vector<8x384xf32> to vector<8x128xf32>
    %352 = vector.extract_strided_slice %350 {offsets = [0, 0], sizes = [8, 128], strides = [1, 1]} : vector<8x384xf32> to vector<8x128xf32>
    %353 = arith.addf %351, %352 : vector<8x128xf32>
    %354 = arith.negf %353 : vector<8x128xf32>
    %355 = math.exp %354 : vector<8x128xf32>
    %cst_218 = arith.constant 1.000000e+00 : f32
    %356 = vector.broadcast %cst_218 : f32 to vector<8x128xf32>
    %357 = arith.addf %356, %355 : vector<8x128xf32>
    %358 = arith.divf %356, %357 : vector<8x128xf32>
    %359 = vector.extract_strided_slice %348 {offsets = [0, 128], sizes = [8, 128], strides = [1, 1]} : vector<8x384xf32> to vector<8x128xf32>
    %360 = vector.extract_strided_slice %350 {offsets = [0, 128], sizes = [8, 128], strides = [1, 1]} : vector<8x384xf32> to vector<8x128xf32>
    %361 = arith.addf %359, %360 : vector<8x128xf32>
    %362 = arith.negf %361 : vector<8x128xf32>
    %363 = math.exp %362 : vector<8x128xf32>
    %cst_219 = arith.constant 1.000000e+00 : f32
    %364 = vector.broadcast %cst_219 : f32 to vector<8x128xf32>
    %365 = arith.addf %364, %363 : vector<8x128xf32>
    %366 = arith.divf %364, %365 : vector<8x128xf32>
    %367 = vector.extract_strided_slice %348 {offsets = [0, 256], sizes = [8, 128], strides = [1, 1]} : vector<8x384xf32> to vector<8x128xf32>
    %368 = vector.extract_strided_slice %350 {offsets = [0, 256], sizes = [8, 128], strides = [1, 1]} : vector<8x384xf32> to vector<8x128xf32>
    %369 = arith.mulf %358, %368 : vector<8x128xf32>
    %370 = arith.addf %367, %369 : vector<8x128xf32>
    %371 = math.tanh %370 : vector<8x128xf32>
    %cst_220 = arith.constant 1.000000e+00 : f32
    %372 = vector.broadcast %cst_220 : f32 to vector<8x128xf32>
    %373 = arith.subf %372, %366 : vector<8x128xf32>
    %374 = arith.mulf %373, %371 : vector<8x128xf32>
    %375 = arith.mulf %366, %313 : vector<8x128xf32>
    %376 = arith.addf %374, %375 : vector<8x128xf32>
    %377 = arith.select %122, %376, %313 : vector<8x128xi1>, vector<8x128xf32>
    %378 = vector.extract_strided_slice %347 {offsets = [0, 384], sizes = [8, 384], strides = [1, 1]} : vector<8x768xf32> to vector<8x384xf32>
    %379 = vector.extract_strided_slice %349 {offsets = [0, 0], sizes = [8, 128], strides = [1, 1]} : vector<8x384xf32> to vector<8x128xf32>
    %380 = vector.extract_strided_slice %378 {offsets = [0, 0], sizes = [8, 128], strides = [1, 1]} : vector<8x384xf32> to vector<8x128xf32>
    %381 = arith.addf %379, %380 : vector<8x128xf32>
    %382 = arith.negf %381 : vector<8x128xf32>
    %383 = math.exp %382 : vector<8x128xf32>
    %cst_221 = arith.constant 1.000000e+00 : f32
    %384 = vector.broadcast %cst_221 : f32 to vector<8x128xf32>
    %385 = arith.addf %384, %383 : vector<8x128xf32>
    %386 = arith.divf %384, %385 : vector<8x128xf32>
    %387 = vector.extract_strided_slice %349 {offsets = [0, 128], sizes = [8, 128], strides = [1, 1]} : vector<8x384xf32> to vector<8x128xf32>
    %388 = vector.extract_strided_slice %378 {offsets = [0, 128], sizes = [8, 128], strides = [1, 1]} : vector<8x384xf32> to vector<8x128xf32>
    %389 = arith.addf %387, %388 : vector<8x128xf32>
    %390 = arith.negf %389 : vector<8x128xf32>
    %391 = math.exp %390 : vector<8x128xf32>
    %cst_222 = arith.constant 1.000000e+00 : f32
    %392 = vector.broadcast %cst_222 : f32 to vector<8x128xf32>
    %393 = arith.addf %392, %391 : vector<8x128xf32>
    %394 = arith.divf %392, %393 : vector<8x128xf32>
    %395 = vector.extract_strided_slice %349 {offsets = [0, 256], sizes = [8, 128], strides = [1, 1]} : vector<8x384xf32> to vector<8x128xf32>
    %396 = vector.extract_strided_slice %378 {offsets = [0, 256], sizes = [8, 128], strides = [1, 1]} : vector<8x384xf32> to vector<8x128xf32>
    %397 = arith.mulf %386, %396 : vector<8x128xf32>
    %398 = arith.addf %395, %397 : vector<8x128xf32>
    %399 = math.tanh %398 : vector<8x128xf32>
    %cst_223 = arith.constant 1.000000e+00 : f32
    %400 = vector.broadcast %cst_223 : f32 to vector<8x128xf32>
    %401 = arith.subf %400, %394 : vector<8x128xf32>
    %402 = arith.mulf %401, %399 : vector<8x128xf32>
    %403 = arith.mulf %394, %341 : vector<8x128xf32>
    %404 = arith.addf %402, %403 : vector<8x128xf32>
    %405 = arith.select %126, %404, %341 : vector<8x128xi1>, vector<8x128xf32>
    %c24_224 = arith.constant 24 : index
    %c0_225 = arith.constant 0 : index
    %406 = vector.load %arg14[%c24_224, %c0_225] : memref<64x256xf32, #tpu.memory_space<vmem>>, vector<8x128xf32>
    tpu.vector_store %arg14[%c24_224, %c0_225], %377 {strides = array<i32>} : memref<64x256xf32, #tpu.memory_space<vmem>>, vector<8x128xf32>,
    %c32_226 = arith.constant 32 : index
    %c128_227 = arith.constant 128 : index
    %407 = vector.load %arg14[%c32_226, %c128_227] : memref<64x256xf32, #tpu.memory_space<vmem>>, vector<8x128xf32>
    tpu.vector_store %arg14[%c32_226, %c128_227], %405 {strides = array<i32>} : memref<64x256xf32, #tpu.memory_space<vmem>>, vector<8x128xf32>,
    %408 = tpu.concatenate %377, %405 in 1 : vector<8x128xf32>, vector<8x128xf32> -> vector<8x256xf32>
    %409 = arith.truncf %408 : vector<8x256xf32> to vector<8x256xbf16>
    %cst_228 = arith.constant dense<0.000000e+00> : vector<8x768xf32>
    %410 = tpu.matmul %409, %149, %cst_228 {dimension_numbers = #tpu.dot_dimension_numbers<[1], [0], [0], [1], [0, 0, 1, 1], [], []>} : vector<8x256xbf16>, vector<256x768xbf16>, vector<8x768xf32> -> vector<8x768xf32>
    %411 = arith.addf %410, %141 : vector<8x768xf32>
    %c32_229 = arith.constant 32 : index
    %c0_230 = arith.constant 0 : index
    %412 = vector.load %arg13[%c32_229, %c0_230] : memref<64x768xf32, #tpu.memory_space<vmem>>, vector<8x384xf32>
    %c24_231 = arith.constant 24 : index
    %c384_232 = arith.constant 384 : index
    %413 = vector.load %arg13[%c24_231, %c384_232] : memref<64x768xf32, #tpu.memory_space<vmem>>, vector<8x384xf32>
    %414 = vector.extract_strided_slice %411 {offsets = [0, 0], sizes = [8, 384], strides = [1, 1]} : vector<8x768xf32> to vector<8x384xf32>
    %415 = vector.extract_strided_slice %412 {offsets = [0, 0], sizes = [8, 128], strides = [1, 1]} : vector<8x384xf32> to vector<8x128xf32>
    %416 = vector.extract_strided_slice %414 {offsets = [0, 0], sizes = [8, 128], strides = [1, 1]} : vector<8x384xf32> to vector<8x128xf32>
    %417 = arith.addf %415, %416 : vector<8x128xf32>
    %418 = arith.negf %417 : vector<8x128xf32>
    %419 = math.exp %418 : vector<8x128xf32>
    %cst_233 = arith.constant 1.000000e+00 : f32
    %420 = vector.broadcast %cst_233 : f32 to vector<8x128xf32>
    %421 = arith.addf %420, %419 : vector<8x128xf32>
    %422 = arith.divf %420, %421 : vector<8x128xf32>
    %423 = vector.extract_strided_slice %412 {offsets = [0, 128], sizes = [8, 128], strides = [1, 1]} : vector<8x384xf32> to vector<8x128xf32>
    %424 = vector.extract_strided_slice %414 {offsets = [0, 128], sizes = [8, 128], strides = [1, 1]} : vector<8x384xf32> to vector<8x128xf32>
    %425 = arith.addf %423, %424 : vector<8x128xf32>
    %426 = arith.negf %425 : vector<8x128xf32>
    %427 = math.exp %426 : vector<8x128xf32>
    %cst_234 = arith.constant 1.000000e+00 : f32
    %428 = vector.broadcast %cst_234 : f32 to vector<8x128xf32>
    %429 = arith.addf %428, %427 : vector<8x128xf32>
    %430 = arith.divf %428, %429 : vector<8x128xf32>
    %431 = vector.extract_strided_slice %412 {offsets = [0, 256], sizes = [8, 128], strides = [1, 1]} : vector<8x384xf32> to vector<8x128xf32>
    %432 = vector.extract_strided_slice %414 {offsets = [0, 256], sizes = [8, 128], strides = [1, 1]} : vector<8x384xf32> to vector<8x128xf32>
    %433 = arith.mulf %422, %432 : vector<8x128xf32>
    %434 = arith.addf %431, %433 : vector<8x128xf32>
    %435 = math.tanh %434 : vector<8x128xf32>
    %cst_235 = arith.constant 1.000000e+00 : f32
    %436 = vector.broadcast %cst_235 : f32 to vector<8x128xf32>
    %437 = arith.subf %436, %430 : vector<8x128xf32>
    %438 = arith.mulf %437, %435 : vector<8x128xf32>
    %439 = arith.mulf %430, %377 : vector<8x128xf32>
    %440 = arith.addf %438, %439 : vector<8x128xf32>
    %441 = arith.select %126, %440, %377 : vector<8x128xi1>, vector<8x128xf32>
    %442 = vector.extract_strided_slice %411 {offsets = [0, 384], sizes = [8, 384], strides = [1, 1]} : vector<8x768xf32> to vector<8x384xf32>
    %443 = vector.extract_strided_slice %413 {offsets = [0, 0], sizes = [8, 128], strides = [1, 1]} : vector<8x384xf32> to vector<8x128xf32>
    %444 = vector.extract_strided_slice %442 {offsets = [0, 0], sizes = [8, 128], strides = [1, 1]} : vector<8x384xf32> to vector<8x128xf32>
    %445 = arith.addf %443, %444 : vector<8x128xf32>
    %446 = arith.negf %445 : vector<8x128xf32>
    %447 = math.exp %446 : vector<8x128xf32>
    %cst_236 = arith.constant 1.000000e+00 : f32
    %448 = vector.broadcast %cst_236 : f32 to vector<8x128xf32>
    %449 = arith.addf %448, %447 : vector<8x128xf32>
    %450 = arith.divf %448, %449 : vector<8x128xf32>
    %451 = vector.extract_strided_slice %413 {offsets = [0, 128], sizes = [8, 128], strides = [1, 1]} : vector<8x384xf32> to vector<8x128xf32>
    %452 = vector.extract_strided_slice %442 {offsets = [0, 128], sizes = [8, 128], strides = [1, 1]} : vector<8x384xf32> to vector<8x128xf32>
    %453 = arith.addf %451, %452 : vector<8x128xf32>
    %454 = arith.negf %453 : vector<8x128xf32>
    %455 = math.exp %454 : vector<8x128xf32>
    %cst_237 = arith.constant 1.000000e+00 : f32
    %456 = vector.broadcast %cst_237 : f32 to vector<8x128xf32>
    %457 = arith.addf %456, %455 : vector<8x128xf32>
    %458 = arith.divf %456, %457 : vector<8x128xf32>
    %459 = vector.extract_strided_slice %413 {offsets = [0, 256], sizes = [8, 128], strides = [1, 1]} : vector<8x384xf32> to vector<8x128xf32>
    %460 = vector.extract_strided_slice %442 {offsets = [0, 256], sizes = [8, 128], strides = [1, 1]} : vector<8x384xf32> to vector<8x128xf32>
    %461 = arith.mulf %450, %460 : vector<8x128xf32>
    %462 = arith.addf %459, %461 : vector<8x128xf32>
    %463 = math.tanh %462 : vector<8x128xf32>
    %cst_238 = arith.constant 1.000000e+00 : f32
    %464 = vector.broadcast %cst_238 : f32 to vector<8x128xf32>
    %465 = arith.subf %464, %458 : vector<8x128xf32>
    %466 = arith.mulf %465, %463 : vector<8x128xf32>
    %467 = arith.mulf %458, %405 : vector<8x128xf32>
    %468 = arith.addf %466, %467 : vector<8x128xf32>
    %469 = arith.select %122, %468, %405 : vector<8x128xi1>, vector<8x128xf32>
    %c32_239 = arith.constant 32 : index
    %c0_240 = arith.constant 0 : index
    %470 = vector.load %arg14[%c32_239, %c0_240] : memref<64x256xf32, #tpu.memory_space<vmem>>, vector<8x128xf32>
    tpu.vector_store %arg14[%c32_239, %c0_240], %441 {strides = array<i32>} : memref<64x256xf32, #tpu.memory_space<vmem>>, vector<8x128xf32>,
    %c24_241 = arith.constant 24 : index
    %c128_242 = arith.constant 128 : index
    %471 = vector.load %arg14[%c24_241, %c128_242] : memref<64x256xf32, #tpu.memory_space<vmem>>, vector<8x128xf32>
    tpu.vector_store %arg14[%c24_241, %c128_242], %469 {strides = array<i32>} : memref<64x256xf32, #tpu.memory_space<vmem>>, vector<8x128xf32>,
    %472 = tpu.concatenate %441, %469 in 1 : vector<8x128xf32>, vector<8x128xf32> -> vector<8x256xf32>
    %473 = arith.truncf %472 : vector<8x256xf32> to vector<8x256xbf16>
    %cst_243 = arith.constant dense<0.000000e+00> : vector<8x768xf32>
    %474 = tpu.matmul %473, %149, %cst_243 {dimension_numbers = #tpu.dot_dimension_numbers<[1], [0], [0], [1], [0, 0, 1, 1], [], []>} : vector<8x256xbf16>, vector<256x768xbf16>, vector<8x768xf32> -> vector<8x768xf32>
    %475 = arith.addf %474, %141 : vector<8x768xf32>
    %c40_244 = arith.constant 40 : index
    %c0_245 = arith.constant 0 : index
    %476 = vector.load %arg13[%c40_244, %c0_245] : memref<64x768xf32, #tpu.memory_space<vmem>>, vector<8x384xf32>
    %c16_246 = arith.constant 16 : index
    %c384_247 = arith.constant 384 : index
    %477 = vector.load %arg13[%c16_246, %c384_247] : memref<64x768xf32, #tpu.memory_space<vmem>>, vector<8x384xf32>
    %478 = vector.extract_strided_slice %475 {offsets = [0, 0], sizes = [8, 384], strides = [1, 1]} : vector<8x768xf32> to vector<8x384xf32>
    %479 = vector.extract_strided_slice %476 {offsets = [0, 0], sizes = [8, 128], strides = [1, 1]} : vector<8x384xf32> to vector<8x128xf32>
    %480 = vector.extract_strided_slice %478 {offsets = [0, 0], sizes = [8, 128], strides = [1, 1]} : vector<8x384xf32> to vector<8x128xf32>
    %481 = arith.addf %479, %480 : vector<8x128xf32>
    %482 = arith.negf %481 : vector<8x128xf32>
    %483 = math.exp %482 : vector<8x128xf32>
    %cst_248 = arith.constant 1.000000e+00 : f32
    %484 = vector.broadcast %cst_248 : f32 to vector<8x128xf32>
    %485 = arith.addf %484, %483 : vector<8x128xf32>
    %486 = arith.divf %484, %485 : vector<8x128xf32>
    %487 = vector.extract_strided_slice %476 {offsets = [0, 128], sizes = [8, 128], strides = [1, 1]} : vector<8x384xf32> to vector<8x128xf32>
    %488 = vector.extract_strided_slice %478 {offsets = [0, 128], sizes = [8, 128], strides = [1, 1]} : vector<8x384xf32> to vector<8x128xf32>
    %489 = arith.addf %487, %488 : vector<8x128xf32>
    %490 = arith.negf %489 : vector<8x128xf32>
    %491 = math.exp %490 : vector<8x128xf32>
    %cst_249 = arith.constant 1.000000e+00 : f32
    %492 = vector.broadcast %cst_249 : f32 to vector<8x128xf32>
    %493 = arith.addf %492, %491 : vector<8x128xf32>
    %494 = arith.divf %492, %493 : vector<8x128xf32>
    %495 = vector.extract_strided_slice %476 {offsets = [0, 256], sizes = [8, 128], strides = [1, 1]} : vector<8x384xf32> to vector<8x128xf32>
    %496 = vector.extract_strided_slice %478 {offsets = [0, 256], sizes = [8, 128], strides = [1, 1]} : vector<8x384xf32> to vector<8x128xf32>
    %497 = arith.mulf %486, %496 : vector<8x128xf32>
    %498 = arith.addf %495, %497 : vector<8x128xf32>
    %499 = math.tanh %498 : vector<8x128xf32>
    %cst_250 = arith.constant 1.000000e+00 : f32
    %500 = vector.broadcast %cst_250 : f32 to vector<8x128xf32>
    %501 = arith.subf %500, %494 : vector<8x128xf32>
    %502 = arith.mulf %501, %499 : vector<8x128xf32>
    %503 = arith.mulf %494, %441 : vector<8x128xf32>
    %504 = arith.addf %502, %503 : vector<8x128xf32>
    %505 = arith.select %130, %504, %441 : vector<8x128xi1>, vector<8x128xf32>
    %506 = vector.extract_strided_slice %475 {offsets = [0, 384], sizes = [8, 384], strides = [1, 1]} : vector<8x768xf32> to vector<8x384xf32>
    %507 = vector.extract_strided_slice %477 {offsets = [0, 0], sizes = [8, 128], strides = [1, 1]} : vector<8x384xf32> to vector<8x128xf32>
    %508 = vector.extract_strided_slice %506 {offsets = [0, 0], sizes = [8, 128], strides = [1, 1]} : vector<8x384xf32> to vector<8x128xf32>
    %509 = arith.addf %507, %508 : vector<8x128xf32>
    %510 = arith.negf %509 : vector<8x128xf32>
    %511 = math.exp %510 : vector<8x128xf32>
    %cst_251 = arith.constant 1.000000e+00 : f32
    %512 = vector.broadcast %cst_251 : f32 to vector<8x128xf32>
    %513 = arith.addf %512, %511 : vector<8x128xf32>
    %514 = arith.divf %512, %513 : vector<8x128xf32>
    %515 = vector.extract_strided_slice %477 {offsets = [0, 128], sizes = [8, 128], strides = [1, 1]} : vector<8x384xf32> to vector<8x128xf32>
    %516 = vector.extract_strided_slice %506 {offsets = [0, 128], sizes = [8, 128], strides = [1, 1]} : vector<8x384xf32> to vector<8x128xf32>
    %517 = arith.addf %515, %516 : vector<8x128xf32>
    %518 = arith.negf %517 : vector<8x128xf32>
    %519 = math.exp %518 : vector<8x128xf32>
    %cst_252 = arith.constant 1.000000e+00 : f32
    %520 = vector.broadcast %cst_252 : f32 to vector<8x128xf32>
    %521 = arith.addf %520, %519 : vector<8x128xf32>
    %522 = arith.divf %520, %521 : vector<8x128xf32>
    %523 = vector.extract_strided_slice %477 {offsets = [0, 256], sizes = [8, 128], strides = [1, 1]} : vector<8x384xf32> to vector<8x128xf32>
    %524 = vector.extract_strided_slice %506 {offsets = [0, 256], sizes = [8, 128], strides = [1, 1]} : vector<8x384xf32> to vector<8x128xf32>
    %525 = arith.mulf %514, %524 : vector<8x128xf32>
    %526 = arith.addf %523, %525 : vector<8x128xf32>
    %527 = math.tanh %526 : vector<8x128xf32>
    %cst_253 = arith.constant 1.000000e+00 : f32
    %528 = vector.broadcast %cst_253 : f32 to vector<8x128xf32>
    %529 = arith.subf %528, %522 : vector<8x128xf32>
    %530 = arith.mulf %529, %527 : vector<8x128xf32>
    %531 = arith.mulf %522, %469 : vector<8x128xf32>
    %532 = arith.addf %530, %531 : vector<8x128xf32>
    %533 = arith.select %118, %532, %469 : vector<8x128xi1>, vector<8x128xf32>
    %c40_254 = arith.constant 40 : index
    %c0_255 = arith.constant 0 : index
    %534 = vector.load %arg14[%c40_254, %c0_255] : memref<64x256xf32, #tpu.memory_space<vmem>>, vector<8x128xf32>
    tpu.vector_store %arg14[%c40_254, %c0_255], %505 {strides = array<i32>} : memref<64x256xf32, #tpu.memory_space<vmem>>, vector<8x128xf32>,
    %c16_256 = arith.constant 16 : index
    %c128_257 = arith.constant 128 : index
    %535 = vector.load %arg14[%c16_256, %c128_257] : memref<64x256xf32, #tpu.memory_space<vmem>>, vector<8x128xf32>
    tpu.vector_store %arg14[%c16_256, %c128_257], %533 {strides = array<i32>} : memref<64x256xf32, #tpu.memory_space<vmem>>, vector<8x128xf32>,
    %536 = tpu.concatenate %505, %533 in 1 : vector<8x128xf32>, vector<8x128xf32> -> vector<8x256xf32>
    %537 = arith.truncf %536 : vector<8x256xf32> to vector<8x256xbf16>
    %cst_258 = arith.constant dense<0.000000e+00> : vector<8x768xf32>
    %538 = tpu.matmul %537, %149, %cst_258 {dimension_numbers = #tpu.dot_dimension_numbers<[1], [0], [0], [1], [0, 0, 1, 1], [], []>} : vector<8x256xbf16>, vector<256x768xbf16>, vector<8x768xf32> -> vector<8x768xf32>
    %539 = arith.addf %538, %141 : vector<8x768xf32>
    %c48_259 = arith.constant 48 : index
    %c0_260 = arith.constant 0 : index
    %540 = vector.load %arg13[%c48_259, %c0_260] : memref<64x768xf32, #tpu.memory_space<vmem>>, vector<8x384xf32>
    %c8_261 = arith.constant 8 : index
    %c384_262 = arith.constant 384 : index
    %541 = vector.load %arg13[%c8_261, %c384_262] : memref<64x768xf32, #tpu.memory_space<vmem>>, vector<8x384xf32>
    %542 = vector.extract_strided_slice %539 {offsets = [0, 0], sizes = [8, 384], strides = [1, 1]} : vector<8x768xf32> to vector<8x384xf32>
    %543 = vector.extract_strided_slice %540 {offsets = [0, 0], sizes = [8, 128], strides = [1, 1]} : vector<8x384xf32> to vector<8x128xf32>
    %544 = vector.extract_strided_slice %542 {offsets = [0, 0], sizes = [8, 128], strides = [1, 1]} : vector<8x384xf32> to vector<8x128xf32>
    %545 = arith.addf %543, %544 : vector<8x128xf32>
    %546 = arith.negf %545 : vector<8x128xf32>
    %547 = math.exp %546 : vector<8x128xf32>
    %cst_263 = arith.constant 1.000000e+00 : f32
    %548 = vector.broadcast %cst_263 : f32 to vector<8x128xf32>
    %549 = arith.addf %548, %547 : vector<8x128xf32>
    %550 = arith.divf %548, %549 : vector<8x128xf32>
    %551 = vector.extract_strided_slice %540 {offsets = [0, 128], sizes = [8, 128], strides = [1, 1]} : vector<8x384xf32> to vector<8x128xf32>
    %552 = vector.extract_strided_slice %542 {offsets = [0, 128], sizes = [8, 128], strides = [1, 1]} : vector<8x384xf32> to vector<8x128xf32>
    %553 = arith.addf %551, %552 : vector<8x128xf32>
    %554 = arith.negf %553 : vector<8x128xf32>
    %555 = math.exp %554 : vector<8x128xf32>
    %cst_264 = arith.constant 1.000000e+00 : f32
    %556 = vector.broadcast %cst_264 : f32 to vector<8x128xf32>
    %557 = arith.addf %556, %555 : vector<8x128xf32>
    %558 = arith.divf %556, %557 : vector<8x128xf32>
    %559 = vector.extract_strided_slice %540 {offsets = [0, 256], sizes = [8, 128], strides = [1, 1]} : vector<8x384xf32> to vector<8x128xf32>
    %560 = vector.extract_strided_slice %542 {offsets = [0, 256], sizes = [8, 128], strides = [1, 1]} : vector<8x384xf32> to vector<8x128xf32>
    %561 = arith.mulf %550, %560 : vector<8x128xf32>
    %562 = arith.addf %559, %561 : vector<8x128xf32>
    %563 = math.tanh %562 : vector<8x128xf32>
    %cst_265 = arith.constant 1.000000e+00 : f32
    %564 = vector.broadcast %cst_265 : f32 to vector<8x128xf32>
    %565 = arith.subf %564, %558 : vector<8x128xf32>
    %566 = arith.mulf %565, %563 : vector<8x128xf32>
    %567 = arith.mulf %558, %505 : vector<8x128xf32>
    %568 = arith.addf %566, %567 : vector<8x128xf32>
    %569 = arith.select %134, %568, %505 : vector<8x128xi1>, vector<8x128xf32>
    %570 = vector.extract_strided_slice %539 {offsets = [0, 384], sizes = [8, 384], strides = [1, 1]} : vector<8x768xf32> to vector<8x384xf32>
    %571 = vector.extract_strided_slice %541 {offsets = [0, 0], sizes = [8, 128], strides = [1, 1]} : vector<8x384xf32> to vector<8x128xf32>
    %572 = vector.extract_strided_slice %570 {offsets = [0, 0], sizes = [8, 128], strides = [1, 1]} : vector<8x384xf32> to vector<8x128xf32>
    %573 = arith.addf %571, %572 : vector<8x128xf32>
    %574 = arith.negf %573 : vector<8x128xf32>
    %575 = math.exp %574 : vector<8x128xf32>
    %cst_266 = arith.constant 1.000000e+00 : f32
    %576 = vector.broadcast %cst_266 : f32 to vector<8x128xf32>
    %577 = arith.addf %576, %575 : vector<8x128xf32>
    %578 = arith.divf %576, %577 : vector<8x128xf32>
    %579 = vector.extract_strided_slice %541 {offsets = [0, 128], sizes = [8, 128], strides = [1, 1]} : vector<8x384xf32> to vector<8x128xf32>
    %580 = vector.extract_strided_slice %570 {offsets = [0, 128], sizes = [8, 128], strides = [1, 1]} : vector<8x384xf32> to vector<8x128xf32>
    %581 = arith.addf %579, %580 : vector<8x128xf32>
    %582 = arith.negf %581 : vector<8x128xf32>
    %583 = math.exp %582 : vector<8x128xf32>
    %cst_267 = arith.constant 1.000000e+00 : f32
    %584 = vector.broadcast %cst_267 : f32 to vector<8x128xf32>
    %585 = arith.addf %584, %583 : vector<8x128xf32>
    %586 = arith.divf %584, %585 : vector<8x128xf32>
    %587 = vector.extract_strided_slice %541 {offsets = [0, 256], sizes = [8, 128], strides = [1, 1]} : vector<8x384xf32> to vector<8x128xf32>
    %588 = vector.extract_strided_slice %570 {offsets = [0, 256], sizes = [8, 128], strides = [1, 1]} : vector<8x384xf32> to vector<8x128xf32>
    %589 = arith.mulf %578, %588 : vector<8x128xf32>
    %590 = arith.addf %587, %589 : vector<8x128xf32>
    %591 = math.tanh %590 : vector<8x128xf32>
    %cst_268 = arith.constant 1.000000e+00 : f32
    %592 = vector.broadcast %cst_268 : f32 to vector<8x128xf32>
    %593 = arith.subf %592, %586 : vector<8x128xf32>
    %594 = arith.mulf %593, %591 : vector<8x128xf32>
    %595 = arith.mulf %586, %533 : vector<8x128xf32>
    %596 = arith.addf %594, %595 : vector<8x128xf32>
    %597 = arith.select %114, %596, %533 : vector<8x128xi1>, vector<8x128xf32>
    %c48_269 = arith.constant 48 : index
    %c0_270 = arith.constant 0 : index
    %598 = vector.load %arg14[%c48_269, %c0_270] : memref<64x256xf32, #tpu.memory_space<vmem>>, vector<8x128xf32>
    tpu.vector_store %arg14[%c48_269, %c0_270], %569 {strides = array<i32>} : memref<64x256xf32, #tpu.memory_space<vmem>>, vector<8x128xf32>,
    %c8_271 = arith.constant 8 : index
    %c128_272 = arith.constant 128 : index
    %599 = vector.load %arg14[%c8_271, %c128_272] : memref<64x256xf32, #tpu.memory_space<vmem>>, vector<8x128xf32>
    tpu.vector_store %arg14[%c8_271, %c128_272], %597 {strides = array<i32>} : memref<64x256xf32, #tpu.memory_space<vmem>>, vector<8x128xf32>,
    %600 = tpu.concatenate %569, %597 in 1 : vector<8x128xf32>, vector<8x128xf32> -> vector<8x256xf32>
    %601 = arith.truncf %600 : vector<8x256xf32> to vector<8x256xbf16>
    %cst_273 = arith.constant dense<0.000000e+00> : vector<8x768xf32>
    %602 = tpu.matmul %601, %149, %cst_273 {dimension_numbers = #tpu.dot_dimension_numbers<[1], [0], [0], [1], [0, 0, 1, 1], [], []>} : vector<8x256xbf16>, vector<256x768xbf16>, vector<8x768xf32> -> vector<8x768xf32>
    %603 = arith.addf %602, %141 : vector<8x768xf32>
    %c56_274 = arith.constant 56 : index
    %c0_275 = arith.constant 0 : index
    %604 = vector.load %arg13[%c56_274, %c0_275] : memref<64x768xf32, #tpu.memory_space<vmem>>, vector<8x384xf32>
    %c0_276 = arith.constant 0 : index
    %c384_277 = arith.constant 384 : index
    %605 = vector.load %arg13[%c0_276, %c384_277] : memref<64x768xf32, #tpu.memory_space<vmem>>, vector<8x384xf32>
    %606 = vector.extract_strided_slice %603 {offsets = [0, 0], sizes = [8, 384], strides = [1, 1]} : vector<8x768xf32> to vector<8x384xf32>
    %607 = vector.extract_strided_slice %604 {offsets = [0, 0], sizes = [8, 128], strides = [1, 1]} : vector<8x384xf32> to vector<8x128xf32>
    %608 = vector.extract_strided_slice %606 {offsets = [0, 0], sizes = [8, 128], strides = [1, 1]} : vector<8x384xf32> to vector<8x128xf32>
    %609 = arith.addf %607, %608 : vector<8x128xf32>
    %610 = arith.negf %609 : vector<8x128xf32>
    %611 = math.exp %610 : vector<8x128xf32>
    %cst_278 = arith.constant 1.000000e+00 : f32
    %612 = vector.broadcast %cst_278 : f32 to vector<8x128xf32>
    %613 = arith.addf %612, %611 : vector<8x128xf32>
    %614 = arith.divf %612, %613 : vector<8x128xf32>
    %615 = vector.extract_strided_slice %604 {offsets = [0, 128], sizes = [8, 128], strides = [1, 1]} : vector<8x384xf32> to vector<8x128xf32>
    %616 = vector.extract_strided_slice %606 {offsets = [0, 128], sizes = [8, 128], strides = [1, 1]} : vector<8x384xf32> to vector<8x128xf32>
    %617 = arith.addf %615, %616 : vector<8x128xf32>
    %618 = arith.negf %617 : vector<8x128xf32>
    %619 = math.exp %618 : vector<8x128xf32>
    %cst_279 = arith.constant 1.000000e+00 : f32
    %620 = vector.broadcast %cst_279 : f32 to vector<8x128xf32>
    %621 = arith.addf %620, %619 : vector<8x128xf32>
    %622 = arith.divf %620, %621 : vector<8x128xf32>
    %623 = vector.extract_strided_slice %604 {offsets = [0, 256], sizes = [8, 128], strides = [1, 1]} : vector<8x384xf32> to vector<8x128xf32>
    %624 = vector.extract_strided_slice %606 {offsets = [0, 256], sizes = [8, 128], strides = [1, 1]} : vector<8x384xf32> to vector<8x128xf32>
    %625 = arith.mulf %614, %624 : vector<8x128xf32>
    %626 = arith.addf %623, %625 : vector<8x128xf32>
    %627 = math.tanh %626 : vector<8x128xf32>
    %cst_280 = arith.constant 1.000000e+00 : f32
    %628 = vector.broadcast %cst_280 : f32 to vector<8x128xf32>
    %629 = arith.subf %628, %622 : vector<8x128xf32>
    %630 = arith.mulf %629, %627 : vector<8x128xf32>
    %631 = arith.mulf %622, %569 : vector<8x128xf32>
    %632 = arith.addf %630, %631 : vector<8x128xf32>
    %633 = arith.select %138, %632, %569 : vector<8x128xi1>, vector<8x128xf32>
    %634 = vector.extract_strided_slice %603 {offsets = [0, 384], sizes = [8, 384], strides = [1, 1]} : vector<8x768xf32> to vector<8x384xf32>
    %635 = vector.extract_strided_slice %605 {offsets = [0, 0], sizes = [8, 128], strides = [1, 1]} : vector<8x384xf32> to vector<8x128xf32>
    %636 = vector.extract_strided_slice %634 {offsets = [0, 0], sizes = [8, 128], strides = [1, 1]} : vector<8x384xf32> to vector<8x128xf32>
    %637 = arith.addf %635, %636 : vector<8x128xf32>
    %638 = arith.negf %637 : vector<8x128xf32>
    %639 = math.exp %638 : vector<8x128xf32>
    %cst_281 = arith.constant 1.000000e+00 : f32
    %640 = vector.broadcast %cst_281 : f32 to vector<8x128xf32>
    %641 = arith.addf %640, %639 : vector<8x128xf32>
    %642 = arith.divf %640, %641 : vector<8x128xf32>
    %643 = vector.extract_strided_slice %605 {offsets = [0, 128], sizes = [8, 128], strides = [1, 1]} : vector<8x384xf32> to vector<8x128xf32>
    %644 = vector.extract_strided_slice %634 {offsets = [0, 128], sizes = [8, 128], strides = [1, 1]} : vector<8x384xf32> to vector<8x128xf32>
    %645 = arith.addf %643, %644 : vector<8x128xf32>
    %646 = arith.negf %645 : vector<8x128xf32>
    %647 = math.exp %646 : vector<8x128xf32>
    %cst_282 = arith.constant 1.000000e+00 : f32
    %648 = vector.broadcast %cst_282 : f32 to vector<8x128xf32>
    %649 = arith.addf %648, %647 : vector<8x128xf32>
    %650 = arith.divf %648, %649 : vector<8x128xf32>
    %651 = vector.extract_strided_slice %605 {offsets = [0, 256], sizes = [8, 128], strides = [1, 1]} : vector<8x384xf32> to vector<8x128xf32>
    %652 = vector.extract_strided_slice %634 {offsets = [0, 256], sizes = [8, 128], strides = [1, 1]} : vector<8x384xf32> to vector<8x128xf32>
    %653 = arith.mulf %642, %652 : vector<8x128xf32>
    %654 = arith.addf %651, %653 : vector<8x128xf32>
    %655 = math.tanh %654 : vector<8x128xf32>
    %cst_283 = arith.constant 1.000000e+00 : f32
    %656 = vector.broadcast %cst_283 : f32 to vector<8x128xf32>
    %657 = arith.subf %656, %650 : vector<8x128xf32>
    %658 = arith.mulf %657, %655 : vector<8x128xf32>
    %659 = arith.mulf %650, %597 : vector<8x128xf32>
    %660 = arith.addf %658, %659 : vector<8x128xf32>
    %661 = arith.select %110, %660, %597 : vector<8x128xi1>, vector<8x128xf32>
    %c56_284 = arith.constant 56 : index
    %c0_285 = arith.constant 0 : index
    %662 = vector.load %arg14[%c56_284, %c0_285] : memref<64x256xf32, #tpu.memory_space<vmem>>, vector<8x128xf32>
    tpu.vector_store %arg14[%c56_284, %c0_285], %633 {strides = array<i32>} : memref<64x256xf32, #tpu.memory_space<vmem>>, vector<8x128xf32>,
    %c0_286 = arith.constant 0 : index
    %c128_287 = arith.constant 128 : index
    %663 = vector.load %arg14[%c0_286, %c128_287] : memref<64x256xf32, #tpu.memory_space<vmem>>, vector<8x128xf32>
    tpu.vector_store %arg14[%c0_286, %c128_287], %661 {strides = array<i32>} : memref<64x256xf32, #tpu.memory_space<vmem>>, vector<8x128xf32>,
    %c0_288 = arith.constant 0 : index
    %c0_289 = arith.constant 0 : index
    %664 = vector.load %arg14[%c0_288, %c0_289] : memref<64x256xf32, #tpu.memory_space<vmem>>, vector<64x256xf32>
    %665 = arith.truncf %664 : vector<64x256xf32> to vector<64x256xbf16>
    %c0_290 = arith.constant 0 : index
    %c0_291 = arith.constant 0 : index
    %666 = vector.load %arg17[%c0_290, %c0_291] : memref<256x768xbf16, #tpu.memory_space<vmem>>, vector<256x768xbf16>
    %cst_292 = arith.constant dense<0.000000e+00> : vector<64x768xf32>
    %667 = tpu.matmul %665, %666, %cst_292 {dimension_numbers = #tpu.dot_dimension_numbers<[1], [0], [0], [1], [0, 0, 1, 1], [], []>} : vector<64x256xbf16>, vector<256x768xbf16>, vector<64x768xf32> -> vector<64x768xf32>
    %c0_293 = arith.constant 0 : index
    %c0_294 = arith.constant 0 : index
    %668 = vector.load %arg7[%c0_293, %c0_294] : memref<1x768xf32, #tpu.memory_space<vmem>>, vector<1x768xf32>
    %669 = vector.broadcast %668 : vector<1x768xf32> to vector<64x768xf32>
    %670 = arith.addf %667, %669 : vector<64x768xf32>
    %c0_295 = arith.constant 0 : index
    %c0_296 = arith.constant 0 : index
    %671 = vector.load %arg13[%c0_295, %c0_296] : memref<64x768xf32, #tpu.memory_space<vmem>>, vector<64x768xf32>
    tpu.vector_store %arg13[%c0_295, %c0_296], %670 {strides = array<i32>} : memref<64x768xf32, #tpu.memory_space<vmem>>, vector<64x768xf32>,
    %c0_297 = arith.constant 0 : index
    %c0_298 = arith.constant 0 : index
    %672 = vector.load %arg18[%c0_297, %c0_298] : memref<256x768xbf16, #tpu.memory_space<vmem>>, vector<256x768xbf16>
    %c0_299 = arith.constant 0 : index
    %c0_300 = arith.constant 0 : index
    %673 = vector.load %arg9[%c0_299, %c0_300] : memref<1x768xf32, #tpu.memory_space<vmem>>, vector<1x768xf32>
    %674 = vector.shape_cast %673 : vector<1x768xf32> to vector<1x768xf32>
    %675 = vector.broadcast %674 : vector<1x768xf32> to vector<8x768xf32>
    %cst_301 = arith.constant 0.000000e+00 : f32
    %676 = vector.broadcast %cst_301 : f32 to vector<8x128xf32>
    %cst_302 = arith.constant 0.000000e+00 : f32
    %677 = vector.broadcast %cst_302 : f32 to vector<8x128xf32>
    %678 = tpu.concatenate %676, %677 in 1 : vector<8x128xf32>, vector<8x128xf32> -> vector<8x256xf32>
    %679 = arith.truncf %678 : vector<8x256xf32> to vector<8x256xbf16>
    %cst_303 = arith.constant dense<0.000000e+00> : vector<8x768xf32>
    %680 = tpu.matmul %679, %672, %cst_303 {dimension_numbers = #tpu.dot_dimension_numbers<[1], [0], [0], [1], [0, 0, 1, 1], [], []>} : vector<8x256xbf16>, vector<256x768xbf16>, vector<8x768xf32> -> vector<8x768xf32>
    %681 = arith.addf %680, %675 : vector<8x768xf32>
    %c0_304 = arith.constant 0 : index
    %c0_305 = arith.constant 0 : index
    %682 = vector.load %arg13[%c0_304, %c0_305] : memref<64x768xf32, #tpu.memory_space<vmem>>, vector<8x384xf32>
    %c56_306 = arith.constant 56 : index
    %c384_307 = arith.constant 384 : index
    %683 = vector.load %arg13[%c56_306, %c384_307] : memref<64x768xf32, #tpu.memory_space<vmem>>, vector<8x384xf32>
    %684 = vector.extract_strided_slice %681 {offsets = [0, 0], sizes = [8, 384], strides = [1, 1]} : vector<8x768xf32> to vector<8x384xf32>
    %685 = vector.extract_strided_slice %682 {offsets = [0, 0], sizes = [8, 128], strides = [1, 1]} : vector<8x384xf32> to vector<8x128xf32>
    %686 = vector.extract_strided_slice %684 {offsets = [0, 0], sizes = [8, 128], strides = [1, 1]} : vector<8x384xf32> to vector<8x128xf32>
    %687 = arith.addf %685, %686 : vector<8x128xf32>
    %688 = arith.negf %687 : vector<8x128xf32>
    %689 = math.exp %688 : vector<8x128xf32>
    %cst_308 = arith.constant 1.000000e+00 : f32
    %690 = vector.broadcast %cst_308 : f32 to vector<8x128xf32>
    %691 = arith.addf %690, %689 : vector<8x128xf32>
    %692 = arith.divf %690, %691 : vector<8x128xf32>
    %693 = vector.extract_strided_slice %682 {offsets = [0, 128], sizes = [8, 128], strides = [1, 1]} : vector<8x384xf32> to vector<8x128xf32>
    %694 = vector.extract_strided_slice %684 {offsets = [0, 128], sizes = [8, 128], strides = [1, 1]} : vector<8x384xf32> to vector<8x128xf32>
    %695 = arith.addf %693, %694 : vector<8x128xf32>
    %696 = arith.negf %695 : vector<8x128xf32>
    %697 = math.exp %696 : vector<8x128xf32>
    %cst_309 = arith.constant 1.000000e+00 : f32
    %698 = vector.broadcast %cst_309 : f32 to vector<8x128xf32>
    %699 = arith.addf %698, %697 : vector<8x128xf32>
    %700 = arith.divf %698, %699 : vector<8x128xf32>
    %701 = vector.extract_strided_slice %682 {offsets = [0, 256], sizes = [8, 128], strides = [1, 1]} : vector<8x384xf32> to vector<8x128xf32>
    %702 = vector.extract_strided_slice %684 {offsets = [0, 256], sizes = [8, 128], strides = [1, 1]} : vector<8x384xf32> to vector<8x128xf32>
    %703 = arith.mulf %692, %702 : vector<8x128xf32>
    %704 = arith.addf %701, %703 : vector<8x128xf32>
    %705 = math.tanh %704 : vector<8x128xf32>
    %cst_310 = arith.constant 1.000000e+00 : f32
    %706 = vector.broadcast %cst_310 : f32 to vector<8x128xf32>
    %707 = arith.subf %706, %700 : vector<8x128xf32>
    %708 = arith.mulf %707, %705 : vector<8x128xf32>
    %709 = arith.mulf %700, %676 : vector<8x128xf32>
    %710 = arith.addf %708, %709 : vector<8x128xf32>
    %711 = arith.select %110, %710, %676 : vector<8x128xi1>, vector<8x128xf32>
    %712 = vector.extract_strided_slice %681 {offsets = [0, 384], sizes = [8, 384], strides = [1, 1]} : vector<8x768xf32> to vector<8x384xf32>
    %713 = vector.extract_strided_slice %683 {offsets = [0, 0], sizes = [8, 128], strides = [1, 1]} : vector<8x384xf32> to vector<8x128xf32>
    %714 = vector.extract_strided_slice %712 {offsets = [0, 0], sizes = [8, 128], strides = [1, 1]} : vector<8x384xf32> to vector<8x128xf32>
    %715 = arith.addf %713, %714 : vector<8x128xf32>
    %716 = arith.negf %715 : vector<8x128xf32>
    %717 = math.exp %716 : vector<8x128xf32>
    %cst_311 = arith.constant 1.000000e+00 : f32
    %718 = vector.broadcast %cst_311 : f32 to vector<8x128xf32>
    %719 = arith.addf %718, %717 : vector<8x128xf32>
    %720 = arith.divf %718, %719 : vector<8x128xf32>
    %721 = vector.extract_strided_slice %683 {offsets = [0, 128], sizes = [8, 128], strides = [1, 1]} : vector<8x384xf32> to vector<8x128xf32>
    %722 = vector.extract_strided_slice %712 {offsets = [0, 128], sizes = [8, 128], strides = [1, 1]} : vector<8x384xf32> to vector<8x128xf32>
    %723 = arith.addf %721, %722 : vector<8x128xf32>
    %724 = arith.negf %723 : vector<8x128xf32>
    %725 = math.exp %724 : vector<8x128xf32>
    %cst_312 = arith.constant 1.000000e+00 : f32
    %726 = vector.broadcast %cst_312 : f32 to vector<8x128xf32>
    %727 = arith.addf %726, %725 : vector<8x128xf32>
    %728 = arith.divf %726, %727 : vector<8x128xf32>
    %729 = vector.extract_strided_slice %683 {offsets = [0, 256], sizes = [8, 128], strides = [1, 1]} : vector<8x384xf32> to vector<8x128xf32>
    %730 = vector.extract_strided_slice %712 {offsets = [0, 256], sizes = [8, 128], strides = [1, 1]} : vector<8x384xf32> to vector<8x128xf32>
    %731 = arith.mulf %720, %730 : vector<8x128xf32>
    %732 = arith.addf %729, %731 : vector<8x128xf32>
    %733 = math.tanh %732 : vector<8x128xf32>
    %cst_313 = arith.constant 1.000000e+00 : f32
    %734 = vector.broadcast %cst_313 : f32 to vector<8x128xf32>
    %735 = arith.subf %734, %728 : vector<8x128xf32>
    %736 = arith.mulf %735, %733 : vector<8x128xf32>
    %737 = arith.mulf %728, %677 : vector<8x128xf32>
    %738 = arith.addf %736, %737 : vector<8x128xf32>
    %739 = arith.select %138, %738, %677 : vector<8x128xi1>, vector<8x128xf32>
    %740 = tpu.concatenate %711, %739 in 1 : vector<8x128xf32>, vector<8x128xf32> -> vector<8x256xf32>
    %741 = arith.truncf %740 : vector<8x256xf32> to vector<8x256xbf16>
    %cst_314 = arith.constant dense<0.000000e+00> : vector<8x768xf32>
    %742 = tpu.matmul %741, %672, %cst_314 {dimension_numbers = #tpu.dot_dimension_numbers<[1], [0], [0], [1], [0, 0, 1, 1], [], []>} : vector<8x256xbf16>, vector<256x768xbf16>, vector<8x768xf32> -> vector<8x768xf32>
    %743 = arith.addf %742, %675 : vector<8x768xf32>
    %c8_315 = arith.constant 8 : index
    %c0_316 = arith.constant 0 : index
    %744 = vector.load %arg13[%c8_315, %c0_316] : memref<64x768xf32, #tpu.memory_space<vmem>>, vector<8x384xf32>
    %c48_317 = arith.constant 48 : index
    %c384_318 = arith.constant 384 : index
    %745 = vector.load %arg13[%c48_317, %c384_318] : memref<64x768xf32, #tpu.memory_space<vmem>>, vector<8x384xf32>
    %746 = vector.extract_strided_slice %743 {offsets = [0, 0], sizes = [8, 384], strides = [1, 1]} : vector<8x768xf32> to vector<8x384xf32>
    %747 = vector.extract_strided_slice %744 {offsets = [0, 0], sizes = [8, 128], strides = [1, 1]} : vector<8x384xf32> to vector<8x128xf32>
    %748 = vector.extract_strided_slice %746 {offsets = [0, 0], sizes = [8, 128], strides = [1, 1]} : vector<8x384xf32> to vector<8x128xf32>
    %749 = arith.addf %747, %748 : vector<8x128xf32>
    %750 = arith.negf %749 : vector<8x128xf32>
    %751 = math.exp %750 : vector<8x128xf32>
    %cst_319 = arith.constant 1.000000e+00 : f32
    %752 = vector.broadcast %cst_319 : f32 to vector<8x128xf32>
    %753 = arith.addf %752, %751 : vector<8x128xf32>
    %754 = arith.divf %752, %753 : vector<8x128xf32>
    %755 = vector.extract_strided_slice %744 {offsets = [0, 128], sizes = [8, 128], strides = [1, 1]} : vector<8x384xf32> to vector<8x128xf32>
    %756 = vector.extract_strided_slice %746 {offsets = [0, 128], sizes = [8, 128], strides = [1, 1]} : vector<8x384xf32> to vector<8x128xf32>
    %757 = arith.addf %755, %756 : vector<8x128xf32>
    %758 = arith.negf %757 : vector<8x128xf32>
    %759 = math.exp %758 : vector<8x128xf32>
    %cst_320 = arith.constant 1.000000e+00 : f32
    %760 = vector.broadcast %cst_320 : f32 to vector<8x128xf32>
    %761 = arith.addf %760, %759 : vector<8x128xf32>
    %762 = arith.divf %760, %761 : vector<8x128xf32>
    %763 = vector.extract_strided_slice %744 {offsets = [0, 256], sizes = [8, 128], strides = [1, 1]} : vector<8x384xf32> to vector<8x128xf32>
    %764 = vector.extract_strided_slice %746 {offsets = [0, 256], sizes = [8, 128], strides = [1, 1]} : vector<8x384xf32> to vector<8x128xf32>
    %765 = arith.mulf %754, %764 : vector<8x128xf32>
    %766 = arith.addf %763, %765 : vector<8x128xf32>
    %767 = math.tanh %766 : vector<8x128xf32>
    %cst_321 = arith.constant 1.000000e+00 : f32
    %768 = vector.broadcast %cst_321 : f32 to vector<8x128xf32>
    %769 = arith.subf %768, %762 : vector<8x128xf32>
    %770 = arith.mulf %769, %767 : vector<8x128xf32>
    %771 = arith.mulf %762, %711 : vector<8x128xf32>
    %772 = arith.addf %770, %771 : vector<8x128xf32>
    %773 = arith.select %114, %772, %711 : vector<8x128xi1>, vector<8x128xf32>
    %774 = vector.extract_strided_slice %743 {offsets = [0, 384], sizes = [8, 384], strides = [1, 1]} : vector<8x768xf32> to vector<8x384xf32>
    %775 = vector.extract_strided_slice %745 {offsets = [0, 0], sizes = [8, 128], strides = [1, 1]} : vector<8x384xf32> to vector<8x128xf32>
    %776 = vector.extract_strided_slice %774 {offsets = [0, 0], sizes = [8, 128], strides = [1, 1]} : vector<8x384xf32> to vector<8x128xf32>
    %777 = arith.addf %775, %776 : vector<8x128xf32>
    %778 = arith.negf %777 : vector<8x128xf32>
    %779 = math.exp %778 : vector<8x128xf32>
    %cst_322 = arith.constant 1.000000e+00 : f32
    %780 = vector.broadcast %cst_322 : f32 to vector<8x128xf32>
    %781 = arith.addf %780, %779 : vector<8x128xf32>
    %782 = arith.divf %780, %781 : vector<8x128xf32>
    %783 = vector.extract_strided_slice %745 {offsets = [0, 128], sizes = [8, 128], strides = [1, 1]} : vector<8x384xf32> to vector<8x128xf32>
    %784 = vector.extract_strided_slice %774 {offsets = [0, 128], sizes = [8, 128], strides = [1, 1]} : vector<8x384xf32> to vector<8x128xf32>
    %785 = arith.addf %783, %784 : vector<8x128xf32>
    %786 = arith.negf %785 : vector<8x128xf32>
    %787 = math.exp %786 : vector<8x128xf32>
    %cst_323 = arith.constant 1.000000e+00 : f32
    %788 = vector.broadcast %cst_323 : f32 to vector<8x128xf32>
    %789 = arith.addf %788, %787 : vector<8x128xf32>
    %790 = arith.divf %788, %789 : vector<8x128xf32>
    %791 = vector.extract_strided_slice %745 {offsets = [0, 256], sizes = [8, 128], strides = [1, 1]} : vector<8x384xf32> to vector<8x128xf32>
    %792 = vector.extract_strided_slice %774 {offsets = [0, 256], sizes = [8, 128], strides = [1, 1]} : vector<8x384xf32> to vector<8x128xf32>
    %793 = arith.mulf %782, %792 : vector<8x128xf32>
    %794 = arith.addf %791, %793 : vector<8x128xf32>
    %795 = math.tanh %794 : vector<8x128xf32>
    %cst_324 = arith.constant 1.000000e+00 : f32
    %796 = vector.broadcast %cst_324 : f32 to vector<8x128xf32>
    %797 = arith.subf %796, %790 : vector<8x128xf32>
    %798 = arith.mulf %797, %795 : vector<8x128xf32>
    %799 = arith.mulf %790, %739 : vector<8x128xf32>
    %800 = arith.addf %798, %799 : vector<8x128xf32>
    %801 = arith.select %134, %800, %739 : vector<8x128xi1>, vector<8x128xf32>
    %802 = tpu.concatenate %773, %801 in 1 : vector<8x128xf32>, vector<8x128xf32> -> vector<8x256xf32>
    %803 = arith.truncf %802 : vector<8x256xf32> to vector<8x256xbf16>
    %cst_325 = arith.constant dense<0.000000e+00> : vector<8x768xf32>
    %804 = tpu.matmul %803, %672, %cst_325 {dimension_numbers = #tpu.dot_dimension_numbers<[1], [0], [0], [1], [0, 0, 1, 1], [], []>} : vector<8x256xbf16>, vector<256x768xbf16>, vector<8x768xf32> -> vector<8x768xf32>
    %805 = arith.addf %804, %675 : vector<8x768xf32>
    %c16_326 = arith.constant 16 : index
    %c0_327 = arith.constant 0 : index
    %806 = vector.load %arg13[%c16_326, %c0_327] : memref<64x768xf32, #tpu.memory_space<vmem>>, vector<8x384xf32>
    %c40_328 = arith.constant 40 : index
    %c384_329 = arith.constant 384 : index
    %807 = vector.load %arg13[%c40_328, %c384_329] : memref<64x768xf32, #tpu.memory_space<vmem>>, vector<8x384xf32>
    %808 = vector.extract_strided_slice %805 {offsets = [0, 0], sizes = [8, 384], strides = [1, 1]} : vector<8x768xf32> to vector<8x384xf32>
    %809 = vector.extract_strided_slice %806 {offsets = [0, 0], sizes = [8, 128], strides = [1, 1]} : vector<8x384xf32> to vector<8x128xf32>
    %810 = vector.extract_strided_slice %808 {offsets = [0, 0], sizes = [8, 128], strides = [1, 1]} : vector<8x384xf32> to vector<8x128xf32>
    %811 = arith.addf %809, %810 : vector<8x128xf32>
    %812 = arith.negf %811 : vector<8x128xf32>
    %813 = math.exp %812 : vector<8x128xf32>
    %cst_330 = arith.constant 1.000000e+00 : f32
    %814 = vector.broadcast %cst_330 : f32 to vector<8x128xf32>
    %815 = arith.addf %814, %813 : vector<8x128xf32>
    %816 = arith.divf %814, %815 : vector<8x128xf32>
    %817 = vector.extract_strided_slice %806 {offsets = [0, 128], sizes = [8, 128], strides = [1, 1]} : vector<8x384xf32> to vector<8x128xf32>
    %818 = vector.extract_strided_slice %808 {offsets = [0, 128], sizes = [8, 128], strides = [1, 1]} : vector<8x384xf32> to vector<8x128xf32>
    %819 = arith.addf %817, %818 : vector<8x128xf32>
    %820 = arith.negf %819 : vector<8x128xf32>
    %821 = math.exp %820 : vector<8x128xf32>
    %cst_331 = arith.constant 1.000000e+00 : f32
    %822 = vector.broadcast %cst_331 : f32 to vector<8x128xf32>
    %823 = arith.addf %822, %821 : vector<8x128xf32>
    %824 = arith.divf %822, %823 : vector<8x128xf32>
    %825 = vector.extract_strided_slice %806 {offsets = [0, 256], sizes = [8, 128], strides = [1, 1]} : vector<8x384xf32> to vector<8x128xf32>
    %826 = vector.extract_strided_slice %808 {offsets = [0, 256], sizes = [8, 128], strides = [1, 1]} : vector<8x384xf32> to vector<8x128xf32>
    %827 = arith.mulf %816, %826 : vector<8x128xf32>
    %828 = arith.addf %825, %827 : vector<8x128xf32>
    %829 = math.tanh %828 : vector<8x128xf32>
    %cst_332 = arith.constant 1.000000e+00 : f32
    %830 = vector.broadcast %cst_332 : f32 to vector<8x128xf32>
    %831 = arith.subf %830, %824 : vector<8x128xf32>
    %832 = arith.mulf %831, %829 : vector<8x128xf32>
    %833 = arith.mulf %824, %773 : vector<8x128xf32>
    %834 = arith.addf %832, %833 : vector<8x128xf32>
    %835 = arith.select %118, %834, %773 : vector<8x128xi1>, vector<8x128xf32>
    %836 = vector.extract_strided_slice %805 {offsets = [0, 384], sizes = [8, 384], strides = [1, 1]} : vector<8x768xf32> to vector<8x384xf32>
    %837 = vector.extract_strided_slice %807 {offsets = [0, 0], sizes = [8, 128], strides = [1, 1]} : vector<8x384xf32> to vector<8x128xf32>
    %838 = vector.extract_strided_slice %836 {offsets = [0, 0], sizes = [8, 128], strides = [1, 1]} : vector<8x384xf32> to vector<8x128xf32>
    %839 = arith.addf %837, %838 : vector<8x128xf32>
    %840 = arith.negf %839 : vector<8x128xf32>
    %841 = math.exp %840 : vector<8x128xf32>
    %cst_333 = arith.constant 1.000000e+00 : f32
    %842 = vector.broadcast %cst_333 : f32 to vector<8x128xf32>
    %843 = arith.addf %842, %841 : vector<8x128xf32>
    %844 = arith.divf %842, %843 : vector<8x128xf32>
    %845 = vector.extract_strided_slice %807 {offsets = [0, 128], sizes = [8, 128], strides = [1, 1]} : vector<8x384xf32> to vector<8x128xf32>
    %846 = vector.extract_strided_slice %836 {offsets = [0, 128], sizes = [8, 128], strides = [1, 1]} : vector<8x384xf32> to vector<8x128xf32>
    %847 = arith.addf %845, %846 : vector<8x128xf32>
    %848 = arith.negf %847 : vector<8x128xf32>
    %849 = math.exp %848 : vector<8x128xf32>
    %cst_334 = arith.constant 1.000000e+00 : f32
    %850 = vector.broadcast %cst_334 : f32 to vector<8x128xf32>
    %851 = arith.addf %850, %849 : vector<8x128xf32>
    %852 = arith.divf %850, %851 : vector<8x128xf32>
    %853 = vector.extract_strided_slice %807 {offsets = [0, 256], sizes = [8, 128], strides = [1, 1]} : vector<8x384xf32> to vector<8x128xf32>
    %854 = vector.extract_strided_slice %836 {offsets = [0, 256], sizes = [8, 128], strides = [1, 1]} : vector<8x384xf32> to vector<8x128xf32>
    %855 = arith.mulf %844, %854 : vector<8x128xf32>
    %856 = arith.addf %853, %855 : vector<8x128xf32>
    %857 = math.tanh %856 : vector<8x128xf32>
    %cst_335 = arith.constant 1.000000e+00 : f32
    %858 = vector.broadcast %cst_335 : f32 to vector<8x128xf32>
    %859 = arith.subf %858, %852 : vector<8x128xf32>
    %860 = arith.mulf %859, %857 : vector<8x128xf32>
    %861 = arith.mulf %852, %801 : vector<8x128xf32>
    %862 = arith.addf %860, %861 : vector<8x128xf32>
    %863 = arith.select %130, %862, %801 : vector<8x128xi1>, vector<8x128xf32>
    %864 = tpu.concatenate %835, %863 in 1 : vector<8x128xf32>, vector<8x128xf32> -> vector<8x256xf32>
    %865 = arith.truncf %864 : vector<8x256xf32> to vector<8x256xbf16>
    %cst_336 = arith.constant dense<0.000000e+00> : vector<8x768xf32>
    %866 = tpu.matmul %865, %672, %cst_336 {dimension_numbers = #tpu.dot_dimension_numbers<[1], [0], [0], [1], [0, 0, 1, 1], [], []>} : vector<8x256xbf16>, vector<256x768xbf16>, vector<8x768xf32> -> vector<8x768xf32>
    %867 = arith.addf %866, %675 : vector<8x768xf32>
    %c24_337 = arith.constant 24 : index
    %c0_338 = arith.constant 0 : index
    %868 = vector.load %arg13[%c24_337, %c0_338] : memref<64x768xf32, #tpu.memory_space<vmem>>, vector<8x384xf32>
    %c32_339 = arith.constant 32 : index
    %c384_340 = arith.constant 384 : index
    %869 = vector.load %arg13[%c32_339, %c384_340] : memref<64x768xf32, #tpu.memory_space<vmem>>, vector<8x384xf32>
    %870 = vector.extract_strided_slice %867 {offsets = [0, 0], sizes = [8, 384], strides = [1, 1]} : vector<8x768xf32> to vector<8x384xf32>
    %871 = vector.extract_strided_slice %868 {offsets = [0, 0], sizes = [8, 128], strides = [1, 1]} : vector<8x384xf32> to vector<8x128xf32>
    %872 = vector.extract_strided_slice %870 {offsets = [0, 0], sizes = [8, 128], strides = [1, 1]} : vector<8x384xf32> to vector<8x128xf32>
    %873 = arith.addf %871, %872 : vector<8x128xf32>
    %874 = arith.negf %873 : vector<8x128xf32>
    %875 = math.exp %874 : vector<8x128xf32>
    %cst_341 = arith.constant 1.000000e+00 : f32
    %876 = vector.broadcast %cst_341 : f32 to vector<8x128xf32>
    %877 = arith.addf %876, %875 : vector<8x128xf32>
    %878 = arith.divf %876, %877 : vector<8x128xf32>
    %879 = vector.extract_strided_slice %868 {offsets = [0, 128], sizes = [8, 128], strides = [1, 1]} : vector<8x384xf32> to vector<8x128xf32>
    %880 = vector.extract_strided_slice %870 {offsets = [0, 128], sizes = [8, 128], strides = [1, 1]} : vector<8x384xf32> to vector<8x128xf32>
    %881 = arith.addf %879, %880 : vector<8x128xf32>
    %882 = arith.negf %881 : vector<8x128xf32>
    %883 = math.exp %882 : vector<8x128xf32>
    %cst_342 = arith.constant 1.000000e+00 : f32
    %884 = vector.broadcast %cst_342 : f32 to vector<8x128xf32>
    %885 = arith.addf %884, %883 : vector<8x128xf32>
    %886 = arith.divf %884, %885 : vector<8x128xf32>
    %887 = vector.extract_strided_slice %868 {offsets = [0, 256], sizes = [8, 128], strides = [1, 1]} : vector<8x384xf32> to vector<8x128xf32>
    %888 = vector.extract_strided_slice %870 {offsets = [0, 256], sizes = [8, 128], strides = [1, 1]} : vector<8x384xf32> to vector<8x128xf32>
    %889 = arith.mulf %878, %888 : vector<8x128xf32>
    %890 = arith.addf %887, %889 : vector<8x128xf32>
    %891 = math.tanh %890 : vector<8x128xf32>
    %cst_343 = arith.constant 1.000000e+00 : f32
    %892 = vector.broadcast %cst_343 : f32 to vector<8x128xf32>
    %893 = arith.subf %892, %886 : vector<8x128xf32>
    %894 = arith.mulf %893, %891 : vector<8x128xf32>
    %895 = arith.mulf %886, %835 : vector<8x128xf32>
    %896 = arith.addf %894, %895 : vector<8x128xf32>
    %897 = arith.select %122, %896, %835 : vector<8x128xi1>, vector<8x128xf32>
    %898 = vector.extract_strided_slice %867 {offsets = [0, 384], sizes = [8, 384], strides = [1, 1]} : vector<8x768xf32> to vector<8x384xf32>
    %899 = vector.extract_strided_slice %869 {offsets = [0, 0], sizes = [8, 128], strides = [1, 1]} : vector<8x384xf32> to vector<8x128xf32>
    %900 = vector.extract_strided_slice %898 {offsets = [0, 0], sizes = [8, 128], strides = [1, 1]} : vector<8x384xf32> to vector<8x128xf32>
    %901 = arith.addf %899, %900 : vector<8x128xf32>
    %902 = arith.negf %901 : vector<8x128xf32>
    %903 = math.exp %902 : vector<8x128xf32>
    %cst_344 = arith.constant 1.000000e+00 : f32
    %904 = vector.broadcast %cst_344 : f32 to vector<8x128xf32>
    %905 = arith.addf %904, %903 : vector<8x128xf32>
    %906 = arith.divf %904, %905 : vector<8x128xf32>
    %907 = vector.extract_strided_slice %869 {offsets = [0, 128], sizes = [8, 128], strides = [1, 1]} : vector<8x384xf32> to vector<8x128xf32>
    %908 = vector.extract_strided_slice %898 {offsets = [0, 128], sizes = [8, 128], strides = [1, 1]} : vector<8x384xf32> to vector<8x128xf32>
    %909 = arith.addf %907, %908 : vector<8x128xf32>
    %910 = arith.negf %909 : vector<8x128xf32>
    %911 = math.exp %910 : vector<8x128xf32>
    %cst_345 = arith.constant 1.000000e+00 : f32
    %912 = vector.broadcast %cst_345 : f32 to vector<8x128xf32>
    %913 = arith.addf %912, %911 : vector<8x128xf32>
    %914 = arith.divf %912, %913 : vector<8x128xf32>
    %915 = vector.extract_strided_slice %869 {offsets = [0, 256], sizes = [8, 128], strides = [1, 1]} : vector<8x384xf32> to vector<8x128xf32>
    %916 = vector.extract_strided_slice %898 {offsets = [0, 256], sizes = [8, 128], strides = [1, 1]} : vector<8x384xf32> to vector<8x128xf32>
    %917 = arith.mulf %906, %916 : vector<8x128xf32>
    %918 = arith.addf %915, %917 : vector<8x128xf32>
    %919 = math.tanh %918 : vector<8x128xf32>
    %cst_346 = arith.constant 1.000000e+00 : f32
    %920 = vector.broadcast %cst_346 : f32 to vector<8x128xf32>
    %921 = arith.subf %920, %914 : vector<8x128xf32>
    %922 = arith.mulf %921, %919 : vector<8x128xf32>
    %923 = arith.mulf %914, %863 : vector<8x128xf32>
    %924 = arith.addf %922, %923 : vector<8x128xf32>
    %925 = arith.select %126, %924, %863 : vector<8x128xi1>, vector<8x128xf32>
    %926 = tpu.concatenate %897, %925 in 1 : vector<8x128xf32>, vector<8x128xf32> -> vector<8x256xf32>
    %927 = arith.truncf %926 : vector<8x256xf32> to vector<8x256xbf16>
    %cst_347 = arith.constant dense<0.000000e+00> : vector<8x768xf32>
    %928 = tpu.matmul %927, %672, %cst_347 {dimension_numbers = #tpu.dot_dimension_numbers<[1], [0], [0], [1], [0, 0, 1, 1], [], []>} : vector<8x256xbf16>, vector<256x768xbf16>, vector<8x768xf32> -> vector<8x768xf32>
    %929 = arith.addf %928, %675 : vector<8x768xf32>
    %c32_348 = arith.constant 32 : index
    %c0_349 = arith.constant 0 : index
    %930 = vector.load %arg13[%c32_348, %c0_349] : memref<64x768xf32, #tpu.memory_space<vmem>>, vector<8x384xf32>
    %c24_350 = arith.constant 24 : index
    %c384_351 = arith.constant 384 : index
    %931 = vector.load %arg13[%c24_350, %c384_351] : memref<64x768xf32, #tpu.memory_space<vmem>>, vector<8x384xf32>
    %932 = vector.extract_strided_slice %929 {offsets = [0, 0], sizes = [8, 384], strides = [1, 1]} : vector<8x768xf32> to vector<8x384xf32>
    %933 = vector.extract_strided_slice %930 {offsets = [0, 0], sizes = [8, 128], strides = [1, 1]} : vector<8x384xf32> to vector<8x128xf32>
    %934 = vector.extract_strided_slice %932 {offsets = [0, 0], sizes = [8, 128], strides = [1, 1]} : vector<8x384xf32> to vector<8x128xf32>
    %935 = arith.addf %933, %934 : vector<8x128xf32>
    %936 = arith.negf %935 : vector<8x128xf32>
    %937 = math.exp %936 : vector<8x128xf32>
    %cst_352 = arith.constant 1.000000e+00 : f32
    %938 = vector.broadcast %cst_352 : f32 to vector<8x128xf32>
    %939 = arith.addf %938, %937 : vector<8x128xf32>
    %940 = arith.divf %938, %939 : vector<8x128xf32>
    %941 = vector.extract_strided_slice %930 {offsets = [0, 128], sizes = [8, 128], strides = [1, 1]} : vector<8x384xf32> to vector<8x128xf32>
    %942 = vector.extract_strided_slice %932 {offsets = [0, 128], sizes = [8, 128], strides = [1, 1]} : vector<8x384xf32> to vector<8x128xf32>
    %943 = arith.addf %941, %942 : vector<8x128xf32>
    %944 = arith.negf %943 : vector<8x128xf32>
    %945 = math.exp %944 : vector<8x128xf32>
    %cst_353 = arith.constant 1.000000e+00 : f32
    %946 = vector.broadcast %cst_353 : f32 to vector<8x128xf32>
    %947 = arith.addf %946, %945 : vector<8x128xf32>
    %948 = arith.divf %946, %947 : vector<8x128xf32>
    %949 = vector.extract_strided_slice %930 {offsets = [0, 256], sizes = [8, 128], strides = [1, 1]} : vector<8x384xf32> to vector<8x128xf32>
    %950 = vector.extract_strided_slice %932 {offsets = [0, 256], sizes = [8, 128], strides = [1, 1]} : vector<8x384xf32> to vector<8x128xf32>
    %951 = arith.mulf %940, %950 : vector<8x128xf32>
    %952 = arith.addf %949, %951 : vector<8x128xf32>
    %953 = math.tanh %952 : vector<8x128xf32>
    %cst_354 = arith.constant 1.000000e+00 : f32
    %954 = vector.broadcast %cst_354 : f32 to vector<8x128xf32>
    %955 = arith.subf %954, %948 : vector<8x128xf32>
    %956 = arith.mulf %955, %953 : vector<8x128xf32>
    %957 = arith.mulf %948, %897 : vector<8x128xf32>
    %958 = arith.addf %956, %957 : vector<8x128xf32>
    %959 = arith.select %126, %958, %897 : vector<8x128xi1>, vector<8x128xf32>
    %960 = vector.extract_strided_slice %929 {offsets = [0, 384], sizes = [8, 384], strides = [1, 1]} : vector<8x768xf32> to vector<8x384xf32>
    %961 = vector.extract_strided_slice %931 {offsets = [0, 0], sizes = [8, 128], strides = [1, 1]} : vector<8x384xf32> to vector<8x128xf32>
    %962 = vector.extract_strided_slice %960 {offsets = [0, 0], sizes = [8, 128], strides = [1, 1]} : vector<8x384xf32> to vector<8x128xf32>
    %963 = arith.addf %961, %962 : vector<8x128xf32>
    %964 = arith.negf %963 : vector<8x128xf32>
    %965 = math.exp %964 : vector<8x128xf32>
    %cst_355 = arith.constant 1.000000e+00 : f32
    %966 = vector.broadcast %cst_355 : f32 to vector<8x128xf32>
    %967 = arith.addf %966, %965 : vector<8x128xf32>
    %968 = arith.divf %966, %967 : vector<8x128xf32>
    %969 = vector.extract_strided_slice %931 {offsets = [0, 128], sizes = [8, 128], strides = [1, 1]} : vector<8x384xf32> to vector<8x128xf32>
    %970 = vector.extract_strided_slice %960 {offsets = [0, 128], sizes = [8, 128], strides = [1, 1]} : vector<8x384xf32> to vector<8x128xf32>
    %971 = arith.addf %969, %970 : vector<8x128xf32>
    %972 = arith.negf %971 : vector<8x128xf32>
    %973 = math.exp %972 : vector<8x128xf32>
    %cst_356 = arith.constant 1.000000e+00 : f32
    %974 = vector.broadcast %cst_356 : f32 to vector<8x128xf32>
    %975 = arith.addf %974, %973 : vector<8x128xf32>
    %976 = arith.divf %974, %975 : vector<8x128xf32>
    %977 = vector.extract_strided_slice %931 {offsets = [0, 256], sizes = [8, 128], strides = [1, 1]} : vector<8x384xf32> to vector<8x128xf32>
    %978 = vector.extract_strided_slice %960 {offsets = [0, 256], sizes = [8, 128], strides = [1, 1]} : vector<8x384xf32> to vector<8x128xf32>
    %979 = arith.mulf %968, %978 : vector<8x128xf32>
    %980 = arith.addf %977, %979 : vector<8x128xf32>
    %981 = math.tanh %980 : vector<8x128xf32>
    %cst_357 = arith.constant 1.000000e+00 : f32
    %982 = vector.broadcast %cst_357 : f32 to vector<8x128xf32>
    %983 = arith.subf %982, %976 : vector<8x128xf32>
    %984 = arith.mulf %983, %981 : vector<8x128xf32>
    %985 = arith.mulf %976, %925 : vector<8x128xf32>
    %986 = arith.addf %984, %985 : vector<8x128xf32>
    %987 = arith.select %122, %986, %925 : vector<8x128xi1>, vector<8x128xf32>
    %988 = tpu.concatenate %959, %987 in 1 : vector<8x128xf32>, vector<8x128xf32> -> vector<8x256xf32>
    %989 = arith.truncf %988 : vector<8x256xf32> to vector<8x256xbf16>
    %cst_358 = arith.constant dense<0.000000e+00> : vector<8x768xf32>
    %990 = tpu.matmul %989, %672, %cst_358 {dimension_numbers = #tpu.dot_dimension_numbers<[1], [0], [0], [1], [0, 0, 1, 1], [], []>} : vector<8x256xbf16>, vector<256x768xbf16>, vector<8x768xf32> -> vector<8x768xf32>
    %991 = arith.addf %990, %675 : vector<8x768xf32>
    %c40_359 = arith.constant 40 : index
    %c0_360 = arith.constant 0 : index
    %992 = vector.load %arg13[%c40_359, %c0_360] : memref<64x768xf32, #tpu.memory_space<vmem>>, vector<8x384xf32>
    %c16_361 = arith.constant 16 : index
    %c384_362 = arith.constant 384 : index
    %993 = vector.load %arg13[%c16_361, %c384_362] : memref<64x768xf32, #tpu.memory_space<vmem>>, vector<8x384xf32>
    %994 = vector.extract_strided_slice %991 {offsets = [0, 0], sizes = [8, 384], strides = [1, 1]} : vector<8x768xf32> to vector<8x384xf32>
    %995 = vector.extract_strided_slice %992 {offsets = [0, 0], sizes = [8, 128], strides = [1, 1]} : vector<8x384xf32> to vector<8x128xf32>
    %996 = vector.extract_strided_slice %994 {offsets = [0, 0], sizes = [8, 128], strides = [1, 1]} : vector<8x384xf32> to vector<8x128xf32>
    %997 = arith.addf %995, %996 : vector<8x128xf32>
    %998 = arith.negf %997 : vector<8x128xf32>
    %999 = math.exp %998 : vector<8x128xf32>
    %cst_363 = arith.constant 1.000000e+00 : f32
    %1000 = vector.broadcast %cst_363 : f32 to vector<8x128xf32>
    %1001 = arith.addf %1000, %999 : vector<8x128xf32>
    %1002 = arith.divf %1000, %1001 : vector<8x128xf32>
    %1003 = vector.extract_strided_slice %992 {offsets = [0, 128], sizes = [8, 128], strides = [1, 1]} : vector<8x384xf32> to vector<8x128xf32>
    %1004 = vector.extract_strided_slice %994 {offsets = [0, 128], sizes = [8, 128], strides = [1, 1]} : vector<8x384xf32> to vector<8x128xf32>
    %1005 = arith.addf %1003, %1004 : vector<8x128xf32>
    %1006 = arith.negf %1005 : vector<8x128xf32>
    %1007 = math.exp %1006 : vector<8x128xf32>
    %cst_364 = arith.constant 1.000000e+00 : f32
    %1008 = vector.broadcast %cst_364 : f32 to vector<8x128xf32>
    %1009 = arith.addf %1008, %1007 : vector<8x128xf32>
    %1010 = arith.divf %1008, %1009 : vector<8x128xf32>
    %1011 = vector.extract_strided_slice %992 {offsets = [0, 256], sizes = [8, 128], strides = [1, 1]} : vector<8x384xf32> to vector<8x128xf32>
    %1012 = vector.extract_strided_slice %994 {offsets = [0, 256], sizes = [8, 128], strides = [1, 1]} : vector<8x384xf32> to vector<8x128xf32>
    %1013 = arith.mulf %1002, %1012 : vector<8x128xf32>
    %1014 = arith.addf %1011, %1013 : vector<8x128xf32>
    %1015 = math.tanh %1014 : vector<8x128xf32>
    %cst_365 = arith.constant 1.000000e+00 : f32
    %1016 = vector.broadcast %cst_365 : f32 to vector<8x128xf32>
    %1017 = arith.subf %1016, %1010 : vector<8x128xf32>
    %1018 = arith.mulf %1017, %1015 : vector<8x128xf32>
    %1019 = arith.mulf %1010, %959 : vector<8x128xf32>
    %1020 = arith.addf %1018, %1019 : vector<8x128xf32>
    %1021 = arith.select %130, %1020, %959 : vector<8x128xi1>, vector<8x128xf32>
    %1022 = vector.extract_strided_slice %991 {offsets = [0, 384], sizes = [8, 384], strides = [1, 1]} : vector<8x768xf32> to vector<8x384xf32>
    %1023 = vector.extract_strided_slice %993 {offsets = [0, 0], sizes = [8, 128], strides = [1, 1]} : vector<8x384xf32> to vector<8x128xf32>
    %1024 = vector.extract_strided_slice %1022 {offsets = [0, 0], sizes = [8, 128], strides = [1, 1]} : vector<8x384xf32> to vector<8x128xf32>
    %1025 = arith.addf %1023, %1024 : vector<8x128xf32>
    %1026 = arith.negf %1025 : vector<8x128xf32>
    %1027 = math.exp %1026 : vector<8x128xf32>
    %cst_366 = arith.constant 1.000000e+00 : f32
    %1028 = vector.broadcast %cst_366 : f32 to vector<8x128xf32>
    %1029 = arith.addf %1028, %1027 : vector<8x128xf32>
    %1030 = arith.divf %1028, %1029 : vector<8x128xf32>
    %1031 = vector.extract_strided_slice %993 {offsets = [0, 128], sizes = [8, 128], strides = [1, 1]} : vector<8x384xf32> to vector<8x128xf32>
    %1032 = vector.extract_strided_slice %1022 {offsets = [0, 128], sizes = [8, 128], strides = [1, 1]} : vector<8x384xf32> to vector<8x128xf32>
    %1033 = arith.addf %1031, %1032 : vector<8x128xf32>
    %1034 = arith.negf %1033 : vector<8x128xf32>
    %1035 = math.exp %1034 : vector<8x128xf32>
    %cst_367 = arith.constant 1.000000e+00 : f32
    %1036 = vector.broadcast %cst_367 : f32 to vector<8x128xf32>
    %1037 = arith.addf %1036, %1035 : vector<8x128xf32>
    %1038 = arith.divf %1036, %1037 : vector<8x128xf32>
    %1039 = vector.extract_strided_slice %993 {offsets = [0, 256], sizes = [8, 128], strides = [1, 1]} : vector<8x384xf32> to vector<8x128xf32>
    %1040 = vector.extract_strided_slice %1022 {offsets = [0, 256], sizes = [8, 128], strides = [1, 1]} : vector<8x384xf32> to vector<8x128xf32>
    %1041 = arith.mulf %1030, %1040 : vector<8x128xf32>
    %1042 = arith.addf %1039, %1041 : vector<8x128xf32>
    %1043 = math.tanh %1042 : vector<8x128xf32>
    %cst_368 = arith.constant 1.000000e+00 : f32
    %1044 = vector.broadcast %cst_368 : f32 to vector<8x128xf32>
    %1045 = arith.subf %1044, %1038 : vector<8x128xf32>
    %1046 = arith.mulf %1045, %1043 : vector<8x128xf32>
    %1047 = arith.mulf %1038, %987 : vector<8x128xf32>
    %1048 = arith.addf %1046, %1047 : vector<8x128xf32>
    %1049 = arith.select %118, %1048, %987 : vector<8x128xi1>, vector<8x128xf32>
    %1050 = tpu.concatenate %1021, %1049 in 1 : vector<8x128xf32>, vector<8x128xf32> -> vector<8x256xf32>
    %1051 = arith.truncf %1050 : vector<8x256xf32> to vector<8x256xbf16>
    %cst_369 = arith.constant dense<0.000000e+00> : vector<8x768xf32>
    %1052 = tpu.matmul %1051, %672, %cst_369 {dimension_numbers = #tpu.dot_dimension_numbers<[1], [0], [0], [1], [0, 0, 1, 1], [], []>} : vector<8x256xbf16>, vector<256x768xbf16>, vector<8x768xf32> -> vector<8x768xf32>
    %1053 = arith.addf %1052, %675 : vector<8x768xf32>
    %c48_370 = arith.constant 48 : index
    %c0_371 = arith.constant 0 : index
    %1054 = vector.load %arg13[%c48_370, %c0_371] : memref<64x768xf32, #tpu.memory_space<vmem>>, vector<8x384xf32>
    %c8_372 = arith.constant 8 : index
    %c384_373 = arith.constant 384 : index
    %1055 = vector.load %arg13[%c8_372, %c384_373] : memref<64x768xf32, #tpu.memory_space<vmem>>, vector<8x384xf32>
    %1056 = vector.extract_strided_slice %1053 {offsets = [0, 0], sizes = [8, 384], strides = [1, 1]} : vector<8x768xf32> to vector<8x384xf32>
    %1057 = vector.extract_strided_slice %1054 {offsets = [0, 0], sizes = [8, 128], strides = [1, 1]} : vector<8x384xf32> to vector<8x128xf32>
    %1058 = vector.extract_strided_slice %1056 {offsets = [0, 0], sizes = [8, 128], strides = [1, 1]} : vector<8x384xf32> to vector<8x128xf32>
    %1059 = arith.addf %1057, %1058 : vector<8x128xf32>
    %1060 = arith.negf %1059 : vector<8x128xf32>
    %1061 = math.exp %1060 : vector<8x128xf32>
    %cst_374 = arith.constant 1.000000e+00 : f32
    %1062 = vector.broadcast %cst_374 : f32 to vector<8x128xf32>
    %1063 = arith.addf %1062, %1061 : vector<8x128xf32>
    %1064 = arith.divf %1062, %1063 : vector<8x128xf32>
    %1065 = vector.extract_strided_slice %1054 {offsets = [0, 128], sizes = [8, 128], strides = [1, 1]} : vector<8x384xf32> to vector<8x128xf32>
    %1066 = vector.extract_strided_slice %1056 {offsets = [0, 128], sizes = [8, 128], strides = [1, 1]} : vector<8x384xf32> to vector<8x128xf32>
    %1067 = arith.addf %1065, %1066 : vector<8x128xf32>
    %1068 = arith.negf %1067 : vector<8x128xf32>
    %1069 = math.exp %1068 : vector<8x128xf32>
    %cst_375 = arith.constant 1.000000e+00 : f32
    %1070 = vector.broadcast %cst_375 : f32 to vector<8x128xf32>
    %1071 = arith.addf %1070, %1069 : vector<8x128xf32>
    %1072 = arith.divf %1070, %1071 : vector<8x128xf32>
    %1073 = vector.extract_strided_slice %1054 {offsets = [0, 256], sizes = [8, 128], strides = [1, 1]} : vector<8x384xf32> to vector<8x128xf32>
    %1074 = vector.extract_strided_slice %1056 {offsets = [0, 256], sizes = [8, 128], strides = [1, 1]} : vector<8x384xf32> to vector<8x128xf32>
    %1075 = arith.mulf %1064, %1074 : vector<8x128xf32>
    %1076 = arith.addf %1073, %1075 : vector<8x128xf32>
    %1077 = math.tanh %1076 : vector<8x128xf32>
    %cst_376 = arith.constant 1.000000e+00 : f32
    %1078 = vector.broadcast %cst_376 : f32 to vector<8x128xf32>
    %1079 = arith.subf %1078, %1072 : vector<8x128xf32>
    %1080 = arith.mulf %1079, %1077 : vector<8x128xf32>
    %1081 = arith.mulf %1072, %1021 : vector<8x128xf32>
    %1082 = arith.addf %1080, %1081 : vector<8x128xf32>
    %1083 = arith.select %134, %1082, %1021 : vector<8x128xi1>, vector<8x128xf32>
    %1084 = vector.extract_strided_slice %1053 {offsets = [0, 384], sizes = [8, 384], strides = [1, 1]} : vector<8x768xf32> to vector<8x384xf32>
    %1085 = vector.extract_strided_slice %1055 {offsets = [0, 0], sizes = [8, 128], strides = [1, 1]} : vector<8x384xf32> to vector<8x128xf32>
    %1086 = vector.extract_strided_slice %1084 {offsets = [0, 0], sizes = [8, 128], strides = [1, 1]} : vector<8x384xf32> to vector<8x128xf32>
    %1087 = arith.addf %1085, %1086 : vector<8x128xf32>
    %1088 = arith.negf %1087 : vector<8x128xf32>
    %1089 = math.exp %1088 : vector<8x128xf32>
    %cst_377 = arith.constant 1.000000e+00 : f32
    %1090 = vector.broadcast %cst_377 : f32 to vector<8x128xf32>
    %1091 = arith.addf %1090, %1089 : vector<8x128xf32>
    %1092 = arith.divf %1090, %1091 : vector<8x128xf32>
    %1093 = vector.extract_strided_slice %1055 {offsets = [0, 128], sizes = [8, 128], strides = [1, 1]} : vector<8x384xf32> to vector<8x128xf32>
    %1094 = vector.extract_strided_slice %1084 {offsets = [0, 128], sizes = [8, 128], strides = [1, 1]} : vector<8x384xf32> to vector<8x128xf32>
    %1095 = arith.addf %1093, %1094 : vector<8x128xf32>
    %1096 = arith.negf %1095 : vector<8x128xf32>
    %1097 = math.exp %1096 : vector<8x128xf32>
    %cst_378 = arith.constant 1.000000e+00 : f32
    %1098 = vector.broadcast %cst_378 : f32 to vector<8x128xf32>
    %1099 = arith.addf %1098, %1097 : vector<8x128xf32>
    %1100 = arith.divf %1098, %1099 : vector<8x128xf32>
    %1101 = vector.extract_strided_slice %1055 {offsets = [0, 256], sizes = [8, 128], strides = [1, 1]} : vector<8x384xf32> to vector<8x128xf32>
    %1102 = vector.extract_strided_slice %1084 {offsets = [0, 256], sizes = [8, 128], strides = [1, 1]} : vector<8x384xf32> to vector<8x128xf32>
    %1103 = arith.mulf %1092, %1102 : vector<8x128xf32>
    %1104 = arith.addf %1101, %1103 : vector<8x128xf32>
    %1105 = math.tanh %1104 : vector<8x128xf32>
    %cst_379 = arith.constant 1.000000e+00 : f32
    %1106 = vector.broadcast %cst_379 : f32 to vector<8x128xf32>
    %1107 = arith.subf %1106, %1100 : vector<8x128xf32>
    %1108 = arith.mulf %1107, %1105 : vector<8x128xf32>
    %1109 = arith.mulf %1100, %1049 : vector<8x128xf32>
    %1110 = arith.addf %1108, %1109 : vector<8x128xf32>
    %1111 = arith.select %114, %1110, %1049 : vector<8x128xi1>, vector<8x128xf32>
    %1112 = tpu.concatenate %1083, %1111 in 1 : vector<8x128xf32>, vector<8x128xf32> -> vector<8x256xf32>
    %1113 = arith.truncf %1112 : vector<8x256xf32> to vector<8x256xbf16>
    %cst_380 = arith.constant dense<0.000000e+00> : vector<8x768xf32>
    %1114 = tpu.matmul %1113, %672, %cst_380 {dimension_numbers = #tpu.dot_dimension_numbers<[1], [0], [0], [1], [0, 0, 1, 1], [], []>} : vector<8x256xbf16>, vector<256x768xbf16>, vector<8x768xf32> -> vector<8x768xf32>
    %1115 = arith.addf %1114, %675 : vector<8x768xf32>
    %c56_381 = arith.constant 56 : index
    %c0_382 = arith.constant 0 : index
    %1116 = vector.load %arg13[%c56_381, %c0_382] : memref<64x768xf32, #tpu.memory_space<vmem>>, vector<8x384xf32>
    %c0_383 = arith.constant 0 : index
    %c384_384 = arith.constant 384 : index
    %1117 = vector.load %arg13[%c0_383, %c384_384] : memref<64x768xf32, #tpu.memory_space<vmem>>, vector<8x384xf32>
    %1118 = vector.extract_strided_slice %1115 {offsets = [0, 0], sizes = [8, 384], strides = [1, 1]} : vector<8x768xf32> to vector<8x384xf32>
    %1119 = vector.extract_strided_slice %1116 {offsets = [0, 0], sizes = [8, 128], strides = [1, 1]} : vector<8x384xf32> to vector<8x128xf32>
    %1120 = vector.extract_strided_slice %1118 {offsets = [0, 0], sizes = [8, 128], strides = [1, 1]} : vector<8x384xf32> to vector<8x128xf32>
    %1121 = arith.addf %1119, %1120 : vector<8x128xf32>
    %1122 = arith.negf %1121 : vector<8x128xf32>
    %1123 = math.exp %1122 : vector<8x128xf32>
    %cst_385 = arith.constant 1.000000e+00 : f32
    %1124 = vector.broadcast %cst_385 : f32 to vector<8x128xf32>
    %1125 = arith.addf %1124, %1123 : vector<8x128xf32>
    %1126 = arith.divf %1124, %1125 : vector<8x128xf32>
    %1127 = vector.extract_strided_slice %1116 {offsets = [0, 128], sizes = [8, 128], strides = [1, 1]} : vector<8x384xf32> to vector<8x128xf32>
    %1128 = vector.extract_strided_slice %1118 {offsets = [0, 128], sizes = [8, 128], strides = [1, 1]} : vector<8x384xf32> to vector<8x128xf32>
    %1129 = arith.addf %1127, %1128 : vector<8x128xf32>
    %1130 = arith.negf %1129 : vector<8x128xf32>
    %1131 = math.exp %1130 : vector<8x128xf32>
    %cst_386 = arith.constant 1.000000e+00 : f32
    %1132 = vector.broadcast %cst_386 : f32 to vector<8x128xf32>
    %1133 = arith.addf %1132, %1131 : vector<8x128xf32>
    %1134 = arith.divf %1132, %1133 : vector<8x128xf32>
    %1135 = vector.extract_strided_slice %1116 {offsets = [0, 256], sizes = [8, 128], strides = [1, 1]} : vector<8x384xf32> to vector<8x128xf32>
    %1136 = vector.extract_strided_slice %1118 {offsets = [0, 256], sizes = [8, 128], strides = [1, 1]} : vector<8x384xf32> to vector<8x128xf32>
    %1137 = arith.mulf %1126, %1136 : vector<8x128xf32>
    %1138 = arith.addf %1135, %1137 : vector<8x128xf32>
    %1139 = math.tanh %1138 : vector<8x128xf32>
    %cst_387 = arith.constant 1.000000e+00 : f32
    %1140 = vector.broadcast %cst_387 : f32 to vector<8x128xf32>
    %1141 = arith.subf %1140, %1134 : vector<8x128xf32>
    %1142 = arith.mulf %1141, %1139 : vector<8x128xf32>
    %1143 = arith.mulf %1134, %1083 : vector<8x128xf32>
    %1144 = arith.addf %1142, %1143 : vector<8x128xf32>
    %1145 = arith.select %138, %1144, %1083 : vector<8x128xi1>, vector<8x128xf32>
    %1146 = vector.extract_strided_slice %1115 {offsets = [0, 384], sizes = [8, 384], strides = [1, 1]} : vector<8x768xf32> to vector<8x384xf32>
    %1147 = vector.extract_strided_slice %1117 {offsets = [0, 0], sizes = [8, 128], strides = [1, 1]} : vector<8x384xf32> to vector<8x128xf32>
    %1148 = vector.extract_strided_slice %1146 {offsets = [0, 0], sizes = [8, 128], strides = [1, 1]} : vector<8x384xf32> to vector<8x128xf32>
    %1149 = arith.addf %1147, %1148 : vector<8x128xf32>
    %1150 = arith.negf %1149 : vector<8x128xf32>
    %1151 = math.exp %1150 : vector<8x128xf32>
    %cst_388 = arith.constant 1.000000e+00 : f32
    %1152 = vector.broadcast %cst_388 : f32 to vector<8x128xf32>
    %1153 = arith.addf %1152, %1151 : vector<8x128xf32>
    %1154 = arith.divf %1152, %1153 : vector<8x128xf32>
    %1155 = vector.extract_strided_slice %1117 {offsets = [0, 128], sizes = [8, 128], strides = [1, 1]} : vector<8x384xf32> to vector<8x128xf32>
    %1156 = vector.extract_strided_slice %1146 {offsets = [0, 128], sizes = [8, 128], strides = [1, 1]} : vector<8x384xf32> to vector<8x128xf32>
    %1157 = arith.addf %1155, %1156 : vector<8x128xf32>
    %1158 = arith.negf %1157 : vector<8x128xf32>
    %1159 = math.exp %1158 : vector<8x128xf32>
    %cst_389 = arith.constant 1.000000e+00 : f32
    %1160 = vector.broadcast %cst_389 : f32 to vector<8x128xf32>
    %1161 = arith.addf %1160, %1159 : vector<8x128xf32>
    %1162 = arith.divf %1160, %1161 : vector<8x128xf32>
    %1163 = vector.extract_strided_slice %1117 {offsets = [0, 256], sizes = [8, 128], strides = [1, 1]} : vector<8x384xf32> to vector<8x128xf32>
    %1164 = vector.extract_strided_slice %1146 {offsets = [0, 256], sizes = [8, 128], strides = [1, 1]} : vector<8x384xf32> to vector<8x128xf32>
    %1165 = arith.mulf %1154, %1164 : vector<8x128xf32>
    %1166 = arith.addf %1163, %1165 : vector<8x128xf32>
    %1167 = math.tanh %1166 : vector<8x128xf32>
    %cst_390 = arith.constant 1.000000e+00 : f32
    %1168 = vector.broadcast %cst_390 : f32 to vector<8x128xf32>
    %1169 = arith.subf %1168, %1162 : vector<8x128xf32>
    %1170 = arith.mulf %1169, %1167 : vector<8x128xf32>
    %1171 = arith.mulf %1162, %1111 : vector<8x128xf32>
    %1172 = arith.addf %1170, %1171 : vector<8x128xf32>
    %1173 = arith.select %110, %1172, %1111 : vector<8x128xi1>, vector<8x128xf32>
    %1174 = tpu.concatenate %1145, %1173 in 1 : vector<8x128xf32>, vector<8x128xf32> -> vector<8x256xf32>
    %1175 = arith.truncf %1174 : vector<8x256xf32> to vector<8x256xbf16>
    %c0_391 = arith.constant 0 : index
    %c0_392 = arith.constant 0 : index
    %1176 = vector.load %arg19[%c0_391, %c0_392] : memref<256x128xbf16, #tpu.memory_space<vmem>>, vector<256x128xbf16>
    %cst_393 = arith.constant dense<0.000000e+00> : vector<8x128xf32>
    %1177 = tpu.matmul %1175, %1176, %cst_393 {dimension_numbers = #tpu.dot_dimension_numbers<[1], [0], [0], [1], [0, 0, 1, 1], [], []>} : vector<8x256xbf16>, vector<256x128xbf16>, vector<8x128xf32> -> vector<8x128xf32>
    %c0_394 = arith.constant 0 : index
    %c0_395 = arith.constant 0 : index
    %1178 = vector.load %arg11[%c0_394, %c0_395] : memref<1x128xf32, #tpu.memory_space<vmem>>, vector<1x128xf32>
    %1179 = vector.broadcast %1178 : vector<1x128xf32> to vector<8x128xf32>
    %1180 = arith.addf %1177, %1179 : vector<8x128xf32>
    %c0_396 = arith.constant 0 : index
    %c0_397 = arith.constant 0 : index
    %1181 = vector.load %arg12[%c0_396, %c0_397] : memref<8x128xf32, #tpu.memory_space<vmem>>, vector<8x128xf32>
    tpu.vector_store %arg12[%c0_396, %c0_397], %1180 {strides = array<i32>} : memref<8x128xf32, #tpu.memory_space<vmem>>, vector<8x128xf32>,
    return
  }
}

</mosaic_0001>

<llo_original>
// kernel: tpu_custom_call.1
$region0: #{tpu_custom_call.1}
  #allocation0 [shape = 'u32[]', space=smem, size = 0x4, offset = 0x4, fixed_abs, tag = 'smem constant byte address 0x4 - core index']
  #allocation1 [shape = 'u32[72,128]{1,0:T(1,128)}', space=vmem, size = 0x9000, scoped, tag = 'internal scratch']
  #allocation2 [shape = 'f32[64,768]{1,0:T(8,128)}', space=vmem, size = 0x30000, scoped, tag = 'scratch operand']
  #allocation3 [shape = 'f32[64,256]{1,0:T(8,128)}', space=vmem, size = 0x10000, scoped, tag = 'scratch operand']
  #allocation4 [shape = 'f32[8,768]{1,0:T(8,128)}', space=vmem, size = 0x6000, scoped, tag = 'scratch operand']
  #allocation5 [shape = 'bf16[256,768]{1,0:T(8,128)(2,1)}', space=vmem, size = 0x60000, scoped, tag = 'scratch operand']
  #allocation6 [shape = 'bf16[256,768]{1,0:T(8,128)(2,1)}', space=vmem, size = 0x60000, scoped, tag = 'scratch operand']
  #allocation7 [shape = 'bf16[256,768]{1,0:T(8,128)(2,1)}', space=vmem, size = 0x60000, scoped, tag = 'scratch operand']
  #allocation8 [shape = 'bf16[256,128]{1,0:T(8,128)(2,1)}', space=vmem, size = 0x10000, scoped, tag = 'scratch operand']
  %s0 = inlined_call_operand.vmem [shape: s32[8,1], index: 0, kind: input, shape index: {}]
  %s1 = inlined_call_operand.vmem [shape: f32[64,8], index: 1, kind: input, shape index: {}]
  %s2 = inlined_call_operand.hbm [shape: f32[6,8,32], index: 2, kind: input, shape index: {}]
  %s3 = inlined_call_operand.vmem [shape: f32[1,768], index: 3, kind: input, shape index: {}]
  %s4 = inlined_call_operand.vmem [shape: bf16[6,32,32], index: 4, kind: input, shape index: {}]
  %s5 = inlined_call_operand.vmem [shape: f32[1,768], index: 5, kind: input, shape index: {}]
  %s6 = inlined_call_operand.hbm [shape: bf16[12,32,32], index: 6, kind: input, shape index: {}]
  %s7 = inlined_call_operand.hbm [shape: f32[1,768], index: 7, kind: input, shape index: {}]
  %s8 = inlined_call_operand.hbm [shape: bf16[6,32,32], index: 8, kind: input, shape index: {}]
  %s9 = inlined_call_operand.hbm [shape: f32[1,768], index: 9, kind: input, shape index: {}]
  %s10 = inlined_call_operand.vmem [shape: bf16[2,32,4], index: 10, kind: input, shape index: {}]
  %s11 = inlined_call_operand.vmem [shape: f32[1,128], index: 11, kind: input, shape index: {}]
  %s12 = inlined_call_operand.hbm [shape: f32[8,128], index: 12, kind: output, shape index: {}]
  %s13 = sld [smem:[#allocation0]]
  $region78: #{tpu_custom_call.1} parent=0
    _
  %s15 = ssub.s32 1, %s13
  %s16 = scalar_select 0, %s15, %s13
  $region1: #{tpu_custom_call.1} parent=0
    #allocation9 [shape = 'u8[24576]{0}', space=vmem, size = 0x6000, scoped, tag = 'input window, operand 2, single buffered']
    #allocation10 [shape = 's32[1]{0}', space=sflag, size = 0x4, scoped, tag = 'scoped memory for tpu_custom_call.1']
    #allocation11 [shape = 's32[1]{0}', space=sflag, size = 0x4, scoped, tag = 'scoped memory for tpu_custom_call.1']
    #allocation12 [shape = 'u8[98304]{0}', space=vmem, size = 0x18000, scoped, tag = 'input window, operand 6, single buffered']
    #allocation13 [shape = 's32[1]{0}', space=sflag, size = 0x4, scoped, tag = 'scoped memory for tpu_custom_call.1']
    #allocation14 [shape = 'u8[3072]{0}', space=vmem, size = 0xc00, scoped, tag = 'input window, operand 7, single buffered']
    #allocation15 [shape = 'u8[49152]{0}', space=vmem, size = 0xc000, scoped, tag = 'input window, operand 8, single buffered']
    #allocation16 [shape = 's32[1]{0}', space=sflag, size = 0x4, scoped, tag = 'scoped memory for tpu_custom_call.1']
    #allocation17 [shape = 'u8[3072]{0}', space=vmem, size = 0xc00, scoped, tag = 'input window, operand 9, single buffered']
    #allocation18 [shape = 'u8[4096]{0}', space=vmem, size = 0x1000, scoped, tag = 'output window, operand 0, single buffered']
    %17 = vsyncpa [#allocation10], 0
    %18 = vsyncpa [#allocation13], 0
    %19 = vsyncpa [#allocation16], 0
    %20 = vsyncpa [#allocation11], 0
    // Predicated region
    $region2: #{tpu_custom_call.1} parent=1 // pred_check
      _
    $region3: #{tpu_custom_call.1} parent=1 // pred_check_branch
      %22 = sbr.rel (0) target = $region5
    $region4: #{tpu_custom_call.1} parent=1 // pred_region
      _
    $region5: #{tpu_custom_call.1} parent=1 // pred_fallthru
      _
    // Predicated region
    $region6: #{tpu_custom_call.1} parent=1 // pred_check
      _
    $region7: #{tpu_custom_call.1} parent=1 // pred_check_branch
      %24 = sbr.rel (0) target = $region9
    $region8: #{tpu_custom_call.1} parent=1 // pred_region
      _
    $region9: #{tpu_custom_call.1} parent=1 // pred_fallthru
      _
    // Predicated region
    $region10: #{tpu_custom_call.1} parent=1 // pred_check
      _
    $region11: #{tpu_custom_call.1} parent=1 // pred_check_branch
      %26 = sbr.rel (0) target = $region13
    $region12: #{tpu_custom_call.1} parent=1 // pred_region
      %28 = vsyncadd [#allocation10], 0
      %s29 = sshll.u32 %s2, 4
      %s30 = int_to_ptr.hbm [resolvable:$true] %s29
      %s31 = sshll.u32 [#allocation9], 4
      %s32 = int_to_ptr.vmem [resolvable:$true] %s31
      %37 = dma.hbm_to_vmem [thread:$0]  %s30, 768, %s32, [#allocation10], 128, 128, 8
    $region13: #{tpu_custom_call.1} parent=1 // pred_fallthru
      _
    // Predicated region
    $region14: #{tpu_custom_call.1} parent=1 // pred_check
      _
    $region15: #{tpu_custom_call.1} parent=1 // pred_check_branch
      %39 = sbr.rel (0) target = $region17
    $region16: #{tpu_custom_call.1} parent=1 // pred_region
      _
    $region17: #{tpu_custom_call.1} parent=1 // pred_fallthru
      _
    // Predicated region
    $region18: #{tpu_custom_call.1} parent=1 // pred_check
      _
    $region19: #{tpu_custom_call.1} parent=1 // pred_check_branch
      %41 = sbr.rel (0) target = $region21
    $region20: #{tpu_custom_call.1} parent=1 // pred_region
      _
    $region21: #{tpu_custom_call.1} parent=1 // pred_fallthru
      _
    // Predicated region
    $region22: #{tpu_custom_call.1} parent=1 // pred_check
      _
    $region23: #{tpu_custom_call.1} parent=1 // pred_check_branch
      %43 = sbr.rel (0) target = $region25
    $region24: #{tpu_custom_call.1} parent=1 // pred_region
      _
    $region25: #{tpu_custom_call.1} parent=1 // pred_fallthru
      _
    // Predicated region
    $region26: #{tpu_custom_call.1} parent=1 // pred_check
      _
    $region27: #{tpu_custom_call.1} parent=1 // pred_check_branch
      %45 = sbr.rel (0) target = $region29
    $region28: #{tpu_custom_call.1} parent=1 // pred_region
      %47 = vsyncadd [#allocation13], 0
      %s48 = sshll.u32 %s6, 4
      %s49 = int_to_ptr.hbm [resolvable:$true] %s48
      %s50 = sshll.u32 [#allocation12], 4
      %s51 = int_to_ptr.vmem [resolvable:$true] %s50
      %56 = dma.hbm_to_vmem [thread:$0]  %s49, 3072, %s51, [#allocation13], 64, 64, 4
    $region29: #{tpu_custom_call.1} parent=1 // pred_fallthru
      _
    // Predicated region
    $region30: #{tpu_custom_call.1} parent=1 // pred_check
      _
    $region31: #{tpu_custom_call.1} parent=1 // pred_check_branch
      %58 = sbr.rel (0) target = $region33
    $region32: #{tpu_custom_call.1} parent=1 // pred_region
      %60 = vsyncadd [#allocation13], 0
      %s62 = sshll.u32 %s7, 4
      %s63 = int_to_ptr.hbm [resolvable:$true] %s62
      %s64 = sshll.u32 [#allocation14], 4
      %s65 = int_to_ptr.vmem [resolvable:$true] %s64
      %67 = dma.hbm_to_vmem [thread:$0]  %s63, 96, %s65, [#allocation13]
    $region33: #{tpu_custom_call.1} parent=1 // pred_fallthru
      _
    // Predicated region
    $region34: #{tpu_custom_call.1} parent=1 // pred_check
      _
    $region35: #{tpu_custom_call.1} parent=1 // pred_check_branch
      %69 = sbr.rel (0) target = $region37
    $region36: #{tpu_custom_call.1} parent=1 // pred_region
      %71 = vsyncadd [#allocation16], 0
      %s72 = sshll.u32 %s8, 4
      %s73 = int_to_ptr.hbm [resolvable:$true] %s72
      %s74 = sshll.u32 [#allocation15], 4
      %s75 = int_to_ptr.vmem [resolvable:$true] %s74
      %80 = dma.hbm_to_vmem [thread:$0]  %s73, 1536, %s75, [#allocation16], 64, 64, 4
    $region37: #{tpu_custom_call.1} parent=1 // pred_fallthru
      _
    // Predicated region
    $region38: #{tpu_custom_call.1} parent=1 // pred_check
      _
    $region39: #{tpu_custom_call.1} parent=1 // pred_check_branch
      %82 = sbr.rel (0) target = $region41
    $region40: #{tpu_custom_call.1} parent=1 // pred_region
      %84 = vsyncadd [#allocation16], 0
      %s86 = sshll.u32 %s9, 4
      %s87 = int_to_ptr.hbm [resolvable:$true] %s86
      %s88 = sshll.u32 [#allocation17], 4
      %s89 = int_to_ptr.vmem [resolvable:$true] %s88
      %91 = dma.hbm_to_vmem [thread:$0]  %s87, 96, %s89, [#allocation16]
    $region41: #{tpu_custom_call.1} parent=1 // pred_fallthru
      _
    // Predicated region
    $region42: #{tpu_custom_call.1} parent=1 // pred_check
      _
    $region43: #{tpu_custom_call.1} parent=1 // pred_check_branch
      %93 = sbr.rel (0) target = $region45
    $region44: #{tpu_custom_call.1} parent=1 // pred_region
      _
    $region45: #{tpu_custom_call.1} parent=1 // pred_fallthru
      _
    // Predicated region
    $region46: #{tpu_custom_call.1} parent=1 // pred_check
      _
    $region47: #{tpu_custom_call.1} parent=1 // pred_check_branch
      %95 = sbr.rel (0) target = $region49
    $region48: #{tpu_custom_call.1} parent=1 // pred_region
      _
    $region49: #{tpu_custom_call.1} parent=1 // pred_fallthru
      _
    // Predicated region
    $region50: #{tpu_custom_call.1} parent=1 // pred_check
      _
    $region51: #{tpu_custom_call.1} parent=1 // pred_check_branch
      %97 = sbr.rel (0) target = $region53
    $region52: #{tpu_custom_call.1} parent=1 // pred_region
      %99 = dma.done [#allocation10], 768
    $region53: #{tpu_custom_call.1} parent=1 // pred_fallthru
      _
    // Predicated region
    $region54: #{tpu_custom_call.1} parent=1 // pred_check
      _
    $region55: #{tpu_custom_call.1} parent=1 // pred_check_branch
      %101 = sbr.rel (0) target = $region57
    $region56: #{tpu_custom_call.1} parent=1 // pred_region
      %103 = dma.done [#allocation13], 3072
    $region57: #{tpu_custom_call.1} parent=1 // pred_fallthru
      _
    // Predicated region
    $region58: #{tpu_custom_call.1} parent=1 // pred_check
      _
    $region59: #{tpu_custom_call.1} parent=1 // pred_check_branch
      %105 = sbr.rel (0) target = $region61
    $region60: #{tpu_custom_call.1} parent=1 // pred_region
      %107 = dma.done [#allocation13], 96
    $region61: #{tpu_custom_call.1} parent=1 // pred_fallthru
      _
    // Predicated region
    $region62: #{tpu_custom_call.1} parent=1 // pred_check
      _
    $region63: #{tpu_custom_call.1} parent=1 // pred_check_branch
      %109 = sbr.rel (0) target = $region65
    $region64: #{tpu_custom_call.1} parent=1 // pred_region
      %111 = dma.done [#allocation16], 1536
    $region65: #{tpu_custom_call.1} parent=1 // pred_fallthru
      _
    // Predicated region
    $region66: #{tpu_custom_call.1} parent=1 // pred_check
      _
    $region67: #{tpu_custom_call.1} parent=1 // pred_check_branch
      %113 = sbr.rel (0) target = $region69
    $region68: #{tpu_custom_call.1} parent=1 // pred_region
      %115 = dma.done [#allocation16], 96
    $region69: #{tpu_custom_call.1} parent=1 // pred_fallthru
      _
    %117 = vst [vmem:[#allocation4] sm:$0xff] 0.0
    %118 = vst [vmem:[#allocation4 + $0x8] sm:$0xff] 0.0
    %119 = vst [vmem:[#allocation4 + $0x10] sm:$0xff] 0.0
    %120 = vst [vmem:[#allocation4 + $0x18] sm:$0xff] 0.0
    %121 = vst [vmem:[#allocation4 + $0x20] sm:$0xff] 0.0
    %122 = vst [vmem:[#allocation4 + $0x28] sm:$0xff] 0.0
    %123 = vst [vmem:[#allocation5] sm:$0xff] 0
    %124 = vst [vmem:[#allocation5 + $0x8] sm:$0xff] 0
    %125 = vst [vmem:[#allocation5 + $0x10] sm:$0xff] 0
    %126 = vst [vmem:[#allocation5 + $0x18] sm:$0xff] 0
    %127 = vst [vmem:[#allocation5 + $0x20] sm:$0xff] 0
    %128 = vst [vmem:[#allocation5 + $0x28] sm:$0xff] 0
    %129 = vst [vmem:[#allocation5 + $0x30] sm:$0xff] 0
    %130 = vst [vmem:[#allocation5 + $0x38] sm:$0xff] 0
    %131 = vst [vmem:[#allocation5 + $0x40] sm:$0xff] 0
    %132 = vst [vmem:[#allocation5 + $0x48] sm:$0xff] 0
    %133 = vst [vmem:[#allocation5 + $0x50] sm:$0xff] 0
    %134 = vst [vmem:[#allocation5 + $0x58] sm:$0xff] 0
    %135 = vst [vmem:[#allocation5 + $0x60] sm:$0xff] 0
    %136 = vst [vmem:[#allocation5 + $0x68] sm:$0xff] 0
    %137 = vst [vmem:[#allocation5 + $0x70] sm:$0xff] 0
    %138 = vst [vmem:[#allocation5 + $0x78] sm:$0xff] 0
    %139 = vst [vmem:[#allocation5 + $0x80] sm:$0xff] 0
    %140 = vst [vmem:[#allocation5 + $0x88] sm:$0xff] 0
    %141 = vst [vmem:[#allocation5 + $0x90] sm:$0xff] 0
    %142 = vst [vmem:[#allocation5 + $0x98] sm:$0xff] 0
    %143 = vst [vmem:[#allocation5 + $0xa0] sm:$0xff] 0
    %144 = vst [vmem:[#allocation5 + $0xa8] sm:$0xff] 0
    %145 = vst [vmem:[#allocation5 + $0xb0] sm:$0xff] 0
    %146 = vst [vmem:[#allocation5 + $0xb8] sm:$0xff] 0
    %147 = vst [vmem:[#allocation5 + $0xc0] sm:$0xff] 0
    %148 = vst [vmem:[#allocation5 + $0xc8] sm:$0xff] 0
    %149 = vst [vmem:[#allocation5 + $0xd0] sm:$0xff] 0
    %150 = vst [vmem:[#allocation5 + $0xd8] sm:$0xff] 0
    %151 = vst [vmem:[#allocation5 + $0xe0] sm:$0xff] 0
    %152 = vst [vmem:[#allocation5 + $0xe8] sm:$0xff] 0
    %153 = vst [vmem:[#allocation5 + $0xf0] sm:$0xff] 0
    %154 = vst [vmem:[#allocation5 + $0xf8] sm:$0xff] 0
    %155 = vst [vmem:[#allocation5 + $0x100] sm:$0xff] 0
    %156 = vst [vmem:[#allocation5 + $0x108] sm:$0xff] 0
    %157 = vst [vmem:[#allocation5 + $0x110] sm:$0xff] 0
    %158 = vst [vmem:[#allocation5 + $0x118] sm:$0xff] 0
    %159 = vst [vmem:[#allocation5 + $0x120] sm:$0xff] 0
    %160 = vst [vmem:[#allocation5 + $0x128] sm:$0xff] 0
    %161 = vst [vmem:[#allocation5 + $0x130] sm:$0xff] 0
    %162 = vst [vmem:[#allocation5 + $0x138] sm:$0xff] 0
    %163 = vst [vmem:[#allocation5 + $0x140] sm:$0xff] 0
    %164 = vst [vmem:[#allocation5 + $0x148] sm:$0xff] 0
    %165 = vst [vmem:[#allocation5 + $0x150] sm:$0xff] 0
    %166 = vst [vmem:[#allocation5 + $0x158] sm:$0xff] 0
    %167 = vst [vmem:[#allocation5 + $0x160] sm:$0xff] 0
    %168 = vst [vmem:[#allocation5 + $0x168] sm:$0xff] 0
    %169 = vst [vmem:[#allocation5 + $0x170] sm:$0xff] 0
    %170 = vst [vmem:[#allocation5 + $0x178] sm:$0xff] 0
    %171 = vst [vmem:[#allocation5 + $0x180] sm:$0xff] 0
    %172 = vst [vmem:[#allocation5 + $0x188] sm:$0xff] 0
    %173 = vst [vmem:[#allocation5 + $0x190] sm:$0xff] 0
    %174 = vst [vmem:[#allocation5 + $0x198] sm:$0xff] 0
    %175 = vst [vmem:[#allocation5 + $0x1a0] sm:$0xff] 0
    %176 = vst [vmem:[#allocation5 + $0x1a8] sm:$0xff] 0
    %177 = vst [vmem:[#allocation5 + $0x1b0] sm:$0xff] 0
    %178 = vst [vmem:[#allocation5 + $0x1b8] sm:$0xff] 0
    %179 = vst [vmem:[#allocation5 + $0x1c0] sm:$0xff] 0
    %180 = vst [vmem:[#allocation5 + $0x1c8] sm:$0xff] 0
    %181 = vst [vmem:[#allocation5 + $0x1d0] sm:$0xff] 0
    %182 = vst [vmem:[#allocation5 + $0x1d8] sm:$0xff] 0
    %183 = vst [vmem:[#allocation5 + $0x1e0] sm:$0xff] 0
    %184 = vst [vmem:[#allocation5 + $0x1e8] sm:$0xff] 0
    %185 = vst [vmem:[#allocation5 + $0x1f0] sm:$0xff] 0
    %186 = vst [vmem:[#allocation5 + $0x1f8] sm:$0xff] 0
    %187 = vst [vmem:[#allocation5 + $0x200] sm:$0xff] 0
    %188 = vst [vmem:[#allocation5 + $0x208] sm:$0xff] 0
    %189 = vst [vmem:[#allocation5 + $0x210] sm:$0xff] 0
    %190 = vst [vmem:[#allocation5 + $0x218] sm:$0xff] 0
    %191 = vst [vmem:[#allocation5 + $0x220] sm:$0xff] 0
    %192 = vst [vmem:[#allocation5 + $0x228] sm:$0xff] 0
    %193 = vst [vmem:[#allocation5 + $0x230] sm:$0xff] 0
    %194 = vst [vmem:[#allocation5 + $0x238] sm:$0xff] 0
    %195 = vst [vmem:[#allocation5 + $0x240] sm:$0xff] 0
    %196 = vst [vmem:[#allocation5 + $0x248] sm:$0xff] 0
    %197 = vst [vmem:[#allocation5 + $0x250] sm:$0xff] 0
    %198 = vst [vmem:[#allocation5 + $0x258] sm:$0xff] 0
    %199 = vst [vmem:[#allocation5 + $0x260] sm:$0xff] 0
    %200 = vst [vmem:[#allocation5 + $0x268] sm:$0xff] 0
    %201 = vst [vmem:[#allocation5 + $0x270] sm:$0xff] 0
    %202 = vst [vmem:[#allocation5 + $0x278] sm:$0xff] 0
    %203 = vst [vmem:[#allocation5 + $0x280] sm:$0xff] 0
    %204 = vst [vmem:[#allocation5 + $0x288] sm:$0xff] 0
    %205 = vst [vmem:[#allocation5 + $0x290] sm:$0xff] 0
    %206 = vst [vmem:[#allocation5 + $0x298] sm:$0xff] 0
    %207 = vst [vmem:[#allocation5 + $0x2a0] sm:$0xff] 0
    %208 = vst [vmem:[#allocation5 + $0x2a8] sm:$0xff] 0
    %209 = vst [vmem:[#allocation5 + $0x2b0] sm:$0xff] 0
    %210 = vst [vmem:[#allocation5 + $0x2b8] sm:$0xff] 0
    %211 = vst [vmem:[#allocation5 + $0x2c0] sm:$0xff] 0
    %212 = vst [vmem:[#allocation5 + $0x2c8] sm:$0xff] 0
    %213 = vst [vmem:[#allocation5 + $0x2d0] sm:$0xff] 0
    %214 = vst [vmem:[#allocation5 + $0x2d8] sm:$0xff] 0
    %215 = vst [vmem:[#allocation5 + $0x2e0] sm:$0xff] 0
    %216 = vst [vmem:[#allocation5 + $0x2e8] sm:$0xff] 0
    %217 = vst [vmem:[#allocation5 + $0x2f0] sm:$0xff] 0
    %218 = vst [vmem:[#allocation5 + $0x2f8] sm:$0xff] 0
    %219 = vst [vmem:[#allocation6] sm:$0xff] 0
    %220 = vst [vmem:[#allocation6 + $0x8] sm:$0xff] 0
    %221 = vst [vmem:[#allocation6 + $0x10] sm:$0xff] 0
    %222 = vst [vmem:[#allocation6 + $0x18] sm:$0xff] 0
    %223 = vst [vmem:[#allocation6 + $0x20] sm:$0xff] 0
    %224 = vst [vmem:[#allocation6 + $0x28] sm:$0xff] 0
    %225 = vst [vmem:[#allocation6 + $0x30] sm:$0xff] 0
    %226 = vst [vmem:[#allocation6 + $0x38] sm:$0xff] 0
    %227 = vst [vmem:[#allocation6 + $0x40] sm:$0xff] 0
    %228 = vst [vmem:[#allocation6 + $0x48] sm:$0xff] 0
    %229 = vst [vmem:[#allocation6 + $0x50] sm:$0xff] 0
    %230 = vst [vmem:[#allocation6 + $0x58] sm:$0xff] 0
    %231 = vst [vmem:[#allocation6 + $0x60] sm:$0xff] 0
    %232 = vst [vmem:[#allocation6 + $0x68] sm:$0xff] 0
    %233 = vst [vmem:[#allocation6 + $0x70] sm:$0xff] 0
    %234 = vst [vmem:[#allocation6 + $0x78] sm:$0xff] 0
    %235 = vst [vmem:[#allocation6 + $0x80] sm:$0xff] 0
    %236 = vst [vmem:[#allocation6 + $0x88] sm:$0xff] 0
    %237 = vst [vmem:[#allocation6 + $0x90] sm:$0xff] 0
    %238 = vst [vmem:[#allocation6 + $0x98] sm:$0xff] 0
    %239 = vst [vmem:[#allocation6 + $0xa0] sm:$0xff] 0
    %240 = vst [vmem:[#allocation6 + $0xa8] sm:$0xff] 0
    %241 = vst [vmem:[#allocation6 + $0xb0] sm:$0xff] 0
    %242 = vst [vmem:[#allocation6 + $0xb8] sm:$0xff] 0
    %243 = vst [vmem:[#allocation6 + $0xc0] sm:$0xff] 0
    %244 = vst [vmem:[#allocation6 + $0xc8] sm:$0xff] 0
    %245 = vst [vmem:[#allocation6 + $0xd0] sm:$0xff] 0
    %246 = vst [vmem:[#allocation6 + $0xd8] sm:$0xff] 0
    %247 = vst [vmem:[#allocation6 + $0xe0] sm:$0xff] 0
    %248 = vst [vmem:[#allocation6 + $0xe8] sm:$0xff] 0
    %249 = vst [vmem:[#allocation6 + $0xf0] sm:$0xff] 0
    %250 = vst [vmem:[#allocation6 + $0xf8] sm:$0xff] 0
    %251 = vst [vmem:[#allocation6 + $0x100] sm:$0xff] 0
    %252 = vst [vmem:[#allocation6 + $0x108] sm:$0xff] 0
    %253 = vst [vmem:[#allocation6 + $0x110] sm:$0xff] 0
    %254 = vst [vmem:[#allocation6 + $0x118] sm:$0xff] 0
    %255 = vst [vmem:[#allocation6 + $0x120] sm:$0xff] 0
    %256 = vst [vmem:[#allocation6 + $0x128] sm:$0xff] 0
    %257 = vst [vmem:[#allocation6 + $0x130] sm:$0xff] 0
    %258 = vst [vmem:[#allocation6 + $0x138] sm:$0xff] 0
    %259 = vst [vmem:[#allocation6 + $0x140] sm:$0xff] 0
    %260 = vst [vmem:[#allocation6 + $0x148] sm:$0xff] 0
    %261 = vst [vmem:[#allocation6 + $0x150] sm:$0xff] 0
    %262 = vst [vmem:[#allocation6 + $0x158] sm:$0xff] 0
    %263 = vst [vmem:[#allocation6 + $0x160] sm:$0xff] 0
    %264 = vst [vmem:[#allocation6 + $0x168] sm:$0xff] 0
    %265 = vst [vmem:[#allocation6 + $0x170] sm:$0xff] 0
    %266 = vst [vmem:[#allocation6 + $0x178] sm:$0xff] 0
    %267 = vst [vmem:[#allocation6 + $0x180] sm:$0xff] 0
    %268 = vst [vmem:[#allocation6 + $0x188] sm:$0xff] 0
    %269 = vst [vmem:[#allocation6 + $0x190] sm:$0xff] 0
    %270 = vst [vmem:[#allocation6 + $0x198] sm:$0xff] 0
    %271 = vst [vmem:[#allocation6 + $0x1a0] sm:$0xff] 0
    %272 = vst [vmem:[#allocation6 + $0x1a8] sm:$0xff] 0
    %273 = vst [vmem:[#allocation6 + $0x1b0] sm:$0xff] 0
    %274 = vst [vmem:[#allocation6 + $0x1b8] sm:$0xff] 0
    %275 = vst [vmem:[#allocation6 + $0x1c0] sm:$0xff] 0
    %276 = vst [vmem:[#allocation6 + $0x1c8] sm:$0xff] 0
    %277 = vst [vmem:[#allocation6 + $0x1d0] sm:$0xff] 0
    %278 = vst [vmem:[#allocation6 + $0x1d8] sm:$0xff] 0
    %279 = vst [vmem:[#allocation6 + $0x1e0] sm:$0xff] 0
    %280 = vst [vmem:[#allocation6 + $0x1e8] sm:$0xff] 0
    %281 = vst [vmem:[#allocation6 + $0x1f0] sm:$0xff] 0
    %282 = vst [vmem:[#allocation6 + $0x1f8] sm:$0xff] 0
    %283 = vst [vmem:[#allocation6 + $0x200] sm:$0xff] 0
    %284 = vst [vmem:[#allocation6 + $0x208] sm:$0xff] 0
    %285 = vst [vmem:[#allocation6 + $0x210] sm:$0xff] 0
    %286 = vst [vmem:[#allocation6 + $0x218] sm:$0xff] 0
    %287 = vst [vmem:[#allocation6 + $0x220] sm:$0xff] 0
    %288 = vst [vmem:[#allocation6 + $0x228] sm:$0xff] 0
    %289 = vst [vmem:[#allocation6 + $0x230] sm:$0xff] 0
    %290 = vst [vmem:[#allocation6 + $0x238] sm:$0xff] 0
    %291 = vst [vmem:[#allocation6 + $0x240] sm:$0xff] 0
    %292 = vst [vmem:[#allocation6 + $0x248] sm:$0xff] 0
    %293 = vst [vmem:[#allocation6 + $0x250] sm:$0xff] 0
    %294 = vst [vmem:[#allocation6 + $0x258] sm:$0xff] 0
    %295 = vst [vmem:[#allocation6 + $0x260] sm:$0xff] 0
    %296 = vst [vmem:[#allocation6 + $0x268] sm:$0xff] 0
    %297 = vst [vmem:[#allocation6 + $0x270] sm:$0xff] 0
    %298 = vst [vmem:[#allocation6 + $0x278] sm:$0xff] 0
    %299 = vst [vmem:[#allocation6 + $0x280] sm:$0xff] 0
    %300 = vst [vmem:[#allocation6 + $0x288] sm:$0xff] 0
    %301 = vst [vmem:[#allocation6 + $0x290] sm:$0xff] 0
    %302 = vst [vmem:[#allocation6 + $0x298] sm:$0xff] 0
    %303 = vst [vmem:[#allocation6 + $0x2a0] sm:$0xff] 0
    %304 = vst [vmem:[#allocation6 + $0x2a8] sm:$0xff] 0
    %305 = vst [vmem:[#allocation6 + $0x2b0] sm:$0xff] 0
    %306 = vst [vmem:[#allocation6 + $0x2b8] sm:$0xff] 0
    %307 = vst [vmem:[#allocation6 + $0x2c0] sm:$0xff] 0
    %308 = vst [vmem:[#allocation6 + $0x2c8] sm:$0xff] 0
    %309 = vst [vmem:[#allocation6 + $0x2d0] sm:$0xff] 0
    %310 = vst [vmem:[#allocation6 + $0x2d8] sm:$0xff] 0
    %311 = vst [vmem:[#allocation6 + $0x2e0] sm:$0xff] 0
    %312 = vst [vmem:[#allocation6 + $0x2e8] sm:$0xff] 0
    %313 = vst [vmem:[#allocation6 + $0x2f0] sm:$0xff] 0
    %314 = vst [vmem:[#allocation6 + $0x2f8] sm:$0xff] 0
    %315 = vst [vmem:[#allocation7] sm:$0xff] 0
    %316 = vst [vmem:[#allocation7 + $0x8] sm:$0xff] 0
    %317 = vst [vmem:[#allocation7 + $0x10] sm:$0xff] 0
    %318 = vst [vmem:[#allocation7 + $0x18] sm:$0xff] 0
    %319 = vst [vmem:[#allocation7 + $0x20] sm:$0xff] 0
    %320 = vst [vmem:[#allocation7 + $0x28] sm:$0xff] 0
    %321 = vst [vmem:[#allocation7 + $0x30] sm:$0xff] 0
    %322 = vst [vmem:[#allocation7 + $0x38] sm:$0xff] 0
    %323 = vst [vmem:[#allocation7 + $0x40] sm:$0xff] 0
    %324 = vst [vmem:[#allocation7 + $0x48] sm:$0xff] 0
    %325 = vst [vmem:[#allocation7 + $0x50] sm:$0xff] 0
    %326 = vst [vmem:[#allocation7 + $0x58] sm:$0xff] 0
    %327 = vst [vmem:[#allocation7 + $0x60] sm:$0xff] 0
    %328 = vst [vmem:[#allocation7 + $0x68] sm:$0xff] 0
    %329 = vst [vmem:[#allocation7 + $0x70] sm:$0xff] 0
    %330 = vst [vmem:[#allocation7 + $0x78] sm:$0xff] 0
    %331 = vst [vmem:[#allocation7 + $0x80] sm:$0xff] 0
    %332 = vst [vmem:[#allocation7 + $0x88] sm:$0xff] 0
    %333 = vst [vmem:[#allocation7 + $0x90] sm:$0xff] 0
    %334 = vst [vmem:[#allocation7 + $0x98] sm:$0xff] 0
    %335 = vst [vmem:[#allocation7 + $0xa0] sm:$0xff] 0
    %336 = vst [vmem:[#allocation7 + $0xa8] sm:$0xff] 0
    %337 = vst [vmem:[#allocation7 + $0xb0] sm:$0xff] 0
    %338 = vst [vmem:[#allocation7 + $0xb8] sm:$0xff] 0
    %339 = vst [vmem:[#allocation7 + $0xc0] sm:$0xff] 0
    %340 = vst [vmem:[#allocation7 + $0xc8] sm:$0xff] 0
    %341 = vst [vmem:[#allocation7 + $0xd0] sm:$0xff] 0
    %342 = vst [vmem:[#allocation7 + $0xd8] sm:$0xff] 0
    %343 = vst [vmem:[#allocation7 + $0xe0] sm:$0xff] 0
    %344 = vst [vmem:[#allocation7 + $0xe8] sm:$0xff] 0
    %345 = vst [vmem:[#allocation7 + $0xf0] sm:$0xff] 0
    %346 = vst [vmem:[#allocation7 + $0xf8] sm:$0xff] 0
    %347 = vst [vmem:[#allocation7 + $0x100] sm:$0xff] 0
    %348 = vst [vmem:[#allocation7 + $0x108] sm:$0xff] 0
    %349 = vst [vmem:[#allocation7 + $0x110] sm:$0xff] 0
    %350 = vst [vmem:[#allocation7 + $0x118] sm:$0xff] 0
    %351 = vst [vmem:[#allocation7 + $0x120] sm:$0xff] 0
    %352 = vst [vmem:[#allocation7 + $0x128] sm:$0xff] 0
    %353 = vst [vmem:[#allocation7 + $0x130] sm:$0xff] 0
    %354 = vst [vmem:[#allocation7 + $0x138] sm:$0xff] 0
    %355 = vst [vmem:[#allocation7 + $0x140] sm:$0xff] 0
    %356 = vst [vmem:[#allocation7 + $0x148] sm:$0xff] 0
    %357 = vst [vmem:[#allocation7 + $0x150] sm:$0xff] 0
    %358 = vst [vmem:[#allocation7 + $0x158] sm:$0xff] 0
    %359 = vst [vmem:[#allocation7 + $0x160] sm:$0xff] 0
    %360 = vst [vmem:[#allocation7 + $0x168] sm:$0xff] 0
    %361 = vst [vmem:[#allocation7 + $0x170] sm:$0xff] 0
    %362 = vst [vmem:[#allocation7 + $0x178] sm:$0xff] 0
    %363 = vst [vmem:[#allocation7 + $0x180] sm:$0xff] 0
    %364 = vst [vmem:[#allocation7 + $0x188] sm:$0xff] 0
    %365 = vst [vmem:[#allocation7 + $0x190] sm:$0xff] 0
    %366 = vst [vmem:[#allocation7 + $0x198] sm:$0xff] 0
    %367 = vst [vmem:[#allocation7 + $0x1a0] sm:$0xff] 0
    %368 = vst [vmem:[#allocation7 + $0x1a8] sm:$0xff] 0
    %369 = vst [vmem:[#allocation7 + $0x1b0] sm:$0xff] 0
    %370 = vst [vmem:[#allocation7 + $0x1b8] sm:$0xff] 0
    %371 = vst [vmem:[#allocation7 + $0x1c0] sm:$0xff] 0
    %372 = vst [vmem:[#allocation7 + $0x1c8] sm:$0xff] 0
    %373 = vst [vmem:[#allocation7 + $0x1d0] sm:$0xff] 0
    %374 = vst [vmem:[#allocation7 + $0x1d8] sm:$0xff] 0
    %375 = vst [vmem:[#allocation7 + $0x1e0] sm:$0xff] 0
    %376 = vst [vmem:[#allocation7 + $0x1e8] sm:$0xff] 0
    %377 = vst [vmem:[#allocation7 + $0x1f0] sm:$0xff] 0
    %378 = vst [vmem:[#allocation7 + $0x1f8] sm:$0xff] 0
    %379 = vst [vmem:[#allocation7 + $0x200] sm:$0xff] 0
    %380 = vst [vmem:[#allocation7 + $0x208] sm:$0xff] 0
    %381 = vst [vmem:[#allocation7 + $0x210] sm:$0xff] 0
    %382 = vst [vmem:[#allocation7 + $0x218] sm:$0xff] 0
    %383 = vst [vmem:[#allocation7 + $0x220] sm:$0xff] 0
    %384 = vst [vmem:[#allocation7 + $0x228] sm:$0xff] 0
    %385 = vst [vmem:[#allocation7 + $0x230] sm:$0xff] 0
    %386 = vst [vmem:[#allocation7 + $0x238] sm:$0xff] 0
    %387 = vst [vmem:[#allocation7 + $0x240] sm:$0xff] 0
    %388 = vst [vmem:[#allocation7 + $0x248] sm:$0xff] 0
    %389 = vst [vmem:[#allocation7 + $0x250] sm:$0xff] 0
    %390 = vst [vmem:[#allocation7 + $0x258] sm:$0xff] 0
    %391 = vst [vmem:[#allocation7 + $0x260] sm:$0xff] 0
    %392 = vst [vmem:[#allocation7 + $0x268] sm:$0xff] 0
    %393 = vst [vmem:[#allocation7 + $0x270] sm:$0xff] 0
    %394 = vst [vmem:[#allocation7 + $0x278] sm:$0xff] 0
    %395 = vst [vmem:[#allocation7 + $0x280] sm:$0xff] 0
    %396 = vst [vmem:[#allocation7 + $0x288] sm:$0xff] 0
    %397 = vst [vmem:[#allocation7 + $0x290] sm:$0xff] 0
    %398 = vst [vmem:[#allocation7 + $0x298] sm:$0xff] 0
    %399 = vst [vmem:[#allocation7 + $0x2a0] sm:$0xff] 0
    %400 = vst [vmem:[#allocation7 + $0x2a8] sm:$0xff] 0
    %401 = vst [vmem:[#allocation7 + $0x2b0] sm:$0xff] 0
    %402 = vst [vmem:[#allocation7 + $0x2b8] sm:$0xff] 0
    %403 = vst [vmem:[#allocation7 + $0x2c0] sm:$0xff] 0
    %404 = vst [vmem:[#allocation7 + $0x2c8] sm:$0xff] 0
    %405 = vst [vmem:[#allocation7 + $0x2d0] sm:$0xff] 0
    %406 = vst [vmem:[#allocation7 + $0x2d8] sm:$0xff] 0
    %407 = vst [vmem:[#allocation7 + $0x2e0] sm:$0xff] 0
    %408 = vst [vmem:[#allocation7 + $0x2e8] sm:$0xff] 0
    %409 = vst [vmem:[#allocation7 + $0x2f0] sm:$0xff] 0
    %410 = vst [vmem:[#allocation7 + $0x2f8] sm:$0xff] 0
    %411 = vst [vmem:[#allocation8] sm:$0xf] 0
    %412 = vst [vmem:[#allocation8 + $0x4] sm:$0xf] 0
    %413 = vst [vmem:[#allocation8 + $0x8] sm:$0xf] 0
    %414 = vst [vmem:[#allocation8 + $0xc] sm:$0xf] 0
    %415 = vst [vmem:[#allocation8 + $0x10] sm:$0xf] 0
    %416 = vst [vmem:[#allocation8 + $0x14] sm:$0xf] 0
    %417 = vst [vmem:[#allocation8 + $0x18] sm:$0xf] 0
    %418 = vst [vmem:[#allocation8 + $0x1c] sm:$0xf] 0
    %419 = vst [vmem:[#allocation8 + $0x20] sm:$0xf] 0
    %420 = vst [vmem:[#allocation8 + $0x24] sm:$0xf] 0
    %421 = vst [vmem:[#allocation8 + $0x28] sm:$0xf] 0
    %422 = vst [vmem:[#allocation8 + $0x2c] sm:$0xf] 0
    %423 = vst [vmem:[#allocation8 + $0x30] sm:$0xf] 0
    %424 = vst [vmem:[#allocation8 + $0x34] sm:$0xf] 0
    %425 = vst [vmem:[#allocation8 + $0x38] sm:$0xf] 0
    %426 = vst [vmem:[#allocation8 + $0x3c] sm:$0xf] 0
    %427 = vst [vmem:[#allocation8 + $0x40] sm:$0xf] 0
    %428 = vst [vmem:[#allocation8 + $0x44] sm:$0xf] 0
    %429 = vst [vmem:[#allocation8 + $0x48] sm:$0xf] 0
    %430 = vst [vmem:[#allocation8 + $0x4c] sm:$0xf] 0
    %431 = vst [vmem:[#allocation8 + $0x50] sm:$0xf] 0
    %432 = vst [vmem:[#allocation8 + $0x54] sm:$0xf] 0
    %433 = vst [vmem:[#allocation8 + $0x58] sm:$0xf] 0
    %434 = vst [vmem:[#allocation8 + $0x5c] sm:$0xf] 0
    %435 = vst [vmem:[#allocation8 + $0x60] sm:$0xf] 0
    %436 = vst [vmem:[#allocation8 + $0x64] sm:$0xf] 0
    %437 = vst [vmem:[#allocation8 + $0x68] sm:$0xf] 0
    %438 = vst [vmem:[#allocation8 + $0x6c] sm:$0xf] 0
    %439 = vst [vmem:[#allocation8 + $0x70] sm:$0xf] 0
    %440 = vst [vmem:[#allocation8 + $0x74] sm:$0xf] 0
    %441 = vst [vmem:[#allocation8 + $0x78] sm:$0xf] 0
    %442 = vst [vmem:[#allocation8 + $0x7c] sm:$0xf] 0
    %v443 = vld [vmem:[#allocation9] sm:$0xff]
    %vm444 = vcmask 261120
    %445 = vst.msk [vmem:[#allocation4] sm:$0xff] %vm444, %v443
    %v446 = vld [vmem:[%s4] sm:$0xf]
    %v447 = vld [vmem:[%s4 + $0x4] sm:$0xf]
    %v448 = vld [vmem:[%s4 + $0x8] sm:$0xf]
    %v449 = vld [vmem:[%s4 + $0xc] sm:$0xf]
    %vm450 = vcmask 257024
    %451 = vst.msk [vmem:[#allocation5] sm:$0xf] %vm450, %v446
    %452 = vst.msk [vmem:[#allocation5 + $0x18] sm:$0xf] %vm450, %v447
    %453 = vst.msk [vmem:[#allocation5 + $0x30] sm:$0xf] %vm450, %v448
    %454 = vst.msk [vmem:[#allocation5 + $0x48] sm:$0xf] %vm450, %v449
    %v455 = vld [vmem:[#allocation15] sm:$0xf]
    %v456 = vld [vmem:[#allocation15 + $0x4] sm:$0xf]
    %v457 = vld [vmem:[#allocation15 + $0x8] sm:$0xf]
    %v458 = vld [vmem:[#allocation15 + $0xc] sm:$0xf]
    %459 = vst.msk [vmem:[#allocation7] sm:$0xf] %vm450, %v455
    %460 = vst.msk [vmem:[#allocation7 + $0x18] sm:$0xf] %vm450, %v456
    %461 = vst.msk [vmem:[#allocation7 + $0x30] sm:$0xf] %vm450, %v457
    %462 = vst.msk [vmem:[#allocation7 + $0x48] sm:$0xf] %vm450, %v458
    %v463 = vld [vmem:[#allocation12] sm:$0xf]
    %v464 = vld [vmem:[#allocation12 + $0x4] sm:$0xf]
    %v465 = vld [vmem:[#allocation12 + $0x8] sm:$0xf]
    %v466 = vld [vmem:[#allocation12 + $0xc] sm:$0xf]
    %467 = vst.msk [vmem:[#allocation6] sm:$0xf] %vm450, %v463
    %468 = vst.msk [vmem:[#allocation6 + $0x18] sm:$0xf] %vm450, %v464
    %469 = vst.msk [vmem:[#allocation6 + $0x30] sm:$0xf] %vm450, %v465
    %470 = vst.msk [vmem:[#allocation6 + $0x48] sm:$0xf] %vm450, %v466
    %s471 = scalar_lea.vmem [#allocation12], 96
    %v472 = vld [vmem:[%s471] sm:$0xf]
    %v473 = vld [vmem:[%s471 + $0x4] sm:$0xf]
    %v474 = vld [vmem:[%s471 + $0x8] sm:$0xf]
    %v475 = vld [vmem:[%s471 + $0xc] sm:$0xf]
    %476 = vst.msk [vmem:[#allocation6 + $0x180] sm:$0xf] %vm450, %v472
    %477 = vst.msk [vmem:[#allocation6 + $0x198] sm:$0xf] %vm450, %v473
    %478 = vst.msk [vmem:[#allocation6 + $0x1b0] sm:$0xf] %vm450, %v474
    %479 = vst.msk [vmem:[#allocation6 + $0x1c8] sm:$0xf] %vm450, %v475
    %s480 = scalar_lea.vmem [#allocation9], 8
    %v481 = vld [vmem:[%s480] sm:$0xff]
    %482 = vst.msk [vmem:[#allocation4 + $0x8] sm:$0xff] %vm444, %v481
    %s483 = scalar_lea.vmem %s4, 16
    %v484 = vld [vmem:[%s483] sm:$0xf]
    %v485 = vld [vmem:[%s483 + $0x4] sm:$0xf]
    %v486 = vld [vmem:[%s483 + $0x8] sm:$0xf]
    %v487 = vld [vmem:[%s483 + $0xc] sm:$0xf]
    %488 = vst.msk [vmem:[#allocation5 + $0x4] sm:$0xf] %vm450, %v484
    %489 = vst.msk [vmem:[#allocation5 + $0x1c] sm:$0xf] %vm450, %v485
    %490 = vst.msk [vmem:[#allocation5 + $0x34] sm:$0xf] %vm450, %v486
    %491 = vst.msk [vmem:[#allocation5 + $0x4c] sm:$0xf] %vm450, %v487
    %s492 = scalar_lea.vmem [#allocation15], 16
    %v493 = vld [vmem:[%s492] sm:$0xf]
    %v494 = vld [vmem:[%s492 + $0x4] sm:$0xf]
    %v495 = vld [vmem:[%s492 + $0x8] sm:$0xf]
    %v496 = vld [vmem:[%s492 + $0xc] sm:$0xf]
    %497 = vst.msk [vmem:[#allocation7 + $0x4] sm:$0xf] %vm450, %v493
    %498 = vst.msk [vmem:[#allocation7 + $0x1c] sm:$0xf] %vm450, %v494
    %499 = vst.msk [vmem:[#allocation7 + $0x34] sm:$0xf] %vm450, %v495
    %500 = vst.msk [vmem:[#allocation7 + $0x4c] sm:$0xf] %vm450, %v496
    %s501 = scalar_lea.vmem [#allocation12], 16
    %v502 = vld [vmem:[%s501] sm:$0xf]
    %v503 = vld [vmem:[%s501 + $0x4] sm:$0xf]
    %v504 = vld [vmem:[%s501 + $0x8] sm:$0xf]
    %v505 = vld [vmem:[%s501 + $0xc] sm:$0xf]
    %506 = vst.msk [vmem:[#allocation6 + $0x4] sm:$0xf] %vm450, %v502
    %507 = vst.msk [vmem:[#allocation6 + $0x1c] sm:$0xf] %vm450, %v503
    %508 = vst.msk [vmem:[#allocation6 + $0x34] sm:$0xf] %vm450, %v504
    %509 = vst.msk [vmem:[#allocation6 + $0x4c] sm:$0xf] %vm450, %v505
    %s510 = scalar_lea.vmem [#allocation12], 112
    %v511 = vld [vmem:[%s510] sm:$0xf]
    %v512 = vld [vmem:[%s510 + $0x4] sm:$0xf]
    %v513 = vld [vmem:[%s510 + $0x8] sm:$0xf]
    %v514 = vld [vmem:[%s510 + $0xc] sm:$0xf]
    %515 = vst.msk [vmem:[#allocation6 + $0x184] sm:$0xf] %vm450, %v511
    %516 = vst.msk [vmem:[#allocation6 + $0x19c] sm:$0xf] %vm450, %v512
    %517 = vst.msk [vmem:[#allocation6 + $0x1b4] sm:$0xf] %vm450, %v513
    %518 = vst.msk [vmem:[#allocation6 + $0x1cc] sm:$0xf] %vm450, %v514
    %s519 = scalar_lea.vmem [#allocation9], 16
    %v520 = vld [vmem:[%s519] sm:$0xff]
    %521 = vst.msk [vmem:[#allocation4 + $0x10] sm:$0xff] %vm444, %v520
    %s522 = scalar_lea.vmem %s4, 32
    %v523 = vld [vmem:[%s522] sm:$0xf]
    %v524 = vld [vmem:[%s522 + $0x4] sm:$0xf]
    %v525 = vld [vmem:[%s522 + $0x8] sm:$0xf]
    %v526 = vld [vmem:[%s522 + $0xc] sm:$0xf]
    %527 = vst.msk [vmem:[#allocation5 + $0x8] sm:$0xf] %vm450, %v523
    %528 = vst.msk [vmem:[#allocation5 + $0x20] sm:$0xf] %vm450, %v524
    %529 = vst.msk [vmem:[#allocation5 + $0x38] sm:$0xf] %vm450, %v525
    %530 = vst.msk [vmem:[#allocation5 + $0x50] sm:$0xf] %vm450, %v526
    %s531 = scalar_lea.vmem [#allocation15], 32
    %v532 = vld [vmem:[%s531] sm:$0xf]
    %v533 = vld [vmem:[%s531 + $0x4] sm:$0xf]
    %v534 = vld [vmem:[%s531 + $0x8] sm:$0xf]
    %v535 = vld [vmem:[%s531 + $0xc] sm:$0xf]
    %536 = vst.msk [vmem:[#allocation7 + $0x8] sm:$0xf] %vm450, %v532
    %537 = vst.msk [vmem:[#allocation7 + $0x20] sm:$0xf] %vm450, %v533
    %538 = vst.msk [vmem:[#allocation7 + $0x38] sm:$0xf] %vm450, %v534
    %539 = vst.msk [vmem:[#allocation7 + $0x50] sm:$0xf] %vm450, %v535
    %s540 = scalar_lea.vmem [#allocation12], 32
    %v541 = vld [vmem:[%s540] sm:$0xf]
    %v542 = vld [vmem:[%s540 + $0x4] sm:$0xf]
    %v543 = vld [vmem:[%s540 + $0x8] sm:$0xf]
    %v544 = vld [vmem:[%s540 + $0xc] sm:$0xf]
    %545 = vst.msk [vmem:[#allocation6 + $0x8] sm:$0xf] %vm450, %v541
    %546 = vst.msk [vmem:[#allocation6 + $0x20] sm:$0xf] %vm450, %v542
    %547 = vst.msk [vmem:[#allocation6 + $0x38] sm:$0xf] %vm450, %v543
    %548 = vst.msk [vmem:[#allocation6 + $0x50] sm:$0xf] %vm450, %v544
    %s549 = scalar_lea.vmem [#allocation12], 128
    %v550 = vld [vmem:[%s549] sm:$0xf]
    %v551 = vld [vmem:[%s549 + $0x4] sm:$0xf]
    %v552 = vld [vmem:[%s549 + $0x8] sm:$0xf]
    %v553 = vld [vmem:[%s549 + $0xc] sm:$0xf]
    %554 = vst.msk [vmem:[#allocation6 + $0x188] sm:$0xf] %vm450, %v550
    %555 = vst.msk [vmem:[#allocation6 + $0x1a0] sm:$0xf] %vm450, %v551
    %556 = vst.msk [vmem:[#allocation6 + $0x1b8] sm:$0xf] %vm450, %v552
    %557 = vst.msk [vmem:[#allocation6 + $0x1d0] sm:$0xf] %vm450, %v553
    %s558 = scalar_lea.vmem [#allocation9], 24
    %v559 = vld [vmem:[%s558] sm:$0xff]
    %560 = vst.msk [vmem:[#allocation4 + $0x18] sm:$0xff] %vm444, %v559
    %s561 = scalar_lea.vmem %s4, 48
    %v562 = vld [vmem:[%s561] sm:$0xf]
    %v563 = vld [vmem:[%s561 + $0x4] sm:$0xf]
    %v564 = vld [vmem:[%s561 + $0x8] sm:$0xf]
    %v565 = vld [vmem:[%s561 + $0xc] sm:$0xf]
    %566 = vst.msk [vmem:[#allocation5 + $0x18c] sm:$0xf] %vm450, %v562
    %567 = vst.msk [vmem:[#allocation5 + $0x1a4] sm:$0xf] %vm450, %v563
    %568 = vst.msk [vmem:[#allocation5 + $0x1bc] sm:$0xf] %vm450, %v564
    %569 = vst.msk [vmem:[#allocation5 + $0x1d4] sm:$0xf] %vm450, %v565
    %s570 = scalar_lea.vmem [#allocation15], 48
    %v571 = vld [vmem:[%s570] sm:$0xf]
    %v572 = vld [vmem:[%s570 + $0x4] sm:$0xf]
    %v573 = vld [vmem:[%s570 + $0x8] sm:$0xf]
    %v574 = vld [vmem:[%s570 + $0xc] sm:$0xf]
    %575 = vst.msk [vmem:[#allocation7 + $0x18c] sm:$0xf] %vm450, %v571
    %576 = vst.msk [vmem:[#allocation7 + $0x1a4] sm:$0xf] %vm450, %v572
    %577 = vst.msk [vmem:[#allocation7 + $0x1bc] sm:$0xf] %vm450, %v573
    %578 = vst.msk [vmem:[#allocation7 + $0x1d4] sm:$0xf] %vm450, %v574
    %s579 = scalar_lea.vmem [#allocation12], 48
    %v580 = vld [vmem:[%s579] sm:$0xf]
    %v581 = vld [vmem:[%s579 + $0x4] sm:$0xf]
    %v582 = vld [vmem:[%s579 + $0x8] sm:$0xf]
    %v583 = vld [vmem:[%s579 + $0xc] sm:$0xf]
    %584 = vst.msk [vmem:[#allocation6 + $0xc] sm:$0xf] %vm450, %v580
    %585 = vst.msk [vmem:[#allocation6 + $0x24] sm:$0xf] %vm450, %v581
    %586 = vst.msk [vmem:[#allocation6 + $0x3c] sm:$0xf] %vm450, %v582
    %587 = vst.msk [vmem:[#allocation6 + $0x54] sm:$0xf] %vm450, %v583
    %s588 = scalar_lea.vmem [#allocation12], 144
    %v589 = vld [vmem:[%s588] sm:$0xf]
    %v590 = vld [vmem:[%s588 + $0x4] sm:$0xf]
    %v591 = vld [vmem:[%s588 + $0x8] sm:$0xf]
    %v592 = vld [vmem:[%s588 + $0xc] sm:$0xf]
    %593 = vst.msk [vmem:[#allocation6 + $0x18c] sm:$0xf] %vm450, %v589
    %594 = vst.msk [vmem:[#allocation6 + $0x1a4] sm:$0xf] %vm450, %v590
    %595 = vst.msk [vmem:[#allocation6 + $0x1bc] sm:$0xf] %vm450, %v591
    %596 = vst.msk [vmem:[#allocation6 + $0x1d4] sm:$0xf] %vm450, %v592
    %s597 = scalar_lea.vmem [#allocation9], 32
    %v598 = vld [vmem:[%s597] sm:$0xff]
    %599 = vst.msk [vmem:[#allocation4 + $0x20] sm:$0xff] %vm444, %v598
    %s600 = scalar_lea.vmem %s4, 64
    %v601 = vld [vmem:[%s600] sm:$0xf]
    %v602 = vld [vmem:[%s600 + $0x4] sm:$0xf]
    %v603 = vld [vmem:[%s600 + $0x8] sm:$0xf]
    %v604 = vld [vmem:[%s600 + $0xc] sm:$0xf]
    %605 = vst.msk [vmem:[#allocation5 + $0x190] sm:$0xf] %vm450, %v601
    %606 = vst.msk [vmem:[#allocation5 + $0x1a8] sm:$0xf] %vm450, %v602
    %607 = vst.msk [vmem:[#allocation5 + $0x1c0] sm:$0xf] %vm450, %v603
    %608 = vst.msk [vmem:[#allocation5 + $0x1d8] sm:$0xf] %vm450, %v604
    %s609 = scalar_lea.vmem [#allocation15], 64
    %v610 = vld [vmem:[%s609] sm:$0xf]
    %v611 = vld [vmem:[%s609 + $0x4] sm:$0xf]
    %v612 = vld [vmem:[%s609 + $0x8] sm:$0xf]
    %v613 = vld [vmem:[%s609 + $0xc] sm:$0xf]
    %614 = vst.msk [vmem:[#allocation7 + $0x190] sm:$0xf] %vm450, %v610
    %615 = vst.msk [vmem:[#allocation7 + $0x1a8] sm:$0xf] %vm450, %v611
    %616 = vst.msk [vmem:[#allocation7 + $0x1c0] sm:$0xf] %vm450, %v612
    %617 = vst.msk [vmem:[#allocation7 + $0x1d8] sm:$0xf] %vm450, %v613
    %s618 = scalar_lea.vmem [#allocation12], 64
    %v619 = vld [vmem:[%s618] sm:$0xf]
    %v620 = vld [vmem:[%s618 + $0x4] sm:$0xf]
    %v621 = vld [vmem:[%s618 + $0x8] sm:$0xf]
    %v622 = vld [vmem:[%s618 + $0xc] sm:$0xf]
    %623 = vst.msk [vmem:[#allocation6 + $0x10] sm:$0xf] %vm450, %v619
    %624 = vst.msk [vmem:[#allocation6 + $0x28] sm:$0xf] %vm450, %v620
    %625 = vst.msk [vmem:[#allocation6 + $0x40] sm:$0xf] %vm450, %v621
    %626 = vst.msk [vmem:[#allocation6 + $0x58] sm:$0xf] %vm450, %v622
    %s627 = scalar_lea.vmem [#allocation12], 160
    %v628 = vld [vmem:[%s627] sm:$0xf]
    %v629 = vld [vmem:[%s627 + $0x4] sm:$0xf]
    %v630 = vld [vmem:[%s627 + $0x8] sm:$0xf]
    %v631 = vld [vmem:[%s627 + $0xc] sm:$0xf]
    %632 = vst.msk [vmem:[#allocation6 + $0x190] sm:$0xf] %vm450, %v628
    %633 = vst.msk [vmem:[#allocation6 + $0x1a8] sm:$0xf] %vm450, %v629
    %634 = vst.msk [vmem:[#allocation6 + $0x1c0] sm:$0xf] %vm450, %v630
    %635 = vst.msk [vmem:[#allocation6 + $0x1d8] sm:$0xf] %vm450, %v631
    %s636 = scalar_lea.vmem [#allocation9], 40
    %v637 = vld [vmem:[%s636] sm:$0xff]
    %638 = vst.msk [vmem:[#allocation4 + $0x28] sm:$0xff] %vm444, %v637
    %s639 = scalar_lea.vmem %s4, 80
    %v640 = vld [vmem:[%s639] sm:$0xf]
    %v641 = vld [vmem:[%s639 + $0x4] sm:$0xf]
    %v642 = vld [vmem:[%s639 + $0x8] sm:$0xf]
    %v643 = vld [vmem:[%s639 + $0xc] sm:$0xf]
    %644 = vst.msk [vmem:[#allocation5 + $0x194] sm:$0xf] %vm450, %v640
    %645 = vst.msk [vmem:[#allocation5 + $0x1ac] sm:$0xf] %vm450, %v641
    %646 = vst.msk [vmem:[#allocation5 + $0x1c4] sm:$0xf] %vm450, %v642
    %647 = vst.msk [vmem:[#allocation5 + $0x1dc] sm:$0xf] %vm450, %v643
    %s648 = scalar_lea.vmem [#allocation15], 80
    %v649 = vld [vmem:[%s648] sm:$0xf]
    %v650 = vld [vmem:[%s648 + $0x4] sm:$0xf]
    %v651 = vld [vmem:[%s648 + $0x8] sm:$0xf]
    %v652 = vld [vmem:[%s648 + $0xc] sm:$0xf]
    %653 = vst.msk [vmem:[#allocation7 + $0x194] sm:$0xf] %vm450, %v649
    %654 = vst.msk [vmem:[#allocation7 + $0x1ac] sm:$0xf] %vm450, %v650
    %655 = vst.msk [vmem:[#allocation7 + $0x1c4] sm:$0xf] %vm450, %v651
    %656 = vst.msk [vmem:[#allocation7 + $0x1dc] sm:$0xf] %vm450, %v652
    %s657 = scalar_lea.vmem [#allocation12], 80
    %v658 = vld [vmem:[%s657] sm:$0xf]
    %v659 = vld [vmem:[%s657 + $0x4] sm:$0xf]
    %v660 = vld [vmem:[%s657 + $0x8] sm:$0xf]
    %v661 = vld [vmem:[%s657 + $0xc] sm:$0xf]
    %662 = vst.msk [vmem:[#allocation6 + $0x14] sm:$0xf] %vm450, %v658
    %663 = vst.msk [vmem:[#allocation6 + $0x2c] sm:$0xf] %vm450, %v659
    %664 = vst.msk [vmem:[#allocation6 + $0x44] sm:$0xf] %vm450, %v660
    %665 = vst.msk [vmem:[#allocation6 + $0x5c] sm:$0xf] %vm450, %v661
    %s666 = scalar_lea.vmem [#allocation12], 176
    %v667 = vld [vmem:[%s666] sm:$0xf]
    %v668 = vld [vmem:[%s666 + $0x4] sm:$0xf]
    %v669 = vld [vmem:[%s666 + $0x8] sm:$0xf]
    %v670 = vld [vmem:[%s666 + $0xc] sm:$0xf]
    %671 = vst.msk [vmem:[#allocation6 + $0x194] sm:$0xf] %vm450, %v667
    %672 = vst.msk [vmem:[#allocation6 + $0x1ac] sm:$0xf] %vm450, %v668
    %673 = vst.msk [vmem:[#allocation6 + $0x1c4] sm:$0xf] %vm450, %v669
    %674 = vst.msk [vmem:[#allocation6 + $0x1dc] sm:$0xf] %vm450, %v670
    %v675 = vld [vmem:[%s10] sm:$0xf]
    %v676 = vld [vmem:[%s10 + $0x4] sm:$0xf]
    %v677 = vld [vmem:[%s10 + $0x8] sm:$0xf]
    %v678 = vld [vmem:[%s10 + $0xc] sm:$0xf]
    %vm679 = vcmask 27648
    %680 = vst.msk [vmem:[#allocation8] sm:$0xf] %vm679, %v675
    %681 = vst.msk [vmem:[#allocation8 + $0x4] sm:$0xf] %vm679, %v676
    %682 = vst.msk [vmem:[#allocation8 + $0x8] sm:$0xf] %vm679, %v677
    %683 = vst.msk [vmem:[#allocation8 + $0xc] sm:$0xf] %vm679, %v678
    %s684 = scalar_lea.vmem %s10, 16
    %v685 = vld [vmem:[%s684] sm:$0xf]
    %v686 = vld [vmem:[%s684 + $0x4] sm:$0xf]
    %v687 = vld [vmem:[%s684 + $0x8] sm:$0xf]
    %v688 = vld [vmem:[%s684 + $0xc] sm:$0xf]
    %689 = vst.msk [vmem:[#allocation8 + $0x40] sm:$0xf] %vm679, %v685
    %690 = vst.msk [vmem:[#allocation8 + $0x44] sm:$0xf] %vm679, %v686
    %691 = vst.msk [vmem:[#allocation8 + $0x48] sm:$0xf] %vm679, %v687
    %692 = vst.msk [vmem:[#allocation8 + $0x4c] sm:$0xf] %vm679, %v688
    %v693 = vld [vmem:[%s0] sm:$0xff]
    %vm694 = vcmp.gt.s32.totalorder %v693, 0
    %v695 = vsel %vm694, 1, 0
    %696 = vset.pattern.permute.xlu0 0
    %697 = vperm.xlu0 %696, %v695
    %v698 = vpop.permute.xlu0 %697
    %vm699 = vcmp.eq.s32.totalorder %v698, 1
    %vm700 = vcmp.gt.s32.totalorder %v693, 1
    %v701 = vsel %vm700, 1, 0
    %702 = vset.pattern.permute.xlu0 0
    %703 = vperm.xlu0 %702, %v701
    %v704 = vpop.permute.xlu0 %703
    %vm705 = vcmp.eq.s32.totalorder %v704, 1
    %vm706 = vcmp.gt.s32.totalorder %v693, 2
    %v707 = vsel %vm706, 1, 0
    %708 = vset.pattern.permute.xlu0 0
    %709 = vperm.xlu0 %708, %v707
    %v710 = vpop.permute.xlu0 %709
    %vm711 = vcmp.eq.s32.totalorder %v710, 1
    %vm712 = vcmp.gt.s32.totalorder %v693, 3
    %v713 = vsel %vm712, 1, 0
    %714 = vset.pattern.permute.xlu0 0
    %715 = vperm.xlu0 %714, %v713
    %v716 = vpop.permute.xlu0 %715
    %vm717 = vcmp.eq.s32.totalorder %v716, 1
    %vm718 = vcmp.gt.s32.totalorder %v693, 4
    %v719 = vsel %vm718, 1, 0
    %720 = vset.pattern.permute.xlu0 0
    %721 = vperm.xlu0 %720, %v719
    %v722 = vpop.permute.xlu0 %721
    %vm723 = vcmp.eq.s32.totalorder %v722, 1
    %vm724 = vcmp.gt.s32.totalorder %v693, 5
    %v725 = vsel %vm724, 1, 0
    %726 = vset.pattern.permute.xlu0 0
    %727 = vperm.xlu0 %726, %v725
    %v728 = vpop.permute.xlu0 %727
    %vm729 = vcmp.eq.s32.totalorder %v728, 1
    %vm730 = vcmp.gt.s32.totalorder %v693, 6
    %v731 = vsel %vm730, 1, 0
    %732 = vset.pattern.permute.xlu0 0
    %733 = vperm.xlu0 %732, %v731
    %v734 = vpop.permute.xlu0 %733
    %vm735 = vcmp.eq.s32.totalorder %v734, 1
    %vm736 = vcmp.gt.s32.totalorder %v693, 7
    %v737 = vsel %vm736, 1, 0
    %738 = vset.pattern.permute.xlu0 0
    %739 = vperm.xlu0 %738, %v737
    %v740 = vpop.permute.xlu0 %739
    %vm741 = vcmp.eq.s32.totalorder %v740, 1
    %v742 = vld [vmem:[%s5] sm:$0x3f]
    %v744 = vperm.slane %v742, 0
    %v745 = vperm.slane %v742, 1
    %v746 = vperm.slane %v742, 2
    %v747 = vperm.slane %v742, 3
    %v748 = vperm.slane %v742, 4
    %v749 = vperm.slane %v742, 5
    %v756 = vld [vmem:[%s1] sm:$0xff]
    %v757 = vld [vmem:[%s1 + $0x8] sm:$0xff]
    %v758 = vld [vmem:[%s1 + $0x10] sm:$0xff]
    %v759 = vld [vmem:[%s1 + $0x18] sm:$0xff]
    %v760 = vld [vmem:[%s1 + $0x20] sm:$0xff]
    %v761 = vld [vmem:[%s1 + $0x28] sm:$0xff]
    %v762 = vld [vmem:[%s1 + $0x30] sm:$0xff]
    %v763 = vld [vmem:[%s1 + $0x38] sm:$0xff]
    %v764 = vld [vmem:[#allocation4] sm:$0xff]
    %v765 = vld [vmem:[#allocation4 + $0x8] sm:$0xff]
    %v766 = vld [vmem:[#allocation4 + $0x10] sm:$0xff]
    %v767 = vld [vmem:[#allocation4 + $0x18] sm:$0xff]
    %v768 = vld [vmem:[#allocation4 + $0x20] sm:$0xff]
    %v769 = vld [vmem:[#allocation4 + $0x28] sm:$0xff]
    %v770 = vld [vmem:[%s3] sm:$0x3f]
    %v772 = vperm.slane %v770, 0
    %v773 = vperm.slane %v770, 1
    %v774 = vperm.slane %v770, 2
    %v775 = vperm.slane %v770, 3
    %v776 = vperm.slane %v770, 4
    %v777 = vperm.slane %v770, 5
    %vm784 = vcmask 64512
    %v786 = vsel %vm784, %v756, 0
    %v789 = vsel %vm784, %v757, 0
    %v792 = vsel %vm784, %v758, 0
    %v795 = vsel %vm784, %v759, 0
    %v798 = vsel %vm784, %v760, 0
    %v801 = vsel %vm784, %v761, 0
    %v804 = vsel %vm784, %v762, 0
    %v807 = vsel %vm784, %v763, 0
    %809 = vmatpush.msra.mxu0 0.0
    %810 = vmatpush.msra.mxu0 0.0
    %811 = vmatpush.msra.mxu0 0.0
    %812 = vmatpush.msra.mxu0 0.0
    %813 = vmatpush.msra.mxu0 0.0
    %814 = vmatpush.msra.mxu0 0.0
    %815 = vmatpush.msra.mxu0 0.0
    %816 = vmatpush.msra.mxu0 0.0
    %817 = vmatpush.msra.mxu0 0.0
    %818 = vmatpush.msra.mxu0 0.0
    %819 = vmatpush.msra.mxu0 0.0
    %820 = vmatpush.msra.mxu0 0.0
    %821 = vmatpush.msra.mxu0 0.0
    %822 = vmatpush.msra.mxu0 0.0
    %823 = vmatpush.msra.mxu0 0.0
    %824 = vmatpush.msra.mxu0 %v764
    %825 = vmatmul.f32.gmra.mxu0 %v786
    %v826 = vpop.f32.mrf.mxu0
    %v827 = vadd.f32 %v772, %v826
    %828 = vmatmul.f32.gmra.mxu0 %v789
    %v829 = vpop.f32.mrf.mxu0
    %v830 = vadd.f32 %v772, %v829
    %831 = vmatmul.f32.gmra.mxu0 %v792
    %v832 = vpop.f32.mrf.mxu0
    %v833 = vadd.f32 %v772, %v832
    %834 = vmatmul.f32.gmra.mxu0 %v795
    %v835 = vpop.f32.mrf.mxu0
    %v836 = vadd.f32 %v772, %v835
    %837 = vmatmul.f32.gmra.mxu0 %v798
    %v838 = vpop.f32.mrf.mxu0
    %v839 = vadd.f32 %v772, %v838
    %840 = vmatmul.f32.gmra.mxu0 %v801
    %v841 = vpop.f32.mrf.mxu0
    %v842 = vadd.f32 %v772, %v841
    %843 = vmatmul.f32.gmra.mxu0 %v804
    %v844 = vpop.f32.mrf.mxu0
    %v845 = vadd.f32 %v772, %v844
    %846 = vmatmul.f32.gmra.mxu0 %v807
    %v847 = vpop.f32.mrf.mxu0
    %v848 = vadd.f32 %v772, %v847
    %849 = vdwg.mxu0
    %850 = vmatpush.msra.mxu0 0.0
    %851 = vmatpush.msra.mxu0 0.0
    %852 = vmatpush.msra.mxu0 0.0
    %853 = vmatpush.msra.mxu0 0.0
    %854 = vmatpush.msra.mxu0 0.0
    %855 = vmatpush.msra.mxu0 0.0
    %856 = vmatpush.msra.mxu0 0.0
    %857 = vmatpush.msra.mxu0 0.0
    %858 = vmatpush.msra.mxu0 0.0
    %859 = vmatpush.msra.mxu0 0.0
    %860 = vmatpush.msra.mxu0 0.0
    %861 = vmatpush.msra.mxu0 0.0
    %862 = vmatpush.msra.mxu0 0.0
    %863 = vmatpush.msra.mxu0 0.0
    %864 = vmatpush.msra.mxu0 0.0
    %865 = vmatpush.msra.mxu0 %v765
    %866 = vmatmul.f32.gmra.mxu0 %v786
    %v867 = vpop.f32.mrf.mxu0
    %v868 = vadd.f32 %v773, %v867
    %869 = vmatmul.f32.gmra.mxu0 %v789
    %v870 = vpop.f32.mrf.mxu0
    %v871 = vadd.f32 %v773, %v870
    %872 = vmatmul.f32.gmra.mxu0 %v792
    %v873 = vpop.f32.mrf.mxu0
    %v874 = vadd.f32 %v773, %v873
    %875 = vmatmul.f32.gmra.mxu0 %v795
    %v876 = vpop.f32.mrf.mxu0
    %v877 = vadd.f32 %v773, %v876
    %878 = vmatmul.f32.gmra.mxu0 %v798
    %v879 = vpop.f32.mrf.mxu0
    %v880 = vadd.f32 %v773, %v879
    %881 = vmatmul.f32.gmra.mxu0 %v801
    %v882 = vpop.f32.mrf.mxu0
    %v883 = vadd.f32 %v773, %v882
    %884 = vmatmul.f32.gmra.mxu0 %v804
    %v885 = vpop.f32.mrf.mxu0
    %v886 = vadd.f32 %v773, %v885
    %887 = vmatmul.f32.gmra.mxu0 %v807
    %v888 = vpop.f32.mrf.mxu0
    %v889 = vadd.f32 %v773, %v888
    %890 = vdwg.mxu0
    %891 = vmatpush.msra.mxu0 0.0
    %892 = vmatpush.msra.mxu0 0.0
    %893 = vmatpush.msra.mxu0 0.0
    %894 = vmatpush.msra.mxu0 0.0
    %895 = vmatpush.msra.mxu0 0.0
    %896 = vmatpush.msra.mxu0 0.0
    %897 = vmatpush.msra.mxu0 0.0
    %898 = vmatpush.msra.mxu0 0.0
    %899 = vmatpush.msra.mxu0 0.0
    %900 = vmatpush.msra.mxu0 0.0
    %901 = vmatpush.msra.mxu0 0.0
    %902 = vmatpush.msra.mxu0 0.0
    %903 = vmatpush.msra.mxu0 0.0
    %904 = vmatpush.msra.mxu0 0.0
    %905 = vmatpush.msra.mxu0 0.0
    %906 = vmatpush.msra.mxu0 %v766
    %907 = vmatmul.f32.gmra.mxu0 %v786
    %v908 = vpop.f32.mrf.mxu0
    %v909 = vadd.f32 %v774, %v908
    %910 = vmatmul.f32.gmra.mxu0 %v789
    %v911 = vpop.f32.mrf.mxu0
    %v912 = vadd.f32 %v774, %v911
    %913 = vmatmul.f32.gmra.mxu0 %v792
    %v914 = vpop.f32.mrf.mxu0
    %v915 = vadd.f32 %v774, %v914
    %916 = vmatmul.f32.gmra.mxu0 %v795
    %v917 = vpop.f32.mrf.mxu0
    %v918 = vadd.f32 %v774, %v917
    %919 = vmatmul.f32.gmra.mxu0 %v798
    %v920 = vpop.f32.mrf.mxu0
    %v921 = vadd.f32 %v774, %v920
    %922 = vmatmul.f32.gmra.mxu0 %v801
    %v923 = vpop.f32.mrf.mxu0
    %v924 = vadd.f32 %v774, %v923
    %925 = vmatmul.f32.gmra.mxu0 %v804
    %v926 = vpop.f32.mrf.mxu0
    %v927 = vadd.f32 %v774, %v926
    %928 = vmatmul.f32.gmra.mxu0 %v807
    %v929 = vpop.f32.mrf.mxu0
    %v930 = vadd.f32 %v774, %v929
    %931 = vdwg.mxu0
    %932 = vmatpush.msra.mxu0 0.0
    %933 = vmatpush.msra.mxu0 0.0
    %934 = vmatpush.msra.mxu0 0.0
    %935 = vmatpush.msra.mxu0 0.0
    %936 = vmatpush.msra.mxu0 0.0
    %937 = vmatpush.msra.mxu0 0.0
    %938 = vmatpush.msra.mxu0 0.0
    %939 = vmatpush.msra.mxu0 0.0
    %940 = vmatpush.msra.mxu0 0.0
    %941 = vmatpush.msra.mxu0 0.0
    %942 = vmatpush.msra.mxu0 0.0
    %943 = vmatpush.msra.mxu0 0.0
    %944 = vmatpush.msra.mxu0 0.0
    %945 = vmatpush.msra.mxu0 0.0
    %946 = vmatpush.msra.mxu0 0.0
    %947 = vmatpush.msra.mxu0 %v767
    %948 = vmatmul.f32.gmra.mxu0 %v786
    %v949 = vpop.f32.mrf.mxu0
    %v950 = vadd.f32 %v775, %v949
    %951 = vmatmul.f32.gmra.mxu0 %v789
    %v952 = vpop.f32.mrf.mxu0
    %v953 = vadd.f32 %v775, %v952
    %954 = vmatmul.f32.gmra.mxu0 %v792
    %v955 = vpop.f32.mrf.mxu0
    %v956 = vadd.f32 %v775, %v955
    %957 = vmatmul.f32.gmra.mxu0 %v795
    %v958 = vpop.f32.mrf.mxu0
    %v959 = vadd.f32 %v775, %v958
    %960 = vmatmul.f32.gmra.mxu0 %v798
    %v961 = vpop.f32.mrf.mxu0
    %v962 = vadd.f32 %v775, %v961
    %963 = vmatmul.f32.gmra.mxu0 %v801
    %v964 = vpop.f32.mrf.mxu0
    %v965 = vadd.f32 %v775, %v964
    %966 = vmatmul.f32.gmra.mxu0 %v804
    %v967 = vpop.f32.mrf.mxu0
    %v968 = vadd.f32 %v775, %v967
    %969 = vmatmul.f32.gmra.mxu0 %v807
    %v970 = vpop.f32.mrf.mxu0
    %v971 = vadd.f32 %v775, %v970
    %972 = vdwg.mxu0
    %973 = vmatpush.msra.mxu0 0.0
    %974 = vmatpush.msra.mxu0 0.0
    %975 = vmatpush.msra.mxu0 0.0
    %976 = vmatpush.msra.mxu0 0.0
    %977 = vmatpush.msra.mxu0 0.0
    %978 = vmatpush.msra.mxu0 0.0
    %979 = vmatpush.msra.mxu0 0.0
    %980 = vmatpush.msra.mxu0 0.0
    %981 = vmatpush.msra.mxu0 0.0
    %982 = vmatpush.msra.mxu0 0.0
    %983 = vmatpush.msra.mxu0 0.0
    %984 = vmatpush.msra.mxu0 0.0
    %985 = vmatpush.msra.mxu0 0.0
    %986 = vmatpush.msra.mxu0 0.0
    %987 = vmatpush.msra.mxu0 0.0
    %988 = vmatpush.msra.mxu0 %v768
    %989 = vmatmul.f32.gmra.mxu0 %v786
    %v990 = vpop.f32.mrf.mxu0
    %v991 = vadd.f32 %v776, %v990
    %992 = vmatmul.f32.gmra.mxu0 %v789
    %v993 = vpop.f32.mrf.mxu0
    %v994 = vadd.f32 %v776, %v993
    %995 = vmatmul.f32.gmra.mxu0 %v792
    %v996 = vpop.f32.mrf.mxu0
    %v997 = vadd.f32 %v776, %v996
    %998 = vmatmul.f32.gmra.mxu0 %v795
    %v999 = vpop.f32.mrf.mxu0
    %v1000 = vadd.f32 %v776, %v999
    %1001 = vmatmul.f32.gmra.mxu0 %v798
    %v1002 = vpop.f32.mrf.mxu0
    %v1003 = vadd.f32 %v776, %v1002
    %1004 = vmatmul.f32.gmra.mxu0 %v801
    %v1005 = vpop.f32.mrf.mxu0
    %v1006 = vadd.f32 %v776, %v1005
    %1007 = vmatmul.f32.gmra.mxu0 %v804
    %v1008 = vpop.f32.mrf.mxu0
    %v1009 = vadd.f32 %v776, %v1008
    %1010 = vmatmul.f32.gmra.mxu0 %v807
    %v1011 = vpop.f32.mrf.mxu0
    %v1012 = vadd.f32 %v776, %v1011
    %1013 = vdwg.mxu0
    %1014 = vmatpush.msra.mxu0 0.0
    %1015 = vmatpush.msra.mxu0 0.0
    %1016 = vmatpush.msra.mxu0 0.0
    %1017 = vmatpush.msra.mxu0 0.0
    %1018 = vmatpush.msra.mxu0 0.0
    %1019 = vmatpush.msra.mxu0 0.0
    %1020 = vmatpush.msra.mxu0 0.0
    %1021 = vmatpush.msra.mxu0 0.0
    %1022 = vmatpush.msra.mxu0 0.0
    %1023 = vmatpush.msra.mxu0 0.0
    %1024 = vmatpush.msra.mxu0 0.0
    %1025 = vmatpush.msra.mxu0 0.0
    %1026 = vmatpush.msra.mxu0 0.0
    %1027 = vmatpush.msra.mxu0 0.0
    %1028 = vmatpush.msra.mxu0 0.0
    %1029 = vmatpush.msra.mxu0 %v769
    %1030 = vmatmul.f32.gmra.mxu0 %v786
    %v1031 = vpop.f32.mrf.mxu0
    %v1032 = vadd.f32 %v777, %v1031
    %1033 = vmatmul.f32.gmra.mxu0 %v789
    %v1034 = vpop.f32.mrf.mxu0
    %v1035 = vadd.f32 %v777, %v1034
    %1036 = vmatmul.f32.gmra.mxu0 %v792
    %v1037 = vpop.f32.mrf.mxu0
    %v1038 = vadd.f32 %v777, %v1037
    %1039 = vmatmul.f32.gmra.mxu0 %v795
    %v1040 = vpop.f32.mrf.mxu0
    %v1041 = vadd.f32 %v777, %v1040
    %1042 = vmatmul.f32.gmra.mxu0 %v798
    %v1043 = vpop.f32.mrf.mxu0
    %v1044 = vadd.f32 %v777, %v1043
    %1045 = vmatmul.f32.gmra.mxu0 %v801
    %v1046 = vpop.f32.mrf.mxu0
    %v1047 = vadd.f32 %v777, %v1046
    %1048 = vmatmul.f32.gmra.mxu0 %v804
    %v1049 = vpop.f32.mrf.mxu0
    %v1050 = vadd.f32 %v777, %v1049
    %1051 = vmatmul.f32.gmra.mxu0 %v807
    %v1052 = vpop.f32.mrf.mxu0
    %v1053 = vadd.f32 %v777, %v1052
    %1054 = vdwg.mxu0
    %1055 = vst [vmem:[#allocation2] sm:$0xff] %v827
    %1056 = vst [vmem:[#allocation2 + $0x8] sm:$0xff] %v868
    %1057 = vst [vmem:[#allocation2 + $0x10] sm:$0xff] %v909
    %1058 = vst [vmem:[#allocation2 + $0x18] sm:$0xff] %v950
    %1059 = vst [vmem:[#allocation2 + $0x20] sm:$0xff] %v991
    %1060 = vst [vmem:[#allocation2 + $0x28] sm:$0xff] %v1032
    %1061 = vst [vmem:[#allocation2 + $0x30] sm:$0xff] %v830
    %1062 = vst [vmem:[#allocation2 + $0x38] sm:$0xff] %v871
    %1063 = vst [vmem:[#allocation2 + $0x40] sm:$0xff] %v912
    %1064 = vst [vmem:[#allocation2 + $0x48] sm:$0xff] %v953
    %1065 = vst [vmem:[#allocation2 + $0x50] sm:$0xff] %v994
    %1066 = vst [vmem:[#allocation2 + $0x58] sm:$0xff] %v1035
    %1067 = vst [vmem:[#allocation2 + $0x60] sm:$0xff] %v833
    %1068 = vst [vmem:[#allocation2 + $0x68] sm:$0xff] %v874
    %1069 = vst [vmem:[#allocation2 + $0x70] sm:$0xff] %v915
    %1070 = vst [vmem:[#allocation2 + $0x78] sm:$0xff] %v956
    %1071 = vst [vmem:[#allocation2 + $0x80] sm:$0xff] %v997
    %1072 = vst [vmem:[#allocation2 + $0x88] sm:$0xff] %v1038
    %1073 = vst [vmem:[#allocation2 + $0x90] sm:$0xff] %v836
    %1074 = vst [vmem:[#allocation2 + $0x98] sm:$0xff] %v877
    %1075 = vst [vmem:[#allocation2 + $0xa0] sm:$0xff] %v918
    %1076 = vst [vmem:[#allocation2 + $0xa8] sm:$0xff] %v959
    %1077 = vst [vmem:[#allocation2 + $0xb0] sm:$0xff] %v1000
    %1078 = vst [vmem:[#allocation2 + $0xb8] sm:$0xff] %v1041
    %1079 = vst [vmem:[#allocation2 + $0xc0] sm:$0xff] %v839
    %1080 = vst [vmem:[#allocation2 + $0xc8] sm:$0xff] %v880
    %1081 = vst [vmem:[#allocation2 + $0xd0] sm:$0xff] %v921
    %1082 = vst [vmem:[#allocation2 + $0xd8] sm:$0xff] %v962
    %1083 = vst [vmem:[#allocation2 + $0xe0] sm:$0xff] %v1003
    %1084 = vst [vmem:[#allocation2 + $0xe8] sm:$0xff] %v1044
    %1085 = vst [vmem:[#allocation2 + $0xf0] sm:$0xff] %v842
    %1086 = vst [vmem:[#allocation2 + $0xf8] sm:$0xff] %v883
    %1087 = vst [vmem:[#allocation2 + $0x100] sm:$0xff] %v924
    %1088 = vst [vmem:[#allocation2 + $0x108] sm:$0xff] %v965
    %1089 = vst [vmem:[#allocation2 + $0x110] sm:$0xff] %v1006
    %1090 = vst [vmem:[#allocation2 + $0x118] sm:$0xff] %v1047
    %1091 = vst [vmem:[#allocation2 + $0x120] sm:$0xff] %v845
    %1092 = vst [vmem:[#allocation2 + $0x128] sm:$0xff] %v886
    %1093 = vst [vmem:[#allocation2 + $0x130] sm:$0xff] %v927
    %1094 = vst [vmem:[#allocation2 + $0x138] sm:$0xff] %v968
    %1095 = vst [vmem:[#allocation2 + $0x140] sm:$0xff] %v1009
    %1096 = vst [vmem:[#allocation2 + $0x148] sm:$0xff] %v1050
    %1097 = vst [vmem:[#allocation2 + $0x150] sm:$0xff] %v848
    %1098 = vst [vmem:[#allocation2 + $0x158] sm:$0xff] %v889
    %1099 = vst [vmem:[#allocation2 + $0x160] sm:$0xff] %v930
    %1100 = vst [vmem:[#allocation2 + $0x168] sm:$0xff] %v971
    %1101 = vst [vmem:[#allocation2 + $0x170] sm:$0xff] %v1012
    %1102 = vst [vmem:[#allocation2 + $0x178] sm:$0xff] %v1053
    %v1103 = vld [vmem:[#allocation5] sm:$0xff]
    %v1104 = vld [vmem:[#allocation5 + $0x8] sm:$0xff]
    %v1105 = vld [vmem:[#allocation5 + $0x10] sm:$0xff]
    %v1106 = vld [vmem:[#allocation5 + $0x18] sm:$0xff]
    %v1107 = vld [vmem:[#allocation5 + $0x20] sm:$0xff]
    %v1108 = vld [vmem:[#allocation5 + $0x28] sm:$0xff]
    %v1109 = vld [vmem:[#allocation5 + $0x30] sm:$0xff]
    %v1110 = vld [vmem:[#allocation5 + $0x38] sm:$0xff]
    %v1111 = vld [vmem:[#allocation5 + $0x40] sm:$0xff]
    %v1112 = vld [vmem:[#allocation5 + $0x48] sm:$0xff]
    %v1113 = vld [vmem:[#allocation5 + $0x50] sm:$0xff]
    %v1114 = vld [vmem:[#allocation5 + $0x58] sm:$0xff]
    %v1115 = vld [vmem:[#allocation5 + $0x60] sm:$0xff]
    %v1116 = vld [vmem:[#allocation5 + $0x68] sm:$0xff]
    %v1117 = vld [vmem:[#allocation5 + $0x70] sm:$0xff]
    %v1118 = vld [vmem:[#allocation5 + $0x78] sm:$0xff]
    %v1119 = vld [vmem:[#allocation5 + $0x80] sm:$0xff]
    %v1120 = vld [vmem:[#allocation5 + $0x88] sm:$0xff]
    %v1121 = vld [vmem:[#allocation5 + $0x90] sm:$0xff]
    %v1122 = vld [vmem:[#allocation5 + $0x98] sm:$0xff]
    %v1123 = vld [vmem:[#allocation5 + $0xa0] sm:$0xff]
    %v1124 = vld [vmem:[#allocation5 + $0xa8] sm:$0xff]
    %v1125 = vld [vmem:[#allocation5 + $0xb0] sm:$0xff]
    %v1126 = vld [vmem:[#allocation5 + $0xb8] sm:$0xff]
    %v1127 = vld [vmem:[#allocation5 + $0xc0] sm:$0xff]
    %v1128 = vld [vmem:[#allocation5 + $0xc8] sm:$0xff]
    %v1129 = vld [vmem:[#allocation5 + $0xd0] sm:$0xff]
    %v1130 = vld [vmem:[#allocation5 + $0xd8] sm:$0xff]
    %v1131 = vld [vmem:[#allocation5 + $0xe0] sm:$0xff]
    %v1132 = vld [vmem:[#allocation5 + $0xe8] sm:$0xff]
    %v1133 = vld [vmem:[#allocation5 + $0xf0] sm:$0xff]
    %v1134 = vld [vmem:[#allocation5 + $0xf8] sm:$0xff]
    %v1135 = vld [vmem:[#allocation5 + $0x100] sm:$0xff]
    %v1136 = vld [vmem:[#allocation5 + $0x108] sm:$0xff]
    %v1137 = vld [vmem:[#allocation5 + $0x110] sm:$0xff]
    %v1138 = vld [vmem:[#allocation5 + $0x118] sm:$0xff]
    %v1139 = vld [vmem:[#allocation5 + $0x120] sm:$0xff]
    %v1140 = vld [vmem:[#allocation5 + $0x128] sm:$0xff]
    %v1141 = vld [vmem:[#allocation5 + $0x130] sm:$0xff]
    %v1142 = vld [vmem:[#allocation5 + $0x138] sm:$0xff]
    %v1143 = vld [vmem:[#allocation5 + $0x140] sm:$0xff]
    %v1144 = vld [vmem:[#allocation5 + $0x148] sm:$0xff]
    %v1145 = vld [vmem:[#allocation5 + $0x150] sm:$0xff]
    %v1146 = vld [vmem:[#allocation5 + $0x158] sm:$0xff]
    %v1147 = vld [vmem:[#allocation5 + $0x160] sm:$0xff]
    %v1148 = vld [vmem:[#allocation5 + $0x168] sm:$0xff]
    %v1149 = vld [vmem:[#allocation5 + $0x170] sm:$0xff]
    %v1150 = vld [vmem:[#allocation5 + $0x178] sm:$0xff]
    %v1151 = vld [vmem:[#allocation5 + $0x180] sm:$0xff]
    %v1152 = vld [vmem:[#allocation5 + $0x188] sm:$0xff]
    %v1153 = vld [vmem:[#allocation5 + $0x190] sm:$0xff]
    %v1154 = vld [vmem:[#allocation5 + $0x198] sm:$0xff]
    %v1155 = vld [vmem:[#allocation5 + $0x1a0] sm:$0xff]
    %v1156 = vld [vmem:[#allocation5 + $0x1a8] sm:$0xff]
    %v1157 = vld [vmem:[#allocation5 + $0x1b0] sm:$0xff]
    %v1158 = vld [vmem:[#allocation5 + $0x1b8] sm:$0xff]
    %v1159 = vld [vmem:[#allocation5 + $0x1c0] sm:$0xff]
    %v1160 = vld [vmem:[#allocation5 + $0x1c8] sm:$0xff]
    %v1161 = vld [vmem:[#allocation5 + $0x1d0] sm:$0xff]
    %v1162 = vld [vmem:[#allocation5 + $0x1d8] sm:$0xff]
    %v1163 = vld [vmem:[#allocation5 + $0x1e0] sm:$0xff]
    %v1164 = vld [vmem:[#allocation5 + $0x1e8] sm:$0xff]
    %v1165 = vld [vmem:[#allocation5 + $0x1f0] sm:$0xff]
    %v1166 = vld [vmem:[#allocation5 + $0x1f8] sm:$0xff]
    %v1167 = vld [vmem:[#allocation5 + $0x200] sm:$0xff]
    %v1168 = vld [vmem:[#allocation5 + $0x208] sm:$0xff]
    %v1169 = vld [vmem:[#allocation5 + $0x210] sm:$0xff]
    %v1170 = vld [vmem:[#allocation5 + $0x218] sm:$0xff]
    %v1171 = vld [vmem:[#allocation5 + $0x220] sm:$0xff]
    %v1172 = vld [vmem:[#allocation5 + $0x228] sm:$0xff]
    %v1173 = vld [vmem:[#allocation5 + $0x230] sm:$0xff]
    %v1174 = vld [vmem:[#allocation5 + $0x238] sm:$0xff]
    %v1175 = vld [vmem:[#allocation5 + $0x240] sm:$0xff]
    %v1176 = vld [vmem:[#allocation5 + $0x248] sm:$0xff]
    %v1177 = vld [vmem:[#allocation5 + $0x250] sm:$0xff]
    %v1178 = vld [vmem:[#allocation5 + $0x258] sm:$0xff]
    %v1179 = vld [vmem:[#allocation5 + $0x260] sm:$0xff]
    %v1180 = vld [vmem:[#allocation5 + $0x268] sm:$0xff]
    %v1181 = vld [vmem:[#allocation5 + $0x270] sm:$0xff]
    %v1182 = vld [vmem:[#allocation5 + $0x278] sm:$0xff]
    %v1183 = vld [vmem:[#allocation5 + $0x280] sm:$0xff]
    %v1184 = vld [vmem:[#allocation5 + $0x288] sm:$0xff]
    %v1185 = vld [vmem:[#allocation5 + $0x290] sm:$0xff]
    %v1186 = vld [vmem:[#allocation5 + $0x298] sm:$0xff]
    %v1187 = vld [vmem:[#allocation5 + $0x2a0] sm:$0xff]
    %v1188 = vld [vmem:[#allocation5 + $0x2a8] sm:$0xff]
    %v1189 = vld [vmem:[#allocation5 + $0x2b0] sm:$0xff]
    %v1190 = vld [vmem:[#allocation5 + $0x2b8] sm:$0xff]
    %v1191 = vld [vmem:[#allocation5 + $0x2c0] sm:$0xff]
    %v1192 = vld [vmem:[#allocation5 + $0x2c8] sm:$0xff]
    %v1193 = vld [vmem:[#allocation5 + $0x2d0] sm:$0xff]
    %v1194 = vld [vmem:[#allocation5 + $0x2d8] sm:$0xff]
    %v1195 = vld [vmem:[#allocation5 + $0x2e0] sm:$0xff]
    %v1196 = vld [vmem:[#allocation5 + $0x2e8] sm:$0xff]
    %v1197 = vld [vmem:[#allocation5 + $0x2f0] sm:$0xff]
    %v1198 = vld [vmem:[#allocation5 + $0x2f8] sm:$0xff]
    %v1199 = vpack.c.bf16 0.0, 0.0
    %v1296 = vunpack.c.l.b16 %v1103
    %v1297 = vunpack.c.h.b16 %v1103
    %v1298 = vunpack.c.l.b16 %v1104
    %v1299 = vunpack.c.h.b16 %v1104
    %v1300 = vunpack.c.l.b16 %v1105
    %v1301 = vunpack.c.h.b16 %v1105
    %v1302 = vunpack.c.l.b16 %v1106
    %v1303 = vunpack.c.h.b16 %v1106
    %v1304 = vunpack.c.l.b16 %v1107
    %v1305 = vunpack.c.h.b16 %v1107
    %v1306 = vunpack.c.l.b16 %v1108
    %v1307 = vunpack.c.h.b16 %v1108
    %v1308 = vunpack.c.l.b16 %v1109
    %v1309 = vunpack.c.h.b16 %v1109
    %v1310 = vunpack.c.l.b16 %v1110
    %v1311 = vunpack.c.h.b16 %v1110
    %v1312 = vunpack.c.l.b16 %v1111
    %v1313 = vunpack.c.h.b16 %v1111
    %v1314 = vunpack.c.l.b16 %v1112
    %v1315 = vunpack.c.h.b16 %v1112
    %v1316 = vunpack.c.l.b16 %v1113
    %v1317 = vunpack.c.h.b16 %v1113
    %v1318 = vunpack.c.l.b16 %v1114
    %v1319 = vunpack.c.h.b16 %v1114
    %v1320 = vunpack.c.l.b16 %v1115
    %v1321 = vunpack.c.h.b16 %v1115
    %v1322 = vunpack.c.l.b16 %v1116
    %v1323 = vunpack.c.h.b16 %v1116
    %v1324 = vunpack.c.l.b16 %v1117
    %v1325 = vunpack.c.h.b16 %v1117
    %v1326 = vunpack.c.l.b16 %v1118
    %v1327 = vunpack.c.h.b16 %v1118
    %v1328 = vunpack.c.l.b16 %v1119
    %v1329 = vunpack.c.h.b16 %v1119
    %v1330 = vunpack.c.l.b16 %v1120
    %v1331 = vunpack.c.h.b16 %v1120
    %v1332 = vunpack.c.l.b16 %v1121
    %v1333 = vunpack.c.h.b16 %v1121
    %v1334 = vunpack.c.l.b16 %v1122
    %v1335 = vunpack.c.h.b16 %v1122
    %v1336 = vunpack.c.l.b16 %v1123
    %v1337 = vunpack.c.h.b16 %v1123
    %v1338 = vunpack.c.l.b16 %v1124
    %v1339 = vunpack.c.h.b16 %v1124
    %v1340 = vunpack.c.l.b16 %v1125
    %v1341 = vunpack.c.h.b16 %v1125
    %v1342 = vunpack.c.l.b16 %v1126
    %v1343 = vunpack.c.h.b16 %v1126
    %v1344 = vunpack.c.l.b16 %v1127
    %v1345 = vunpack.c.h.b16 %v1127
    %v1346 = vunpack.c.l.b16 %v1128
    %v1347 = vunpack.c.h.b16 %v1128
    %v1348 = vunpack.c.l.b16 %v1129
    %v1349 = vunpack.c.h.b16 %v1129
    %v1350 = vunpack.c.l.b16 %v1130
    %v1351 = vunpack.c.h.b16 %v1130
    %v1352 = vunpack.c.l.b16 %v1131
    %v1353 = vunpack.c.h.b16 %v1131
    %v1354 = vunpack.c.l.b16 %v1132
    %v1355 = vunpack.c.h.b16 %v1132
    %v1356 = vunpack.c.l.b16 %v1133
    %v1357 = vunpack.c.h.b16 %v1133
    %v1358 = vunpack.c.l.b16 %v1134
    %v1359 = vunpack.c.h.b16 %v1134
    %v1360 = vunpack.c.l.b16 %v1135
    %v1361 = vunpack.c.h.b16 %v1135
    %v1362 = vunpack.c.l.b16 %v1136
    %v1363 = vunpack.c.h.b16 %v1136
    %v1364 = vunpack.c.l.b16 %v1137
    %v1365 = vunpack.c.h.b16 %v1137
    %v1366 = vunpack.c.l.b16 %v1138
    %v1367 = vunpack.c.h.b16 %v1138
    %v1368 = vunpack.c.l.b16 %v1139
    %v1369 = vunpack.c.h.b16 %v1139
    %v1370 = vunpack.c.l.b16 %v1140
    %v1371 = vunpack.c.h.b16 %v1140
    %v1372 = vunpack.c.l.b16 %v1141
    %v1373 = vunpack.c.h.b16 %v1141
    %v1374 = vunpack.c.l.b16 %v1142
    %v1375 = vunpack.c.h.b16 %v1142
    %v1376 = vunpack.c.l.b16 %v1143
    %v1377 = vunpack.c.h.b16 %v1143
    %v1378 = vunpack.c.l.b16 %v1144
    %v1379 = vunpack.c.h.b16 %v1144
    %v1380 = vunpack.c.l.b16 %v1145
    %v1381 = vunpack.c.h.b16 %v1145
    %v1382 = vunpack.c.l.b16 %v1146
    %v1383 = vunpack.c.h.b16 %v1146
    %v1384 = vunpack.c.l.b16 %v1147
    %v1385 = vunpack.c.h.b16 %v1147
    %v1386 = vunpack.c.l.b16 %v1148
    %v1387 = vunpack.c.h.b16 %v1148
    %v1388 = vunpack.c.l.b16 %v1149
    %v1389 = vunpack.c.h.b16 %v1149
    %v1390 = vunpack.c.l.b16 %v1150
    %v1391 = vunpack.c.h.b16 %v1150
    %v1392 = vunpack.c.l.b16 %v1151
    %v1393 = vunpack.c.h.b16 %v1151
    %v1394 = vunpack.c.l.b16 %v1152
    %v1395 = vunpack.c.h.b16 %v1152
    %v1396 = vunpack.c.l.b16 %v1153
    %v1397 = vunpack.c.h.b16 %v1153
    %v1398 = vunpack.c.l.b16 %v1154
    %v1399 = vunpack.c.h.b16 %v1154
    %v1400 = vunpack.c.l.b16 %v1155
    %v1401 = vunpack.c.h.b16 %v1155
    %v1402 = vunpack.c.l.b16 %v1156
    %v1403 = vunpack.c.h.b16 %v1156
    %v1404 = vunpack.c.l.b16 %v1157
    %v1405 = vunpack.c.h.b16 %v1157
    %v1406 = vunpack.c.l.b16 %v1158
    %v1407 = vunpack.c.h.b16 %v1158
    %v1408 = vunpack.c.l.b16 %v1159
    %v1409 = vunpack.c.h.b16 %v1159
    %v1410 = vunpack.c.l.b16 %v1160
    %v1411 = vunpack.c.h.b16 %v1160
    %v1412 = vunpack.c.l.b16 %v1161
    %v1413 = vunpack.c.h.b16 %v1161
    %v1414 = vunpack.c.l.b16 %v1162
    %v1415 = vunpack.c.h.b16 %v1162
    %v1416 = vunpack.c.l.b16 %v1163
    %v1417 = vunpack.c.h.b16 %v1163
    %v1418 = vunpack.c.l.b16 %v1164
    %v1419 = vunpack.c.h.b16 %v1164
    %v1420 = vunpack.c.l.b16 %v1165
    %v1421 = vunpack.c.h.b16 %v1165
    %v1422 = vunpack.c.l.b16 %v1166
    %v1423 = vunpack.c.h.b16 %v1166
    %v1424 = vunpack.c.l.b16 %v1167
    %v1425 = vunpack.c.h.b16 %v1167
    %v1426 = vunpack.c.l.b16 %v1168
    %v1427 = vunpack.c.h.b16 %v1168
    %v1428 = vunpack.c.l.b16 %v1169
    %v1429 = vunpack.c.h.b16 %v1169
    %v1430 = vunpack.c.l.b16 %v1170
    %v1431 = vunpack.c.h.b16 %v1170
    %v1432 = vunpack.c.l.b16 %v1171
    %v1433 = vunpack.c.h.b16 %v1171
    %v1434 = vunpack.c.l.b16 %v1172
    %v1435 = vunpack.c.h.b16 %v1172
    %v1436 = vunpack.c.l.b16 %v1173
    %v1437 = vunpack.c.h.b16 %v1173
    %v1438 = vunpack.c.l.b16 %v1174
    %v1439 = vunpack.c.h.b16 %v1174
    %v1440 = vunpack.c.l.b16 %v1175
    %v1441 = vunpack.c.h.b16 %v1175
    %v1442 = vunpack.c.l.b16 %v1176
    %v1443 = vunpack.c.h.b16 %v1176
    %v1444 = vunpack.c.l.b16 %v1177
    %v1445 = vunpack.c.h.b16 %v1177
    %v1446 = vunpack.c.l.b16 %v1178
    %v1447 = vunpack.c.h.b16 %v1178
    %v1448 = vunpack.c.l.b16 %v1179
    %v1449 = vunpack.c.h.b16 %v1179
    %v1450 = vunpack.c.l.b16 %v1180
    %v1451 = vunpack.c.h.b16 %v1180
    %v1452 = vunpack.c.l.b16 %v1181
    %v1453 = vunpack.c.h.b16 %v1181
    %v1454 = vunpack.c.l.b16 %v1182
    %v1455 = vunpack.c.h.b16 %v1182
    %v1456 = vunpack.c.l.b16 %v1183
    %v1457 = vunpack.c.h.b16 %v1183
    %v1458 = vunpack.c.l.b16 %v1184
    %v1459 = vunpack.c.h.b16 %v1184
    %v1460 = vunpack.c.l.b16 %v1185
    %v1461 = vunpack.c.h.b16 %v1185
    %v1462 = vunpack.c.l.b16 %v1186
    %v1463 = vunpack.c.h.b16 %v1186
    %v1464 = vunpack.c.l.b16 %v1187
    %v1465 = vunpack.c.h.b16 %v1187
    %v1466 = vunpack.c.l.b16 %v1188
    %v1467 = vunpack.c.h.b16 %v1188
    %v1468 = vunpack.c.l.b16 %v1189
    %v1469 = vunpack.c.h.b16 %v1189
    %v1470 = vunpack.c.l.b16 %v1190
    %v1471 = vunpack.c.h.b16 %v1190
    %v1472 = vunpack.c.l.b16 %v1191
    %v1473 = vunpack.c.h.b16 %v1191
    %v1474 = vunpack.c.l.b16 %v1192
    %v1475 = vunpack.c.h.b16 %v1192
    %v1476 = vunpack.c.l.b16 %v1193
    %v1477 = vunpack.c.h.b16 %v1193
    %v1478 = vunpack.c.l.b16 %v1194
    %v1479 = vunpack.c.h.b16 %v1194
    %v1480 = vunpack.c.l.b16 %v1195
    %v1481 = vunpack.c.h.b16 %v1195
    %v1482 = vunpack.c.l.b16 %v1196
    %v1483 = vunpack.c.h.b16 %v1196
    %v1484 = vunpack.c.l.b16 %v1197
    %v1485 = vunpack.c.h.b16 %v1197
    %v1486 = vunpack.c.l.b16 %v1198
    %v1487 = vunpack.c.h.b16 %v1198
    %v1488 = vpack.c.b16 %v1302, %v1296
    %v1489 = vpack.c.b16 %v1303, %v1297
    %v1490 = vpack.c.b16 %v1304, %v1298
    %v1491 = vpack.c.b16 %v1305, %v1299
    %v1492 = vpack.c.b16 %v1306, %v1300
    %v1493 = vpack.c.b16 %v1307, %v1301
    %v1494 = vpack.c.b16 %v1314, %v1308
    %v1495 = vpack.c.b16 %v1315, %v1309
    %v1496 = vpack.c.b16 %v1316, %v1310
    %v1497 = vpack.c.b16 %v1317, %v1311
    %v1498 = vpack.c.b16 %v1318, %v1312
    %v1499 = vpack.c.b16 %v1319, %v1313
    %v1500 = vpack.c.b16 %v1326, %v1320
    %v1501 = vpack.c.b16 %v1327, %v1321
    %v1502 = vpack.c.b16 %v1328, %v1322
    %v1503 = vpack.c.b16 %v1329, %v1323
    %v1504 = vpack.c.b16 %v1330, %v1324
    %v1505 = vpack.c.b16 %v1331, %v1325
    %v1506 = vpack.c.b16 %v1338, %v1332
    %v1507 = vpack.c.b16 %v1339, %v1333
    %v1508 = vpack.c.b16 %v1340, %v1334
    %v1509 = vpack.c.b16 %v1341, %v1335
    %v1510 = vpack.c.b16 %v1342, %v1336
    %v1511 = vpack.c.b16 %v1343, %v1337
    %v1512 = vpack.c.b16 %v1350, %v1344
    %v1513 = vpack.c.b16 %v1351, %v1345
    %v1514 = vpack.c.b16 %v1352, %v1346
    %v1515 = vpack.c.b16 %v1353, %v1347
    %v1516 = vpack.c.b16 %v1354, %v1348
    %v1517 = vpack.c.b16 %v1355, %v1349
    %v1518 = vpack.c.b16 %v1362, %v1356
    %v1519 = vpack.c.b16 %v1363, %v1357
    %v1520 = vpack.c.b16 %v1364, %v1358
    %v1521 = vpack.c.b16 %v1365, %v1359
    %v1522 = vpack.c.b16 %v1366, %v1360
    %v1523 = vpack.c.b16 %v1367, %v1361
    %v1524 = vpack.c.b16 %v1374, %v1368
    %v1525 = vpack.c.b16 %v1375, %v1369
    %v1526 = vpack.c.b16 %v1376, %v1370
    %v1527 = vpack.c.b16 %v1377, %v1371
    %v1528 = vpack.c.b16 %v1378, %v1372
    %v1529 = vpack.c.b16 %v1379, %v1373
    %v1530 = vpack.c.b16 %v1386, %v1380
    %v1531 = vpack.c.b16 %v1387, %v1381
    %v1532 = vpack.c.b16 %v1388, %v1382
    %v1533 = vpack.c.b16 %v1389, %v1383
    %v1534 = vpack.c.b16 %v1390, %v1384
    %v1535 = vpack.c.b16 %v1391, %v1385
    %v1536 = vpack.c.b16 %v1398, %v1392
    %v1537 = vpack.c.b16 %v1399, %v1393
    %v1538 = vpack.c.b16 %v1400, %v1394
    %v1539 = vpack.c.b16 %v1401, %v1395
    %v1540 = vpack.c.b16 %v1402, %v1396
    %v1541 = vpack.c.b16 %v1403, %v1397
    %v1542 = vpack.c.b16 %v1410, %v1404
    %v1543 = vpack.c.b16 %v1411, %v1405
    %v1544 = vpack.c.b16 %v1412, %v1406
    %v1545 = vpack.c.b16 %v1413, %v1407
    %v1546 = vpack.c.b16 %v1414, %v1408
    %v1547 = vpack.c.b16 %v1415, %v1409
    %v1548 = vpack.c.b16 %v1422, %v1416
    %v1549 = vpack.c.b16 %v1423, %v1417
    %v1550 = vpack.c.b16 %v1424, %v1418
    %v1551 = vpack.c.b16 %v1425, %v1419
    %v1552 = vpack.c.b16 %v1426, %v1420
    %v1553 = vpack.c.b16 %v1427, %v1421
    %v1554 = vpack.c.b16 %v1434, %v1428
    %v1555 = vpack.c.b16 %v1435, %v1429
    %v1556 = vpack.c.b16 %v1436, %v1430
    %v1557 = vpack.c.b16 %v1437, %v1431
    %v1558 = vpack.c.b16 %v1438, %v1432
    %v1559 = vpack.c.b16 %v1439, %v1433
    %v1560 = vpack.c.b16 %v1446, %v1440
    %v1561 = vpack.c.b16 %v1447, %v1441
    %v1562 = vpack.c.b16 %v1448, %v1442
    %v1563 = vpack.c.b16 %v1449, %v1443
    %v1564 = vpack.c.b16 %v1450, %v1444
    %v1565 = vpack.c.b16 %v1451, %v1445
    %v1566 = vpack.c.b16 %v1458, %v1452
    %v1567 = vpack.c.b16 %v1459, %v1453
    %v1568 = vpack.c.b16 %v1460, %v1454
    %v1569 = vpack.c.b16 %v1461, %v1455
    %v1570 = vpack.c.b16 %v1462, %v1456
    %v1571 = vpack.c.b16 %v1463, %v1457
    %v1572 = vpack.c.b16 %v1470, %v1464
    %v1573 = vpack.c.b16 %v1471, %v1465
    %v1574 = vpack.c.b16 %v1472, %v1466
    %v1575 = vpack.c.b16 %v1473, %v1467
    %v1576 = vpack.c.b16 %v1474, %v1468
    %v1577 = vpack.c.b16 %v1475, %v1469
    %v1578 = vpack.c.b16 %v1482, %v1476
    %v1579 = vpack.c.b16 %v1483, %v1477
    %v1580 = vpack.c.b16 %v1484, %v1478
    %v1581 = vpack.c.b16 %v1485, %v1479
    %v1582 = vpack.c.b16 %v1486, %v1480
    %v1583 = vpack.c.b16 %v1487, %v1481
    %1680 = vmatpush.bf16.msra.mxu0 %v1530
    %1681 = vmatpush.bf16.msra.mxu0 %v1524
    %1682 = vmatpush.bf16.msra.mxu0 %v1518
    %1683 = vmatpush.bf16.msra.mxu0 %v1512
    %1684 = vmatpush.bf16.msra.mxu0 %v1506
    %1685 = vmatpush.bf16.msra.mxu0 %v1500
    %1686 = vmatpush.bf16.msra.mxu0 %v1494
    %1687 = vmatpush.bf16.msra.mxu0 %v1488
    %1688 = vmatmul.bf16.gmra.mxu0 %v1199
    %v1689 = vpop.f32.mrf.mxu0
    %v1690 = vadd.f32 %v744, %v1689
    %v1691 = vpop.f32.mrf.mxu0
    %1692 = vdwg.mxu0
    %1693 = vmatpush.bf16.msra.mxu0 %v1578
    %1694 = vmatpush.bf16.msra.mxu0 %v1572
    %1695 = vmatpush.bf16.msra.mxu0 %v1566
    %1696 = vmatpush.bf16.msra.mxu0 %v1560
    %1697 = vmatpush.bf16.msra.mxu0 %v1554
    %1698 = vmatpush.bf16.msra.mxu0 %v1548
    %1699 = vmatpush.bf16.msra.mxu0 %v1542
    %1700 = vmatpush.bf16.msra.mxu0 %v1536
    %1701 = vmatmul.bf16.gmra.mxu0 %v1199
    %v1702 = vpop.f32.mrf.mxu0
    %v1703 = vadd.f32 %v1690, %v1702
    %v1704 = vpop.f32.mrf.mxu0
    %1705 = vdwg.mxu0
    %1706 = vmatpush.bf16.msra.mxu0 %v1531
    %1707 = vmatpush.bf16.msra.mxu0 %v1525
    %1708 = vmatpush.bf16.msra.mxu0 %v1519
    %1709 = vmatpush.bf16.msra.mxu0 %v1513
    %1710 = vmatpush.bf16.msra.mxu0 %v1507
    %1711 = vmatpush.bf16.msra.mxu0 %v1501
    %1712 = vmatpush.bf16.msra.mxu0 %v1495
    %1713 = vmatpush.bf16.msra.mxu0 %v1489
    %1714 = vmatmul.bf16.gmra.mxu0 %v1199
    %v1715 = vpop.f32.mrf.mxu0
    %v1716 = vadd.f32 %v745, %v1715
    %v1717 = vpop.f32.mrf.mxu0
    %1718 = vdwg.mxu0
    %1719 = vmatpush.bf16.msra.mxu0 %v1579
    %1720 = vmatpush.bf16.msra.mxu0 %v1573
    %1721 = vmatpush.bf16.msra.mxu0 %v1567
    %1722 = vmatpush.bf16.msra.mxu0 %v1561
    %1723 = vmatpush.bf16.msra.mxu0 %v1555
    %1724 = vmatpush.bf16.msra.mxu0 %v1549
    %1725 = vmatpush.bf16.msra.mxu0 %v1543
    %1726 = vmatpush.bf16.msra.mxu0 %v1537
    %1727 = vmatmul.bf16.gmra.mxu0 %v1199
    %v1728 = vpop.f32.mrf.mxu0
    %v1729 = vadd.f32 %v1716, %v1728
    %v1730 = vpop.f32.mrf.mxu0
    %1731 = vdwg.mxu0
    %1732 = vmatpush.bf16.msra.mxu0 %v1532
    %1733 = vmatpush.bf16.msra.mxu0 %v1526
    %1734 = vmatpush.bf16.msra.mxu0 %v1520
    %1735 = vmatpush.bf16.msra.mxu0 %v1514
    %1736 = vmatpush.bf16.msra.mxu0 %v1508
    %1737 = vmatpush.bf16.msra.mxu0 %v1502
    %1738 = vmatpush.bf16.msra.mxu0 %v1496
    %1739 = vmatpush.bf16.msra.mxu0 %v1490
    %1740 = vmatmul.bf16.gmra.mxu0 %v1199
    %v1741 = vpop.f32.mrf.mxu0
    %v1742 = vadd.f32 %v746, %v1741
    %v1743 = vpop.f32.mrf.mxu0
    %1744 = vdwg.mxu0
    %1745 = vmatpush.bf16.msra.mxu0 %v1580
    %1746 = vmatpush.bf16.msra.mxu0 %v1574
    %1747 = vmatpush.bf16.msra.mxu0 %v1568
    %1748 = vmatpush.bf16.msra.mxu0 %v1562
    %1749 = vmatpush.bf16.msra.mxu0 %v1556
    %1750 = vmatpush.bf16.msra.mxu0 %v1550
    %1751 = vmatpush.bf16.msra.mxu0 %v1544
    %1752 = vmatpush.bf16.msra.mxu0 %v1538
    %1753 = vmatmul.bf16.gmra.mxu0 %v1199
    %v1754 = vpop.f32.mrf.mxu0
    %v1755 = vadd.f32 %v1742, %v1754
    %v1756 = vpop.f32.mrf.mxu0
    %1757 = vdwg.mxu0
    %1758 = vmatpush.bf16.msra.mxu0 %v1533
    %1759 = vmatpush.bf16.msra.mxu0 %v1527
    %1760 = vmatpush.bf16.msra.mxu0 %v1521
    %1761 = vmatpush.bf16.msra.mxu0 %v1515
    %1762 = vmatpush.bf16.msra.mxu0 %v1509
    %1763 = vmatpush.bf16.msra.mxu0 %v1503
    %1764 = vmatpush.bf16.msra.mxu0 %v1497
    %1765 = vmatpush.bf16.msra.mxu0 %v1491
    %1766 = vmatmul.bf16.gmra.mxu0 %v1199
    %v1767 = vpop.f32.mrf.mxu0
    %v1768 = vadd.f32 %v747, %v1767
    %v1769 = vpop.f32.mrf.mxu0
    %1770 = vdwg.mxu0
    %1771 = vmatpush.bf16.msra.mxu0 %v1581
    %1772 = vmatpush.bf16.msra.mxu0 %v1575
    %1773 = vmatpush.bf16.msra.mxu0 %v1569
    %1774 = vmatpush.bf16.msra.mxu0 %v1563
    %1775 = vmatpush.bf16.msra.mxu0 %v1557
    %1776 = vmatpush.bf16.msra.mxu0 %v1551
    %1777 = vmatpush.bf16.msra.mxu0 %v1545
    %1778 = vmatpush.bf16.msra.mxu0 %v1539
    %1779 = vmatmul.bf16.gmra.mxu0 %v1199
    %v1780 = vpop.f32.mrf.mxu0
    %v1781 = vadd.f32 %v1768, %v1780
    %v1782 = vpop.f32.mrf.mxu0
    %1783 = vdwg.mxu0
    %1784 = vmatpush.bf16.msra.mxu0 %v1534
    %1785 = vmatpush.bf16.msra.mxu0 %v1528
    %1786 = vmatpush.bf16.msra.mxu0 %v1522
    %1787 = vmatpush.bf16.msra.mxu0 %v1516
    %1788 = vmatpush.bf16.msra.mxu0 %v1510
    %1789 = vmatpush.bf16.msra.mxu0 %v1504
    %1790 = vmatpush.bf16.msra.mxu0 %v1498
    %1791 = vmatpush.bf16.msra.mxu0 %v1492
    %1792 = vmatmul.bf16.gmra.mxu0 %v1199
    %v1793 = vpop.f32.mrf.mxu0
    %v1794 = vadd.f32 %v748, %v1793
    %v1795 = vpop.f32.mrf.mxu0
    %1796 = vdwg.mxu0
    %1797 = vmatpush.bf16.msra.mxu0 %v1582
    %1798 = vmatpush.bf16.msra.mxu0 %v1576
    %1799 = vmatpush.bf16.msra.mxu0 %v1570
    %1800 = vmatpush.bf16.msra.mxu0 %v1564
    %1801 = vmatpush.bf16.msra.mxu0 %v1558
    %1802 = vmatpush.bf16.msra.mxu0 %v1552
    %1803 = vmatpush.bf16.msra.mxu0 %v1546
    %1804 = vmatpush.bf16.msra.mxu0 %v1540
    %1805 = vmatmul.bf16.gmra.mxu0 %v1199
    %v1806 = vpop.f32.mrf.mxu0
    %v1807 = vadd.f32 %v1794, %v1806
    %v1808 = vpop.f32.mrf.mxu0
    %1809 = vdwg.mxu0
    %1810 = vmatpush.bf16.msra.mxu0 %v1535
    %1811 = vmatpush.bf16.msra.mxu0 %v1529
    %1812 = vmatpush.bf16.msra.mxu0 %v1523
    %1813 = vmatpush.bf16.msra.mxu0 %v1517
    %1814 = vmatpush.bf16.msra.mxu0 %v1511
    %1815 = vmatpush.bf16.msra.mxu0 %v1505
    %1816 = vmatpush.bf16.msra.mxu0 %v1499
    %1817 = vmatpush.bf16.msra.mxu0 %v1493
    %1818 = vmatmul.bf16.gmra.mxu0 %v1199
    %v1819 = vpop.f32.mrf.mxu0
    %v1820 = vadd.f32 %v749, %v1819
    %v1821 = vpop.f32.mrf.mxu0
    %1822 = vdwg.mxu0
    %1823 = vmatpush.bf16.msra.mxu0 %v1583
    %1824 = vmatpush.bf16.msra.mxu0 %v1577
    %1825 = vmatpush.bf16.msra.mxu0 %v1571
    %1826 = vmatpush.bf16.msra.mxu0 %v1565
    %1827 = vmatpush.bf16.msra.mxu0 %v1559
    %1828 = vmatpush.bf16.msra.mxu0 %v1553
    %1829 = vmatpush.bf16.msra.mxu0 %v1547
    %1830 = vmatpush.bf16.msra.mxu0 %v1541
    %1831 = vmatmul.bf16.gmra.mxu0 %v1199
    %v1832 = vpop.f32.mrf.mxu0
    %v1833 = vadd.f32 %v1820, %v1832
    %v1834 = vpop.f32.mrf.mxu0
    %1835 = vdwg.mxu0
    %v1836 = vld [vmem:[#allocation2] sm:$0xff]
    %v1837 = vld [vmem:[#allocation2 + $0x8] sm:$0xff]
    %v1838 = vld [vmem:[#allocation2 + $0x10] sm:$0xff]
    %v1839 = vld [vmem:[#allocation2 + $0x168] sm:$0xff]
    %v1840 = vld [vmem:[#allocation2 + $0x170] sm:$0xff]
    %v1841 = vld [vmem:[#allocation2 + $0x178] sm:$0xff]
    %v1842 = vadd.f32 %v1836, %v1703
    %v1843 = vxor.u32 %v1842, 2147483648
    %v1844 = vmul.f32 %v1843, 1.442695
    %v1845 = vpow.pop %v1844
    %v1846 = vadd.f32 %v1845, 1.0
    %v1847 = vrcp.pop %v1846
    %v1848 = vmul.f32 %v1846, %v1847
    %v1849 = vsub.f32 1.0, %v1848
    %v1850 = vmul.f32 %v1847, %v1849
    %v1851 = vadd.f32 %v1847, %v1850
    %vm1852 = vweird.f32 %v1846
    %vm1853 = vweird.f32 %v1847
    %vm1854 = vmor %vm1852, %vm1853
    %v1855 = vsel %vm1854, %v1847, %v1851
    %v1856 = vand.u32 2147483647, %v1846
    %vm1857 = vcmp.eq.f32.partialorder %v1856, 8.507059e+37
    %v1858 = vand.u32 %v1846, 2147483648
    %v1859 = vor.u32 1.1754944e-38, %v1858
    %v1860 = vsel %vm1857, %v1859, %v1855
    %v1861 = vmul.f32 1.0, %v1860
    %v1862 = vadd.f32 %v1837, %v1729
    %v1863 = vxor.u32 %v1862, 2147483648
    %v1864 = vmul.f32 %v1863, 1.442695
    %v1865 = vpow.pop %v1864
    %v1866 = vadd.f32 %v1865, 1.0
    %v1867 = vrcp.pop %v1866
    %v1868 = vmul.f32 %v1866, %v1867
    %v1869 = vsub.f32 1.0, %v1868
    %v1870 = vmul.f32 %v1867, %v1869
    %v1871 = vadd.f32 %v1867, %v1870
    %vm1872 = vweird.f32 %v1866
    %vm1873 = vweird.f32 %v1867
    %vm1874 = vmor %vm1872, %vm1873
    %v1875 = vsel %vm1874, %v1867, %v1871
    %v1876 = vand.u32 2147483647, %v1866
    %vm1877 = vcmp.eq.f32.partialorder %v1876, 8.507059e+37
    %v1878 = vand.u32 %v1866, 2147483648
    %v1879 = vor.u32 1.1754944e-38, %v1878
    %v1880 = vsel %vm1877, %v1879, %v1875
    %v1881 = vmul.f32 1.0, %v1880
    %v1882 = vmul.f32 %v1861, %v1755
    %v1883 = vadd.f32 %v1838, %v1882
    %v1884 = vtanh.pop %v1883
    %v1885 = vsub.f32 1.0, %v1881
    %v1886 = vmul.f32 %v1885, %v1884
    %v1887 = vmul.f32 %v1881, 0.0
    %v1888 = vadd.f32 %v1886, %v1887
    %v1889 = vsel %vm699, %v1888, 0.0
    %v1890 = vadd.f32 %v1839, %v1781
    %v1891 = vxor.u32 %v1890, 2147483648
    %v1892 = vmul.f32 %v1891, 1.442695
    %v1893 = vpow.pop %v1892
    %v1894 = vadd.f32 %v1893, 1.0
    %v1895 = vrcp.pop %v1894
    %v1896 = vmul.f32 %v1894, %v1895
    %v1897 = vsub.f32 1.0, %v1896
    %v1898 = vmul.f32 %v1895, %v1897
    %v1899 = vadd.f32 %v1895, %v1898
    %vm1900 = vweird.f32 %v1894
    %vm1901 = vweird.f32 %v1895
    %vm1902 = vmor %vm1900, %vm1901
    %v1903 = vsel %vm1902, %v1895, %v1899
    %v1904 = vand.u32 2147483647, %v1894
    %vm1905 = vcmp.eq.f32.partialorder %v1904, 8.507059e+37
    %v1906 = vand.u32 %v1894, 2147483648
    %v1907 = vor.u32 1.1754944e-38, %v1906
    %v1908 = vsel %vm1905, %v1907, %v1903
    %v1909 = vmul.f32 1.0, %v1908
    %v1910 = vadd.f32 %v1840, %v1807
    %v1911 = vxor.u32 %v1910, 2147483648
    %v1912 = vmul.f32 %v1911, 1.442695
    %v1913 = vpow.pop %v1912
    %v1914 = vadd.f32 %v1913, 1.0
    %v1915 = vrcp.pop %v1914
    %v1916 = vmul.f32 %v1914, %v1915
    %v1917 = vsub.f32 1.0, %v1916
    %v1918 = vmul.f32 %v1915, %v1917
    %v1919 = vadd.f32 %v1915, %v1918
    %vm1920 = vweird.f32 %v1914
    %vm1921 = vweird.f32 %v1915
    %vm1922 = vmor %vm1920, %vm1921
    %v1923 = vsel %vm1922, %v1915, %v1919
    %v1924 = vand.u32 2147483647, %v1914
    %vm1925 = vcmp.eq.f32.partialorder %v1924, 8.507059e+37
    %v1926 = vand.u32 %v1914, 2147483648
    %v1927 = vor.u32 1.1754944e-38, %v1926
    %v1928 = vsel %vm1925, %v1927, %v1923
    %v1929 = vmul.f32 1.0, %v1928
    %v1930 = vmul.f32 %v1909, %v1833
    %v1931 = vadd.f32 %v1841, %v1930
    %v1932 = vtanh.pop %v1931
    %v1933 = vsub.f32 1.0, %v1929
    %v1934 = vmul.f32 %v1933, %v1932
    %v1935 = vmul.f32 %v1929, 0.0
    %v1936 = vadd.f32 %v1934, %v1935
    %v1937 = vsel %vm741, %v1936, 0.0
    %1938 = vst [vmem:[#allocation3] sm:$0xff] %v1889
    %1939 = vst [vmem:[#allocation3 + $0x78] sm:$0xff] %v1937
    %v1940 = vpack.c.bf16 %v1889, %v1889
    %v1941 = vpack.c.bf16 %v1937, %v1937
    %1942 = vmatpush.bf16.msra.mxu0 %v1530
    %1943 = vmatpush.bf16.msra.mxu0 %v1524
    %1944 = vmatpush.bf16.msra.mxu0 %v1518
    %1945 = vmatpush.bf16.msra.mxu0 %v1512
    %1946 = vmatpush.bf16.msra.mxu0 %v1506
    %1947 = vmatpush.bf16.msra.mxu0 %v1500
    %1948 = vmatpush.bf16.msra.mxu0 %v1494
    %1949 = vmatpush.bf16.msra.mxu0 %v1488
    %1950 = vmatmul.bf16.gmra.mxu0 %v1940
    %v1951 = vpop.f32.mrf.mxu0
    %v1952 = vadd.f32 %v744, %v1951
    %v1953 = vpop.f32.mrf.mxu0
    %1954 = vdwg.mxu0
    %1955 = vmatpush.bf16.msra.mxu0 %v1578
    %1956 = vmatpush.bf16.msra.mxu0 %v1572
    %1957 = vmatpush.bf16.msra.mxu0 %v1566
    %1958 = vmatpush.bf16.msra.mxu0 %v1560
    %1959 = vmatpush.bf16.msra.mxu0 %v1554
    %1960 = vmatpush.bf16.msra.mxu0 %v1548
    %1961 = vmatpush.bf16.msra.mxu0 %v1542
    %1962 = vmatpush.bf16.msra.mxu0 %v1536
    %1963 = vmatmul.bf16.gmra.mxu0 %v1941
    %v1964 = vpop.f32.mrf.mxu0
    %v1965 = vadd.f32 %v1952, %v1964
    %v1966 = vpop.f32.mrf.mxu0
    %1967 = vdwg.mxu0
    %1968 = vmatpush.bf16.msra.mxu0 %v1531
    %1969 = vmatpush.bf16.msra.mxu0 %v1525
    %1970 = vmatpush.bf16.msra.mxu0 %v1519
    %1971 = vmatpush.bf16.msra.mxu0 %v1513
    %1972 = vmatpush.bf16.msra.mxu0 %v1507
    %1973 = vmatpush.bf16.msra.mxu0 %v1501
    %1974 = vmatpush.bf16.msra.mxu0 %v1495
    %1975 = vmatpush.bf16.msra.mxu0 %v1489
    %1976 = vmatmul.bf16.gmra.mxu0 %v1940
    %v1977 = vpop.f32.mrf.mxu0
    %v1978 = vadd.f32 %v745, %v1977
    %v1979 = vpop.f32.mrf.mxu0
    %1980 = vdwg.mxu0
    %1981 = vmatpush.bf16.msra.mxu0 %v1579
    %1982 = vmatpush.bf16.msra.mxu0 %v1573
    %1983 = vmatpush.bf16.msra.mxu0 %v1567
    %1984 = vmatpush.bf16.msra.mxu0 %v1561
    %1985 = vmatpush.bf16.msra.mxu0 %v1555
    %1986 = vmatpush.bf16.msra.mxu0 %v1549
    %1987 = vmatpush.bf16.msra.mxu0 %v1543
    %1988 = vmatpush.bf16.msra.mxu0 %v1537
    %1989 = vmatmul.bf16.gmra.mxu0 %v1941
    %v1990 = vpop.f32.mrf.mxu0
    %v1991 = vadd.f32 %v1978, %v1990
    %v1992 = vpop.f32.mrf.mxu0
    %1993 = vdwg.mxu0
    %1994 = vmatpush.bf16.msra.mxu0 %v1532
    %1995 = vmatpush.bf16.msra.mxu0 %v1526
    %1996 = vmatpush.bf16.msra.mxu0 %v1520
    %1997 = vmatpush.bf16.msra.mxu0 %v1514
    %1998 = vmatpush.bf16.msra.mxu0 %v1508
    %1999 = vmatpush.bf16.msra.mxu0 %v1502
    %2000 = vmatpush.bf16.msra.mxu0 %v1496
    %2001 = vmatpush.bf16.msra.mxu0 %v1490
    %2002 = vmatmul.bf16.gmra.mxu0 %v1940
    %v2003 = vpop.f32.mrf.mxu0
    %v2004 = vadd.f32 %v746, %v2003
    %v2005 = vpop.f32.mrf.mxu0
    %2006 = vdwg.mxu0
    %2007 = vmatpush.bf16.msra.mxu0 %v1580
    %2008 = vmatpush.bf16.msra.mxu0 %v1574
    %2009 = vmatpush.bf16.msra.mxu0 %v1568
    %2010 = vmatpush.bf16.msra.mxu0 %v1562
    %2011 = vmatpush.bf16.msra.mxu0 %v1556
    %2012 = vmatpush.bf16.msra.mxu0 %v1550
    %2013 = vmatpush.bf16.msra.mxu0 %v1544
    %2014 = vmatpush.bf16.msra.mxu0 %v1538
    %2015 = vmatmul.bf16.gmra.mxu0 %v1941
    %v2016 = vpop.f32.mrf.mxu0
    %v2017 = vadd.f32 %v2004, %v2016
    %v2018 = vpop.f32.mrf.mxu0
    %2019 = vdwg.mxu0
    %2020 = vmatpush.bf16.msra.mxu0 %v1533
    %2021 = vmatpush.bf16.msra.mxu0 %v1527
    %2022 = vmatpush.bf16.msra.mxu0 %v1521
    %2023 = vmatpush.bf16.msra.mxu0 %v1515
    %2024 = vmatpush.bf16.msra.mxu0 %v1509
    %2025 = vmatpush.bf16.msra.mxu0 %v1503
    %2026 = vmatpush.bf16.msra.mxu0 %v1497
    %2027 = vmatpush.bf16.msra.mxu0 %v1491
    %2028 = vmatmul.bf16.gmra.mxu0 %v1940
    %v2029 = vpop.f32.mrf.mxu0
    %v2030 = vadd.f32 %v747, %v2029
    %v2031 = vpop.f32.mrf.mxu0
    %2032 = vdwg.mxu0
    %2033 = vmatpush.bf16.msra.mxu0 %v1581
    %2034 = vmatpush.bf16.msra.mxu0 %v1575
    %2035 = vmatpush.bf16.msra.mxu0 %v1569
    %2036 = vmatpush.bf16.msra.mxu0 %v1563
    %2037 = vmatpush.bf16.msra.mxu0 %v1557
    %2038 = vmatpush.bf16.msra.mxu0 %v1551
    %2039 = vmatpush.bf16.msra.mxu0 %v1545
    %2040 = vmatpush.bf16.msra.mxu0 %v1539
    %2041 = vmatmul.bf16.gmra.mxu0 %v1941
    %v2042 = vpop.f32.mrf.mxu0
    %v2043 = vadd.f32 %v2030, %v2042
    %v2044 = vpop.f32.mrf.mxu0
    %2045 = vdwg.mxu0
    %2046 = vmatpush.bf16.msra.mxu0 %v1534
    %2047 = vmatpush.bf16.msra.mxu0 %v1528
    %2048 = vmatpush.bf16.msra.mxu0 %v1522
    %2049 = vmatpush.bf16.msra.mxu0 %v1516
    %2050 = vmatpush.bf16.msra.mxu0 %v1510
    %2051 = vmatpush.bf16.msra.mxu0 %v1504
    %2052 = vmatpush.bf16.msra.mxu0 %v1498
    %2053 = vmatpush.bf16.msra.mxu0 %v1492
    %2054 = vmatmul.bf16.gmra.mxu0 %v1940
    %v2055 = vpop.f32.mrf.mxu0
    %v2056 = vadd.f32 %v748, %v2055
    %v2057 = vpop.f32.mrf.mxu0
    %2058 = vdwg.mxu0
    %2059 = vmatpush.bf16.msra.mxu0 %v1582
    %2060 = vmatpush.bf16.msra.mxu0 %v1576
    %2061 = vmatpush.bf16.msra.mxu0 %v1570
    %2062 = vmatpush.bf16.msra.mxu0 %v1564
    %2063 = vmatpush.bf16.msra.mxu0 %v1558
    %2064 = vmatpush.bf16.msra.mxu0 %v1552
    %2065 = vmatpush.bf16.msra.mxu0 %v1546
    %2066 = vmatpush.bf16.msra.mxu0 %v1540
    %2067 = vmatmul.bf16.gmra.mxu0 %v1941
    %v2068 = vpop.f32.mrf.mxu0
    %v2069 = vadd.f32 %v2056, %v2068
    %v2070 = vpop.f32.mrf.mxu0
    %2071 = vdwg.mxu0
    %2072 = vmatpush.bf16.msra.mxu0 %v1535
    %2073 = vmatpush.bf16.msra.mxu0 %v1529
    %2074 = vmatpush.bf16.msra.mxu0 %v1523
    %2075 = vmatpush.bf16.msra.mxu0 %v1517
    %2076 = vmatpush.bf16.msra.mxu0 %v1511
    %2077 = vmatpush.bf16.msra.mxu0 %v1505
    %2078 = vmatpush.bf16.msra.mxu0 %v1499
    %2079 = vmatpush.bf16.msra.mxu0 %v1493
    %2080 = vmatmul.bf16.gmra.mxu0 %v1940
    %v2081 = vpop.f32.mrf.mxu0
    %v2082 = vadd.f32 %v749, %v2081
    %v2083 = vpop.f32.mrf.mxu0
    %2084 = vdwg.mxu0
    %2085 = vmatpush.bf16.msra.mxu0 %v1583
    %2086 = vmatpush.bf16.msra.mxu0 %v1577
    %2087 = vmatpush.bf16.msra.mxu0 %v1571
    %2088 = vmatpush.bf16.msra.mxu0 %v1565
    %2089 = vmatpush.bf16.msra.mxu0 %v1559
    %2090 = vmatpush.bf16.msra.mxu0 %v1553
    %2091 = vmatpush.bf16.msra.mxu0 %v1547
    %2092 = vmatpush.bf16.msra.mxu0 %v1541
    %2093 = vmatmul.bf16.gmra.mxu0 %v1941
    %v2094 = vpop.f32.mrf.mxu0
    %v2095 = vadd.f32 %v2082, %v2094
    %v2096 = vpop.f32.mrf.mxu0
    %2097 = vdwg.mxu0
    %v2098 = vld [vmem:[#allocation2 + $0x30] sm:$0xff]
    %v2099 = vld [vmem:[#allocation2 + $0x38] sm:$0xff]
    %v2100 = vld [vmem:[#allocation2 + $0x40] sm:$0xff]
    %v2101 = vld [vmem:[#allocation2 + $0x138] sm:$0xff]
    %v2102 = vld [vmem:[#allocation2 + $0x140] sm:$0xff]
    %v2103 = vld [vmem:[#allocation2 + $0x148] sm:$0xff]
    %v2104 = vadd.f32 %v2098, %v1965
    %v2105 = vxor.u32 %v2104, 2147483648
    %v2106 = vmul.f32 %v2105, 1.442695
    %v2107 = vpow.pop %v2106
    %v2108 = vadd.f32 %v2107, 1.0
    %v2109 = vrcp.pop %v2108
    %v2110 = vmul.f32 %v2108, %v2109
    %v2111 = vsub.f32 1.0, %v2110
    %v2112 = vmul.f32 %v2109, %v2111
    %v2113 = vadd.f32 %v2109, %v2112
    %vm2114 = vweird.f32 %v2108
    %vm2115 = vweird.f32 %v2109
    %vm2116 = vmor %vm2114, %vm2115
    %v2117 = vsel %vm2116, %v2109, %v2113
    %v2118 = vand.u32 2147483647, %v2108
    %vm2119 = vcmp.eq.f32.partialorder %v2118, 8.507059e+37
    %v2120 = vand.u32 %v2108, 2147483648
    %v2121 = vor.u32 1.1754944e-38, %v2120
    %v2122 = vsel %vm2119, %v2121, %v2117
    %v2123 = vmul.f32 1.0, %v2122
    %v2124 = vadd.f32 %v2099, %v1991
    %v2125 = vxor.u32 %v2124, 2147483648
    %v2126 = vmul.f32 %v2125, 1.442695
    %v2127 = vpow.pop %v2126
    %v2128 = vadd.f32 %v2127, 1.0
    %v2129 = vrcp.pop %v2128
    %v2130 = vmul.f32 %v2128, %v2129
    %v2131 = vsub.f32 1.0, %v2130
    %v2132 = vmul.f32 %v2129, %v2131
    %v2133 = vadd.f32 %v2129, %v2132
    %vm2134 = vweird.f32 %v2128
    %vm2135 = vweird.f32 %v2129
    %vm2136 = vmor %vm2134, %vm2135
    %v2137 = vsel %vm2136, %v2129, %v2133
    %v2138 = vand.u32 2147483647, %v2128
    %vm2139 = vcmp.eq.f32.partialorder %v2138, 8.507059e+37
    %v2140 = vand.u32 %v2128, 2147483648
    %v2141 = vor.u32 1.1754944e-38, %v2140
    %v2142 = vsel %vm2139, %v2141, %v2137
    %v2143 = vmul.f32 1.0, %v2142
    %v2144 = vmul.f32 %v2123, %v2017
    %v2145 = vadd.f32 %v2100, %v2144
    %v2146 = vtanh.pop %v2145
    %v2147 = vsub.f32 1.0, %v2143
    %v2148 = vmul.f32 %v2147, %v2146
    %v2149 = vmul.f32 %v2143, %v1889
    %v2150 = vadd.f32 %v2148, %v2149
    %v2151 = vsel %vm705, %v2150, %v1889
    %v2152 = vadd.f32 %v2101, %v2043
    %v2153 = vxor.u32 %v2152, 2147483648
    %v2154 = vmul.f32 %v2153, 1.442695
    %v2155 = vpow.pop %v2154
    %v2156 = vadd.f32 %v2155, 1.0
    %v2157 = vrcp.pop %v2156
    %v2158 = vmul.f32 %v2156, %v2157
    %v2159 = vsub.f32 1.0, %v2158
    %v2160 = vmul.f32 %v2157, %v2159
    %v2161 = vadd.f32 %v2157, %v2160
    %vm2162 = vweird.f32 %v2156
    %vm2163 = vweird.f32 %v2157
    %vm2164 = vmor %vm2162, %vm2163
    %v2165 = vsel %vm2164, %v2157, %v2161
    %v2166 = vand.u32 2147483647, %v2156
    %vm2167 = vcmp.eq.f32.partialorder %v2166, 8.507059e+37
    %v2168 = vand.u32 %v2156, 2147483648
    %v2169 = vor.u32 1.1754944e-38, %v2168
    %v2170 = vsel %vm2167, %v2169, %v2165
    %v2171 = vmul.f32 1.0, %v2170
    %v2172 = vadd.f32 %v2102, %v2069
    %v2173 = vxor.u32 %v2172, 2147483648
    %v2174 = vmul.f32 %v2173, 1.442695
    %v2175 = vpow.pop %v2174
    %v2176 = vadd.f32 %v2175, 1.0
    %v2177 = vrcp.pop %v2176
    %v2178 = vmul.f32 %v2176, %v2177
    %v2179 = vsub.f32 1.0, %v2178
    %v2180 = vmul.f32 %v2177, %v2179
    %v2181 = vadd.f32 %v2177, %v2180
    %vm2182 = vweird.f32 %v2176
    %vm2183 = vweird.f32 %v2177
    %vm2184 = vmor %vm2182, %vm2183
    %v2185 = vsel %vm2184, %v2177, %v2181
    %v2186 = vand.u32 2147483647, %v2176
    %vm2187 = vcmp.eq.f32.partialorder %v2186, 8.507059e+37
    %v2188 = vand.u32 %v2176, 2147483648
    %v2189 = vor.u32 1.1754944e-38, %v2188
    %v2190 = vsel %vm2187, %v2189, %v2185
    %v2191 = vmul.f32 1.0, %v2190
    %v2192 = vmul.f32 %v2171, %v2095
    %v2193 = vadd.f32 %v2103, %v2192
    %v2194 = vtanh.pop %v2193
    %v2195 = vsub.f32 1.0, %v2191
    %v2196 = vmul.f32 %v2195, %v2194
    %v2197 = vmul.f32 %v2191, %v1937
    %v2198 = vadd.f32 %v2196, %v2197
    %v2199 = vsel %vm735, %v2198, %v1937
    %2200 = vst [vmem:[#allocation3 + $0x10] sm:$0xff] %v2151
    %2201 = vst [vmem:[#allocation3 + $0x68] sm:$0xff] %v2199
    %v2202 = vpack.c.bf16 %v2151, %v2151
    %v2203 = vpack.c.bf16 %v2199, %v2199
    %2204 = vmatpush.bf16.msra.mxu0 %v1530
    %2205 = vmatpush.bf16.msra.mxu0 %v1524
    %2206 = vmatpush.bf16.msra.mxu0 %v1518
    %2207 = vmatpush.bf16.msra.mxu0 %v1512
    %2208 = vmatpush.bf16.msra.mxu0 %v1506
    %2209 = vmatpush.bf16.msra.mxu0 %v1500
    %2210 = vmatpush.bf16.msra.mxu0 %v1494
    %2211 = vmatpush.bf16.msra.mxu0 %v1488
    %2212 = vmatmul.bf16.gmra.mxu0 %v2202
    %v2213 = vpop.f32.mrf.mxu0
    %v2214 = vadd.f32 %v744, %v2213
    %v2215 = vpop.f32.mrf.mxu0
    %2216 = vdwg.mxu0
    %2217 = vmatpush.bf16.msra.mxu0 %v1578
    %2218 = vmatpush.bf16.msra.mxu0 %v1572
    %2219 = vmatpush.bf16.msra.mxu0 %v1566
    %2220 = vmatpush.bf16.msra.mxu0 %v1560
    %2221 = vmatpush.bf16.msra.mxu0 %v1554
    %2222 = vmatpush.bf16.msra.mxu0 %v1548
    %2223 = vmatpush.bf16.msra.mxu0 %v1542
    %2224 = vmatpush.bf16.msra.mxu0 %v1536
    %2225 = vmatmul.bf16.gmra.mxu0 %v2203
    %v2226 = vpop.f32.mrf.mxu0
    %v2227 = vadd.f32 %v2214, %v2226
    %v2228 = vpop.f32.mrf.mxu0
    %2229 = vdwg.mxu0
    %2230 = vmatpush.bf16.msra.mxu0 %v1531
    %2231 = vmatpush.bf16.msra.mxu0 %v1525
    %2232 = vmatpush.bf16.msra.mxu0 %v1519
    %2233 = vmatpush.bf16.msra.mxu0 %v1513
    %2234 = vmatpush.bf16.msra.mxu0 %v1507
    %2235 = vmatpush.bf16.msra.mxu0 %v1501
    %2236 = vmatpush.bf16.msra.mxu0 %v1495
    %2237 = vmatpush.bf16.msra.mxu0 %v1489
    %2238 = vmatmul.bf16.gmra.mxu0 %v2202
    %v2239 = vpop.f32.mrf.mxu0
    %v2240 = vadd.f32 %v745, %v2239
    %v2241 = vpop.f32.mrf.mxu0
    %2242 = vdwg.mxu0
    %2243 = vmatpush.bf16.msra.mxu0 %v1579
    %2244 = vmatpush.bf16.msra.mxu0 %v1573
    %2245 = vmatpush.bf16.msra.mxu0 %v1567
    %2246 = vmatpush.bf16.msra.mxu0 %v1561
    %2247 = vmatpush.bf16.msra.mxu0 %v1555
    %2248 = vmatpush.bf16.msra.mxu0 %v1549
    %2249 = vmatpush.bf16.msra.mxu0 %v1543
    %2250 = vmatpush.bf16.msra.mxu0 %v1537
    %2251 = vmatmul.bf16.gmra.mxu0 %v2203
    %v2252 = vpop.f32.mrf.mxu0
    %v2253 = vadd.f32 %v2240, %v2252
    %v2254 = vpop.f32.mrf.mxu0
    %2255 = vdwg.mxu0
    %2256 = vmatpush.bf16.msra.mxu0 %v1532
    %2257 = vmatpush.bf16.msra.mxu0 %v1526
    %2258 = vmatpush.bf16.msra.mxu0 %v1520
    %2259 = vmatpush.bf16.msra.mxu0 %v1514
    %2260 = vmatpush.bf16.msra.mxu0 %v1508
    %2261 = vmatpush.bf16.msra.mxu0 %v1502
    %2262 = vmatpush.bf16.msra.mxu0 %v1496
    %2263 = vmatpush.bf16.msra.mxu0 %v1490
    %2264 = vmatmul.bf16.gmra.mxu0 %v2202
    %v2265 = vpop.f32.mrf.mxu0
    %v2266 = vadd.f32 %v746, %v2265
    %v2267 = vpop.f32.mrf.mxu0
    %2268 = vdwg.mxu0
    %2269 = vmatpush.bf16.msra.mxu0 %v1580
    %2270 = vmatpush.bf16.msra.mxu0 %v1574
    %2271 = vmatpush.bf16.msra.mxu0 %v1568
    %2272 = vmatpush.bf16.msra.mxu0 %v1562
    %2273 = vmatpush.bf16.msra.mxu0 %v1556
    %2274 = vmatpush.bf16.msra.mxu0 %v1550
    %2275 = vmatpush.bf16.msra.mxu0 %v1544
    %2276 = vmatpush.bf16.msra.mxu0 %v1538
    %2277 = vmatmul.bf16.gmra.mxu0 %v2203
    %v2278 = vpop.f32.mrf.mxu0
    %v2279 = vadd.f32 %v2266, %v2278
    %v2280 = vpop.f32.mrf.mxu0
    %2281 = vdwg.mxu0
    %2282 = vmatpush.bf16.msra.mxu0 %v1533
    %2283 = vmatpush.bf16.msra.mxu0 %v1527
    %2284 = vmatpush.bf16.msra.mxu0 %v1521
    %2285 = vmatpush.bf16.msra.mxu0 %v1515
    %2286 = vmatpush.bf16.msra.mxu0 %v1509
    %2287 = vmatpush.bf16.msra.mxu0 %v1503
    %2288 = vmatpush.bf16.msra.mxu0 %v1497
    %2289 = vmatpush.bf16.msra.mxu0 %v1491
    %2290 = vmatmul.bf16.gmra.mxu0 %v2202
    %v2291 = vpop.f32.mrf.mxu0
    %v2292 = vadd.f32 %v747, %v2291
    %v2293 = vpop.f32.mrf.mxu0
    %2294 = vdwg.mxu0
    %2295 = vmatpush.bf16.msra.mxu0 %v1581
    %2296 = vmatpush.bf16.msra.mxu0 %v1575
    %2297 = vmatpush.bf16.msra.mxu0 %v1569
    %2298 = vmatpush.bf16.msra.mxu0 %v1563
    %2299 = vmatpush.bf16.msra.mxu0 %v1557
    %2300 = vmatpush.bf16.msra.mxu0 %v1551
    %2301 = vmatpush.bf16.msra.mxu0 %v1545
    %2302 = vmatpush.bf16.msra.mxu0 %v1539
    %2303 = vmatmul.bf16.gmra.mxu0 %v2203
    %v2304 = vpop.f32.mrf.mxu0
    %v2305 = vadd.f32 %v2292, %v2304
    %v2306 = vpop.f32.mrf.mxu0
    %2307 = vdwg.mxu0
    %2308 = vmatpush.bf16.msra.mxu0 %v1534
    %2309 = vmatpush.bf16.msra.mxu0 %v1528
    %2310 = vmatpush.bf16.msra.mxu0 %v1522
    %2311 = vmatpush.bf16.msra.mxu0 %v1516
    %2312 = vmatpush.bf16.msra.mxu0 %v1510
    %2313 = vmatpush.bf16.msra.mxu0 %v1504
    %2314 = vmatpush.bf16.msra.mxu0 %v1498
    %2315 = vmatpush.bf16.msra.mxu0 %v1492
    %2316 = vmatmul.bf16.gmra.mxu0 %v2202
    %v2317 = vpop.f32.mrf.mxu0
    %v2318 = vadd.f32 %v748, %v2317
    %v2319 = vpop.f32.mrf.mxu0
    %2320 = vdwg.mxu0
    %2321 = vmatpush.bf16.msra.mxu0 %v1582
    %2322 = vmatpush.bf16.msra.mxu0 %v1576
    %2323 = vmatpush.bf16.msra.mxu0 %v1570
    %2324 = vmatpush.bf16.msra.mxu0 %v1564
    %2325 = vmatpush.bf16.msra.mxu0 %v1558
    %2326 = vmatpush.bf16.msra.mxu0 %v1552
    %2327 = vmatpush.bf16.msra.mxu0 %v1546
    %2328 = vmatpush.bf16.msra.mxu0 %v1540
    %2329 = vmatmul.bf16.gmra.mxu0 %v2203
    %v2330 = vpop.f32.mrf.mxu0
    %v2331 = vadd.f32 %v2318, %v2330
    %v2332 = vpop.f32.mrf.mxu0
    %2333 = vdwg.mxu0
    %2334 = vmatpush.bf16.msra.mxu0 %v1535
    %2335 = vmatpush.bf16.msra.mxu0 %v1529
    %2336 = vmatpush.bf16.msra.mxu0 %v1523
    %2337 = vmatpush.bf16.msra.mxu0 %v1517
    %2338 = vmatpush.bf16.msra.mxu0 %v1511
    %2339 = vmatpush.bf16.msra.mxu0 %v1505
    %2340 = vmatpush.bf16.msra.mxu0 %v1499
    %2341 = vmatpush.bf16.msra.mxu0 %v1493
    %2342 = vmatmul.bf16.gmra.mxu0 %v2202
    %v2343 = vpop.f32.mrf.mxu0
    %v2344 = vadd.f32 %v749, %v2343
    %v2345 = vpop.f32.mrf.mxu0
    %2346 = vdwg.mxu0
    %2347 = vmatpush.bf16.msra.mxu0 %v1583
    %2348 = vmatpush.bf16.msra.mxu0 %v1577
    %2349 = vmatpush.bf16.msra.mxu0 %v1571
    %2350 = vmatpush.bf16.msra.mxu0 %v1565
    %2351 = vmatpush.bf16.msra.mxu0 %v1559
    %2352 = vmatpush.bf16.msra.mxu0 %v1553
    %2353 = vmatpush.bf16.msra.mxu0 %v1547
    %2354 = vmatpush.bf16.msra.mxu0 %v1541
    %2355 = vmatmul.bf16.gmra.mxu0 %v2203
    %v2356 = vpop.f32.mrf.mxu0
    %v2357 = vadd.f32 %v2344, %v2356
    %v2358 = vpop.f32.mrf.mxu0
    %2359 = vdwg.mxu0
    %v2360 = vld [vmem:[#allocation2 + $0x60] sm:$0xff]
    %v2361 = vld [vmem:[#allocation2 + $0x68] sm:$0xff]
    %v2362 = vld [vmem:[#allocation2 + $0x70] sm:$0xff]
    %v2363 = vld [vmem:[#allocation2 + $0x108] sm:$0xff]
    %v2364 = vld [vmem:[#allocation2 + $0x110] sm:$0xff]
    %v2365 = vld [vmem:[#allocation2 + $0x118] sm:$0xff]
    %v2366 = vadd.f32 %v2360, %v2227
    %v2367 = vxor.u32 %v2366, 2147483648
    %v2368 = vmul.f32 %v2367, 1.442695
    %v2369 = vpow.pop %v2368
    %v2370 = vadd.f32 %v2369, 1.0
    %v2371 = vrcp.pop %v2370
    %v2372 = vmul.f32 %v2370, %v2371
    %v2373 = vsub.f32 1.0, %v2372
    %v2374 = vmul.f32 %v2371, %v2373
    %v2375 = vadd.f32 %v2371, %v2374
    %vm2376 = vweird.f32 %v2370
    %vm2377 = vweird.f32 %v2371
    %vm2378 = vmor %vm2376, %vm2377
    %v2379 = vsel %vm2378, %v2371, %v2375
    %v2380 = vand.u32 2147483647, %v2370
    %vm2381 = vcmp.eq.f32.partialorder %v2380, 8.507059e+37
    %v2382 = vand.u32 %v2370, 2147483648
    %v2383 = vor.u32 1.1754944e-38, %v2382
    %v2384 = vsel %vm2381, %v2383, %v2379
    %v2385 = vmul.f32 1.0, %v2384
    %v2386 = vadd.f32 %v2361, %v2253
    %v2387 = vxor.u32 %v2386, 2147483648
    %v2388 = vmul.f32 %v2387, 1.442695
    %v2389 = vpow.pop %v2388
    %v2390 = vadd.f32 %v2389, 1.0
    %v2391 = vrcp.pop %v2390
    %v2392 = vmul.f32 %v2390, %v2391
    %v2393 = vsub.f32 1.0, %v2392
    %v2394 = vmul.f32 %v2391, %v2393
    %v2395 = vadd.f32 %v2391, %v2394
    %vm2396 = vweird.f32 %v2390
    %vm2397 = vweird.f32 %v2391
    %vm2398 = vmor %vm2396, %vm2397
    %v2399 = vsel %vm2398, %v2391, %v2395
    %v2400 = vand.u32 2147483647, %v2390
    %vm2401 = vcmp.eq.f32.partialorder %v2400, 8.507059e+37
    %v2402 = vand.u32 %v2390, 2147483648
    %v2403 = vor.u32 1.1754944e-38, %v2402
    %v2404 = vsel %vm2401, %v2403, %v2399
    %v2405 = vmul.f32 1.0, %v2404
    %v2406 = vmul.f32 %v2385, %v2279
    %v2407 = vadd.f32 %v2362, %v2406
    %v2408 = vtanh.pop %v2407
    %v2409 = vsub.f32 1.0, %v2405
    %v2410 = vmul.f32 %v2409, %v2408
    %v2411 = vmul.f32 %v2405, %v2151
    %v2412 = vadd.f32 %v2410, %v2411
    %v2413 = vsel %vm711, %v2412, %v2151
    %v2414 = vadd.f32 %v2363, %v2305
    %v2415 = vxor.u32 %v2414, 2147483648
    %v2416 = vmul.f32 %v2415, 1.442695
    %v2417 = vpow.pop %v2416
    %v2418 = vadd.f32 %v2417, 1.0
    %v2419 = vrcp.pop %v2418
    %v2420 = vmul.f32 %v2418, %v2419
    %v2421 = vsub.f32 1.0, %v2420
    %v2422 = vmul.f32 %v2419, %v2421
    %v2423 = vadd.f32 %v2419, %v2422
    %vm2424 = vweird.f32 %v2418
    %vm2425 = vweird.f32 %v2419
    %vm2426 = vmor %vm2424, %vm2425
    %v2427 = vsel %vm2426, %v2419, %v2423
    %v2428 = vand.u32 2147483647, %v2418
    %vm2429 = vcmp.eq.f32.partialorder %v2428, 8.507059e+37
    %v2430 = vand.u32 %v2418, 2147483648
    %v2431 = vor.u32 1.1754944e-38, %v2430
    %v2432 = vsel %vm2429, %v2431, %v2427
    %v2433 = vmul.f32 1.0, %v2432
    %v2434 = vadd.f32 %v2364, %v2331
    %v2435 = vxor.u32 %v2434, 2147483648
    %v2436 = vmul.f32 %v2435, 1.442695
    %v2437 = vpow.pop %v2436
    %v2438 = vadd.f32 %v2437, 1.0
    %v2439 = vrcp.pop %v2438
    %v2440 = vmul.f32 %v2438, %v2439
    %v2441 = vsub.f32 1.0, %v2440
    %v2442 = vmul.f32 %v2439, %v2441
    %v2443 = vadd.f32 %v2439, %v2442
    %vm2444 = vweird.f32 %v2438
    %vm2445 = vweird.f32 %v2439
    %vm2446 = vmor %vm2444, %vm2445
    %v2447 = vsel %vm2446, %v2439, %v2443
    %v2448 = vand.u32 2147483647, %v2438
    %vm2449 = vcmp.eq.f32.partialorder %v2448, 8.507059e+37
    %v2450 = vand.u32 %v2438, 2147483648
    %v2451 = vor.u32 1.1754944e-38, %v2450
    %v2452 = vsel %vm2449, %v2451, %v2447
    %v2453 = vmul.f32 1.0, %v2452
    %v2454 = vmul.f32 %v2433, %v2357
    %v2455 = vadd.f32 %v2365, %v2454
    %v2456 = vtanh.pop %v2455
    %v2457 = vsub.f32 1.0, %v2453
    %v2458 = vmul.f32 %v2457, %v2456
    %v2459 = vmul.f32 %v2453, %v2199
    %v2460 = vadd.f32 %v2458, %v2459
    %v2461 = vsel %vm729, %v2460, %v2199
    %2462 = vst [vmem:[#allocation3 + $0x20] sm:$0xff] %v2413
    %2463 = vst [vmem:[#allocation3 + $0x58] sm:$0xff] %v2461
    %v2464 = vpack.c.bf16 %v2413, %v2413
    %v2465 = vpack.c.bf16 %v2461, %v2461
    %2466 = vmatpush.bf16.msra.mxu0 %v1530
    %2467 = vmatpush.bf16.msra.mxu0 %v1524
    %2468 = vmatpush.bf16.msra.mxu0 %v1518
    %2469 = vmatpush.bf16.msra.mxu0 %v1512
    %2470 = vmatpush.bf16.msra.mxu0 %v1506
    %2471 = vmatpush.bf16.msra.mxu0 %v1500
    %2472 = vmatpush.bf16.msra.mxu0 %v1494
    %2473 = vmatpush.bf16.msra.mxu0 %v1488
    %2474 = vmatmul.bf16.gmra.mxu0 %v2464
    %v2475 = vpop.f32.mrf.mxu0
    %v2476 = vadd.f32 %v744, %v2475
    %v2477 = vpop.f32.mrf.mxu0
    %2478 = vdwg.mxu0
    %2479 = vmatpush.bf16.msra.mxu0 %v1578
    %2480 = vmatpush.bf16.msra.mxu0 %v1572
    %2481 = vmatpush.bf16.msra.mxu0 %v1566
    %2482 = vmatpush.bf16.msra.mxu0 %v1560
    %2483 = vmatpush.bf16.msra.mxu0 %v1554
    %2484 = vmatpush.bf16.msra.mxu0 %v1548
    %2485 = vmatpush.bf16.msra.mxu0 %v1542
    %2486 = vmatpush.bf16.msra.mxu0 %v1536
    %2487 = vmatmul.bf16.gmra.mxu0 %v2465
    %v2488 = vpop.f32.mrf.mxu0
    %v2489 = vadd.f32 %v2476, %v2488
    %v2490 = vpop.f32.mrf.mxu0
    %2491 = vdwg.mxu0
    %2492 = vmatpush.bf16.msra.mxu0 %v1531
    %2493 = vmatpush.bf16.msra.mxu0 %v1525
    %2494 = vmatpush.bf16.msra.mxu0 %v1519
    %2495 = vmatpush.bf16.msra.mxu0 %v1513
    %2496 = vmatpush.bf16.msra.mxu0 %v1507
    %2497 = vmatpush.bf16.msra.mxu0 %v1501
    %2498 = vmatpush.bf16.msra.mxu0 %v1495
    %2499 = vmatpush.bf16.msra.mxu0 %v1489
    %2500 = vmatmul.bf16.gmra.mxu0 %v2464
    %v2501 = vpop.f32.mrf.mxu0
    %v2502 = vadd.f32 %v745, %v2501
    %v2503 = vpop.f32.mrf.mxu0
    %2504 = vdwg.mxu0
    %2505 = vmatpush.bf16.msra.mxu0 %v1579
    %2506 = vmatpush.bf16.msra.mxu0 %v1573
    %2507 = vmatpush.bf16.msra.mxu0 %v1567
    %2508 = vmatpush.bf16.msra.mxu0 %v1561
    %2509 = vmatpush.bf16.msra.mxu0 %v1555
    %2510 = vmatpush.bf16.msra.mxu0 %v1549
    %2511 = vmatpush.bf16.msra.mxu0 %v1543
    %2512 = vmatpush.bf16.msra.mxu0 %v1537
    %2513 = vmatmul.bf16.gmra.mxu0 %v2465
    %v2514 = vpop.f32.mrf.mxu0
    %v2515 = vadd.f32 %v2502, %v2514
    %v2516 = vpop.f32.mrf.mxu0
    %2517 = vdwg.mxu0
    %2518 = vmatpush.bf16.msra.mxu0 %v1532
    %2519 = vmatpush.bf16.msra.mxu0 %v1526
    %2520 = vmatpush.bf16.msra.mxu0 %v1520
    %2521 = vmatpush.bf16.msra.mxu0 %v1514
    %2522 = vmatpush.bf16.msra.mxu0 %v1508
    %2523 = vmatpush.bf16.msra.mxu0 %v1502
    %2524 = vmatpush.bf16.msra.mxu0 %v1496
    %2525 = vmatpush.bf16.msra.mxu0 %v1490
    %2526 = vmatmul.bf16.gmra.mxu0 %v2464
    %v2527 = vpop.f32.mrf.mxu0
    %v2528 = vadd.f32 %v746, %v2527
    %v2529 = vpop.f32.mrf.mxu0
    %2530 = vdwg.mxu0
    %2531 = vmatpush.bf16.msra.mxu0 %v1580
    %2532 = vmatpush.bf16.msra.mxu0 %v1574
    %2533 = vmatpush.bf16.msra.mxu0 %v1568
    %2534 = vmatpush.bf16.msra.mxu0 %v1562
    %2535 = vmatpush.bf16.msra.mxu0 %v1556
    %2536 = vmatpush.bf16.msra.mxu0 %v1550
    %2537 = vmatpush.bf16.msra.mxu0 %v1544
    %2538 = vmatpush.bf16.msra.mxu0 %v1538
    %2539 = vmatmul.bf16.gmra.mxu0 %v2465
    %v2540 = vpop.f32.mrf.mxu0
    %v2541 = vadd.f32 %v2528, %v2540
    %v2542 = vpop.f32.mrf.mxu0
    %2543 = vdwg.mxu0
    %2544 = vmatpush.bf16.msra.mxu0 %v1533
    %2545 = vmatpush.bf16.msra.mxu0 %v1527
    %2546 = vmatpush.bf16.msra.mxu0 %v1521
    %2547 = vmatpush.bf16.msra.mxu0 %v1515
    %2548 = vmatpush.bf16.msra.mxu0 %v1509
    %2549 = vmatpush.bf16.msra.mxu0 %v1503
    %2550 = vmatpush.bf16.msra.mxu0 %v1497
    %2551 = vmatpush.bf16.msra.mxu0 %v1491
    %2552 = vmatmul.bf16.gmra.mxu0 %v2464
    %v2553 = vpop.f32.mrf.mxu0
    %v2554 = vadd.f32 %v747, %v2553
    %v2555 = vpop.f32.mrf.mxu0
    %2556 = vdwg.mxu0
    %2557 = vmatpush.bf16.msra.mxu0 %v1581
    %2558 = vmatpush.bf16.msra.mxu0 %v1575
    %2559 = vmatpush.bf16.msra.mxu0 %v1569
    %2560 = vmatpush.bf16.msra.mxu0 %v1563
    %2561 = vmatpush.bf16.msra.mxu0 %v1557
    %2562 = vmatpush.bf16.msra.mxu0 %v1551
    %2563 = vmatpush.bf16.msra.mxu0 %v1545
    %2564 = vmatpush.bf16.msra.mxu0 %v1539
    %2565 = vmatmul.bf16.gmra.mxu0 %v2465
    %v2566 = vpop.f32.mrf.mxu0
    %v2567 = vadd.f32 %v2554, %v2566
    %v2568 = vpop.f32.mrf.mxu0
    %2569 = vdwg.mxu0
    %2570 = vmatpush.bf16.msra.mxu0 %v1534
    %2571 = vmatpush.bf16.msra.mxu0 %v1528
    %2572 = vmatpush.bf16.msra.mxu0 %v1522
    %2573 = vmatpush.bf16.msra.mxu0 %v1516
    %2574 = vmatpush.bf16.msra.mxu0 %v1510
    %2575 = vmatpush.bf16.msra.mxu0 %v1504
    %2576 = vmatpush.bf16.msra.mxu0 %v1498
    %2577 = vmatpush.bf16.msra.mxu0 %v1492
    %2578 = vmatmul.bf16.gmra.mxu0 %v2464
    %v2579 = vpop.f32.mrf.mxu0
    %v2580 = vadd.f32 %v748, %v2579
    %v2581 = vpop.f32.mrf.mxu0
    %2582 = vdwg.mxu0
    %2583 = vmatpush.bf16.msra.mxu0 %v1582
    %2584 = vmatpush.bf16.msra.mxu0 %v1576
    %2585 = vmatpush.bf16.msra.mxu0 %v1570
    %2586 = vmatpush.bf16.msra.mxu0 %v1564
    %2587 = vmatpush.bf16.msra.mxu0 %v1558
    %2588 = vmatpush.bf16.msra.mxu0 %v1552
    %2589 = vmatpush.bf16.msra.mxu0 %v1546
    %2590 = vmatpush.bf16.msra.mxu0 %v1540
    %2591 = vmatmul.bf16.gmra.mxu0 %v2465
    %v2592 = vpop.f32.mrf.mxu0
    %v2593 = vadd.f32 %v2580, %v2592
    %v2594 = vpop.f32.mrf.mxu0
    %2595 = vdwg.mxu0
    %2596 = vmatpush.bf16.msra.mxu0 %v1535
    %2597 = vmatpush.bf16.msra.mxu0 %v1529
    %2598 = vmatpush.bf16.msra.mxu0 %v1523
    %2599 = vmatpush.bf16.msra.mxu0 %v1517
    %2600 = vmatpush.bf16.msra.mxu0 %v1511
    %2601 = vmatpush.bf16.msra.mxu0 %v1505
    %2602 = vmatpush.bf16.msra.mxu0 %v1499
    %2603 = vmatpush.bf16.msra.mxu0 %v1493
    %2604 = vmatmul.bf16.gmra.mxu0 %v2464
    %v2605 = vpop.f32.mrf.mxu0
    %v2606 = vadd.f32 %v749, %v2605
    %v2607 = vpop.f32.mrf.mxu0
    %2608 = vdwg.mxu0
    %2609 = vmatpush.bf16.msra.mxu0 %v1583
    %2610 = vmatpush.bf16.msra.mxu0 %v1577
    %2611 = vmatpush.bf16.msra.mxu0 %v1571
    %2612 = vmatpush.bf16.msra.mxu0 %v1565
    %2613 = vmatpush.bf16.msra.mxu0 %v1559
    %2614 = vmatpush.bf16.msra.mxu0 %v1553
    %2615 = vmatpush.bf16.msra.mxu0 %v1547
    %2616 = vmatpush.bf16.msra.mxu0 %v1541
    %2617 = vmatmul.bf16.gmra.mxu0 %v2465
    %v2618 = vpop.f32.mrf.mxu0
    %v2619 = vadd.f32 %v2606, %v2618
    %v2620 = vpop.f32.mrf.mxu0
    %2621 = vdwg.mxu0
    %v2622 = vld [vmem:[#allocation2 + $0x90] sm:$0xff]
    %v2623 = vld [vmem:[#allocation2 + $0x98] sm:$0xff]
    %v2624 = vld [vmem:[#allocation2 + $0xa0] sm:$0xff]
    %v2625 = vld [vmem:[#allocation2 + $0xd8] sm:$0xff]
    %v2626 = vld [vmem:[#allocation2 + $0xe0] sm:$0xff]
    %v2627 = vld [vmem:[#allocation2 + $0xe8] sm:$0xff]
    %v2628 = vadd.f32 %v2622, %v2489
    %v2629 = vxor.u32 %v2628, 2147483648
    %v2630 = vmul.f32 %v2629, 1.442695
    %v2631 = vpow.pop %v2630
    %v2632 = vadd.f32 %v2631, 1.0
    %v2633 = vrcp.pop %v2632
    %v2634 = vmul.f32 %v2632, %v2633
    %v2635 = vsub.f32 1.0, %v2634
    %v2636 = vmul.f32 %v2633, %v2635
    %v2637 = vadd.f32 %v2633, %v2636
    %vm2638 = vweird.f32 %v2632
    %vm2639 = vweird.f32 %v2633
    %vm2640 = vmor %vm2638, %vm2639
    %v2641 = vsel %vm2640, %v2633, %v2637
    %v2642 = vand.u32 2147483647, %v2632
    %vm2643 = vcmp.eq.f32.partialorder %v2642, 8.507059e+37
    %v2644 = vand.u32 %v2632, 2147483648
    %v2645 = vor.u32 1.1754944e-38, %v2644
    %v2646 = vsel %vm2643, %v2645, %v2641
    %v2647 = vmul.f32 1.0, %v2646
    %v2648 = vadd.f32 %v2623, %v2515
    %v2649 = vxor.u32 %v2648, 2147483648
    %v2650 = vmul.f32 %v2649, 1.442695
    %v2651 = vpow.pop %v2650
    %v2652 = vadd.f32 %v2651, 1.0
    %v2653 = vrcp.pop %v2652
    %v2654 = vmul.f32 %v2652, %v2653
    %v2655 = vsub.f32 1.0, %v2654
    %v2656 = vmul.f32 %v2653, %v2655
    %v2657 = vadd.f32 %v2653, %v2656
    %vm2658 = vweird.f32 %v2652
    %vm2659 = vweird.f32 %v2653
    %vm2660 = vmor %vm2658, %vm2659
    %v2661 = vsel %vm2660, %v2653, %v2657
    %v2662 = vand.u32 2147483647, %v2652
    %vm2663 = vcmp.eq.f32.partialorder %v2662, 8.507059e+37
    %v2664 = vand.u32 %v2652, 2147483648
    %v2665 = vor.u32 1.1754944e-38, %v2664
    %v2666 = vsel %vm2663, %v2665, %v2661
    %v2667 = vmul.f32 1.0, %v2666
    %v2668 = vmul.f32 %v2647, %v2541
    %v2669 = vadd.f32 %v2624, %v2668
    %v2670 = vtanh.pop %v2669
    %v2671 = vsub.f32 1.0, %v2667
    %v2672 = vmul.f32 %v2671, %v2670
    %v2673 = vmul.f32 %v2667, %v2413
    %v2674 = vadd.f32 %v2672, %v2673
    %v2675 = vsel %vm717, %v2674, %v2413
    %v2676 = vadd.f32 %v2625, %v2567
    %v2677 = vxor.u32 %v2676, 2147483648
    %v2678 = vmul.f32 %v2677, 1.442695
    %v2679 = vpow.pop %v2678
    %v2680 = vadd.f32 %v2679, 1.0
    %v2681 = vrcp.pop %v2680
    %v2682 = vmul.f32 %v2680, %v2681
    %v2683 = vsub.f32 1.0, %v2682
    %v2684 = vmul.f32 %v2681, %v2683
    %v2685 = vadd.f32 %v2681, %v2684
    %vm2686 = vweird.f32 %v2680
    %vm2687 = vweird.f32 %v2681
    %vm2688 = vmor %vm2686, %vm2687
    %v2689 = vsel %vm2688, %v2681, %v2685
    %v2690 = vand.u32 2147483647, %v2680
    %vm2691 = vcmp.eq.f32.partialorder %v2690, 8.507059e+37
    %v2692 = vand.u32 %v2680, 2147483648
    %v2693 = vor.u32 1.1754944e-38, %v2692
    %v2694 = vsel %vm2691, %v2693, %v2689
    %v2695 = vmul.f32 1.0, %v2694
    %v2696 = vadd.f32 %v2626, %v2593
    %v2697 = vxor.u32 %v2696, 2147483648
    %v2698 = vmul.f32 %v2697, 1.442695
    %v2699 = vpow.pop %v2698
    %v2700 = vadd.f32 %v2699, 1.0
    %v2701 = vrcp.pop %v2700
    %v2702 = vmul.f32 %v2700, %v2701
    %v2703 = vsub.f32 1.0, %v2702
    %v2704 = vmul.f32 %v2701, %v2703
    %v2705 = vadd.f32 %v2701, %v2704
    %vm2706 = vweird.f32 %v2700
    %vm2707 = vweird.f32 %v2701
    %vm2708 = vmor %vm2706, %vm2707
    %v2709 = vsel %vm2708, %v2701, %v2705
    %v2710 = vand.u32 2147483647, %v2700
    %vm2711 = vcmp.eq.f32.partialorder %v2710, 8.507059e+37
    %v2712 = vand.u32 %v2700, 2147483648
    %v2713 = vor.u32 1.1754944e-38, %v2712
    %v2714 = vsel %vm2711, %v2713, %v2709
    %v2715 = vmul.f32 1.0, %v2714
    %v2716 = vmul.f32 %v2695, %v2619
    %v2717 = vadd.f32 %v2627, %v2716
    %v2718 = vtanh.pop %v2717
    %v2719 = vsub.f32 1.0, %v2715
    %v2720 = vmul.f32 %v2719, %v2718
    %v2721 = vmul.f32 %v2715, %v2461
    %v2722 = vadd.f32 %v2720, %v2721
    %v2723 = vsel %vm723, %v2722, %v2461
    %2724 = vst [vmem:[#allocation3 + $0x30] sm:$0xff] %v2675
    %2725 = vst [vmem:[#allocation3 + $0x48] sm:$0xff] %v2723
    %v2726 = vpack.c.bf16 %v2675, %v2675
    %v2727 = vpack.c.bf16 %v2723, %v2723
    %2728 = vmatpush.bf16.msra.mxu0 %v1530
    %2729 = vmatpush.bf16.msra.mxu0 %v1524
    %2730 = vmatpush.bf16.msra.mxu0 %v1518
    %2731 = vmatpush.bf16.msra.mxu0 %v1512
    %2732 = vmatpush.bf16.msra.mxu0 %v1506
    %2733 = vmatpush.bf16.msra.mxu0 %v1500
    %2734 = vmatpush.bf16.msra.mxu0 %v1494
    %2735 = vmatpush.bf16.msra.mxu0 %v1488
    %2736 = vmatmul.bf16.gmra.mxu0 %v2726
    %v2737 = vpop.f32.mrf.mxu0
    %v2738 = vadd.f32 %v744, %v2737
    %v2739 = vpop.f32.mrf.mxu0
    %2740 = vdwg.mxu0
    %2741 = vmatpush.bf16.msra.mxu0 %v1578
    %2742 = vmatpush.bf16.msra.mxu0 %v1572
    %2743 = vmatpush.bf16.msra.mxu0 %v1566
    %2744 = vmatpush.bf16.msra.mxu0 %v1560
    %2745 = vmatpush.bf16.msra.mxu0 %v1554
    %2746 = vmatpush.bf16.msra.mxu0 %v1548
    %2747 = vmatpush.bf16.msra.mxu0 %v1542
    %2748 = vmatpush.bf16.msra.mxu0 %v1536
    %2749 = vmatmul.bf16.gmra.mxu0 %v2727
    %v2750 = vpop.f32.mrf.mxu0
    %v2751 = vadd.f32 %v2738, %v2750
    %v2752 = vpop.f32.mrf.mxu0
    %2753 = vdwg.mxu0
    %2754 = vmatpush.bf16.msra.mxu0 %v1531
    %2755 = vmatpush.bf16.msra.mxu0 %v1525
    %2756 = vmatpush.bf16.msra.mxu0 %v1519
    %2757 = vmatpush.bf16.msra.mxu0 %v1513
    %2758 = vmatpush.bf16.msra.mxu0 %v1507
    %2759 = vmatpush.bf16.msra.mxu0 %v1501
    %2760 = vmatpush.bf16.msra.mxu0 %v1495
    %2761 = vmatpush.bf16.msra.mxu0 %v1489
    %2762 = vmatmul.bf16.gmra.mxu0 %v2726
    %v2763 = vpop.f32.mrf.mxu0
    %v2764 = vadd.f32 %v745, %v2763
    %v2765 = vpop.f32.mrf.mxu0
    %2766 = vdwg.mxu0
    %2767 = vmatpush.bf16.msra.mxu0 %v1579
    %2768 = vmatpush.bf16.msra.mxu0 %v1573
    %2769 = vmatpush.bf16.msra.mxu0 %v1567
    %2770 = vmatpush.bf16.msra.mxu0 %v1561
    %2771 = vmatpush.bf16.msra.mxu0 %v1555
    %2772 = vmatpush.bf16.msra.mxu0 %v1549
    %2773 = vmatpush.bf16.msra.mxu0 %v1543
    %2774 = vmatpush.bf16.msra.mxu0 %v1537
    %2775 = vmatmul.bf16.gmra.mxu0 %v2727
    %v2776 = vpop.f32.mrf.mxu0
    %v2777 = vadd.f32 %v2764, %v2776
    %v2778 = vpop.f32.mrf.mxu0
    %2779 = vdwg.mxu0
    %2780 = vmatpush.bf16.msra.mxu0 %v1532
    %2781 = vmatpush.bf16.msra.mxu0 %v1526
    %2782 = vmatpush.bf16.msra.mxu0 %v1520
    %2783 = vmatpush.bf16.msra.mxu0 %v1514
    %2784 = vmatpush.bf16.msra.mxu0 %v1508
    %2785 = vmatpush.bf16.msra.mxu0 %v1502
    %2786 = vmatpush.bf16.msra.mxu0 %v1496
    %2787 = vmatpush.bf16.msra.mxu0 %v1490
    %2788 = vmatmul.bf16.gmra.mxu0 %v2726
    %v2789 = vpop.f32.mrf.mxu0
    %v2790 = vadd.f32 %v746, %v2789
    %v2791 = vpop.f32.mrf.mxu0
    %2792 = vdwg.mxu0
    %2793 = vmatpush.bf16.msra.mxu0 %v1580
    %2794 = vmatpush.bf16.msra.mxu0 %v1574
    %2795 = vmatpush.bf16.msra.mxu0 %v1568
    %2796 = vmatpush.bf16.msra.mxu0 %v1562
    %2797 = vmatpush.bf16.msra.mxu0 %v1556
    %2798 = vmatpush.bf16.msra.mxu0 %v1550
    %2799 = vmatpush.bf16.msra.mxu0 %v1544
    %2800 = vmatpush.bf16.msra.mxu0 %v1538
    %2801 = vmatmul.bf16.gmra.mxu0 %v2727
    %v2802 = vpop.f32.mrf.mxu0
    %v2803 = vadd.f32 %v2790, %v2802
    %v2804 = vpop.f32.mrf.mxu0
    %2805 = vdwg.mxu0
    %2806 = vmatpush.bf16.msra.mxu0 %v1533
    %2807 = vmatpush.bf16.msra.mxu0 %v1527
    %2808 = vmatpush.bf16.msra.mxu0 %v1521
    %2809 = vmatpush.bf16.msra.mxu0 %v1515
    %2810 = vmatpush.bf16.msra.mxu0 %v1509
    %2811 = vmatpush.bf16.msra.mxu0 %v1503
    %2812 = vmatpush.bf16.msra.mxu0 %v1497
    %2813 = vmatpush.bf16.msra.mxu0 %v1491
    %2814 = vmatmul.bf16.gmra.mxu0 %v2726
    %v2815 = vpop.f32.mrf.mxu0
    %v2816 = vadd.f32 %v747, %v2815
    %v2817 = vpop.f32.mrf.mxu0
    %2818 = vdwg.mxu0
    %2819 = vmatpush.bf16.msra.mxu0 %v1581
    %2820 = vmatpush.bf16.msra.mxu0 %v1575
    %2821 = vmatpush.bf16.msra.mxu0 %v1569
    %2822 = vmatpush.bf16.msra.mxu0 %v1563
    %2823 = vmatpush.bf16.msra.mxu0 %v1557
    %2824 = vmatpush.bf16.msra.mxu0 %v1551
    %2825 = vmatpush.bf16.msra.mxu0 %v1545
    %2826 = vmatpush.bf16.msra.mxu0 %v1539
    %2827 = vmatmul.bf16.gmra.mxu0 %v2727
    %v2828 = vpop.f32.mrf.mxu0
    %v2829 = vadd.f32 %v2816, %v2828
    %v2830 = vpop.f32.mrf.mxu0
    %2831 = vdwg.mxu0
    %2832 = vmatpush.bf16.msra.mxu0 %v1534
    %2833 = vmatpush.bf16.msra.mxu0 %v1528
    %2834 = vmatpush.bf16.msra.mxu0 %v1522
    %2835 = vmatpush.bf16.msra.mxu0 %v1516
    %2836 = vmatpush.bf16.msra.mxu0 %v1510
    %2837 = vmatpush.bf16.msra.mxu0 %v1504
    %2838 = vmatpush.bf16.msra.mxu0 %v1498
    %2839 = vmatpush.bf16.msra.mxu0 %v1492
    %2840 = vmatmul.bf16.gmra.mxu0 %v2726
    %v2841 = vpop.f32.mrf.mxu0
    %v2842 = vadd.f32 %v748, %v2841
    %v2843 = vpop.f32.mrf.mxu0
    %2844 = vdwg.mxu0
    %2845 = vmatpush.bf16.msra.mxu0 %v1582
    %2846 = vmatpush.bf16.msra.mxu0 %v1576
    %2847 = vmatpush.bf16.msra.mxu0 %v1570
    %2848 = vmatpush.bf16.msra.mxu0 %v1564
    %2849 = vmatpush.bf16.msra.mxu0 %v1558
    %2850 = vmatpush.bf16.msra.mxu0 %v1552
    %2851 = vmatpush.bf16.msra.mxu0 %v1546
    %2852 = vmatpush.bf16.msra.mxu0 %v1540
    %2853 = vmatmul.bf16.gmra.mxu0 %v2727
    %v2854 = vpop.f32.mrf.mxu0
    %v2855 = vadd.f32 %v2842, %v2854
    %v2856 = vpop.f32.mrf.mxu0
    %2857 = vdwg.mxu0
    %2858 = vmatpush.bf16.msra.mxu0 %v1535
    %2859 = vmatpush.bf16.msra.mxu0 %v1529
    %2860 = vmatpush.bf16.msra.mxu0 %v1523
    %2861 = vmatpush.bf16.msra.mxu0 %v1517
    %2862 = vmatpush.bf16.msra.mxu0 %v1511
    %2863 = vmatpush.bf16.msra.mxu0 %v1505
    %2864 = vmatpush.bf16.msra.mxu0 %v1499
    %2865 = vmatpush.bf16.msra.mxu0 %v1493
    %2866 = vmatmul.bf16.gmra.mxu0 %v2726
    %v2867 = vpop.f32.mrf.mxu0
    %v2868 = vadd.f32 %v749, %v2867
    %v2869 = vpop.f32.mrf.mxu0
    %2870 = vdwg.mxu0
    %2871 = vmatpush.bf16.msra.mxu0 %v1583
    %2872 = vmatpush.bf16.msra.mxu0 %v1577
    %2873 = vmatpush.bf16.msra.mxu0 %v1571
    %2874 = vmatpush.bf16.msra.mxu0 %v1565
    %2875 = vmatpush.bf16.msra.mxu0 %v1559
    %2876 = vmatpush.bf16.msra.mxu0 %v1553
    %2877 = vmatpush.bf16.msra.mxu0 %v1547
    %2878 = vmatpush.bf16.msra.mxu0 %v1541
    %2879 = vmatmul.bf16.gmra.mxu0 %v2727
    %v2880 = vpop.f32.mrf.mxu0
    %v2881 = vadd.f32 %v2868, %v2880
    %v2882 = vpop.f32.mrf.mxu0
    %2883 = vdwg.mxu0
    %v2884 = vld [vmem:[#allocation2 + $0xc0] sm:$0xff]
    %v2885 = vld [vmem:[#allocation2 + $0xc8] sm:$0xff]
    %v2886 = vld [vmem:[#allocation2 + $0xd0] sm:$0xff]
    %v2887 = vld [vmem:[#allocation2 + $0xa8] sm:$0xff]
    %v2888 = vld [vmem:[#allocation2 + $0xb0] sm:$0xff]
    %v2889 = vld [vmem:[#allocation2 + $0xb8] sm:$0xff]
    %v2890 = vadd.f32 %v2884, %v2751
    %v2891 = vxor.u32 %v2890, 2147483648
    %v2892 = vmul.f32 %v2891, 1.442695
    %v2893 = vpow.pop %v2892
    %v2894 = vadd.f32 %v2893, 1.0
    %v2895 = vrcp.pop %v2894
    %v2896 = vmul.f32 %v2894, %v2895
    %v2897 = vsub.f32 1.0, %v2896
    %v2898 = vmul.f32 %v2895, %v2897
    %v2899 = vadd.f32 %v2895, %v2898
    %vm2900 = vweird.f32 %v2894
    %vm2901 = vweird.f32 %v2895
    %vm2902 = vmor %vm2900, %vm2901
    %v2903 = vsel %vm2902, %v2895, %v2899
    %v2904 = vand.u32 2147483647, %v2894
    %vm2905 = vcmp.eq.f32.partialorder %v2904, 8.507059e+37
    %v2906 = vand.u32 %v2894, 2147483648
    %v2907 = vor.u32 1.1754944e-38, %v2906
    %v2908 = vsel %vm2905, %v2907, %v2903
    %v2909 = vmul.f32 1.0, %v2908
    %v2910 = vadd.f32 %v2885, %v2777
    %v2911 = vxor.u32 %v2910, 2147483648
    %v2912 = vmul.f32 %v2911, 1.442695
    %v2913 = vpow.pop %v2912
    %v2914 = vadd.f32 %v2913, 1.0
    %v2915 = vrcp.pop %v2914
    %v2916 = vmul.f32 %v2914, %v2915
    %v2917 = vsub.f32 1.0, %v2916
    %v2918 = vmul.f32 %v2915, %v2917
    %v2919 = vadd.f32 %v2915, %v2918
    %vm2920 = vweird.f32 %v2914
    %vm2921 = vweird.f32 %v2915
    %vm2922 = vmor %vm2920, %vm2921
    %v2923 = vsel %vm2922, %v2915, %v2919
    %v2924 = vand.u32 2147483647, %v2914
    %vm2925 = vcmp.eq.f32.partialorder %v2924, 8.507059e+37
    %v2926 = vand.u32 %v2914, 2147483648
    %v2927 = vor.u32 1.1754944e-38, %v2926
    %v2928 = vsel %vm2925, %v2927, %v2923
    %v2929 = vmul.f32 1.0, %v2928
    %v2930 = vmul.f32 %v2909, %v2803
    %v2931 = vadd.f32 %v2886, %v2930
    %v2932 = vtanh.pop %v2931
    %v2933 = vsub.f32 1.0, %v2929
    %v2934 = vmul.f32 %v2933, %v2932
    %v2935 = vmul.f32 %v2929, %v2675
    %v2936 = vadd.f32 %v2934, %v2935
    %v2937 = vsel %vm723, %v2936, %v2675
    %v2938 = vadd.f32 %v2887, %v2829
    %v2939 = vxor.u32 %v2938, 2147483648
    %v2940 = vmul.f32 %v2939, 1.442695
    %v2941 = vpow.pop %v2940
    %v2942 = vadd.f32 %v2941, 1.0
    %v2943 = vrcp.pop %v2942
    %v2944 = vmul.f32 %v2942, %v2943
    %v2945 = vsub.f32 1.0, %v2944
    %v2946 = vmul.f32 %v2943, %v2945
    %v2947 = vadd.f32 %v2943, %v2946
    %vm2948 = vweird.f32 %v2942
    %vm2949 = vweird.f32 %v2943
    %vm2950 = vmor %vm2948, %vm2949
    %v2951 = vsel %vm2950, %v2943, %v2947
    %v2952 = vand.u32 2147483647, %v2942
    %vm2953 = vcmp.eq.f32.partialorder %v2952, 8.507059e+37
    %v2954 = vand.u32 %v2942, 2147483648
    %v2955 = vor.u32 1.1754944e-38, %v2954
    %v2956 = vsel %vm2953, %v2955, %v2951
    %v2957 = vmul.f32 1.0, %v2956
    %v2958 = vadd.f32 %v2888, %v2855
    %v2959 = vxor.u32 %v2958, 2147483648
    %v2960 = vmul.f32 %v2959, 1.442695
    %v2961 = vpow.pop %v2960
    %v2962 = vadd.f32 %v2961, 1.0
    %v2963 = vrcp.pop %v2962
    %v2964 = vmul.f32 %v2962, %v2963
    %v2965 = vsub.f32 1.0, %v2964
    %v2966 = vmul.f32 %v2963, %v2965
    %v2967 = vadd.f32 %v2963, %v2966
    %vm2968 = vweird.f32 %v2962
    %vm2969 = vweird.f32 %v2963
    %vm2970 = vmor %vm2968, %vm2969
    %v2971 = vsel %vm2970, %v2963, %v2967
    %v2972 = vand.u32 2147483647, %v2962
    %vm2973 = vcmp.eq.f32.partialorder %v2972, 8.507059e+37
    %v2974 = vand.u32 %v2962, 2147483648
    %v2975 = vor.u32 1.1754944e-38, %v2974
    %v2976 = vsel %vm2973, %v2975, %v2971
    %v2977 = vmul.f32 1.0, %v2976
    %v2978 = vmul.f32 %v2957, %v2881
    %v2979 = vadd.f32 %v2889, %v2978
    %v2980 = vtanh.pop %v2979
    %v2981 = vsub.f32 1.0, %v2977
    %v2982 = vmul.f32 %v2981, %v2980
    %v2983 = vmul.f32 %v2977, %v2723
    %v2984 = vadd.f32 %v2982, %v2983
    %v2985 = vsel %vm717, %v2984, %v2723
    %2986 = vst [vmem:[#allocation3 + $0x40] sm:$0xff] %v2937
    %2987 = vst [vmem:[#allocation3 + $0x38] sm:$0xff] %v2985
    %v2988 = vpack.c.bf16 %v2937, %v2937
    %v2989 = vpack.c.bf16 %v2985, %v2985
    %2990 = vmatpush.bf16.msra.mxu0 %v1530
    %2991 = vmatpush.bf16.msra.mxu0 %v1524
    %2992 = vmatpush.bf16.msra.mxu0 %v1518
    %2993 = vmatpush.bf16.msra.mxu0 %v1512
    %2994 = vmatpush.bf16.msra.mxu0 %v1506
    %2995 = vmatpush.bf16.msra.mxu0 %v1500
    %2996 = vmatpush.bf16.msra.mxu0 %v1494
    %2997 = vmatpush.bf16.msra.mxu0 %v1488
    %2998 = vmatmul.bf16.gmra.mxu0 %v2988
    %v2999 = vpop.f32.mrf.mxu0
    %v3000 = vadd.f32 %v744, %v2999
    %v3001 = vpop.f32.mrf.mxu0
    %3002 = vdwg.mxu0
    %3003 = vmatpush.bf16.msra.mxu0 %v1578
    %3004 = vmatpush.bf16.msra.mxu0 %v1572
    %3005 = vmatpush.bf16.msra.mxu0 %v1566
    %3006 = vmatpush.bf16.msra.mxu0 %v1560
    %3007 = vmatpush.bf16.msra.mxu0 %v1554
    %3008 = vmatpush.bf16.msra.mxu0 %v1548
    %3009 = vmatpush.bf16.msra.mxu0 %v1542
    %3010 = vmatpush.bf16.msra.mxu0 %v1536
    %3011 = vmatmul.bf16.gmra.mxu0 %v2989
    %v3012 = vpop.f32.mrf.mxu0
    %v3013 = vadd.f32 %v3000, %v3012
    %v3014 = vpop.f32.mrf.mxu0
    %3015 = vdwg.mxu0
    %3016 = vmatpush.bf16.msra.mxu0 %v1531
    %3017 = vmatpush.bf16.msra.mxu0 %v1525
    %3018 = vmatpush.bf16.msra.mxu0 %v1519
    %3019 = vmatpush.bf16.msra.mxu0 %v1513
    %3020 = vmatpush.bf16.msra.mxu0 %v1507
    %3021 = vmatpush.bf16.msra.mxu0 %v1501
    %3022 = vmatpush.bf16.msra.mxu0 %v1495
    %3023 = vmatpush.bf16.msra.mxu0 %v1489
    %3024 = vmatmul.bf16.gmra.mxu0 %v2988
    %v3025 = vpop.f32.mrf.mxu0
    %v3026 = vadd.f32 %v745, %v3025
    %v3027 = vpop.f32.mrf.mxu0
    %3028 = vdwg.mxu0
    %3029 = vmatpush.bf16.msra.mxu0 %v1579
    %3030 = vmatpush.bf16.msra.mxu0 %v1573
    %3031 = vmatpush.bf16.msra.mxu0 %v1567
    %3032 = vmatpush.bf16.msra.mxu0 %v1561
    %3033 = vmatpush.bf16.msra.mxu0 %v1555
    %3034 = vmatpush.bf16.msra.mxu0 %v1549
    %3035 = vmatpush.bf16.msra.mxu0 %v1543
    %3036 = vmatpush.bf16.msra.mxu0 %v1537
    %3037 = vmatmul.bf16.gmra.mxu0 %v2989
    %v3038 = vpop.f32.mrf.mxu0
    %v3039 = vadd.f32 %v3026, %v3038
    %v3040 = vpop.f32.mrf.mxu0
    %3041 = vdwg.mxu0
    %3042 = vmatpush.bf16.msra.mxu0 %v1532
    %3043 = vmatpush.bf16.msra.mxu0 %v1526
    %3044 = vmatpush.bf16.msra.mxu0 %v1520
    %3045 = vmatpush.bf16.msra.mxu0 %v1514
    %3046 = vmatpush.bf16.msra.mxu0 %v1508
    %3047 = vmatpush.bf16.msra.mxu0 %v1502
    %3048 = vmatpush.bf16.msra.mxu0 %v1496
    %3049 = vmatpush.bf16.msra.mxu0 %v1490
    %3050 = vmatmul.bf16.gmra.mxu0 %v2988
    %v3051 = vpop.f32.mrf.mxu0
    %v3052 = vadd.f32 %v746, %v3051
    %v3053 = vpop.f32.mrf.mxu0
    %3054 = vdwg.mxu0
    %3055 = vmatpush.bf16.msra.mxu0 %v1580
    %3056 = vmatpush.bf16.msra.mxu0 %v1574
    %3057 = vmatpush.bf16.msra.mxu0 %v1568
    %3058 = vmatpush.bf16.msra.mxu0 %v1562
    %3059 = vmatpush.bf16.msra.mxu0 %v1556
    %3060 = vmatpush.bf16.msra.mxu0 %v1550
    %3061 = vmatpush.bf16.msra.mxu0 %v1544
    %3062 = vmatpush.bf16.msra.mxu0 %v1538
    %3063 = vmatmul.bf16.gmra.mxu0 %v2989
    %v3064 = vpop.f32.mrf.mxu0
    %v3065 = vadd.f32 %v3052, %v3064
    %v3066 = vpop.f32.mrf.mxu0
    %3067 = vdwg.mxu0
    %3068 = vmatpush.bf16.msra.mxu0 %v1533
    %3069 = vmatpush.bf16.msra.mxu0 %v1527
    %3070 = vmatpush.bf16.msra.mxu0 %v1521
    %3071 = vmatpush.bf16.msra.mxu0 %v1515
    %3072 = vmatpush.bf16.msra.mxu0 %v1509
    %3073 = vmatpush.bf16.msra.mxu0 %v1503
    %3074 = vmatpush.bf16.msra.mxu0 %v1497
    %3075 = vmatpush.bf16.msra.mxu0 %v1491
    %3076 = vmatmul.bf16.gmra.mxu0 %v2988
    %v3077 = vpop.f32.mrf.mxu0
    %v3078 = vadd.f32 %v747, %v3077
    %v3079 = vpop.f32.mrf.mxu0
    %3080 = vdwg.mxu0
    %3081 = vmatpush.bf16.msra.mxu0 %v1581
    %3082 = vmatpush.bf16.msra.mxu0 %v1575
    %3083 = vmatpush.bf16.msra.mxu0 %v1569
    %3084 = vmatpush.bf16.msra.mxu0 %v1563
    %3085 = vmatpush.bf16.msra.mxu0 %v1557
    %3086 = vmatpush.bf16.msra.mxu0 %v1551
    %3087 = vmatpush.bf16.msra.mxu0 %v1545
    %3088 = vmatpush.bf16.msra.mxu0 %v1539
    %3089 = vmatmul.bf16.gmra.mxu0 %v2989
    %v3090 = vpop.f32.mrf.mxu0
    %v3091 = vadd.f32 %v3078, %v3090
    %v3092 = vpop.f32.mrf.mxu0
    %3093 = vdwg.mxu0
    %3094 = vmatpush.bf16.msra.mxu0 %v1534
    %3095 = vmatpush.bf16.msra.mxu0 %v1528
    %3096 = vmatpush.bf16.msra.mxu0 %v1522
    %3097 = vmatpush.bf16.msra.mxu0 %v1516
    %3098 = vmatpush.bf16.msra.mxu0 %v1510
    %3099 = vmatpush.bf16.msra.mxu0 %v1504
    %3100 = vmatpush.bf16.msra.mxu0 %v1498
    %3101 = vmatpush.bf16.msra.mxu0 %v1492
    %3102 = vmatmul.bf16.gmra.mxu0 %v2988
    %v3103 = vpop.f32.mrf.mxu0
    %v3104 = vadd.f32 %v748, %v3103
    %v3105 = vpop.f32.mrf.mxu0
    %3106 = vdwg.mxu0
    %3107 = vmatpush.bf16.msra.mxu0 %v1582
    %3108 = vmatpush.bf16.msra.mxu0 %v1576
    %3109 = vmatpush.bf16.msra.mxu0 %v1570
    %3110 = vmatpush.bf16.msra.mxu0 %v1564
    %3111 = vmatpush.bf16.msra.mxu0 %v1558
    %3112 = vmatpush.bf16.msra.mxu0 %v1552
    %3113 = vmatpush.bf16.msra.mxu0 %v1546
    %3114 = vmatpush.bf16.msra.mxu0 %v1540
    %3115 = vmatmul.bf16.gmra.mxu0 %v2989
    %v3116 = vpop.f32.mrf.mxu0
    %v3117 = vadd.f32 %v3104, %v3116
    %v3118 = vpop.f32.mrf.mxu0
    %3119 = vdwg.mxu0
    %3120 = vmatpush.bf16.msra.mxu0 %v1535
    %3121 = vmatpush.bf16.msra.mxu0 %v1529
    %3122 = vmatpush.bf16.msra.mxu0 %v1523
    %3123 = vmatpush.bf16.msra.mxu0 %v1517
    %3124 = vmatpush.bf16.msra.mxu0 %v1511
    %3125 = vmatpush.bf16.msra.mxu0 %v1505
    %3126 = vmatpush.bf16.msra.mxu0 %v1499
    %3127 = vmatpush.bf16.msra.mxu0 %v1493
    %3128 = vmatmul.bf16.gmra.mxu0 %v2988
    %v3129 = vpop.f32.mrf.mxu0
    %v3130 = vadd.f32 %v749, %v3129
    %v3131 = vpop.f32.mrf.mxu0
    %3132 = vdwg.mxu0
    %3133 = vmatpush.bf16.msra.mxu0 %v1583
    %3134 = vmatpush.bf16.msra.mxu0 %v1577
    %3135 = vmatpush.bf16.msra.mxu0 %v1571
    %3136 = vmatpush.bf16.msra.mxu0 %v1565
    %3137 = vmatpush.bf16.msra.mxu0 %v1559
    %3138 = vmatpush.bf16.msra.mxu0 %v1553
    %3139 = vmatpush.bf16.msra.mxu0 %v1547
    %3140 = vmatpush.bf16.msra.mxu0 %v1541
    %3141 = vmatmul.bf16.gmra.mxu0 %v2989
    %v3142 = vpop.f32.mrf.mxu0
    %v3143 = vadd.f32 %v3130, %v3142
    %v3144 = vpop.f32.mrf.mxu0
    %3145 = vdwg.mxu0
    %v3146 = vld [vmem:[#allocation2 + $0xf0] sm:$0xff]
    %v3147 = vld [vmem:[#allocation2 + $0xf8] sm:$0xff]
    %v3148 = vld [vmem:[#allocation2 + $0x100] sm:$0xff]
    %v3149 = vld [vmem:[#allocation2 + $0x78] sm:$0xff]
    %v3150 = vld [vmem:[#allocation2 + $0x80] sm:$0xff]
    %v3151 = vld [vmem:[#allocation2 + $0x88] sm:$0xff]
    %v3152 = vadd.f32 %v3146, %v3013
    %v3153 = vxor.u32 %v3152, 2147483648
    %v3154 = vmul.f32 %v3153, 1.442695
    %v3155 = vpow.pop %v3154
    %v3156 = vadd.f32 %v3155, 1.0
    %v3157 = vrcp.pop %v3156
    %v3158 = vmul.f32 %v3156, %v3157
    %v3159 = vsub.f32 1.0, %v3158
    %v3160 = vmul.f32 %v3157, %v3159
    %v3161 = vadd.f32 %v3157, %v3160
    %vm3162 = vweird.f32 %v3156
    %vm3163 = vweird.f32 %v3157
    %vm3164 = vmor %vm3162, %vm3163
    %v3165 = vsel %vm3164, %v3157, %v3161
    %v3166 = vand.u32 2147483647, %v3156
    %vm3167 = vcmp.eq.f32.partialorder %v3166, 8.507059e+37
    %v3168 = vand.u32 %v3156, 2147483648
    %v3169 = vor.u32 1.1754944e-38, %v3168
    %v3170 = vsel %vm3167, %v3169, %v3165
    %v3171 = vmul.f32 1.0, %v3170
    %v3172 = vadd.f32 %v3147, %v3039
    %v3173 = vxor.u32 %v3172, 2147483648
    %v3174 = vmul.f32 %v3173, 1.442695
    %v3175 = vpow.pop %v3174
    %v3176 = vadd.f32 %v3175, 1.0
    %v3177 = vrcp.pop %v3176
    %v3178 = vmul.f32 %v3176, %v3177
    %v3179 = vsub.f32 1.0, %v3178
    %v3180 = vmul.f32 %v3177, %v3179
    %v3181 = vadd.f32 %v3177, %v3180
    %vm3182 = vweird.f32 %v3176
    %vm3183 = vweird.f32 %v3177
    %vm3184 = vmor %vm3182, %vm3183
    %v3185 = vsel %vm3184, %v3177, %v3181
    %v3186 = vand.u32 2147483647, %v3176
    %vm3187 = vcmp.eq.f32.partialorder %v3186, 8.507059e+37
    %v3188 = vand.u32 %v3176, 2147483648
    %v3189 = vor.u32 1.1754944e-38, %v3188
    %v3190 = vsel %vm3187, %v3189, %v3185
    %v3191 = vmul.f32 1.0, %v3190
    %v3192 = vmul.f32 %v3171, %v3065
    %v3193 = vadd.f32 %v3148, %v3192
    %v3194 = vtanh.pop %v3193
    %v3195 = vsub.f32 1.0, %v3191
    %v3196 = vmul.f32 %v3195, %v3194
    %v3197 = vmul.f32 %v3191, %v2937
    %v3198 = vadd.f32 %v3196, %v3197
    %v3199 = vsel %vm729, %v3198, %v2937
    %v3200 = vadd.f32 %v3149, %v3091
    %v3201 = vxor.u32 %v3200, 2147483648
    %v3202 = vmul.f32 %v3201, 1.442695
    %v3203 = vpow.pop %v3202
    %v3204 = vadd.f32 %v3203, 1.0
    %v3205 = vrcp.pop %v3204
    %v3206 = vmul.f32 %v3204, %v3205
    %v3207 = vsub.f32 1.0, %v3206
    %v3208 = vmul.f32 %v3205, %v3207
    %v3209 = vadd.f32 %v3205, %v3208
    %vm3210 = vweird.f32 %v3204
    %vm3211 = vweird.f32 %v3205
    %vm3212 = vmor %vm3210, %vm3211
    %v3213 = vsel %vm3212, %v3205, %v3209
    %v3214 = vand.u32 2147483647, %v3204
    %vm3215 = vcmp.eq.f32.partialorder %v3214, 8.507059e+37
    %v3216 = vand.u32 %v3204, 2147483648
    %v3217 = vor.u32 1.1754944e-38, %v3216
    %v3218 = vsel %vm3215, %v3217, %v3213
    %v3219 = vmul.f32 1.0, %v3218
    %v3220 = vadd.f32 %v3150, %v3117
    %v3221 = vxor.u32 %v3220, 2147483648
    %v3222 = vmul.f32 %v3221, 1.442695
    %v3223 = vpow.pop %v3222
    %v3224 = vadd.f32 %v3223, 1.0
    %v3225 = vrcp.pop %v3224
    %v3226 = vmul.f32 %v3224, %v3225
    %v3227 = vsub.f32 1.0, %v3226
    %v3228 = vmul.f32 %v3225, %v3227
    %v3229 = vadd.f32 %v3225, %v3228
    %vm3230 = vweird.f32 %v3224
    %vm3231 = vweird.f32 %v3225
    %vm3232 = vmor %vm3230, %vm3231
    %v3233 = vsel %vm3232, %v3225, %v3229
    %v3234 = vand.u32 2147483647, %v3224
    %vm3235 = vcmp.eq.f32.partialorder %v3234, 8.507059e+37
    %v3236 = vand.u32 %v3224, 2147483648
    %v3237 = vor.u32 1.1754944e-38, %v3236
    %v3238 = vsel %vm3235, %v3237, %v3233
    %v3239 = vmul.f32 1.0, %v3238
    %v3240 = vmul.f32 %v3219, %v3143
    %v3241 = vadd.f32 %v3151, %v3240
    %v3242 = vtanh.pop %v3241
    %v3243 = vsub.f32 1.0, %v3239
    %v3244 = vmul.f32 %v3243, %v3242
    %v3245 = vmul.f32 %v3239, %v2985
    %v3246 = vadd.f32 %v3244, %v3245
    %v3247 = vsel %vm711, %v3246, %v2985
    %3248 = vst [vmem:[#allocation3 + $0x50] sm:$0xff] %v3199
    %3249 = vst [vmem:[#allocation3 + $0x28] sm:$0xff] %v3247
    %v3250 = vpack.c.bf16 %v3199, %v3199
    %v3251 = vpack.c.bf16 %v3247, %v3247
    %3252 = vmatpush.bf16.msra.mxu0 %v1530
    %3253 = vmatpush.bf16.msra.mxu0 %v1524
    %3254 = vmatpush.bf16.msra.mxu0 %v1518
    %3255 = vmatpush.bf16.msra.mxu0 %v1512
    %3256 = vmatpush.bf16.msra.mxu0 %v1506
    %3257 = vmatpush.bf16.msra.mxu0 %v1500
    %3258 = vmatpush.bf16.msra.mxu0 %v1494
    %3259 = vmatpush.bf16.msra.mxu0 %v1488
    %3260 = vmatmul.bf16.gmra.mxu0 %v3250
    %v3261 = vpop.f32.mrf.mxu0
    %v3262 = vadd.f32 %v744, %v3261
    %v3263 = vpop.f32.mrf.mxu0
    %3264 = vdwg.mxu0
    %3265 = vmatpush.bf16.msra.mxu0 %v1578
    %3266 = vmatpush.bf16.msra.mxu0 %v1572
    %3267 = vmatpush.bf16.msra.mxu0 %v1566
    %3268 = vmatpush.bf16.msra.mxu0 %v1560
    %3269 = vmatpush.bf16.msra.mxu0 %v1554
    %3270 = vmatpush.bf16.msra.mxu0 %v1548
    %3271 = vmatpush.bf16.msra.mxu0 %v1542
    %3272 = vmatpush.bf16.msra.mxu0 %v1536
    %3273 = vmatmul.bf16.gmra.mxu0 %v3251
    %v3274 = vpop.f32.mrf.mxu0
    %v3275 = vadd.f32 %v3262, %v3274
    %v3276 = vpop.f32.mrf.mxu0
    %3277 = vdwg.mxu0
    %3278 = vmatpush.bf16.msra.mxu0 %v1531
    %3279 = vmatpush.bf16.msra.mxu0 %v1525
    %3280 = vmatpush.bf16.msra.mxu0 %v1519
    %3281 = vmatpush.bf16.msra.mxu0 %v1513
    %3282 = vmatpush.bf16.msra.mxu0 %v1507
    %3283 = vmatpush.bf16.msra.mxu0 %v1501
    %3284 = vmatpush.bf16.msra.mxu0 %v1495
    %3285 = vmatpush.bf16.msra.mxu0 %v1489
    %3286 = vmatmul.bf16.gmra.mxu0 %v3250
    %v3287 = vpop.f32.mrf.mxu0
    %v3288 = vadd.f32 %v745, %v3287
    %v3289 = vpop.f32.mrf.mxu0
    %3290 = vdwg.mxu0
    %3291 = vmatpush.bf16.msra.mxu0 %v1579
    %3292 = vmatpush.bf16.msra.mxu0 %v1573
    %3293 = vmatpush.bf16.msra.mxu0 %v1567
    %3294 = vmatpush.bf16.msra.mxu0 %v1561
    %3295 = vmatpush.bf16.msra.mxu0 %v1555
    %3296 = vmatpush.bf16.msra.mxu0 %v1549
    %3297 = vmatpush.bf16.msra.mxu0 %v1543
    %3298 = vmatpush.bf16.msra.mxu0 %v1537
    %3299 = vmatmul.bf16.gmra.mxu0 %v3251
    %v3300 = vpop.f32.mrf.mxu0
    %v3301 = vadd.f32 %v3288, %v3300
    %v3302 = vpop.f32.mrf.mxu0
    %3303 = vdwg.mxu0
    %3304 = vmatpush.bf16.msra.mxu0 %v1532
    %3305 = vmatpush.bf16.msra.mxu0 %v1526
    %3306 = vmatpush.bf16.msra.mxu0 %v1520
    %3307 = vmatpush.bf16.msra.mxu0 %v1514
    %3308 = vmatpush.bf16.msra.mxu0 %v1508
    %3309 = vmatpush.bf16.msra.mxu0 %v1502
    %3310 = vmatpush.bf16.msra.mxu0 %v1496
    %3311 = vmatpush.bf16.msra.mxu0 %v1490
    %3312 = vmatmul.bf16.gmra.mxu0 %v3250
    %v3313 = vpop.f32.mrf.mxu0
    %v3314 = vadd.f32 %v746, %v3313
    %v3315 = vpop.f32.mrf.mxu0
    %3316 = vdwg.mxu0
    %3317 = vmatpush.bf16.msra.mxu0 %v1580
    %3318 = vmatpush.bf16.msra.mxu0 %v1574
    %3319 = vmatpush.bf16.msra.mxu0 %v1568
    %3320 = vmatpush.bf16.msra.mxu0 %v1562
    %3321 = vmatpush.bf16.msra.mxu0 %v1556
    %3322 = vmatpush.bf16.msra.mxu0 %v1550
    %3323 = vmatpush.bf16.msra.mxu0 %v1544
    %3324 = vmatpush.bf16.msra.mxu0 %v1538
    %3325 = vmatmul.bf16.gmra.mxu0 %v3251
    %v3326 = vpop.f32.mrf.mxu0
    %v3327 = vadd.f32 %v3314, %v3326
    %v3328 = vpop.f32.mrf.mxu0
    %3329 = vdwg.mxu0
    %3330 = vmatpush.bf16.msra.mxu0 %v1533
    %3331 = vmatpush.bf16.msra.mxu0 %v1527
    %3332 = vmatpush.bf16.msra.mxu0 %v1521
    %3333 = vmatpush.bf16.msra.mxu0 %v1515
    %3334 = vmatpush.bf16.msra.mxu0 %v1509
    %3335 = vmatpush.bf16.msra.mxu0 %v1503
    %3336 = vmatpush.bf16.msra.mxu0 %v1497
    %3337 = vmatpush.bf16.msra.mxu0 %v1491
    %3338 = vmatmul.bf16.gmra.mxu0 %v3250
    %v3339 = vpop.f32.mrf.mxu0
    %v3340 = vadd.f32 %v747, %v3339
    %v3341 = vpop.f32.mrf.mxu0
    %3342 = vdwg.mxu0
    %3343 = vmatpush.bf16.msra.mxu0 %v1581
    %3344 = vmatpush.bf16.msra.mxu0 %v1575
    %3345 = vmatpush.bf16.msra.mxu0 %v1569
    %3346 = vmatpush.bf16.msra.mxu0 %v1563
    %3347 = vmatpush.bf16.msra.mxu0 %v1557
    %3348 = vmatpush.bf16.msra.mxu0 %v1551
    %3349 = vmatpush.bf16.msra.mxu0 %v1545
    %3350 = vmatpush.bf16.msra.mxu0 %v1539
    %3351 = vmatmul.bf16.gmra.mxu0 %v3251
    %v3352 = vpop.f32.mrf.mxu0
    %v3353 = vadd.f32 %v3340, %v3352
    %v3354 = vpop.f32.mrf.mxu0
    %3355 = vdwg.mxu0
    %3356 = vmatpush.bf16.msra.mxu0 %v1534
    %3357 = vmatpush.bf16.msra.mxu0 %v1528
    %3358 = vmatpush.bf16.msra.mxu0 %v1522
    %3359 = vmatpush.bf16.msra.mxu0 %v1516
    %3360 = vmatpush.bf16.msra.mxu0 %v1510
    %3361 = vmatpush.bf16.msra.mxu0 %v1504
    %3362 = vmatpush.bf16.msra.mxu0 %v1498
    %3363 = vmatpush.bf16.msra.mxu0 %v1492
    %3364 = vmatmul.bf16.gmra.mxu0 %v3250
    %v3365 = vpop.f32.mrf.mxu0
    %v3366 = vadd.f32 %v748, %v3365
    %v3367 = vpop.f32.mrf.mxu0
    %3368 = vdwg.mxu0
    %3369 = vmatpush.bf16.msra.mxu0 %v1582
    %3370 = vmatpush.bf16.msra.mxu0 %v1576
    %3371 = vmatpush.bf16.msra.mxu0 %v1570
    %3372 = vmatpush.bf16.msra.mxu0 %v1564
    %3373 = vmatpush.bf16.msra.mxu0 %v1558
    %3374 = vmatpush.bf16.msra.mxu0 %v1552
    %3375 = vmatpush.bf16.msra.mxu0 %v1546
    %3376 = vmatpush.bf16.msra.mxu0 %v1540
    %3377 = vmatmul.bf16.gmra.mxu0 %v3251
    %v3378 = vpop.f32.mrf.mxu0
    %v3379 = vadd.f32 %v3366, %v3378
    %v3380 = vpop.f32.mrf.mxu0
    %3381 = vdwg.mxu0
    %3382 = vmatpush.bf16.msra.mxu0 %v1535
    %3383 = vmatpush.bf16.msra.mxu0 %v1529
    %3384 = vmatpush.bf16.msra.mxu0 %v1523
    %3385 = vmatpush.bf16.msra.mxu0 %v1517
    %3386 = vmatpush.bf16.msra.mxu0 %v1511
    %3387 = vmatpush.bf16.msra.mxu0 %v1505
    %3388 = vmatpush.bf16.msra.mxu0 %v1499
    %3389 = vmatpush.bf16.msra.mxu0 %v1493
    %3390 = vmatmul.bf16.gmra.mxu0 %v3250
    %v3391 = vpop.f32.mrf.mxu0
    %v3392 = vadd.f32 %v749, %v3391
    %v3393 = vpop.f32.mrf.mxu0
    %3394 = vdwg.mxu0
    %3395 = vmatpush.bf16.msra.mxu0 %v1583
    %3396 = vmatpush.bf16.msra.mxu0 %v1577
    %3397 = vmatpush.bf16.msra.mxu0 %v1571
    %3398 = vmatpush.bf16.msra.mxu0 %v1565
    %3399 = vmatpush.bf16.msra.mxu0 %v1559
    %3400 = vmatpush.bf16.msra.mxu0 %v1553
    %3401 = vmatpush.bf16.msra.mxu0 %v1547
    %3402 = vmatpush.bf16.msra.mxu0 %v1541
    %3403 = vmatmul.bf16.gmra.mxu0 %v3251
    %v3404 = vpop.f32.mrf.mxu0
    %v3405 = vadd.f32 %v3392, %v3404
    %v3406 = vpop.f32.mrf.mxu0
    %3407 = vdwg.mxu0
    %v3408 = vld [vmem:[#allocation2 + $0x120] sm:$0xff]
    %v3409 = vld [vmem:[#allocation2 + $0x128] sm:$0xff]
    %v3410 = vld [vmem:[#allocation2 + $0x130] sm:$0xff]
    %v3411 = vld [vmem:[#allocation2 + $0x48] sm:$0xff]
    %v3412 = vld [vmem:[#allocation2 + $0x50] sm:$0xff]
    %v3413 = vld [vmem:[#allocation2 + $0x58] sm:$0xff]
    %v3414 = vadd.f32 %v3408, %v3275
    %v3415 = vxor.u32 %v3414, 2147483648
    %v3416 = vmul.f32 %v3415, 1.442695
    %v3417 = vpow.pop %v3416
    %v3418 = vadd.f32 %v3417, 1.0
    %v3419 = vrcp.pop %v3418
    %v3420 = vmul.f32 %v3418, %v3419
    %v3421 = vsub.f32 1.0, %v3420
    %v3422 = vmul.f32 %v3419, %v3421
    %v3423 = vadd.f32 %v3419, %v3422
    %vm3424 = vweird.f32 %v3418
    %vm3425 = vweird.f32 %v3419
    %vm3426 = vmor %vm3424, %vm3425
    %v3427 = vsel %vm3426, %v3419, %v3423
    %v3428 = vand.u32 2147483647, %v3418
    %vm3429 = vcmp.eq.f32.partialorder %v3428, 8.507059e+37
    %v3430 = vand.u32 %v3418, 2147483648
    %v3431 = vor.u32 1.1754944e-38, %v3430
    %v3432 = vsel %vm3429, %v3431, %v3427
    %v3433 = vmul.f32 1.0, %v3432
    %v3434 = vadd.f32 %v3409, %v3301
    %v3435 = vxor.u32 %v3434, 2147483648
    %v3436 = vmul.f32 %v3435, 1.442695
    %v3437 = vpow.pop %v3436
    %v3438 = vadd.f32 %v3437, 1.0
    %v3439 = vrcp.pop %v3438
    %v3440 = vmul.f32 %v3438, %v3439
    %v3441 = vsub.f32 1.0, %v3440
    %v3442 = vmul.f32 %v3439, %v3441
    %v3443 = vadd.f32 %v3439, %v3442
    %vm3444 = vweird.f32 %v3438
    %vm3445 = vweird.f32 %v3439
    %vm3446 = vmor %vm3444, %vm3445
    %v3447 = vsel %vm3446, %v3439, %v3443
    %v3448 = vand.u32 2147483647, %v3438
    %vm3449 = vcmp.eq.f32.partialorder %v3448, 8.507059e+37
    %v3450 = vand.u32 %v3438, 2147483648
    %v3451 = vor.u32 1.1754944e-38, %v3450
    %v3452 = vsel %vm3449, %v3451, %v3447
    %v3453 = vmul.f32 1.0, %v3452
    %v3454 = vmul.f32 %v3433, %v3327
    %v3455 = vadd.f32 %v3410, %v3454
    %v3456 = vtanh.pop %v3455
    %v3457 = vsub.f32 1.0, %v3453
    %v3458 = vmul.f32 %v3457, %v3456
    %v3459 = vmul.f32 %v3453, %v3199
    %v3460 = vadd.f32 %v3458, %v3459
    %v3461 = vsel %vm735, %v3460, %v3199
    %v3462 = vadd.f32 %v3411, %v3353
    %v3463 = vxor.u32 %v3462, 2147483648
    %v3464 = vmul.f32 %v3463, 1.442695
    %v3465 = vpow.pop %v3464
    %v3466 = vadd.f32 %v3465, 1.0
    %v3467 = vrcp.pop %v3466
    %v3468 = vmul.f32 %v3466, %v3467
    %v3469 = vsub.f32 1.0, %v3468
    %v3470 = vmul.f32 %v3467, %v3469
    %v3471 = vadd.f32 %v3467, %v3470
    %vm3472 = vweird.f32 %v3466
    %vm3473 = vweird.f32 %v3467
    %vm3474 = vmor %vm3472, %vm3473
    %v3475 = vsel %vm3474, %v3467, %v3471
    %v3476 = vand.u32 2147483647, %v3466
    %vm3477 = vcmp.eq.f32.partialorder %v3476, 8.507059e+37
    %v3478 = vand.u32 %v3466, 2147483648
    %v3479 = vor.u32 1.1754944e-38, %v3478
    %v3480 = vsel %vm3477, %v3479, %v3475
    %v3481 = vmul.f32 1.0, %v3480
    %v3482 = vadd.f32 %v3412, %v3379
    %v3483 = vxor.u32 %v3482, 2147483648
    %v3484 = vmul.f32 %v3483, 1.442695
    %v3485 = vpow.pop %v3484
    %v3486 = vadd.f32 %v3485, 1.0
    %v3487 = vrcp.pop %v3486
    %v3488 = vmul.f32 %v3486, %v3487
    %v3489 = vsub.f32 1.0, %v3488
    %v3490 = vmul.f32 %v3487, %v3489
    %v3491 = vadd.f32 %v3487, %v3490
    %vm3492 = vweird.f32 %v3486
    %vm3493 = vweird.f32 %v3487
    %vm3494 = vmor %vm3492, %vm3493
    %v3495 = vsel %vm3494, %v3487, %v3491
    %v3496 = vand.u32 2147483647, %v3486
    %vm3497 = vcmp.eq.f32.partialorder %v3496, 8.507059e+37
    %v3498 = vand.u32 %v3486, 2147483648
    %v3499 = vor.u32 1.1754944e-38, %v3498
    %v3500 = vsel %vm3497, %v3499, %v3495
    %v3501 = vmul.f32 1.0, %v3500
    %v3502 = vmul.f32 %v3481, %v3405
    %v3503 = vadd.f32 %v3413, %v3502
    %v3504 = vtanh.pop %v3503
    %v3505 = vsub.f32 1.0, %v3501
    %v3506 = vmul.f32 %v3505, %v3504
    %v3507 = vmul.f32 %v3501, %v3247
    %v3508 = vadd.f32 %v3506, %v3507
    %v3509 = vsel %vm705, %v3508, %v3247
    %3510 = vst [vmem:[#allocation3 + $0x60] sm:$0xff] %v3461
    %3511 = vst [vmem:[#allocation3 + $0x18] sm:$0xff] %v3509
    %v3512 = vpack.c.bf16 %v3461, %v3461
    %v3513 = vpack.c.bf16 %v3509, %v3509
    %3514 = vmatpush.bf16.msra.mxu0 %v1530
    %3515 = vmatpush.bf16.msra.mxu0 %v1524
    %3516 = vmatpush.bf16.msra.mxu0 %v1518
    %3517 = vmatpush.bf16.msra.mxu0 %v1512
    %3518 = vmatpush.bf16.msra.mxu0 %v1506
    %3519 = vmatpush.bf16.msra.mxu0 %v1500
    %3520 = vmatpush.bf16.msra.mxu0 %v1494
    %3521 = vmatpush.bf16.msra.mxu0 %v1488
    %3522 = vmatmul.bf16.gmra.mxu0 %v3512
    %v3523 = vpop.f32.mrf.mxu0
    %v3524 = vadd.f32 %v744, %v3523
    %v3525 = vpop.f32.mrf.mxu0
    %3526 = vdwg.mxu0
    %3527 = vmatpush.bf16.msra.mxu0 %v1578
    %3528 = vmatpush.bf16.msra.mxu0 %v1572
    %3529 = vmatpush.bf16.msra.mxu0 %v1566
    %3530 = vmatpush.bf16.msra.mxu0 %v1560
    %3531 = vmatpush.bf16.msra.mxu0 %v1554
    %3532 = vmatpush.bf16.msra.mxu0 %v1548
    %3533 = vmatpush.bf16.msra.mxu0 %v1542
    %3534 = vmatpush.bf16.msra.mxu0 %v1536
    %3535 = vmatmul.bf16.gmra.mxu0 %v3513
    %v3536 = vpop.f32.mrf.mxu0
    %v3537 = vadd.f32 %v3524, %v3536
    %v3538 = vpop.f32.mrf.mxu0
    %3539 = vdwg.mxu0
    %3540 = vmatpush.bf16.msra.mxu0 %v1531
    %3541 = vmatpush.bf16.msra.mxu0 %v1525
    %3542 = vmatpush.bf16.msra.mxu0 %v1519
    %3543 = vmatpush.bf16.msra.mxu0 %v1513
    %3544 = vmatpush.bf16.msra.mxu0 %v1507
    %3545 = vmatpush.bf16.msra.mxu0 %v1501
    %3546 = vmatpush.bf16.msra.mxu0 %v1495
    %3547 = vmatpush.bf16.msra.mxu0 %v1489
    %3548 = vmatmul.bf16.gmra.mxu0 %v3512
    %v3549 = vpop.f32.mrf.mxu0
    %v3550 = vadd.f32 %v745, %v3549
    %v3551 = vpop.f32.mrf.mxu0
    %3552 = vdwg.mxu0
    %3553 = vmatpush.bf16.msra.mxu0 %v1579
    %3554 = vmatpush.bf16.msra.mxu0 %v1573
    %3555 = vmatpush.bf16.msra.mxu0 %v1567
    %3556 = vmatpush.bf16.msra.mxu0 %v1561
    %3557 = vmatpush.bf16.msra.mxu0 %v1555
    %3558 = vmatpush.bf16.msra.mxu0 %v1549
    %3559 = vmatpush.bf16.msra.mxu0 %v1543
    %3560 = vmatpush.bf16.msra.mxu0 %v1537
    %3561 = vmatmul.bf16.gmra.mxu0 %v3513
    %v3562 = vpop.f32.mrf.mxu0
    %v3563 = vadd.f32 %v3550, %v3562
    %v3564 = vpop.f32.mrf.mxu0
    %3565 = vdwg.mxu0
    %3566 = vmatpush.bf16.msra.mxu0 %v1532
    %3567 = vmatpush.bf16.msra.mxu0 %v1526
    %3568 = vmatpush.bf16.msra.mxu0 %v1520
    %3569 = vmatpush.bf16.msra.mxu0 %v1514
    %3570 = vmatpush.bf16.msra.mxu0 %v1508
    %3571 = vmatpush.bf16.msra.mxu0 %v1502
    %3572 = vmatpush.bf16.msra.mxu0 %v1496
    %3573 = vmatpush.bf16.msra.mxu0 %v1490
    %3574 = vmatmul.bf16.gmra.mxu0 %v3512
    %v3575 = vpop.f32.mrf.mxu0
    %v3576 = vadd.f32 %v746, %v3575
    %v3577 = vpop.f32.mrf.mxu0
    %3578 = vdwg.mxu0
    %3579 = vmatpush.bf16.msra.mxu0 %v1580
    %3580 = vmatpush.bf16.msra.mxu0 %v1574
    %3581 = vmatpush.bf16.msra.mxu0 %v1568
    %3582 = vmatpush.bf16.msra.mxu0 %v1562
    %3583 = vmatpush.bf16.msra.mxu0 %v1556
    %3584 = vmatpush.bf16.msra.mxu0 %v1550
    %3585 = vmatpush.bf16.msra.mxu0 %v1544
    %3586 = vmatpush.bf16.msra.mxu0 %v1538
    %3587 = vmatmul.bf16.gmra.mxu0 %v3513
    %v3588 = vpop.f32.mrf.mxu0
    %v3589 = vadd.f32 %v3576, %v3588
    %v3590 = vpop.f32.mrf.mxu0
    %3591 = vdwg.mxu0
    %3592 = vmatpush.bf16.msra.mxu0 %v1533
    %3593 = vmatpush.bf16.msra.mxu0 %v1527
    %3594 = vmatpush.bf16.msra.mxu0 %v1521
    %3595 = vmatpush.bf16.msra.mxu0 %v1515
    %3596 = vmatpush.bf16.msra.mxu0 %v1509
    %3597 = vmatpush.bf16.msra.mxu0 %v1503
    %3598 = vmatpush.bf16.msra.mxu0 %v1497
    %3599 = vmatpush.bf16.msra.mxu0 %v1491
    %3600 = vmatmul.bf16.gmra.mxu0 %v3512
    %v3601 = vpop.f32.mrf.mxu0
    %v3602 = vadd.f32 %v747, %v3601
    %v3603 = vpop.f32.mrf.mxu0
    %3604 = vdwg.mxu0
    %3605 = vmatpush.bf16.msra.mxu0 %v1581
    %3606 = vmatpush.bf16.msra.mxu0 %v1575
    %3607 = vmatpush.bf16.msra.mxu0 %v1569
    %3608 = vmatpush.bf16.msra.mxu0 %v1563
    %3609 = vmatpush.bf16.msra.mxu0 %v1557
    %3610 = vmatpush.bf16.msra.mxu0 %v1551
    %3611 = vmatpush.bf16.msra.mxu0 %v1545
    %3612 = vmatpush.bf16.msra.mxu0 %v1539
    %3613 = vmatmul.bf16.gmra.mxu0 %v3513
    %v3614 = vpop.f32.mrf.mxu0
    %v3615 = vadd.f32 %v3602, %v3614
    %v3616 = vpop.f32.mrf.mxu0
    %3617 = vdwg.mxu0
    %3618 = vmatpush.bf16.msra.mxu0 %v1534
    %3619 = vmatpush.bf16.msra.mxu0 %v1528
    %3620 = vmatpush.bf16.msra.mxu0 %v1522
    %3621 = vmatpush.bf16.msra.mxu0 %v1516
    %3622 = vmatpush.bf16.msra.mxu0 %v1510
    %3623 = vmatpush.bf16.msra.mxu0 %v1504
    %3624 = vmatpush.bf16.msra.mxu0 %v1498
    %3625 = vmatpush.bf16.msra.mxu0 %v1492
    %3626 = vmatmul.bf16.gmra.mxu0 %v3512
    %v3627 = vpop.f32.mrf.mxu0
    %v3628 = vadd.f32 %v748, %v3627
    %v3629 = vpop.f32.mrf.mxu0
    %3630 = vdwg.mxu0
    %3631 = vmatpush.bf16.msra.mxu0 %v1582
    %3632 = vmatpush.bf16.msra.mxu0 %v1576
    %3633 = vmatpush.bf16.msra.mxu0 %v1570
    %3634 = vmatpush.bf16.msra.mxu0 %v1564
    %3635 = vmatpush.bf16.msra.mxu0 %v1558
    %3636 = vmatpush.bf16.msra.mxu0 %v1552
    %3637 = vmatpush.bf16.msra.mxu0 %v1546
    %3638 = vmatpush.bf16.msra.mxu0 %v1540
    %3639 = vmatmul.bf16.gmra.mxu0 %v3513
    %v3640 = vpop.f32.mrf.mxu0
    %v3641 = vadd.f32 %v3628, %v3640
    %v3642 = vpop.f32.mrf.mxu0
    %3643 = vdwg.mxu0
    %3644 = vmatpush.bf16.msra.mxu0 %v1535
    %3645 = vmatpush.bf16.msra.mxu0 %v1529
    %3646 = vmatpush.bf16.msra.mxu0 %v1523
    %3647 = vmatpush.bf16.msra.mxu0 %v1517
    %3648 = vmatpush.bf16.msra.mxu0 %v1511
    %3649 = vmatpush.bf16.msra.mxu0 %v1505
    %3650 = vmatpush.bf16.msra.mxu0 %v1499
    %3651 = vmatpush.bf16.msra.mxu0 %v1493
    %3652 = vmatmul.bf16.gmra.mxu0 %v3512
    %v3653 = vpop.f32.mrf.mxu0
    %v3654 = vadd.f32 %v749, %v3653
    %v3655 = vpop.f32.mrf.mxu0
    %3656 = vdwg.mxu0
    %3657 = vmatpush.bf16.msra.mxu0 %v1583
    %3658 = vmatpush.bf16.msra.mxu0 %v1577
    %3659 = vmatpush.bf16.msra.mxu0 %v1571
    %3660 = vmatpush.bf16.msra.mxu0 %v1565
    %3661 = vmatpush.bf16.msra.mxu0 %v1559
    %3662 = vmatpush.bf16.msra.mxu0 %v1553
    %3663 = vmatpush.bf16.msra.mxu0 %v1547
    %3664 = vmatpush.bf16.msra.mxu0 %v1541
    %3665 = vmatmul.bf16.gmra.mxu0 %v3513
    %v3666 = vpop.f32.mrf.mxu0
    %v3667 = vadd.f32 %v3654, %v3666
    %v3668 = vpop.f32.mrf.mxu0
    %3669 = vdwg.mxu0
    %v3670 = vld [vmem:[#allocation2 + $0x150] sm:$0xff]
    %v3671 = vld [vmem:[#allocation2 + $0x158] sm:$0xff]
    %v3672 = vld [vmem:[#allocation2 + $0x160] sm:$0xff]
    %v3673 = vld [vmem:[#allocation2 + $0x18] sm:$0xff]
    %v3674 = vld [vmem:[#allocation2 + $0x20] sm:$0xff]
    %v3675 = vld [vmem:[#allocation2 + $0x28] sm:$0xff]
    %v3676 = vadd.f32 %v3670, %v3537
    %v3677 = vxor.u32 %v3676, 2147483648
    %v3678 = vmul.f32 %v3677, 1.442695
    %v3679 = vpow.pop %v3678
    %v3680 = vadd.f32 %v3679, 1.0
    %v3681 = vrcp.pop %v3680
    %v3682 = vmul.f32 %v3680, %v3681
    %v3683 = vsub.f32 1.0, %v3682
    %v3684 = vmul.f32 %v3681, %v3683
    %v3685 = vadd.f32 %v3681, %v3684
    %vm3686 = vweird.f32 %v3680
    %vm3687 = vweird.f32 %v3681
    %vm3688 = vmor %vm3686, %vm3687
    %v3689 = vsel %vm3688, %v3681, %v3685
    %v3690 = vand.u32 2147483647, %v3680
    %vm3691 = vcmp.eq.f32.partialorder %v3690, 8.507059e+37
    %v3692 = vand.u32 %v3680, 2147483648
    %v3693 = vor.u32 1.1754944e-38, %v3692
    %v3694 = vsel %vm3691, %v3693, %v3689
    %v3695 = vmul.f32 1.0, %v3694
    %v3696 = vadd.f32 %v3671, %v3563
    %v3697 = vxor.u32 %v3696, 2147483648
    %v3698 = vmul.f32 %v3697, 1.442695
    %v3699 = vpow.pop %v3698
    %v3700 = vadd.f32 %v3699, 1.0
    %v3701 = vrcp.pop %v3700
    %v3702 = vmul.f32 %v3700, %v3701
    %v3703 = vsub.f32 1.0, %v3702
    %v3704 = vmul.f32 %v3701, %v3703
    %v3705 = vadd.f32 %v3701, %v3704
    %vm3706 = vweird.f32 %v3700
    %vm3707 = vweird.f32 %v3701
    %vm3708 = vmor %vm3706, %vm3707
    %v3709 = vsel %vm3708, %v3701, %v3705
    %v3710 = vand.u32 2147483647, %v3700
    %vm3711 = vcmp.eq.f32.partialorder %v3710, 8.507059e+37
    %v3712 = vand.u32 %v3700, 2147483648
    %v3713 = vor.u32 1.1754944e-38, %v3712
    %v3714 = vsel %vm3711, %v3713, %v3709
    %v3715 = vmul.f32 1.0, %v3714
    %v3716 = vmul.f32 %v3695, %v3589
    %v3717 = vadd.f32 %v3672, %v3716
    %v3718 = vtanh.pop %v3717
    %v3719 = vsub.f32 1.0, %v3715
    %v3720 = vmul.f32 %v3719, %v3718
    %v3721 = vmul.f32 %v3715, %v3461
    %v3722 = vadd.f32 %v3720, %v3721
    %v3723 = vsel %vm741, %v3722, %v3461
    %v3724 = vadd.f32 %v3673, %v3615
    %v3725 = vxor.u32 %v3724, 2147483648
    %v3726 = vmul.f32 %v3725, 1.442695
    %v3727 = vpow.pop %v3726
    %v3728 = vadd.f32 %v3727, 1.0
    %v3729 = vrcp.pop %v3728
    %v3730 = vmul.f32 %v3728, %v3729
    %v3731 = vsub.f32 1.0, %v3730
    %v3732 = vmul.f32 %v3729, %v3731
    %v3733 = vadd.f32 %v3729, %v3732
    %vm3734 = vweird.f32 %v3728
    %vm3735 = vweird.f32 %v3729
    %vm3736 = vmor %vm3734, %vm3735
    %v3737 = vsel %vm3736, %v3729, %v3733
    %v3738 = vand.u32 2147483647, %v3728
    %vm3739 = vcmp.eq.f32.partialorder %v3738, 8.507059e+37
    %v3740 = vand.u32 %v3728, 2147483648
    %v3741 = vor.u32 1.1754944e-38, %v3740
    %v3742 = vsel %vm3739, %v3741, %v3737
    %v3743 = vmul.f32 1.0, %v3742
    %v3744 = vadd.f32 %v3674, %v3641
    %v3745 = vxor.u32 %v3744, 2147483648
    %v3746 = vmul.f32 %v3745, 1.442695
    %v3747 = vpow.pop %v3746
    %v3748 = vadd.f32 %v3747, 1.0
    %v3749 = vrcp.pop %v3748
    %v3750 = vmul.f32 %v3748, %v3749
    %v3751 = vsub.f32 1.0, %v3750
    %v3752 = vmul.f32 %v3749, %v3751
    %v3753 = vadd.f32 %v3749, %v3752
    %vm3754 = vweird.f32 %v3748
    %vm3755 = vweird.f32 %v3749
    %vm3756 = vmor %vm3754, %vm3755
    %v3757 = vsel %vm3756, %v3749, %v3753
    %v3758 = vand.u32 2147483647, %v3748
    %vm3759 = vcmp.eq.f32.partialorder %v3758, 8.507059e+37
    %v3760 = vand.u32 %v3748, 2147483648
    %v3761 = vor.u32 1.1754944e-38, %v3760
    %v3762 = vsel %vm3759, %v3761, %v3757
    %v3763 = vmul.f32 1.0, %v3762
    %v3764 = vmul.f32 %v3743, %v3667
    %v3765 = vadd.f32 %v3675, %v3764
    %v3766 = vtanh.pop %v3765
    %v3767 = vsub.f32 1.0, %v3763
    %v3768 = vmul.f32 %v3767, %v3766
    %v3769 = vmul.f32 %v3763, %v3509
    %v3770 = vadd.f32 %v3768, %v3769
    %v3771 = vsel %vm699, %v3770, %v3509
    %3772 = vst [vmem:[#allocation3 + $0x70] sm:$0xff] %v3723
    %3773 = vst [vmem:[#allocation3 + $0x8] sm:$0xff] %v3771
    %v3774 = vld [vmem:[#allocation3] sm:$0xff]
    %v3775 = vld [vmem:[#allocation3 + $0x8] sm:$0xff]
    %v3776 = vld [vmem:[#allocation3 + $0x10] sm:$0xff]
    %v3777 = vld [vmem:[#allocation3 + $0x18] sm:$0xff]
    %v3778 = vld [vmem:[#allocation3 + $0x20] sm:$0xff]
    %v3779 = vld [vmem:[#allocation3 + $0x28] sm:$0xff]
    %v3780 = vld [vmem:[#allocation3 + $0x30] sm:$0xff]
    %v3781 = vld [vmem:[#allocation3 + $0x38] sm:$0xff]
    %v3782 = vld [vmem:[#allocation3 + $0x40] sm:$0xff]
    %v3783 = vld [vmem:[#allocation3 + $0x48] sm:$0xff]
    %v3784 = vld [vmem:[#allocation3 + $0x50] sm:$0xff]
    %v3785 = vld [vmem:[#allocation3 + $0x58] sm:$0xff]
    %v3786 = vld [vmem:[#allocation3 + $0x60] sm:$0xff]
    %v3787 = vld [vmem:[#allocation3 + $0x68] sm:$0xff]
    %v3788 = vld [vmem:[#allocation3 + $0x70] sm:$0xff]
    %v3789 = vld [vmem:[#allocation3 + $0x78] sm:$0xff]
    %v3790 = vpack.c.bf16 %v3776, %v3774
    %v3791 = vpack.c.bf16 %v3777, %v3775
    %v3792 = vpack.c.bf16 %v3780, %v3778
    %v3793 = vpack.c.bf16 %v3781, %v3779
    %v3794 = vpack.c.bf16 %v3784, %v3782
    %v3795 = vpack.c.bf16 %v3785, %v3783
    %v3796 = vpack.c.bf16 %v3788, %v3786
    %v3797 = vpack.c.bf16 %v3789, %v3787
    %v3798 = vld [vmem:[#allocation6] sm:$0xff]
    %v3799 = vld [vmem:[#allocation6 + $0x8] sm:$0xff]
    %v3800 = vld [vmem:[#allocation6 + $0x10] sm:$0xff]
    %v3801 = vld [vmem:[#allocation6 + $0x18] sm:$0xff]
    %v3802 = vld [vmem:[#allocation6 + $0x20] sm:$0xff]
    %v3803 = vld [vmem:[#allocation6 + $0x28] sm:$0xff]
    %v3804 = vld [vmem:[#allocation6 + $0x30] sm:$0xff]
    %v3805 = vld [vmem:[#allocation6 + $0x38] sm:$0xff]
    %v3806 = vld [vmem:[#allocation6 + $0x40] sm:$0xff]
    %v3807 = vld [vmem:[#allocation6 + $0x48] sm:$0xff]
    %v3808 = vld [vmem:[#allocation6 + $0x50] sm:$0xff]
    %v3809 = vld [vmem:[#allocation6 + $0x58] sm:$0xff]
    %v3810 = vld [vmem:[#allocation6 + $0x60] sm:$0xff]
    %v3811 = vld [vmem:[#allocation6 + $0x68] sm:$0xff]
    %v3812 = vld [vmem:[#allocation6 + $0x70] sm:$0xff]
    %v3813 = vld [vmem:[#allocation6 + $0x78] sm:$0xff]
    %v3814 = vld [vmem:[#allocation6 + $0x80] sm:$0xff]
    %v3815 = vld [vmem:[#allocation6 + $0x88] sm:$0xff]
    %v3816 = vld [vmem:[#allocation6 + $0x90] sm:$0xff]
    %v3817 = vld [vmem:[#allocation6 + $0x98] sm:$0xff]
    %v3818 = vld [vmem:[#allocation6 + $0xa0] sm:$0xff]
    %v3819 = vld [vmem:[#allocation6 + $0xa8] sm:$0xff]
    %v3820 = vld [vmem:[#allocation6 + $0xb0] sm:$0xff]
    %v3821 = vld [vmem:[#allocation6 + $0xb8] sm:$0xff]
    %v3822 = vld [vmem:[#allocation6 + $0xc0] sm:$0xff]
    %v3823 = vld [vmem:[#allocation6 + $0xc8] sm:$0xff]
    %v3824 = vld [vmem:[#allocation6 + $0xd0] sm:$0xff]
    %v3825 = vld [vmem:[#allocation6 + $0xd8] sm:$0xff]
    %v3826 = vld [vmem:[#allocation6 + $0xe0] sm:$0xff]
    %v3827 = vld [vmem:[#allocation6 + $0xe8] sm:$0xff]
    %v3828 = vld [vmem:[#allocation6 + $0xf0] sm:$0xff]
    %v3829 = vld [vmem:[#allocation6 + $0xf8] sm:$0xff]
    %v3830 = vld [vmem:[#allocation6 + $0x100] sm:$0xff]
    %v3831 = vld [vmem:[#allocation6 + $0x108] sm:$0xff]
    %v3832 = vld [vmem:[#allocation6 + $0x110] sm:$0xff]
    %v3833 = vld [vmem:[#allocation6 + $0x118] sm:$0xff]
    %v3834 = vld [vmem:[#allocation6 + $0x120] sm:$0xff]
    %v3835 = vld [vmem:[#allocation6 + $0x128] sm:$0xff]
    %v3836 = vld [vmem:[#allocation6 + $0x130] sm:$0xff]
    %v3837 = vld [vmem:[#allocation6 + $0x138] sm:$0xff]
    %v3838 = vld [vmem:[#allocation6 + $0x140] sm:$0xff]
    %v3839 = vld [vmem:[#allocation6 + $0x148] sm:$0xff]
    %v3840 = vld [vmem:[#allocation6 + $0x150] sm:$0xff]
    %v3841 = vld [vmem:[#allocation6 + $0x158] sm:$0xff]
    %v3842 = vld [vmem:[#allocation6 + $0x160] sm:$0xff]
    %v3843 = vld [vmem:[#allocation6 + $0x168] sm:$0xff]
    %v3844 = vld [vmem:[#allocation6 + $0x170] sm:$0xff]
    %v3845 = vld [vmem:[#allocation6 + $0x178] sm:$0xff]
    %v3846 = vld [vmem:[#allocation6 + $0x180] sm:$0xff]
    %v3847 = vld [vmem:[#allocation6 + $0x188] sm:$0xff]
    %v3848 = vld [vmem:[#allocation6 + $0x190] sm:$0xff]
    %v3849 = vld [vmem:[#allocation6 + $0x198] sm:$0xff]
    %v3850 = vld [vmem:[#allocation6 + $0x1a0] sm:$0xff]
    %v3851 = vld [vmem:[#allocation6 + $0x1a8] sm:$0xff]
    %v3852 = vld [vmem:[#allocation6 + $0x1b0] sm:$0xff]
    %v3853 = vld [vmem:[#allocation6 + $0x1b8] sm:$0xff]
    %v3854 = vld [vmem:[#allocation6 + $0x1c0] sm:$0xff]
    %v3855 = vld [vmem:[#allocation6 + $0x1c8] sm:$0xff]
    %v3856 = vld [vmem:[#allocation6 + $0x1d0] sm:$0xff]
    %v3857 = vld [vmem:[#allocation6 + $0x1d8] sm:$0xff]
    %v3858 = vld [vmem:[#allocation6 + $0x1e0] sm:$0xff]
    %v3859 = vld [vmem:[#allocation6 + $0x1e8] sm:$0xff]
    %v3860 = vld [vmem:[#allocation6 + $0x1f0] sm:$0xff]
    %v3861 = vld [vmem:[#allocation6 + $0x1f8] sm:$0xff]
    %v3862 = vld [vmem:[#allocation6 + $0x200] sm:$0xff]
    %v3863 = vld [vmem:[#allocation6 + $0x208] sm:$0xff]
    %v3864 = vld [vmem:[#allocation6 + $0x210] sm:$0xff]
    %v3865 = vld [vmem:[#allocation6 + $0x218] sm:$0xff]
    %v3866 = vld [vmem:[#allocation6 + $0x220] sm:$0xff]
    %v3867 = vld [vmem:[#allocation6 + $0x228] sm:$0xff]
    %v3868 = vld [vmem:[#allocation6 + $0x230] sm:$0xff]
    %v3869 = vld [vmem:[#allocation6 + $0x238] sm:$0xff]
    %v3870 = vld [vmem:[#allocation6 + $0x240] sm:$0xff]
    %v3871 = vld [vmem:[#allocation6 + $0x248] sm:$0xff]
    %v3872 = vld [vmem:[#allocation6 + $0x250] sm:$0xff]
    %v3873 = vld [vmem:[#allocation6 + $0x258] sm:$0xff]
    %v3874 = vld [vmem:[#allocation6 + $0x260] sm:$0xff]
    %v3875 = vld [vmem:[#allocation6 + $0x268] sm:$0xff]
    %v3876 = vld [vmem:[#allocation6 + $0x270] sm:$0xff]
    %v3877 = vld [vmem:[#allocation6 + $0x278] sm:$0xff]
    %v3878 = vld [vmem:[#allocation6 + $0x280] sm:$0xff]
    %v3879 = vld [vmem:[#allocation6 + $0x288] sm:$0xff]
    %v3880 = vld [vmem:[#allocation6 + $0x290] sm:$0xff]
    %v3881 = vld [vmem:[#allocation6 + $0x298] sm:$0xff]
    %v3882 = vld [vmem:[#allocation6 + $0x2a0] sm:$0xff]
    %v3883 = vld [vmem:[#allocation6 + $0x2a8] sm:$0xff]
    %v3884 = vld [vmem:[#allocation6 + $0x2b0] sm:$0xff]
    %v3885 = vld [vmem:[#allocation6 + $0x2b8] sm:$0xff]
    %v3886 = vld [vmem:[#allocation6 + $0x2c0] sm:$0xff]
    %v3887 = vld [vmem:[#allocation6 + $0x2c8] sm:$0xff]
    %v3888 = vld [vmem:[#allocation6 + $0x2d0] sm:$0xff]
    %v3889 = vld [vmem:[#allocation6 + $0x2d8] sm:$0xff]
    %v3890 = vld [vmem:[#allocation6 + $0x2e0] sm:$0xff]
    %v3891 = vld [vmem:[#allocation6 + $0x2e8] sm:$0xff]
    %v3892 = vld [vmem:[#allocation6 + $0x2f0] sm:$0xff]
    %v3893 = vld [vmem:[#allocation6 + $0x2f8] sm:$0xff]
    %v3894 = vld [vmem:[#allocation14] sm:$0x3f]
    %v3896 = vperm.slane %v3894, 0
    %v3897 = vperm.slane %v3894, 1
    %v3898 = vperm.slane %v3894, 2
    %v3899 = vperm.slane %v3894, 3
    %v3900 = vperm.slane %v3894, 4
    %v3901 = vperm.slane %v3894, 5
    %v4004 = vunpack.c.l.b16 %v3798
    %v4005 = vunpack.c.h.b16 %v3798
    %v4006 = vunpack.c.l.b16 %v3799
    %v4007 = vunpack.c.h.b16 %v3799
    %v4008 = vunpack.c.l.b16 %v3800
    %v4009 = vunpack.c.h.b16 %v3800
    %v4010 = vunpack.c.l.b16 %v3801
    %v4011 = vunpack.c.h.b16 %v3801
    %v4012 = vunpack.c.l.b16 %v3802
    %v4013 = vunpack.c.h.b16 %v3802
    %v4014 = vunpack.c.l.b16 %v3803
    %v4015 = vunpack.c.h.b16 %v3803
    %v4016 = vunpack.c.l.b16 %v3804
    %v4017 = vunpack.c.h.b16 %v3804
    %v4018 = vunpack.c.l.b16 %v3805
    %v4019 = vunpack.c.h.b16 %v3805
    %v4020 = vunpack.c.l.b16 %v3806
    %v4021 = vunpack.c.h.b16 %v3806
    %v4022 = vunpack.c.l.b16 %v3807
    %v4023 = vunpack.c.h.b16 %v3807
    %v4024 = vunpack.c.l.b16 %v3808
    %v4025 = vunpack.c.h.b16 %v3808
    %v4026 = vunpack.c.l.b16 %v3809
    %v4027 = vunpack.c.h.b16 %v3809
    %v4028 = vunpack.c.l.b16 %v3810
    %v4029 = vunpack.c.h.b16 %v3810
    %v4030 = vunpack.c.l.b16 %v3811
    %v4031 = vunpack.c.h.b16 %v3811
    %v4032 = vunpack.c.l.b16 %v3812
    %v4033 = vunpack.c.h.b16 %v3812
    %v4034 = vunpack.c.l.b16 %v3813
    %v4035 = vunpack.c.h.b16 %v3813
    %v4036 = vunpack.c.l.b16 %v3814
    %v4037 = vunpack.c.h.b16 %v3814
    %v4038 = vunpack.c.l.b16 %v3815
    %v4039 = vunpack.c.h.b16 %v3815
    %v4040 = vunpack.c.l.b16 %v3816
    %v4041 = vunpack.c.h.b16 %v3816
    %v4042 = vunpack.c.l.b16 %v3817
    %v4043 = vunpack.c.h.b16 %v3817
    %v4044 = vunpack.c.l.b16 %v3818
    %v4045 = vunpack.c.h.b16 %v3818
    %v4046 = vunpack.c.l.b16 %v3819
    %v4047 = vunpack.c.h.b16 %v3819
    %v4048 = vunpack.c.l.b16 %v3820
    %v4049 = vunpack.c.h.b16 %v3820
    %v4050 = vunpack.c.l.b16 %v3821
    %v4051 = vunpack.c.h.b16 %v3821
    %v4052 = vunpack.c.l.b16 %v3822
    %v4053 = vunpack.c.h.b16 %v3822
    %v4054 = vunpack.c.l.b16 %v3823
    %v4055 = vunpack.c.h.b16 %v3823
    %v4056 = vunpack.c.l.b16 %v3824
    %v4057 = vunpack.c.h.b16 %v3824
    %v4058 = vunpack.c.l.b16 %v3825
    %v4059 = vunpack.c.h.b16 %v3825
    %v4060 = vunpack.c.l.b16 %v3826
    %v4061 = vunpack.c.h.b16 %v3826
    %v4062 = vunpack.c.l.b16 %v3827
    %v4063 = vunpack.c.h.b16 %v3827
    %v4064 = vunpack.c.l.b16 %v3828
    %v4065 = vunpack.c.h.b16 %v3828
    %v4066 = vunpack.c.l.b16 %v3829
    %v4067 = vunpack.c.h.b16 %v3829
    %v4068 = vunpack.c.l.b16 %v3830
    %v4069 = vunpack.c.h.b16 %v3830
    %v4070 = vunpack.c.l.b16 %v3831
    %v4071 = vunpack.c.h.b16 %v3831
    %v4072 = vunpack.c.l.b16 %v3832
    %v4073 = vunpack.c.h.b16 %v3832
    %v4074 = vunpack.c.l.b16 %v3833
    %v4075 = vunpack.c.h.b16 %v3833
    %v4076 = vunpack.c.l.b16 %v3834
    %v4077 = vunpack.c.h.b16 %v3834
    %v4078 = vunpack.c.l.b16 %v3835
    %v4079 = vunpack.c.h.b16 %v3835
    %v4080 = vunpack.c.l.b16 %v3836
    %v4081 = vunpack.c.h.b16 %v3836
    %v4082 = vunpack.c.l.b16 %v3837
    %v4083 = vunpack.c.h.b16 %v3837
    %v4084 = vunpack.c.l.b16 %v3838
    %v4085 = vunpack.c.h.b16 %v3838
    %v4086 = vunpack.c.l.b16 %v3839
    %v4087 = vunpack.c.h.b16 %v3839
    %v4088 = vunpack.c.l.b16 %v3840
    %v4089 = vunpack.c.h.b16 %v3840
    %v4090 = vunpack.c.l.b16 %v3841
    %v4091 = vunpack.c.h.b16 %v3841
    %v4092 = vunpack.c.l.b16 %v3842
    %v4093 = vunpack.c.h.b16 %v3842
    %v4094 = vunpack.c.l.b16 %v3843
    %v4095 = vunpack.c.h.b16 %v3843
    %v4096 = vunpack.c.l.b16 %v3844
    %v4097 = vunpack.c.h.b16 %v3844
    %v4098 = vunpack.c.l.b16 %v3845
    %v4099 = vunpack.c.h.b16 %v3845
    %v4100 = vunpack.c.l.b16 %v3846
    %v4101 = vunpack.c.h.b16 %v3846
    %v4102 = vunpack.c.l.b16 %v3847
    %v4103 = vunpack.c.h.b16 %v3847
    %v4104 = vunpack.c.l.b16 %v3848
    %v4105 = vunpack.c.h.b16 %v3848
    %v4106 = vunpack.c.l.b16 %v3849
    %v4107 = vunpack.c.h.b16 %v3849
    %v4108 = vunpack.c.l.b16 %v3850
    %v4109 = vunpack.c.h.b16 %v3850
    %v4110 = vunpack.c.l.b16 %v3851
    %v4111 = vunpack.c.h.b16 %v3851
    %v4112 = vunpack.c.l.b16 %v3852
    %v4113 = vunpack.c.h.b16 %v3852
    %v4114 = vunpack.c.l.b16 %v3853
    %v4115 = vunpack.c.h.b16 %v3853
    %v4116 = vunpack.c.l.b16 %v3854
    %v4117 = vunpack.c.h.b16 %v3854
    %v4118 = vunpack.c.l.b16 %v3855
    %v4119 = vunpack.c.h.b16 %v3855
    %v4120 = vunpack.c.l.b16 %v3856
    %v4121 = vunpack.c.h.b16 %v3856
    %v4122 = vunpack.c.l.b16 %v3857
    %v4123 = vunpack.c.h.b16 %v3857
    %v4124 = vunpack.c.l.b16 %v3858
    %v4125 = vunpack.c.h.b16 %v3858
    %v4126 = vunpack.c.l.b16 %v3859
    %v4127 = vunpack.c.h.b16 %v3859
    %v4128 = vunpack.c.l.b16 %v3860
    %v4129 = vunpack.c.h.b16 %v3860
    %v4130 = vunpack.c.l.b16 %v3861
    %v4131 = vunpack.c.h.b16 %v3861
    %v4132 = vunpack.c.l.b16 %v3862
    %v4133 = vunpack.c.h.b16 %v3862
    %v4134 = vunpack.c.l.b16 %v3863
    %v4135 = vunpack.c.h.b16 %v3863
    %v4136 = vunpack.c.l.b16 %v3864
    %v4137 = vunpack.c.h.b16 %v3864
    %v4138 = vunpack.c.l.b16 %v3865
    %v4139 = vunpack.c.h.b16 %v3865
    %v4140 = vunpack.c.l.b16 %v3866
    %v4141 = vunpack.c.h.b16 %v3866
    %v4142 = vunpack.c.l.b16 %v3867
    %v4143 = vunpack.c.h.b16 %v3867
    %v4144 = vunpack.c.l.b16 %v3868
    %v4145 = vunpack.c.h.b16 %v3868
    %v4146 = vunpack.c.l.b16 %v3869
    %v4147 = vunpack.c.h.b16 %v3869
    %v4148 = vunpack.c.l.b16 %v3870
    %v4149 = vunpack.c.h.b16 %v3870
    %v4150 = vunpack.c.l.b16 %v3871
    %v4151 = vunpack.c.h.b16 %v3871
    %v4152 = vunpack.c.l.b16 %v3872
    %v4153 = vunpack.c.h.b16 %v3872
    %v4154 = vunpack.c.l.b16 %v3873
    %v4155 = vunpack.c.h.b16 %v3873
    %v4156 = vunpack.c.l.b16 %v3874
    %v4157 = vunpack.c.h.b16 %v3874
    %v4158 = vunpack.c.l.b16 %v3875
    %v4159 = vunpack.c.h.b16 %v3875
    %v4160 = vunpack.c.l.b16 %v3876
    %v4161 = vunpack.c.h.b16 %v3876
    %v4162 = vunpack.c.l.b16 %v3877
    %v4163 = vunpack.c.h.b16 %v3877
    %v4164 = vunpack.c.l.b16 %v3878
    %v4165 = vunpack.c.h.b16 %v3878
    %v4166 = vunpack.c.l.b16 %v3879
    %v4167 = vunpack.c.h.b16 %v3879
    %v4168 = vunpack.c.l.b16 %v3880
    %v4169 = vunpack.c.h.b16 %v3880
    %v4170 = vunpack.c.l.b16 %v3881
    %v4171 = vunpack.c.h.b16 %v3881
    %v4172 = vunpack.c.l.b16 %v3882
    %v4173 = vunpack.c.h.b16 %v3882
    %v4174 = vunpack.c.l.b16 %v3883
    %v4175 = vunpack.c.h.b16 %v3883
    %v4176 = vunpack.c.l.b16 %v3884
    %v4177 = vunpack.c.h.b16 %v3884
    %v4178 = vunpack.c.l.b16 %v3885
    %v4179 = vunpack.c.h.b16 %v3885
    %v4180 = vunpack.c.l.b16 %v3886
    %v4181 = vunpack.c.h.b16 %v3886
    %v4182 = vunpack.c.l.b16 %v3887
    %v4183 = vunpack.c.h.b16 %v3887
    %v4184 = vunpack.c.l.b16 %v3888
    %v4185 = vunpack.c.h.b16 %v3888
    %v4186 = vunpack.c.l.b16 %v3889
    %v4187 = vunpack.c.h.b16 %v3889
    %v4188 = vunpack.c.l.b16 %v3890
    %v4189 = vunpack.c.h.b16 %v3890
    %v4190 = vunpack.c.l.b16 %v3891
    %v4191 = vunpack.c.h.b16 %v3891
    %v4192 = vunpack.c.l.b16 %v3892
    %v4193 = vunpack.c.h.b16 %v3892
    %v4194 = vunpack.c.l.b16 %v3893
    %v4195 = vunpack.c.h.b16 %v3893
    %v4196 = vpack.c.b16 %v4010, %v4004
    %v4197 = vpack.c.b16 %v4011, %v4005
    %v4198 = vpack.c.b16 %v4012, %v4006
    %v4199 = vpack.c.b16 %v4013, %v4007
    %v4200 = vpack.c.b16 %v4014, %v4008
    %v4201 = vpack.c.b16 %v4015, %v4009
    %v4202 = vpack.c.b16 %v4022, %v4016
    %v4203 = vpack.c.b16 %v4023, %v4017
    %v4204 = vpack.c.b16 %v4024, %v4018
    %v4205 = vpack.c.b16 %v4025, %v4019
    %v4206 = vpack.c.b16 %v4026, %v4020
    %v4207 = vpack.c.b16 %v4027, %v4021
    %v4208 = vpack.c.b16 %v4034, %v4028
    %v4209 = vpack.c.b16 %v4035, %v4029
    %v4210 = vpack.c.b16 %v4036, %v4030
    %v4211 = vpack.c.b16 %v4037, %v4031
    %v4212 = vpack.c.b16 %v4038, %v4032
    %v4213 = vpack.c.b16 %v4039, %v4033
    %v4214 = vpack.c.b16 %v4046, %v4040
    %v4215 = vpack.c.b16 %v4047, %v4041
    %v4216 = vpack.c.b16 %v4048, %v4042
    %v4217 = vpack.c.b16 %v4049, %v4043
    %v4218 = vpack.c.b16 %v4050, %v4044
    %v4219 = vpack.c.b16 %v4051, %v4045
    %v4220 = vpack.c.b16 %v4058, %v4052
    %v4221 = vpack.c.b16 %v4059, %v4053
    %v4222 = vpack.c.b16 %v4060, %v4054
    %v4223 = vpack.c.b16 %v4061, %v4055
    %v4224 = vpack.c.b16 %v4062, %v4056
    %v4225 = vpack.c.b16 %v4063, %v4057
    %v4226 = vpack.c.b16 %v4070, %v4064
    %v4227 = vpack.c.b16 %v4071, %v4065
    %v4228 = vpack.c.b16 %v4072, %v4066
    %v4229 = vpack.c.b16 %v4073, %v4067
    %v4230 = vpack.c.b16 %v4074, %v4068
    %v4231 = vpack.c.b16 %v4075, %v4069
    %v4232 = vpack.c.b16 %v4082, %v4076
    %v4233 = vpack.c.b16 %v4083, %v4077
    %v4234 = vpack.c.b16 %v4084, %v4078
    %v4235 = vpack.c.b16 %v4085, %v4079
    %v4236 = vpack.c.b16 %v4086, %v4080
    %v4237 = vpack.c.b16 %v4087, %v4081
    %v4238 = vpack.c.b16 %v4094, %v4088
    %v4239 = vpack.c.b16 %v4095, %v4089
    %v4240 = vpack.c.b16 %v4096, %v4090
    %v4241 = vpack.c.b16 %v4097, %v4091
    %v4242 = vpack.c.b16 %v4098, %v4092
    %v4243 = vpack.c.b16 %v4099, %v4093
    %v4244 = vpack.c.b16 %v4106, %v4100
    %v4245 = vpack.c.b16 %v4107, %v4101
    %v4246 = vpack.c.b16 %v4108, %v4102
    %v4247 = vpack.c.b16 %v4109, %v4103
    %v4248 = vpack.c.b16 %v4110, %v4104
    %v4249 = vpack.c.b16 %v4111, %v4105
    %v4250 = vpack.c.b16 %v4118, %v4112
    %v4251 = vpack.c.b16 %v4119, %v4113
    %v4252 = vpack.c.b16 %v4120, %v4114
    %v4253 = vpack.c.b16 %v4121, %v4115
    %v4254 = vpack.c.b16 %v4122, %v4116
    %v4255 = vpack.c.b16 %v4123, %v4117
    %v4256 = vpack.c.b16 %v4130, %v4124
    %v4257 = vpack.c.b16 %v4131, %v4125
    %v4258 = vpack.c.b16 %v4132, %v4126
    %v4259 = vpack.c.b16 %v4133, %v4127
    %v4260 = vpack.c.b16 %v4134, %v4128
    %v4261 = vpack.c.b16 %v4135, %v4129
    %v4262 = vpack.c.b16 %v4142, %v4136
    %v4263 = vpack.c.b16 %v4143, %v4137
    %v4264 = vpack.c.b16 %v4144, %v4138
    %v4265 = vpack.c.b16 %v4145, %v4139
    %v4266 = vpack.c.b16 %v4146, %v4140
    %v4267 = vpack.c.b16 %v4147, %v4141
    %v4268 = vpack.c.b16 %v4154, %v4148
    %v4269 = vpack.c.b16 %v4155, %v4149
    %v4270 = vpack.c.b16 %v4156, %v4150
    %v4271 = vpack.c.b16 %v4157, %v4151
    %v4272 = vpack.c.b16 %v4158, %v4152
    %v4273 = vpack.c.b16 %v4159, %v4153
    %v4274 = vpack.c.b16 %v4166, %v4160
    %v4275 = vpack.c.b16 %v4167, %v4161
    %v4276 = vpack.c.b16 %v4168, %v4162
    %v4277 = vpack.c.b16 %v4169, %v4163
    %v4278 = vpack.c.b16 %v4170, %v4164
    %v4279 = vpack.c.b16 %v4171, %v4165
    %v4280 = vpack.c.b16 %v4178, %v4172
    %v4281 = vpack.c.b16 %v4179, %v4173
    %v4282 = vpack.c.b16 %v4180, %v4174
    %v4283 = vpack.c.b16 %v4181, %v4175
    %v4284 = vpack.c.b16 %v4182, %v4176
    %v4285 = vpack.c.b16 %v4183, %v4177
    %v4286 = vpack.c.b16 %v4190, %v4184
    %v4287 = vpack.c.b16 %v4191, %v4185
    %v4288 = vpack.c.b16 %v4192, %v4186
    %v4289 = vpack.c.b16 %v4193, %v4187
    %v4290 = vpack.c.b16 %v4194, %v4188
    %v4291 = vpack.c.b16 %v4195, %v4189
    %4388 = vmatpush.bf16.msra.mxu0 %v4238
    %4389 = vmatpush.bf16.msra.mxu0 %v4232
    %4390 = vmatpush.bf16.msra.mxu0 %v4226
    %4391 = vmatpush.bf16.msra.mxu0 %v4220
    %4392 = vmatpush.bf16.msra.mxu0 %v4214
    %4393 = vmatpush.bf16.msra.mxu0 %v4208
    %4394 = vmatpush.bf16.msra.mxu0 %v4202
    %4395 = vmatpush.bf16.msra.mxu0 %v4196
    %4396 = vmatmul.bf16.gmra.mxu0 %v3790
    %v4397 = vpop.f32.mrf.mxu0
    %v4398 = vadd.f32 %v3896, %v4397
    %v4399 = vpop.f32.mrf.mxu0
    %v4400 = vadd.f32 %v3896, %v4399
    %4401 = vmatmul.bf16.gmra.mxu0 %v3792
    %v4402 = vpop.f32.mrf.mxu0
    %v4403 = vadd.f32 %v3896, %v4402
    %v4404 = vpop.f32.mrf.mxu0
    %v4405 = vadd.f32 %v3896, %v4404
    %4406 = vmatmul.bf16.gmra.mxu0 %v3794
    %v4407 = vpop.f32.mrf.mxu0
    %v4408 = vadd.f32 %v3896, %v4407
    %v4409 = vpop.f32.mrf.mxu0
    %v4410 = vadd.f32 %v3896, %v4409
    %4411 = vmatmul.bf16.gmra.mxu0 %v3796
    %v4412 = vpop.f32.mrf.mxu0
    %v4413 = vadd.f32 %v3896, %v4412
    %v4414 = vpop.f32.mrf.mxu0
    %v4415 = vadd.f32 %v3896, %v4414
    %4416 = vdwg.mxu0
    %4417 = vmatpush.bf16.msra.mxu0 %v4286
    %4418 = vmatpush.bf16.msra.mxu0 %v4280
    %4419 = vmatpush.bf16.msra.mxu0 %v4274
    %4420 = vmatpush.bf16.msra.mxu0 %v4268
    %4421 = vmatpush.bf16.msra.mxu0 %v4262
    %4422 = vmatpush.bf16.msra.mxu0 %v4256
    %4423 = vmatpush.bf16.msra.mxu0 %v4250
    %4424 = vmatpush.bf16.msra.mxu0 %v4244
    %4425 = vmatmul.bf16.gmra.mxu0 %v3791
    %v4426 = vpop.f32.mrf.mxu0
    %v4427 = vadd.f32 %v4398, %v4426
    %v4428 = vpop.f32.mrf.mxu0
    %v4429 = vadd.f32 %v4400, %v4428
    %4430 = vmatmul.bf16.gmra.mxu0 %v3793
    %v4431 = vpop.f32.mrf.mxu0
    %v4432 = vadd.f32 %v4403, %v4431
    %v4433 = vpop.f32.mrf.mxu0
    %v4434 = vadd.f32 %v4405, %v4433
    %4435 = vmatmul.bf16.gmra.mxu0 %v3795
    %v4436 = vpop.f32.mrf.mxu0
    %v4437 = vadd.f32 %v4408, %v4436
    %v4438 = vpop.f32.mrf.mxu0
    %v4439 = vadd.f32 %v4410, %v4438
    %4440 = vmatmul.bf16.gmra.mxu0 %v3797
    %v4441 = vpop.f32.mrf.mxu0
    %v4442 = vadd.f32 %v4413, %v4441
    %v4443 = vpop.f32.mrf.mxu0
    %v4444 = vadd.f32 %v4415, %v4443
    %4445 = vdwg.mxu0
    %4446 = vmatpush.bf16.msra.mxu0 %v4239
    %4447 = vmatpush.bf16.msra.mxu0 %v4233
    %4448 = vmatpush.bf16.msra.mxu0 %v4227
    %4449 = vmatpush.bf16.msra.mxu0 %v4221
    %4450 = vmatpush.bf16.msra.mxu0 %v4215
    %4451 = vmatpush.bf16.msra.mxu0 %v4209
    %4452 = vmatpush.bf16.msra.mxu0 %v4203
    %4453 = vmatpush.bf16.msra.mxu0 %v4197
    %4454 = vmatmul.bf16.gmra.mxu0 %v3790
    %v4455 = vpop.f32.mrf.mxu0
    %v4456 = vadd.f32 %v3897, %v4455
    %v4457 = vpop.f32.mrf.mxu0
    %v4458 = vadd.f32 %v3897, %v4457
    %4459 = vmatmul.bf16.gmra.mxu0 %v3792
    %v4460 = vpop.f32.mrf.mxu0
    %v4461 = vadd.f32 %v3897, %v4460
    %v4462 = vpop.f32.mrf.mxu0
    %v4463 = vadd.f32 %v3897, %v4462
    %4464 = vmatmul.bf16.gmra.mxu0 %v3794
    %v4465 = vpop.f32.mrf.mxu0
    %v4466 = vadd.f32 %v3897, %v4465
    %v4467 = vpop.f32.mrf.mxu0
    %v4468 = vadd.f32 %v3897, %v4467
    %4469 = vmatmul.bf16.gmra.mxu0 %v3796
    %v4470 = vpop.f32.mrf.mxu0
    %v4471 = vadd.f32 %v3897, %v4470
    %v4472 = vpop.f32.mrf.mxu0
    %v4473 = vadd.f32 %v3897, %v4472
    %4474 = vdwg.mxu0
    %4475 = vmatpush.bf16.msra.mxu0 %v4287
    %4476 = vmatpush.bf16.msra.mxu0 %v4281
    %4477 = vmatpush.bf16.msra.mxu0 %v4275
    %4478 = vmatpush.bf16.msra.mxu0 %v4269
    %4479 = vmatpush.bf16.msra.mxu0 %v4263
    %4480 = vmatpush.bf16.msra.mxu0 %v4257
    %4481 = vmatpush.bf16.msra.mxu0 %v4251
    %4482 = vmatpush.bf16.msra.mxu0 %v4245
    %4483 = vmatmul.bf16.gmra.mxu0 %v3791
    %v4484 = vpop.f32.mrf.mxu0
    %v4485 = vadd.f32 %v4456, %v4484
    %v4486 = vpop.f32.mrf.mxu0
    %v4487 = vadd.f32 %v4458, %v4486
    %4488 = vmatmul.bf16.gmra.mxu0 %v3793
    %v4489 = vpop.f32.mrf.mxu0
    %v4490 = vadd.f32 %v4461, %v4489
    %v4491 = vpop.f32.mrf.mxu0
    %v4492 = vadd.f32 %v4463, %v4491
    %4493 = vmatmul.bf16.gmra.mxu0 %v3795
    %v4494 = vpop.f32.mrf.mxu0
    %v4495 = vadd.f32 %v4466, %v4494
    %v4496 = vpop.f32.mrf.mxu0
    %v4497 = vadd.f32 %v4468, %v4496
    %4498 = vmatmul.bf16.gmra.mxu0 %v3797
    %v4499 = vpop.f32.mrf.mxu0
    %v4500 = vadd.f32 %v4471, %v4499
    %v4501 = vpop.f32.mrf.mxu0
    %v4502 = vadd.f32 %v4473, %v4501
    %4503 = vdwg.mxu0
    %4504 = vmatpush.bf16.msra.mxu0 %v4240
    %4505 = vmatpush.bf16.msra.mxu0 %v4234
    %4506 = vmatpush.bf16.msra.mxu0 %v4228
    %4507 = vmatpush.bf16.msra.mxu0 %v4222
    %4508 = vmatpush.bf16.msra.mxu0 %v4216
    %4509 = vmatpush.bf16.msra.mxu0 %v4210
    %4510 = vmatpush.bf16.msra.mxu0 %v4204
    %4511 = vmatpush.bf16.msra.mxu0 %v4198
    %4512 = vmatmul.bf16.gmra.mxu0 %v3790
    %v4513 = vpop.f32.mrf.mxu0
    %v4514 = vadd.f32 %v3898, %v4513
    %v4515 = vpop.f32.mrf.mxu0
    %v4516 = vadd.f32 %v3898, %v4515
    %4517 = vmatmul.bf16.gmra.mxu0 %v3792
    %v4518 = vpop.f32.mrf.mxu0
    %v4519 = vadd.f32 %v3898, %v4518
    %v4520 = vpop.f32.mrf.mxu0
    %v4521 = vadd.f32 %v3898, %v4520
    %4522 = vmatmul.bf16.gmra.mxu0 %v3794
    %v4523 = vpop.f32.mrf.mxu0
    %v4524 = vadd.f32 %v3898, %v4523
    %v4525 = vpop.f32.mrf.mxu0
    %v4526 = vadd.f32 %v3898, %v4525
    %4527 = vmatmul.bf16.gmra.mxu0 %v3796
    %v4528 = vpop.f32.mrf.mxu0
    %v4529 = vadd.f32 %v3898, %v4528
    %v4530 = vpop.f32.mrf.mxu0
    %v4531 = vadd.f32 %v3898, %v4530
    %4532 = vdwg.mxu0
    %4533 = vmatpush.bf16.msra.mxu0 %v4288
    %4534 = vmatpush.bf16.msra.mxu0 %v4282
    %4535 = vmatpush.bf16.msra.mxu0 %v4276
    %4536 = vmatpush.bf16.msra.mxu0 %v4270
    %4537 = vmatpush.bf16.msra.mxu0 %v4264
    %4538 = vmatpush.bf16.msra.mxu0 %v4258
    %4539 = vmatpush.bf16.msra.mxu0 %v4252
    %4540 = vmatpush.bf16.msra.mxu0 %v4246
    %4541 = vmatmul.bf16.gmra.mxu0 %v3791
    %v4542 = vpop.f32.mrf.mxu0
    %v4543 = vadd.f32 %v4514, %v4542
    %v4544 = vpop.f32.mrf.mxu0
    %v4545 = vadd.f32 %v4516, %v4544
    %4546 = vmatmul.bf16.gmra.mxu0 %v3793
    %v4547 = vpop.f32.mrf.mxu0
    %v4548 = vadd.f32 %v4519, %v4547
    %v4549 = vpop.f32.mrf.mxu0
    %v4550 = vadd.f32 %v4521, %v4549
    %4551 = vmatmul.bf16.gmra.mxu0 %v3795
    %v4552 = vpop.f32.mrf.mxu0
    %v4553 = vadd.f32 %v4524, %v4552
    %v4554 = vpop.f32.mrf.mxu0
    %v4555 = vadd.f32 %v4526, %v4554
    %4556 = vmatmul.bf16.gmra.mxu0 %v3797
    %v4557 = vpop.f32.mrf.mxu0
    %v4558 = vadd.f32 %v4529, %v4557
    %v4559 = vpop.f32.mrf.mxu0
    %v4560 = vadd.f32 %v4531, %v4559
    %4561 = vdwg.mxu0
    %4562 = vmatpush.bf16.msra.mxu0 %v4241
    %4563 = vmatpush.bf16.msra.mxu0 %v4235
    %4564 = vmatpush.bf16.msra.mxu0 %v4229
    %4565 = vmatpush.bf16.msra.mxu0 %v4223
    %4566 = vmatpush.bf16.msra.mxu0 %v4217
    %4567 = vmatpush.bf16.msra.mxu0 %v4211
    %4568 = vmatpush.bf16.msra.mxu0 %v4205
    %4569 = vmatpush.bf16.msra.mxu0 %v4199
    %4570 = vmatmul.bf16.gmra.mxu0 %v3790
    %v4571 = vpop.f32.mrf.mxu0
    %v4572 = vadd.f32 %v3899, %v4571
    %v4573 = vpop.f32.mrf.mxu0
    %v4574 = vadd.f32 %v3899, %v4573
    %4575 = vmatmul.bf16.gmra.mxu0 %v3792
    %v4576 = vpop.f32.mrf.mxu0
    %v4577 = vadd.f32 %v3899, %v4576
    %v4578 = vpop.f32.mrf.mxu0
    %v4579 = vadd.f32 %v3899, %v4578
    %4580 = vmatmul.bf16.gmra.mxu0 %v3794
    %v4581 = vpop.f32.mrf.mxu0
    %v4582 = vadd.f32 %v3899, %v4581
    %v4583 = vpop.f32.mrf.mxu0
    %v4584 = vadd.f32 %v3899, %v4583
    %4585 = vmatmul.bf16.gmra.mxu0 %v3796
    %v4586 = vpop.f32.mrf.mxu0
    %v4587 = vadd.f32 %v3899, %v4586
    %v4588 = vpop.f32.mrf.mxu0
    %v4589 = vadd.f32 %v3899, %v4588
    %4590 = vdwg.mxu0
    %4591 = vmatpush.bf16.msra.mxu0 %v4289
    %4592 = vmatpush.bf16.msra.mxu0 %v4283
    %4593 = vmatpush.bf16.msra.mxu0 %v4277
    %4594 = vmatpush.bf16.msra.mxu0 %v4271
    %4595 = vmatpush.bf16.msra.mxu0 %v4265
    %4596 = vmatpush.bf16.msra.mxu0 %v4259
    %4597 = vmatpush.bf16.msra.mxu0 %v4253
    %4598 = vmatpush.bf16.msra.mxu0 %v4247
    %4599 = vmatmul.bf16.gmra.mxu0 %v3791
    %v4600 = vpop.f32.mrf.mxu0
    %v4601 = vadd.f32 %v4572, %v4600
    %v4602 = vpop.f32.mrf.mxu0
    %v4603 = vadd.f32 %v4574, %v4602
    %4604 = vmatmul.bf16.gmra.mxu0 %v3793
    %v4605 = vpop.f32.mrf.mxu0
    %v4606 = vadd.f32 %v4577, %v4605
    %v4607 = vpop.f32.mrf.mxu0
    %v4608 = vadd.f32 %v4579, %v4607
    %4609 = vmatmul.bf16.gmra.mxu0 %v3795
    %v4610 = vpop.f32.mrf.mxu0
    %v4611 = vadd.f32 %v4582, %v4610
    %v4612 = vpop.f32.mrf.mxu0
    %v4613 = vadd.f32 %v4584, %v4612
    %4614 = vmatmul.bf16.gmra.mxu0 %v3797
    %v4615 = vpop.f32.mrf.mxu0
    %v4616 = vadd.f32 %v4587, %v4615
    %v4617 = vpop.f32.mrf.mxu0
    %v4618 = vadd.f32 %v4589, %v4617
    %4619 = vdwg.mxu0
    %4620 = vmatpush.bf16.msra.mxu0 %v4242
    %4621 = vmatpush.bf16.msra.mxu0 %v4236
    %4622 = vmatpush.bf16.msra.mxu0 %v4230
    %4623 = vmatpush.bf16.msra.mxu0 %v4224
    %4624 = vmatpush.bf16.msra.mxu0 %v4218
    %4625 = vmatpush.bf16.msra.mxu0 %v4212
    %4626 = vmatpush.bf16.msra.mxu0 %v4206
    %4627 = vmatpush.bf16.msra.mxu0 %v4200
    %4628 = vmatmul.bf16.gmra.mxu0 %v3790
    %v4629 = vpop.f32.mrf.mxu0
    %v4630 = vadd.f32 %v3900, %v4629
    %v4631 = vpop.f32.mrf.mxu0
    %v4632 = vadd.f32 %v3900, %v4631
    %4633 = vmatmul.bf16.gmra.mxu0 %v3792
    %v4634 = vpop.f32.mrf.mxu0
    %v4635 = vadd.f32 %v3900, %v4634
    %v4636 = vpop.f32.mrf.mxu0
    %v4637 = vadd.f32 %v3900, %v4636
    %4638 = vmatmul.bf16.gmra.mxu0 %v3794
    %v4639 = vpop.f32.mrf.mxu0
    %v4640 = vadd.f32 %v3900, %v4639
    %v4641 = vpop.f32.mrf.mxu0
    %v4642 = vadd.f32 %v3900, %v4641
    %4643 = vmatmul.bf16.gmra.mxu0 %v3796
    %v4644 = vpop.f32.mrf.mxu0
    %v4645 = vadd.f32 %v3900, %v4644
    %v4646 = vpop.f32.mrf.mxu0
    %v4647 = vadd.f32 %v3900, %v4646
    %4648 = vdwg.mxu0
    %4649 = vmatpush.bf16.msra.mxu0 %v4290
    %4650 = vmatpush.bf16.msra.mxu0 %v4284
    %4651 = vmatpush.bf16.msra.mxu0 %v4278
    %4652 = vmatpush.bf16.msra.mxu0 %v4272
    %4653 = vmatpush.bf16.msra.mxu0 %v4266
    %4654 = vmatpush.bf16.msra.mxu0 %v4260
    %4655 = vmatpush.bf16.msra.mxu0 %v4254
    %4656 = vmatpush.bf16.msra.mxu0 %v4248
    %4657 = vmatmul.bf16.gmra.mxu0 %v3791
    %v4658 = vpop.f32.mrf.mxu0
    %v4659 = vadd.f32 %v4630, %v4658
    %v4660 = vpop.f32.mrf.mxu0
    %v4661 = vadd.f32 %v4632, %v4660
    %4662 = vmatmul.bf16.gmra.mxu0 %v3793
    %v4663 = vpop.f32.mrf.mxu0
    %v4664 = vadd.f32 %v4635, %v4663
    %v4665 = vpop.f32.mrf.mxu0
    %v4666 = vadd.f32 %v4637, %v4665
    %4667 = vmatmul.bf16.gmra.mxu0 %v3795
    %v4668 = vpop.f32.mrf.mxu0
    %v4669 = vadd.f32 %v4640, %v4668
    %v4670 = vpop.f32.mrf.mxu0
    %v4671 = vadd.f32 %v4642, %v4670
    %4672 = vmatmul.bf16.gmra.mxu0 %v3797
    %v4673 = vpop.f32.mrf.mxu0
    %v4674 = vadd.f32 %v4645, %v4673
    %v4675 = vpop.f32.mrf.mxu0
    %v4676 = vadd.f32 %v4647, %v4675
    %4677 = vdwg.mxu0
    %4678 = vmatpush.bf16.msra.mxu0 %v4243
    %4679 = vmatpush.bf16.msra.mxu0 %v4237
    %4680 = vmatpush.bf16.msra.mxu0 %v4231
    %4681 = vmatpush.bf16.msra.mxu0 %v4225
    %4682 = vmatpush.bf16.msra.mxu0 %v4219
    %4683 = vmatpush.bf16.msra.mxu0 %v4213
    %4684 = vmatpush.bf16.msra.mxu0 %v4207
    %4685 = vmatpush.bf16.msra.mxu0 %v4201
    %4686 = vmatmul.bf16.gmra.mxu0 %v3790
    %v4687 = vpop.f32.mrf.mxu0
    %v4688 = vadd.f32 %v3901, %v4687
    %v4689 = vpop.f32.mrf.mxu0
    %v4690 = vadd.f32 %v3901, %v4689
    %4691 = vmatmul.bf16.gmra.mxu0 %v3792
    %v4692 = vpop.f32.mrf.mxu0
    %v4693 = vadd.f32 %v3901, %v4692
    %v4694 = vpop.f32.mrf.mxu0
    %v4695 = vadd.f32 %v3901, %v4694
    %4696 = vmatmul.bf16.gmra.mxu0 %v3794
    %v4697 = vpop.f32.mrf.mxu0
    %v4698 = vadd.f32 %v3901, %v4697
    %v4699 = vpop.f32.mrf.mxu0
    %v4700 = vadd.f32 %v3901, %v4699
    %4701 = vmatmul.bf16.gmra.mxu0 %v3796
    %v4702 = vpop.f32.mrf.mxu0
    %v4703 = vadd.f32 %v3901, %v4702
    %v4704 = vpop.f32.mrf.mxu0
    %v4705 = vadd.f32 %v3901, %v4704
    %4706 = vdwg.mxu0
    %4707 = vmatpush.bf16.msra.mxu0 %v4291
    %4708 = vmatpush.bf16.msra.mxu0 %v4285
    %4709 = vmatpush.bf16.msra.mxu0 %v4279
    %4710 = vmatpush.bf16.msra.mxu0 %v4273
    %4711 = vmatpush.bf16.msra.mxu0 %v4267
    %4712 = vmatpush.bf16.msra.mxu0 %v4261
    %4713 = vmatpush.bf16.msra.mxu0 %v4255
    %4714 = vmatpush.bf16.msra.mxu0 %v4249
    %4715 = vmatmul.bf16.gmra.mxu0 %v3791
    %v4716 = vpop.f32.mrf.mxu0
    %v4717 = vadd.f32 %v4688, %v4716
    %v4718 = vpop.f32.mrf.mxu0
    %v4719 = vadd.f32 %v4690, %v4718
    %4720 = vmatmul.bf16.gmra.mxu0 %v3793
    %v4721 = vpop.f32.mrf.mxu0
    %v4722 = vadd.f32 %v4693, %v4721
    %v4723 = vpop.f32.mrf.mxu0
    %v4724 = vadd.f32 %v4695, %v4723
    %4725 = vmatmul.bf16.gmra.mxu0 %v3795
    %v4726 = vpop.f32.mrf.mxu0
    %v4727 = vadd.f32 %v4698, %v4726
    %v4728 = vpop.f32.mrf.mxu0
    %v4729 = vadd.f32 %v4700, %v4728
    %4730 = vmatmul.bf16.gmra.mxu0 %v3797
    %v4731 = vpop.f32.mrf.mxu0
    %v4732 = vadd.f32 %v4703, %v4731
    %v4733 = vpop.f32.mrf.mxu0
    %v4734 = vadd.f32 %v4705, %v4733
    %4735 = vdwg.mxu0
    %4736 = vst [vmem:[#allocation2] sm:$0xff] %v4427
    %4737 = vst [vmem:[#allocation2 + $0x8] sm:$0xff] %v4485
    %4738 = vst [vmem:[#allocation2 + $0x10] sm:$0xff] %v4543
    %4739 = vst [vmem:[#allocation2 + $0x18] sm:$0xff] %v4601
    %4740 = vst [vmem:[#allocation2 + $0x20] sm:$0xff] %v4659
    %4741 = vst [vmem:[#allocation2 + $0x28] sm:$0xff] %v4717
    %4742 = vst [vmem:[#allocation2 + $0x30] sm:$0xff] %v4429
    %4743 = vst [vmem:[#allocation2 + $0x38] sm:$0xff] %v4487
    %4744 = vst [vmem:[#allocation2 + $0x40] sm:$0xff] %v4545
    %4745 = vst [vmem:[#allocation2 + $0x48] sm:$0xff] %v4603
    %4746 = vst [vmem:[#allocation2 + $0x50] sm:$0xff] %v4661
    %4747 = vst [vmem:[#allocation2 + $0x58] sm:$0xff] %v4719
    %4748 = vst [vmem:[#allocation2 + $0x60] sm:$0xff] %v4432
    %4749 = vst [vmem:[#allocation2 + $0x68] sm:$0xff] %v4490
    %4750 = vst [vmem:[#allocation2 + $0x70] sm:$0xff] %v4548
    %4751 = vst [vmem:[#allocation2 + $0x78] sm:$0xff] %v4606
    %4752 = vst [vmem:[#allocation2 + $0x80] sm:$0xff] %v4664
    %4753 = vst [vmem:[#allocation2 + $0x88] sm:$0xff] %v4722
    %4754 = vst [vmem:[#allocation2 + $0x90] sm:$0xff] %v4434
    %4755 = vst [vmem:[#allocation2 + $0x98] sm:$0xff] %v4492
    %4756 = vst [vmem:[#allocation2 + $0xa0] sm:$0xff] %v4550
    %4757 = vst [vmem:[#allocation2 + $0xa8] sm:$0xff] %v4608
    %4758 = vst [vmem:[#allocation2 + $0xb0] sm:$0xff] %v4666
    %4759 = vst [vmem:[#allocation2 + $0xb8] sm:$0xff] %v4724
    %4760 = vst [vmem:[#allocation2 + $0xc0] sm:$0xff] %v4437
    %4761 = vst [vmem:[#allocation2 + $0xc8] sm:$0xff] %v4495
    %4762 = vst [vmem:[#allocation2 + $0xd0] sm:$0xff] %v4553
    %4763 = vst [vmem:[#allocation2 + $0xd8] sm:$0xff] %v4611
    %4764 = vst [vmem:[#allocation2 + $0xe0] sm:$0xff] %v4669
    %4765 = vst [vmem:[#allocation2 + $0xe8] sm:$0xff] %v4727
    %4766 = vst [vmem:[#allocation2 + $0xf0] sm:$0xff] %v4439
    %4767 = vst [vmem:[#allocation2 + $0xf8] sm:$0xff] %v4497
    %4768 = vst [vmem:[#allocation2 + $0x100] sm:$0xff] %v4555
    %4769 = vst [vmem:[#allocation2 + $0x108] sm:$0xff] %v4613
    %4770 = vst [vmem:[#allocation2 + $0x110] sm:$0xff] %v4671
    %4771 = vst [vmem:[#allocation2 + $0x118] sm:$0xff] %v4729
    %4772 = vst [vmem:[#allocation2 + $0x120] sm:$0xff] %v4442
    %4773 = vst [vmem:[#allocation2 + $0x128] sm:$0xff] %v4500
    %4774 = vst [vmem:[#allocation2 + $0x130] sm:$0xff] %v4558
    %4775 = vst [vmem:[#allocation2 + $0x138] sm:$0xff] %v4616
    %4776 = vst [vmem:[#allocation2 + $0x140] sm:$0xff] %v4674
    %4777 = vst [vmem:[#allocation2 + $0x148] sm:$0xff] %v4732
    %4778 = vst [vmem:[#allocation2 + $0x150] sm:$0xff] %v4444
    %4779 = vst [vmem:[#allocation2 + $0x158] sm:$0xff] %v4502
    %4780 = vst [vmem:[#allocation2 + $0x160] sm:$0xff] %v4560
    %4781 = vst [vmem:[#allocation2 + $0x168] sm:$0xff] %v4618
    %4782 = vst [vmem:[#allocation2 + $0x170] sm:$0xff] %v4676
    %4783 = vst [vmem:[#allocation2 + $0x178] sm:$0xff] %v4734
    %v4784 = vld [vmem:[#allocation7] sm:$0xff]
    %v4785 = vld [vmem:[#allocation7 + $0x8] sm:$0xff]
    %v4786 = vld [vmem:[#allocation7 + $0x10] sm:$0xff]
    %v4787 = vld [vmem:[#allocation7 + $0x18] sm:$0xff]
    %v4788 = vld [vmem:[#allocation7 + $0x20] sm:$0xff]
    %v4789 = vld [vmem:[#allocation7 + $0x28] sm:$0xff]
    %v4790 = vld [vmem:[#allocation7 + $0x30] sm:$0xff]
    %v4791 = vld [vmem:[#allocation7 + $0x38] sm:$0xff]
    %v4792 = vld [vmem:[#allocation7 + $0x40] sm:$0xff]
    %v4793 = vld [vmem:[#allocation7 + $0x48] sm:$0xff]
    %v4794 = vld [vmem:[#allocation7 + $0x50] sm:$0xff]
    %v4795 = vld [vmem:[#allocation7 + $0x58] sm:$0xff]
    %v4796 = vld [vmem:[#allocation7 + $0x60] sm:$0xff]
    %v4797 = vld [vmem:[#allocation7 + $0x68] sm:$0xff]
    %v4798 = vld [vmem:[#allocation7 + $0x70] sm:$0xff]
    %v4799 = vld [vmem:[#allocation7 + $0x78] sm:$0xff]
    %v4800 = vld [vmem:[#allocation7 + $0x80] sm:$0xff]
    %v4801 = vld [vmem:[#allocation7 + $0x88] sm:$0xff]
    %v4802 = vld [vmem:[#allocation7 + $0x90] sm:$0xff]
    %v4803 = vld [vmem:[#allocation7 + $0x98] sm:$0xff]
    %v4804 = vld [vmem:[#allocation7 + $0xa0] sm:$0xff]
    %v4805 = vld [vmem:[#allocation7 + $0xa8] sm:$0xff]
    %v4806 = vld [vmem:[#allocation7 + $0xb0] sm:$0xff]
    %v4807 = vld [vmem:[#allocation7 + $0xb8] sm:$0xff]
    %v4808 = vld [vmem:[#allocation7 + $0xc0] sm:$0xff]
    %v4809 = vld [vmem:[#allocation7 + $0xc8] sm:$0xff]
    %v4810 = vld [vmem:[#allocation7 + $0xd0] sm:$0xff]
    %v4811 = vld [vmem:[#allocation7 + $0xd8] sm:$0xff]
    %v4812 = vld [vmem:[#allocation7 + $0xe0] sm:$0xff]
    %v4813 = vld [vmem:[#allocation7 + $0xe8] sm:$0xff]
    %v4814 = vld [vmem:[#allocation7 + $0xf0] sm:$0xff]
    %v4815 = vld [vmem:[#allocation7 + $0xf8] sm:$0xff]
    %v4816 = vld [vmem:[#allocation7 + $0x100] sm:$0xff]
    %v4817 = vld [vmem:[#allocation7 + $0x108] sm:$0xff]
    %v4818 = vld [vmem:[#allocation7 + $0x110] sm:$0xff]
    %v4819 = vld [vmem:[#allocation7 + $0x118] sm:$0xff]
    %v4820 = vld [vmem:[#allocation7 + $0x120] sm:$0xff]
    %v4821 = vld [vmem:[#allocation7 + $0x128] sm:$0xff]
    %v4822 = vld [vmem:[#allocation7 + $0x130] sm:$0xff]
    %v4823 = vld [vmem:[#allocation7 + $0x138] sm:$0xff]
    %v4824 = vld [vmem:[#allocation7 + $0x140] sm:$0xff]
    %v4825 = vld [vmem:[#allocation7 + $0x148] sm:$0xff]
    %v4826 = vld [vmem:[#allocation7 + $0x150] sm:$0xff]
    %v4827 = vld [vmem:[#allocation7 + $0x158] sm:$0xff]
    %v4828 = vld [vmem:[#allocation7 + $0x160] sm:$0xff]
    %v4829 = vld [vmem:[#allocation7 + $0x168] sm:$0xff]
    %v4830 = vld [vmem:[#allocation7 + $0x170] sm:$0xff]
    %v4831 = vld [vmem:[#allocation7 + $0x178] sm:$0xff]
    %v4832 = vld [vmem:[#allocation7 + $0x180] sm:$0xff]
    %v4833 = vld [vmem:[#allocation7 + $0x188] sm:$0xff]
    %v4834 = vld [vmem:[#allocation7 + $0x190] sm:$0xff]
    %v4835 = vld [vmem:[#allocation7 + $0x198] sm:$0xff]
    %v4836 = vld [vmem:[#allocation7 + $0x1a0] sm:$0xff]
    %v4837 = vld [vmem:[#allocation7 + $0x1a8] sm:$0xff]
    %v4838 = vld [vmem:[#allocation7 + $0x1b0] sm:$0xff]
    %v4839 = vld [vmem:[#allocation7 + $0x1b8] sm:$0xff]
    %v4840 = vld [vmem:[#allocation7 + $0x1c0] sm:$0xff]
    %v4841 = vld [vmem:[#allocation7 + $0x1c8] sm:$0xff]
    %v4842 = vld [vmem:[#allocation7 + $0x1d0] sm:$0xff]
    %v4843 = vld [vmem:[#allocation7 + $0x1d8] sm:$0xff]
    %v4844 = vld [vmem:[#allocation7 + $0x1e0] sm:$0xff]
    %v4845 = vld [vmem:[#allocation7 + $0x1e8] sm:$0xff]
    %v4846 = vld [vmem:[#allocation7 + $0x1f0] sm:$0xff]
    %v4847 = vld [vmem:[#allocation7 + $0x1f8] sm:$0xff]
    %v4848 = vld [vmem:[#allocation7 + $0x200] sm:$0xff]
    %v4849 = vld [vmem:[#allocation7 + $0x208] sm:$0xff]
    %v4850 = vld [vmem:[#allocation7 + $0x210] sm:$0xff]
    %v4851 = vld [vmem:[#allocation7 + $0x218] sm:$0xff]
    %v4852 = vld [vmem:[#allocation7 + $0x220] sm:$0xff]
    %v4853 = vld [vmem:[#allocation7 + $0x228] sm:$0xff]
    %v4854 = vld [vmem:[#allocation7 + $0x230] sm:$0xff]
    %v4855 = vld [vmem:[#allocation7 + $0x238] sm:$0xff]
    %v4856 = vld [vmem:[#allocation7 + $0x240] sm:$0xff]
    %v4857 = vld [vmem:[#allocation7 + $0x248] sm:$0xff]
    %v4858 = vld [vmem:[#allocation7 + $0x250] sm:$0xff]
    %v4859 = vld [vmem:[#allocation7 + $0x258] sm:$0xff]
    %v4860 = vld [vmem:[#allocation7 + $0x260] sm:$0xff]
    %v4861 = vld [vmem:[#allocation7 + $0x268] sm:$0xff]
    %v4862 = vld [vmem:[#allocation7 + $0x270] sm:$0xff]
    %v4863 = vld [vmem:[#allocation7 + $0x278] sm:$0xff]
    %v4864 = vld [vmem:[#allocation7 + $0x280] sm:$0xff]
    %v4865 = vld [vmem:[#allocation7 + $0x288] sm:$0xff]
    %v4866 = vld [vmem:[#allocation7 + $0x290] sm:$0xff]
    %v4867 = vld [vmem:[#allocation7 + $0x298] sm:$0xff]
    %v4868 = vld [vmem:[#allocation7 + $0x2a0] sm:$0xff]
    %v4869 = vld [vmem:[#allocation7 + $0x2a8] sm:$0xff]
    %v4870 = vld [vmem:[#allocation7 + $0x2b0] sm:$0xff]
    %v4871 = vld [vmem:[#allocation7 + $0x2b8] sm:$0xff]
    %v4872 = vld [vmem:[#allocation7 + $0x2c0] sm:$0xff]
    %v4873 = vld [vmem:[#allocation7 + $0x2c8] sm:$0xff]
    %v4874 = vld [vmem:[#allocation7 + $0x2d0] sm:$0xff]
    %v4875 = vld [vmem:[#allocation7 + $0x2d8] sm:$0xff]
    %v4876 = vld [vmem:[#allocation7 + $0x2e0] sm:$0xff]
    %v4877 = vld [vmem:[#allocation7 + $0x2e8] sm:$0xff]
    %v4878 = vld [vmem:[#allocation7 + $0x2f0] sm:$0xff]
    %v4879 = vld [vmem:[#allocation7 + $0x2f8] sm:$0xff]
    %v4880 = vld [vmem:[#allocation17] sm:$0x3f]
    %v4882 = vperm.slane %v4880, 0
    %v4883 = vperm.slane %v4880, 1
    %v4884 = vperm.slane %v4880, 2
    %v4885 = vperm.slane %v4880, 3
    %v4886 = vperm.slane %v4880, 4
    %v4887 = vperm.slane %v4880, 5
    %v4990 = vunpack.c.l.b16 %v4784
    %v4991 = vunpack.c.h.b16 %v4784
    %v4992 = vunpack.c.l.b16 %v4785
    %v4993 = vunpack.c.h.b16 %v4785
    %v4994 = vunpack.c.l.b16 %v4786
    %v4995 = vunpack.c.h.b16 %v4786
    %v4996 = vunpack.c.l.b16 %v4787
    %v4997 = vunpack.c.h.b16 %v4787
    %v4998 = vunpack.c.l.b16 %v4788
    %v4999 = vunpack.c.h.b16 %v4788
    %v5000 = vunpack.c.l.b16 %v4789
    %v5001 = vunpack.c.h.b16 %v4789
    %v5002 = vunpack.c.l.b16 %v4790
    %v5003 = vunpack.c.h.b16 %v4790
    %v5004 = vunpack.c.l.b16 %v4791
    %v5005 = vunpack.c.h.b16 %v4791
    %v5006 = vunpack.c.l.b16 %v4792
    %v5007 = vunpack.c.h.b16 %v4792
    %v5008 = vunpack.c.l.b16 %v4793
    %v5009 = vunpack.c.h.b16 %v4793
    %v5010 = vunpack.c.l.b16 %v4794
    %v5011 = vunpack.c.h.b16 %v4794
    %v5012 = vunpack.c.l.b16 %v4795
    %v5013 = vunpack.c.h.b16 %v4795
    %v5014 = vunpack.c.l.b16 %v4796
    %v5015 = vunpack.c.h.b16 %v4796
    %v5016 = vunpack.c.l.b16 %v4797
    %v5017 = vunpack.c.h.b16 %v4797
    %v5018 = vunpack.c.l.b16 %v4798
    %v5019 = vunpack.c.h.b16 %v4798
    %v5020 = vunpack.c.l.b16 %v4799
    %v5021 = vunpack.c.h.b16 %v4799
    %v5022 = vunpack.c.l.b16 %v4800
    %v5023 = vunpack.c.h.b16 %v4800
    %v5024 = vunpack.c.l.b16 %v4801
    %v5025 = vunpack.c.h.b16 %v4801
    %v5026 = vunpack.c.l.b16 %v4802
    %v5027 = vunpack.c.h.b16 %v4802
    %v5028 = vunpack.c.l.b16 %v4803
    %v5029 = vunpack.c.h.b16 %v4803
    %v5030 = vunpack.c.l.b16 %v4804
    %v5031 = vunpack.c.h.b16 %v4804
    %v5032 = vunpack.c.l.b16 %v4805
    %v5033 = vunpack.c.h.b16 %v4805
    %v5034 = vunpack.c.l.b16 %v4806
    %v5035 = vunpack.c.h.b16 %v4806
    %v5036 = vunpack.c.l.b16 %v4807
    %v5037 = vunpack.c.h.b16 %v4807
    %v5038 = vunpack.c.l.b16 %v4808
    %v5039 = vunpack.c.h.b16 %v4808
    %v5040 = vunpack.c.l.b16 %v4809
    %v5041 = vunpack.c.h.b16 %v4809
    %v5042 = vunpack.c.l.b16 %v4810
    %v5043 = vunpack.c.h.b16 %v4810
    %v5044 = vunpack.c.l.b16 %v4811
    %v5045 = vunpack.c.h.b16 %v4811
    %v5046 = vunpack.c.l.b16 %v4812
    %v5047 = vunpack.c.h.b16 %v4812
    %v5048 = vunpack.c.l.b16 %v4813
    %v5049 = vunpack.c.h.b16 %v4813
    %v5050 = vunpack.c.l.b16 %v4814
    %v5051 = vunpack.c.h.b16 %v4814
    %v5052 = vunpack.c.l.b16 %v4815
    %v5053 = vunpack.c.h.b16 %v4815
    %v5054 = vunpack.c.l.b16 %v4816
    %v5055 = vunpack.c.h.b16 %v4816
    %v5056 = vunpack.c.l.b16 %v4817
    %v5057 = vunpack.c.h.b16 %v4817
    %v5058 = vunpack.c.l.b16 %v4818
    %v5059 = vunpack.c.h.b16 %v4818
    %v5060 = vunpack.c.l.b16 %v4819
    %v5061 = vunpack.c.h.b16 %v4819
    %v5062 = vunpack.c.l.b16 %v4820
    %v5063 = vunpack.c.h.b16 %v4820
    %v5064 = vunpack.c.l.b16 %v4821
    %v5065 = vunpack.c.h.b16 %v4821
    %v5066 = vunpack.c.l.b16 %v4822
    %v5067 = vunpack.c.h.b16 %v4822
    %v5068 = vunpack.c.l.b16 %v4823
    %v5069 = vunpack.c.h.b16 %v4823
    %v5070 = vunpack.c.l.b16 %v4824
    %v5071 = vunpack.c.h.b16 %v4824
    %v5072 = vunpack.c.l.b16 %v4825
    %v5073 = vunpack.c.h.b16 %v4825
    %v5074 = vunpack.c.l.b16 %v4826
    %v5075 = vunpack.c.h.b16 %v4826
    %v5076 = vunpack.c.l.b16 %v4827
    %v5077 = vunpack.c.h.b16 %v4827
    %v5078 = vunpack.c.l.b16 %v4828
    %v5079 = vunpack.c.h.b16 %v4828
    %v5080 = vunpack.c.l.b16 %v4829
    %v5081 = vunpack.c.h.b16 %v4829
    %v5082 = vunpack.c.l.b16 %v4830
    %v5083 = vunpack.c.h.b16 %v4830
    %v5084 = vunpack.c.l.b16 %v4831
    %v5085 = vunpack.c.h.b16 %v4831
    %v5086 = vunpack.c.l.b16 %v4832
    %v5087 = vunpack.c.h.b16 %v4832
    %v5088 = vunpack.c.l.b16 %v4833
    %v5089 = vunpack.c.h.b16 %v4833
    %v5090 = vunpack.c.l.b16 %v4834
    %v5091 = vunpack.c.h.b16 %v4834
    %v5092 = vunpack.c.l.b16 %v4835
    %v5093 = vunpack.c.h.b16 %v4835
    %v5094 = vunpack.c.l.b16 %v4836
    %v5095 = vunpack.c.h.b16 %v4836
    %v5096 = vunpack.c.l.b16 %v4837
    %v5097 = vunpack.c.h.b16 %v4837
    %v5098 = vunpack.c.l.b16 %v4838
    %v5099 = vunpack.c.h.b16 %v4838
    %v5100 = vunpack.c.l.b16 %v4839
    %v5101 = vunpack.c.h.b16 %v4839
    %v5102 = vunpack.c.l.b16 %v4840
    %v5103 = vunpack.c.h.b16 %v4840
    %v5104 = vunpack.c.l.b16 %v4841
    %v5105 = vunpack.c.h.b16 %v4841
    %v5106 = vunpack.c.l.b16 %v4842
    %v5107 = vunpack.c.h.b16 %v4842
    %v5108 = vunpack.c.l.b16 %v4843
    %v5109 = vunpack.c.h.b16 %v4843
    %v5110 = vunpack.c.l.b16 %v4844
    %v5111 = vunpack.c.h.b16 %v4844
    %v5112 = vunpack.c.l.b16 %v4845
    %v5113 = vunpack.c.h.b16 %v4845
    %v5114 = vunpack.c.l.b16 %v4846
    %v5115 = vunpack.c.h.b16 %v4846
    %v5116 = vunpack.c.l.b16 %v4847
    %v5117 = vunpack.c.h.b16 %v4847
    %v5118 = vunpack.c.l.b16 %v4848
    %v5119 = vunpack.c.h.b16 %v4848
    %v5120 = vunpack.c.l.b16 %v4849
    %v5121 = vunpack.c.h.b16 %v4849
    %v5122 = vunpack.c.l.b16 %v4850
    %v5123 = vunpack.c.h.b16 %v4850
    %v5124 = vunpack.c.l.b16 %v4851
    %v5125 = vunpack.c.h.b16 %v4851
    %v5126 = vunpack.c.l.b16 %v4852
    %v5127 = vunpack.c.h.b16 %v4852
    %v5128 = vunpack.c.l.b16 %v4853
    %v5129 = vunpack.c.h.b16 %v4853
    %v5130 = vunpack.c.l.b16 %v4854
    %v5131 = vunpack.c.h.b16 %v4854
    %v5132 = vunpack.c.l.b16 %v4855
    %v5133 = vunpack.c.h.b16 %v4855
    %v5134 = vunpack.c.l.b16 %v4856
    %v5135 = vunpack.c.h.b16 %v4856
    %v5136 = vunpack.c.l.b16 %v4857
    %v5137 = vunpack.c.h.b16 %v4857
    %v5138 = vunpack.c.l.b16 %v4858
    %v5139 = vunpack.c.h.b16 %v4858
    %v5140 = vunpack.c.l.b16 %v4859
    %v5141 = vunpack.c.h.b16 %v4859
    %v5142 = vunpack.c.l.b16 %v4860
    %v5143 = vunpack.c.h.b16 %v4860
    %v5144 = vunpack.c.l.b16 %v4861
    %v5145 = vunpack.c.h.b16 %v4861
    %v5146 = vunpack.c.l.b16 %v4862
    %v5147 = vunpack.c.h.b16 %v4862
    %v5148 = vunpack.c.l.b16 %v4863
    %v5149 = vunpack.c.h.b16 %v4863
    %v5150 = vunpack.c.l.b16 %v4864
    %v5151 = vunpack.c.h.b16 %v4864
    %v5152 = vunpack.c.l.b16 %v4865
    %v5153 = vunpack.c.h.b16 %v4865
    %v5154 = vunpack.c.l.b16 %v4866
    %v5155 = vunpack.c.h.b16 %v4866
    %v5156 = vunpack.c.l.b16 %v4867
    %v5157 = vunpack.c.h.b16 %v4867
    %v5158 = vunpack.c.l.b16 %v4868
    %v5159 = vunpack.c.h.b16 %v4868
    %v5160 = vunpack.c.l.b16 %v4869
    %v5161 = vunpack.c.h.b16 %v4869
    %v5162 = vunpack.c.l.b16 %v4870
    %v5163 = vunpack.c.h.b16 %v4870
    %v5164 = vunpack.c.l.b16 %v4871
    %v5165 = vunpack.c.h.b16 %v4871
    %v5166 = vunpack.c.l.b16 %v4872
    %v5167 = vunpack.c.h.b16 %v4872
    %v5168 = vunpack.c.l.b16 %v4873
    %v5169 = vunpack.c.h.b16 %v4873
    %v5170 = vunpack.c.l.b16 %v4874
    %v5171 = vunpack.c.h.b16 %v4874
    %v5172 = vunpack.c.l.b16 %v4875
    %v5173 = vunpack.c.h.b16 %v4875
    %v5174 = vunpack.c.l.b16 %v4876
    %v5175 = vunpack.c.h.b16 %v4876
    %v5176 = vunpack.c.l.b16 %v4877
    %v5177 = vunpack.c.h.b16 %v4877
    %v5178 = vunpack.c.l.b16 %v4878
    %v5179 = vunpack.c.h.b16 %v4878
    %v5180 = vunpack.c.l.b16 %v4879
    %v5181 = vunpack.c.h.b16 %v4879
    %v5182 = vpack.c.b16 %v4996, %v4990
    %v5183 = vpack.c.b16 %v4997, %v4991
    %v5184 = vpack.c.b16 %v4998, %v4992
    %v5185 = vpack.c.b16 %v4999, %v4993
    %v5186 = vpack.c.b16 %v5000, %v4994
    %v5187 = vpack.c.b16 %v5001, %v4995
    %v5188 = vpack.c.b16 %v5008, %v5002
    %v5189 = vpack.c.b16 %v5009, %v5003
    %v5190 = vpack.c.b16 %v5010, %v5004
    %v5191 = vpack.c.b16 %v5011, %v5005
    %v5192 = vpack.c.b16 %v5012, %v5006
    %v5193 = vpack.c.b16 %v5013, %v5007
    %v5194 = vpack.c.b16 %v5020, %v5014
    %v5195 = vpack.c.b16 %v5021, %v5015
    %v5196 = vpack.c.b16 %v5022, %v5016
    %v5197 = vpack.c.b16 %v5023, %v5017
    %v5198 = vpack.c.b16 %v5024, %v5018
    %v5199 = vpack.c.b16 %v5025, %v5019
    %v5200 = vpack.c.b16 %v5032, %v5026
    %v5201 = vpack.c.b16 %v5033, %v5027
    %v5202 = vpack.c.b16 %v5034, %v5028
    %v5203 = vpack.c.b16 %v5035, %v5029
    %v5204 = vpack.c.b16 %v5036, %v5030
    %v5205 = vpack.c.b16 %v5037, %v5031
    %v5206 = vpack.c.b16 %v5044, %v5038
    %v5207 = vpack.c.b16 %v5045, %v5039
    %v5208 = vpack.c.b16 %v5046, %v5040
    %v5209 = vpack.c.b16 %v5047, %v5041
    %v5210 = vpack.c.b16 %v5048, %v5042
    %v5211 = vpack.c.b16 %v5049, %v5043
    %v5212 = vpack.c.b16 %v5056, %v5050
    %v5213 = vpack.c.b16 %v5057, %v5051
    %v5214 = vpack.c.b16 %v5058, %v5052
    %v5215 = vpack.c.b16 %v5059, %v5053
    %v5216 = vpack.c.b16 %v5060, %v5054
    %v5217 = vpack.c.b16 %v5061, %v5055
    %v5218 = vpack.c.b16 %v5068, %v5062
    %v5219 = vpack.c.b16 %v5069, %v5063
    %v5220 = vpack.c.b16 %v5070, %v5064
    %v5221 = vpack.c.b16 %v5071, %v5065
    %v5222 = vpack.c.b16 %v5072, %v5066
    %v5223 = vpack.c.b16 %v5073, %v5067
    %v5224 = vpack.c.b16 %v5080, %v5074
    %v5225 = vpack.c.b16 %v5081, %v5075
    %v5226 = vpack.c.b16 %v5082, %v5076
    %v5227 = vpack.c.b16 %v5083, %v5077
    %v5228 = vpack.c.b16 %v5084, %v5078
    %v5229 = vpack.c.b16 %v5085, %v5079
    %v5230 = vpack.c.b16 %v5092, %v5086
    %v5231 = vpack.c.b16 %v5093, %v5087
    %v5232 = vpack.c.b16 %v5094, %v5088
    %v5233 = vpack.c.b16 %v5095, %v5089
    %v5234 = vpack.c.b16 %v5096, %v5090
    %v5235 = vpack.c.b16 %v5097, %v5091
    %v5236 = vpack.c.b16 %v5104, %v5098
    %v5237 = vpack.c.b16 %v5105, %v5099
    %v5238 = vpack.c.b16 %v5106, %v5100
    %v5239 = vpack.c.b16 %v5107, %v5101
    %v5240 = vpack.c.b16 %v5108, %v5102
    %v5241 = vpack.c.b16 %v5109, %v5103
    %v5242 = vpack.c.b16 %v5116, %v5110
    %v5243 = vpack.c.b16 %v5117, %v5111
    %v5244 = vpack.c.b16 %v5118, %v5112
    %v5245 = vpack.c.b16 %v5119, %v5113
    %v5246 = vpack.c.b16 %v5120, %v5114
    %v5247 = vpack.c.b16 %v5121, %v5115
    %v5248 = vpack.c.b16 %v5128, %v5122
    %v5249 = vpack.c.b16 %v5129, %v5123
    %v5250 = vpack.c.b16 %v5130, %v5124
    %v5251 = vpack.c.b16 %v5131, %v5125
    %v5252 = vpack.c.b16 %v5132, %v5126
    %v5253 = vpack.c.b16 %v5133, %v5127
    %v5254 = vpack.c.b16 %v5140, %v5134
    %v5255 = vpack.c.b16 %v5141, %v5135
    %v5256 = vpack.c.b16 %v5142, %v5136
    %v5257 = vpack.c.b16 %v5143, %v5137
    %v5258 = vpack.c.b16 %v5144, %v5138
    %v5259 = vpack.c.b16 %v5145, %v5139
    %v5260 = vpack.c.b16 %v5152, %v5146
    %v5261 = vpack.c.b16 %v5153, %v5147
    %v5262 = vpack.c.b16 %v5154, %v5148
    %v5263 = vpack.c.b16 %v5155, %v5149
    %v5264 = vpack.c.b16 %v5156, %v5150
    %v5265 = vpack.c.b16 %v5157, %v5151
    %v5266 = vpack.c.b16 %v5164, %v5158
    %v5267 = vpack.c.b16 %v5165, %v5159
    %v5268 = vpack.c.b16 %v5166, %v5160
    %v5269 = vpack.c.b16 %v5167, %v5161
    %v5270 = vpack.c.b16 %v5168, %v5162
    %v5271 = vpack.c.b16 %v5169, %v5163
    %v5272 = vpack.c.b16 %v5176, %v5170
    %v5273 = vpack.c.b16 %v5177, %v5171
    %v5274 = vpack.c.b16 %v5178, %v5172
    %v5275 = vpack.c.b16 %v5179, %v5173
    %v5276 = vpack.c.b16 %v5180, %v5174
    %v5277 = vpack.c.b16 %v5181, %v5175
    %5374 = vmatpush.bf16.msra.mxu0 %v5224
    %5375 = vmatpush.bf16.msra.mxu0 %v5218
    %5376 = vmatpush.bf16.msra.mxu0 %v5212
    %5377 = vmatpush.bf16.msra.mxu0 %v5206
    %5378 = vmatpush.bf16.msra.mxu0 %v5200
    %5379 = vmatpush.bf16.msra.mxu0 %v5194
    %5380 = vmatpush.bf16.msra.mxu0 %v5188
    %5381 = vmatpush.bf16.msra.mxu0 %v5182
    %5382 = vmatmul.bf16.gmra.mxu0 %v1199
    %v5383 = vpop.f32.mrf.mxu0
    %v5384 = vadd.f32 %v4882, %v5383
    %v5385 = vpop.f32.mrf.mxu0
    %5386 = vdwg.mxu0
    %5387 = vmatpush.bf16.msra.mxu0 %v5272
    %5388 = vmatpush.bf16.msra.mxu0 %v5266
    %5389 = vmatpush.bf16.msra.mxu0 %v5260
    %5390 = vmatpush.bf16.msra.mxu0 %v5254
    %5391 = vmatpush.bf16.msra.mxu0 %v5248
    %5392 = vmatpush.bf16.msra.mxu0 %v5242
    %5393 = vmatpush.bf16.msra.mxu0 %v5236
    %5394 = vmatpush.bf16.msra.mxu0 %v5230
    %5395 = vmatmul.bf16.gmra.mxu0 %v1199
    %v5396 = vpop.f32.mrf.mxu0
    %v5397 = vadd.f32 %v5384, %v5396
    %v5398 = vpop.f32.mrf.mxu0
    %5399 = vdwg.mxu0
    %5400 = vmatpush.bf16.msra.mxu0 %v5225
    %5401 = vmatpush.bf16.msra.mxu0 %v5219
    %5402 = vmatpush.bf16.msra.mxu0 %v5213
    %5403 = vmatpush.bf16.msra.mxu0 %v5207
    %5404 = vmatpush.bf16.msra.mxu0 %v5201
    %5405 = vmatpush.bf16.msra.mxu0 %v5195
    %5406 = vmatpush.bf16.msra.mxu0 %v5189
    %5407 = vmatpush.bf16.msra.mxu0 %v5183
    %5408 = vmatmul.bf16.gmra.mxu0 %v1199
    %v5409 = vpop.f32.mrf.mxu0
    %v5410 = vadd.f32 %v4883, %v5409
    %v5411 = vpop.f32.mrf.mxu0
    %5412 = vdwg.mxu0
    %5413 = vmatpush.bf16.msra.mxu0 %v5273
    %5414 = vmatpush.bf16.msra.mxu0 %v5267
    %5415 = vmatpush.bf16.msra.mxu0 %v5261
    %5416 = vmatpush.bf16.msra.mxu0 %v5255
    %5417 = vmatpush.bf16.msra.mxu0 %v5249
    %5418 = vmatpush.bf16.msra.mxu0 %v5243
    %5419 = vmatpush.bf16.msra.mxu0 %v5237
    %5420 = vmatpush.bf16.msra.mxu0 %v5231
    %5421 = vmatmul.bf16.gmra.mxu0 %v1199
    %v5422 = vpop.f32.mrf.mxu0
    %v5423 = vadd.f32 %v5410, %v5422
    %v5424 = vpop.f32.mrf.mxu0
    %5425 = vdwg.mxu0
    %5426 = vmatpush.bf16.msra.mxu0 %v5226
    %5427 = vmatpush.bf16.msra.mxu0 %v5220
    %5428 = vmatpush.bf16.msra.mxu0 %v5214
    %5429 = vmatpush.bf16.msra.mxu0 %v5208
    %5430 = vmatpush.bf16.msra.mxu0 %v5202
    %5431 = vmatpush.bf16.msra.mxu0 %v5196
    %5432 = vmatpush.bf16.msra.mxu0 %v5190
    %5433 = vmatpush.bf16.msra.mxu0 %v5184
    %5434 = vmatmul.bf16.gmra.mxu0 %v1199
    %v5435 = vpop.f32.mrf.mxu0
    %v5436 = vadd.f32 %v4884, %v5435
    %v5437 = vpop.f32.mrf.mxu0
    %5438 = vdwg.mxu0
    %5439 = vmatpush.bf16.msra.mxu0 %v5274
    %5440 = vmatpush.bf16.msra.mxu0 %v5268
    %5441 = vmatpush.bf16.msra.mxu0 %v5262
    %5442 = vmatpush.bf16.msra.mxu0 %v5256
    %5443 = vmatpush.bf16.msra.mxu0 %v5250
    %5444 = vmatpush.bf16.msra.mxu0 %v5244
    %5445 = vmatpush.bf16.msra.mxu0 %v5238
    %5446 = vmatpush.bf16.msra.mxu0 %v5232
    %5447 = vmatmul.bf16.gmra.mxu0 %v1199
    %v5448 = vpop.f32.mrf.mxu0
    %v5449 = vadd.f32 %v5436, %v5448
    %v5450 = vpop.f32.mrf.mxu0
    %5451 = vdwg.mxu0
    %5452 = vmatpush.bf16.msra.mxu0 %v5227
    %5453 = vmatpush.bf16.msra.mxu0 %v5221
    %5454 = vmatpush.bf16.msra.mxu0 %v5215
    %5455 = vmatpush.bf16.msra.mxu0 %v5209
    %5456 = vmatpush.bf16.msra.mxu0 %v5203
    %5457 = vmatpush.bf16.msra.mxu0 %v5197
    %5458 = vmatpush.bf16.msra.mxu0 %v5191
    %5459 = vmatpush.bf16.msra.mxu0 %v5185
    %5460 = vmatmul.bf16.gmra.mxu0 %v1199
    %v5461 = vpop.f32.mrf.mxu0
    %v5462 = vadd.f32 %v4885, %v5461
    %v5463 = vpop.f32.mrf.mxu0
    %5464 = vdwg.mxu0
    %5465 = vmatpush.bf16.msra.mxu0 %v5275
    %5466 = vmatpush.bf16.msra.mxu0 %v5269
    %5467 = vmatpush.bf16.msra.mxu0 %v5263
    %5468 = vmatpush.bf16.msra.mxu0 %v5257
    %5469 = vmatpush.bf16.msra.mxu0 %v5251
    %5470 = vmatpush.bf16.msra.mxu0 %v5245
    %5471 = vmatpush.bf16.msra.mxu0 %v5239
    %5472 = vmatpush.bf16.msra.mxu0 %v5233
    %5473 = vmatmul.bf16.gmra.mxu0 %v1199
    %v5474 = vpop.f32.mrf.mxu0
    %v5475 = vadd.f32 %v5462, %v5474
    %v5476 = vpop.f32.mrf.mxu0
    %5477 = vdwg.mxu0
    %5478 = vmatpush.bf16.msra.mxu0 %v5228
    %5479 = vmatpush.bf16.msra.mxu0 %v5222
    %5480 = vmatpush.bf16.msra.mxu0 %v5216
    %5481 = vmatpush.bf16.msra.mxu0 %v5210
    %5482 = vmatpush.bf16.msra.mxu0 %v5204
    %5483 = vmatpush.bf16.msra.mxu0 %v5198
    %5484 = vmatpush.bf16.msra.mxu0 %v5192
    %5485 = vmatpush.bf16.msra.mxu0 %v5186
    %5486 = vmatmul.bf16.gmra.mxu0 %v1199
    %v5487 = vpop.f32.mrf.mxu0
    %v5488 = vadd.f32 %v4886, %v5487
    %v5489 = vpop.f32.mrf.mxu0
    %5490 = vdwg.mxu0
    %5491 = vmatpush.bf16.msra.mxu0 %v5276
    %5492 = vmatpush.bf16.msra.mxu0 %v5270
    %5493 = vmatpush.bf16.msra.mxu0 %v5264
    %5494 = vmatpush.bf16.msra.mxu0 %v5258
    %5495 = vmatpush.bf16.msra.mxu0 %v5252
    %5496 = vmatpush.bf16.msra.mxu0 %v5246
    %5497 = vmatpush.bf16.msra.mxu0 %v5240
    %5498 = vmatpush.bf16.msra.mxu0 %v5234
    %5499 = vmatmul.bf16.gmra.mxu0 %v1199
    %v5500 = vpop.f32.mrf.mxu0
    %v5501 = vadd.f32 %v5488, %v5500
    %v5502 = vpop.f32.mrf.mxu0
    %5503 = vdwg.mxu0
    %5504 = vmatpush.bf16.msra.mxu0 %v5229
    %5505 = vmatpush.bf16.msra.mxu0 %v5223
    %5506 = vmatpush.bf16.msra.mxu0 %v5217
    %5507 = vmatpush.bf16.msra.mxu0 %v5211
    %5508 = vmatpush.bf16.msra.mxu0 %v5205
    %5509 = vmatpush.bf16.msra.mxu0 %v5199
    %5510 = vmatpush.bf16.msra.mxu0 %v5193
    %5511 = vmatpush.bf16.msra.mxu0 %v5187
    %5512 = vmatmul.bf16.gmra.mxu0 %v1199
    %v5513 = vpop.f32.mrf.mxu0
    %v5514 = vadd.f32 %v4887, %v5513
    %v5515 = vpop.f32.mrf.mxu0
    %5516 = vdwg.mxu0
    %5517 = vmatpush.bf16.msra.mxu0 %v5277
    %5518 = vmatpush.bf16.msra.mxu0 %v5271
    %5519 = vmatpush.bf16.msra.mxu0 %v5265
    %5520 = vmatpush.bf16.msra.mxu0 %v5259
    %5521 = vmatpush.bf16.msra.mxu0 %v5253
    %5522 = vmatpush.bf16.msra.mxu0 %v5247
    %5523 = vmatpush.bf16.msra.mxu0 %v5241
    %5524 = vmatpush.bf16.msra.mxu0 %v5235
    %5525 = vmatmul.bf16.gmra.mxu0 %v1199
    %v5526 = vpop.f32.mrf.mxu0
    %v5527 = vadd.f32 %v5514, %v5526
    %v5528 = vpop.f32.mrf.mxu0
    %5529 = vdwg.mxu0
    %v5530 = vld [vmem:[#allocation2] sm:$0xff]
    %v5531 = vld [vmem:[#allocation2 + $0x8] sm:$0xff]
    %v5532 = vld [vmem:[#allocation2 + $0x10] sm:$0xff]
    %v5533 = vld [vmem:[#allocation2 + $0x168] sm:$0xff]
    %v5534 = vld [vmem:[#allocation2 + $0x170] sm:$0xff]
    %v5535 = vld [vmem:[#allocation2 + $0x178] sm:$0xff]
    %v5536 = vadd.f32 %v5530, %v5397
    %v5537 = vxor.u32 %v5536, 2147483648
    %v5538 = vmul.f32 %v5537, 1.442695
    %v5539 = vpow.pop %v5538
    %v5540 = vadd.f32 %v5539, 1.0
    %v5541 = vrcp.pop %v5540
    %v5542 = vmul.f32 %v5540, %v5541
    %v5543 = vsub.f32 1.0, %v5542
    %v5544 = vmul.f32 %v5541, %v5543
    %v5545 = vadd.f32 %v5541, %v5544
    %vm5546 = vweird.f32 %v5540
    %vm5547 = vweird.f32 %v5541
    %vm5548 = vmor %vm5546, %vm5547
    %v5549 = vsel %vm5548, %v5541, %v5545
    %v5550 = vand.u32 2147483647, %v5540
    %vm5551 = vcmp.eq.f32.partialorder %v5550, 8.507059e+37
    %v5552 = vand.u32 %v5540, 2147483648
    %v5553 = vor.u32 1.1754944e-38, %v5552
    %v5554 = vsel %vm5551, %v5553, %v5549
    %v5555 = vmul.f32 1.0, %v5554
    %v5556 = vadd.f32 %v5531, %v5423
    %v5557 = vxor.u32 %v5556, 2147483648
    %v5558 = vmul.f32 %v5557, 1.442695
    %v5559 = vpow.pop %v5558
    %v5560 = vadd.f32 %v5559, 1.0
    %v5561 = vrcp.pop %v5560
    %v5562 = vmul.f32 %v5560, %v5561
    %v5563 = vsub.f32 1.0, %v5562
    %v5564 = vmul.f32 %v5561, %v5563
    %v5565 = vadd.f32 %v5561, %v5564
    %vm5566 = vweird.f32 %v5560
    %vm5567 = vweird.f32 %v5561
    %vm5568 = vmor %vm5566, %vm5567
    %v5569 = vsel %vm5568, %v5561, %v5565
    %v5570 = vand.u32 2147483647, %v5560
    %vm5571 = vcmp.eq.f32.partialorder %v5570, 8.507059e+37
    %v5572 = vand.u32 %v5560, 2147483648
    %v5573 = vor.u32 1.1754944e-38, %v5572
    %v5574 = vsel %vm5571, %v5573, %v5569
    %v5575 = vmul.f32 1.0, %v5574
    %v5576 = vmul.f32 %v5555, %v5449
    %v5577 = vadd.f32 %v5532, %v5576
    %v5578 = vtanh.pop %v5577
    %v5579 = vsub.f32 1.0, %v5575
    %v5580 = vmul.f32 %v5579, %v5578
    %v5581 = vmul.f32 %v5575, 0.0
    %v5582 = vadd.f32 %v5580, %v5581
    %v5583 = vsel %vm699, %v5582, 0.0
    %v5584 = vadd.f32 %v5533, %v5475
    %v5585 = vxor.u32 %v5584, 2147483648
    %v5586 = vmul.f32 %v5585, 1.442695
    %v5587 = vpow.pop %v5586
    %v5588 = vadd.f32 %v5587, 1.0
    %v5589 = vrcp.pop %v5588
    %v5590 = vmul.f32 %v5588, %v5589
    %v5591 = vsub.f32 1.0, %v5590
    %v5592 = vmul.f32 %v5589, %v5591
    %v5593 = vadd.f32 %v5589, %v5592
    %vm5594 = vweird.f32 %v5588
    %vm5595 = vweird.f32 %v5589
    %vm5596 = vmor %vm5594, %vm5595
    %v5597 = vsel %vm5596, %v5589, %v5593
    %v5598 = vand.u32 2147483647, %v5588
    %vm5599 = vcmp.eq.f32.partialorder %v5598, 8.507059e+37
    %v5600 = vand.u32 %v5588, 2147483648
    %v5601 = vor.u32 1.1754944e-38, %v5600
    %v5602 = vsel %vm5599, %v5601, %v5597
    %v5603 = vmul.f32 1.0, %v5602
    %v5604 = vadd.f32 %v5534, %v5501
    %v5605 = vxor.u32 %v5604, 2147483648
    %v5606 = vmul.f32 %v5605, 1.442695
    %v5607 = vpow.pop %v5606
    %v5608 = vadd.f32 %v5607, 1.0
    %v5609 = vrcp.pop %v5608
    %v5610 = vmul.f32 %v5608, %v5609
    %v5611 = vsub.f32 1.0, %v5610
    %v5612 = vmul.f32 %v5609, %v5611
    %v5613 = vadd.f32 %v5609, %v5612
    %vm5614 = vweird.f32 %v5608
    %vm5615 = vweird.f32 %v5609
    %vm5616 = vmor %vm5614, %vm5615
    %v5617 = vsel %vm5616, %v5609, %v5613
    %v5618 = vand.u32 2147483647, %v5608
    %vm5619 = vcmp.eq.f32.partialorder %v5618, 8.507059e+37
    %v5620 = vand.u32 %v5608, 2147483648
    %v5621 = vor.u32 1.1754944e-38, %v5620
    %v5622 = vsel %vm5619, %v5621, %v5617
    %v5623 = vmul.f32 1.0, %v5622
    %v5624 = vmul.f32 %v5603, %v5527
    %v5625 = vadd.f32 %v5535, %v5624
    %v5626 = vtanh.pop %v5625
    %v5627 = vsub.f32 1.0, %v5623
    %v5628 = vmul.f32 %v5627, %v5626
    %v5629 = vmul.f32 %v5623, 0.0
    %v5630 = vadd.f32 %v5628, %v5629
    %v5631 = vsel %vm741, %v5630, 0.0
    %v5632 = vpack.c.bf16 %v5583, %v5583
    %v5633 = vpack.c.bf16 %v5631, %v5631
    %5634 = vmatpush.bf16.msra.mxu0 %v5224
    %5635 = vmatpush.bf16.msra.mxu0 %v5218
    %5636 = vmatpush.bf16.msra.mxu0 %v5212
    %5637 = vmatpush.bf16.msra.mxu0 %v5206
    %5638 = vmatpush.bf16.msra.mxu0 %v5200
    %5639 = vmatpush.bf16.msra.mxu0 %v5194
    %5640 = vmatpush.bf16.msra.mxu0 %v5188
    %5641 = vmatpush.bf16.msra.mxu0 %v5182
    %5642 = vmatmul.bf16.gmra.mxu0 %v5632
    %v5643 = vpop.f32.mrf.mxu0
    %v5644 = vadd.f32 %v4882, %v5643
    %v5645 = vpop.f32.mrf.mxu0
    %5646 = vdwg.mxu0
    %5647 = vmatpush.bf16.msra.mxu0 %v5272
    %5648 = vmatpush.bf16.msra.mxu0 %v5266
    %5649 = vmatpush.bf16.msra.mxu0 %v5260
    %5650 = vmatpush.bf16.msra.mxu0 %v5254
    %5651 = vmatpush.bf16.msra.mxu0 %v5248
    %5652 = vmatpush.bf16.msra.mxu0 %v5242
    %5653 = vmatpush.bf16.msra.mxu0 %v5236
    %5654 = vmatpush.bf16.msra.mxu0 %v5230
    %5655 = vmatmul.bf16.gmra.mxu0 %v5633
    %v5656 = vpop.f32.mrf.mxu0
    %v5657 = vadd.f32 %v5644, %v5656
    %v5658 = vpop.f32.mrf.mxu0
    %5659 = vdwg.mxu0
    %5660 = vmatpush.bf16.msra.mxu0 %v5225
    %5661 = vmatpush.bf16.msra.mxu0 %v5219
    %5662 = vmatpush.bf16.msra.mxu0 %v5213
    %5663 = vmatpush.bf16.msra.mxu0 %v5207
    %5664 = vmatpush.bf16.msra.mxu0 %v5201
    %5665 = vmatpush.bf16.msra.mxu0 %v5195
    %5666 = vmatpush.bf16.msra.mxu0 %v5189
    %5667 = vmatpush.bf16.msra.mxu0 %v5183
    %5668 = vmatmul.bf16.gmra.mxu0 %v5632
    %v5669 = vpop.f32.mrf.mxu0
    %v5670 = vadd.f32 %v4883, %v5669
    %v5671 = vpop.f32.mrf.mxu0
    %5672 = vdwg.mxu0
    %5673 = vmatpush.bf16.msra.mxu0 %v5273
    %5674 = vmatpush.bf16.msra.mxu0 %v5267
    %5675 = vmatpush.bf16.msra.mxu0 %v5261
    %5676 = vmatpush.bf16.msra.mxu0 %v5255
    %5677 = vmatpush.bf16.msra.mxu0 %v5249
    %5678 = vmatpush.bf16.msra.mxu0 %v5243
    %5679 = vmatpush.bf16.msra.mxu0 %v5237
    %5680 = vmatpush.bf16.msra.mxu0 %v5231
    %5681 = vmatmul.bf16.gmra.mxu0 %v5633
    %v5682 = vpop.f32.mrf.mxu0
    %v5683 = vadd.f32 %v5670, %v5682
    %v5684 = vpop.f32.mrf.mxu0
    %5685 = vdwg.mxu0
    %5686 = vmatpush.bf16.msra.mxu0 %v5226
    %5687 = vmatpush.bf16.msra.mxu0 %v5220
    %5688 = vmatpush.bf16.msra.mxu0 %v5214
    %5689 = vmatpush.bf16.msra.mxu0 %v5208
    %5690 = vmatpush.bf16.msra.mxu0 %v5202
    %5691 = vmatpush.bf16.msra.mxu0 %v5196
    %5692 = vmatpush.bf16.msra.mxu0 %v5190
    %5693 = vmatpush.bf16.msra.mxu0 %v5184
    %5694 = vmatmul.bf16.gmra.mxu0 %v5632
    %v5695 = vpop.f32.mrf.mxu0
    %v5696 = vadd.f32 %v4884, %v5695
    %v5697 = vpop.f32.mrf.mxu0
    %5698 = vdwg.mxu0
    %5699 = vmatpush.bf16.msra.mxu0 %v5274
    %5700 = vmatpush.bf16.msra.mxu0 %v5268
    %5701 = vmatpush.bf16.msra.mxu0 %v5262
    %5702 = vmatpush.bf16.msra.mxu0 %v5256
    %5703 = vmatpush.bf16.msra.mxu0 %v5250
    %5704 = vmatpush.bf16.msra.mxu0 %v5244
    %5705 = vmatpush.bf16.msra.mxu0 %v5238
    %5706 = vmatpush.bf16.msra.mxu0 %v5232
    %5707 = vmatmul.bf16.gmra.mxu0 %v5633
    %v5708 = vpop.f32.mrf.mxu0
    %v5709 = vadd.f32 %v5696, %v5708
    %v5710 = vpop.f32.mrf.mxu0
    %5711 = vdwg.mxu0
    %5712 = vmatpush.bf16.msra.mxu0 %v5227
    %5713 = vmatpush.bf16.msra.mxu0 %v5221
    %5714 = vmatpush.bf16.msra.mxu0 %v5215
    %5715 = vmatpush.bf16.msra.mxu0 %v5209
    %5716 = vmatpush.bf16.msra.mxu0 %v5203
    %5717 = vmatpush.bf16.msra.mxu0 %v5197
    %5718 = vmatpush.bf16.msra.mxu0 %v5191
    %5719 = vmatpush.bf16.msra.mxu0 %v5185
    %5720 = vmatmul.bf16.gmra.mxu0 %v5632
    %v5721 = vpop.f32.mrf.mxu0
    %v5722 = vadd.f32 %v4885, %v5721
    %v5723 = vpop.f32.mrf.mxu0
    %5724 = vdwg.mxu0
    %5725 = vmatpush.bf16.msra.mxu0 %v5275
    %5726 = vmatpush.bf16.msra.mxu0 %v5269
    %5727 = vmatpush.bf16.msra.mxu0 %v5263
    %5728 = vmatpush.bf16.msra.mxu0 %v5257
    %5729 = vmatpush.bf16.msra.mxu0 %v5251
    %5730 = vmatpush.bf16.msra.mxu0 %v5245
    %5731 = vmatpush.bf16.msra.mxu0 %v5239
    %5732 = vmatpush.bf16.msra.mxu0 %v5233
    %5733 = vmatmul.bf16.gmra.mxu0 %v5633
    %v5734 = vpop.f32.mrf.mxu0
    %v5735 = vadd.f32 %v5722, %v5734
    %v5736 = vpop.f32.mrf.mxu0
    %5737 = vdwg.mxu0
    %5738 = vmatpush.bf16.msra.mxu0 %v5228
    %5739 = vmatpush.bf16.msra.mxu0 %v5222
    %5740 = vmatpush.bf16.msra.mxu0 %v5216
    %5741 = vmatpush.bf16.msra.mxu0 %v5210
    %5742 = vmatpush.bf16.msra.mxu0 %v5204
    %5743 = vmatpush.bf16.msra.mxu0 %v5198
    %5744 = vmatpush.bf16.msra.mxu0 %v5192
    %5745 = vmatpush.bf16.msra.mxu0 %v5186
    %5746 = vmatmul.bf16.gmra.mxu0 %v5632
    %v5747 = vpop.f32.mrf.mxu0
    %v5748 = vadd.f32 %v4886, %v5747
    %v5749 = vpop.f32.mrf.mxu0
    %5750 = vdwg.mxu0
    %5751 = vmatpush.bf16.msra.mxu0 %v5276
    %5752 = vmatpush.bf16.msra.mxu0 %v5270
    %5753 = vmatpush.bf16.msra.mxu0 %v5264
    %5754 = vmatpush.bf16.msra.mxu0 %v5258
    %5755 = vmatpush.bf16.msra.mxu0 %v5252
    %5756 = vmatpush.bf16.msra.mxu0 %v5246
    %5757 = vmatpush.bf16.msra.mxu0 %v5240
    %5758 = vmatpush.bf16.msra.mxu0 %v5234
    %5759 = vmatmul.bf16.gmra.mxu0 %v5633
    %v5760 = vpop.f32.mrf.mxu0
    %v5761 = vadd.f32 %v5748, %v5760
    %v5762 = vpop.f32.mrf.mxu0
    %5763 = vdwg.mxu0
    %5764 = vmatpush.bf16.msra.mxu0 %v5229
    %5765 = vmatpush.bf16.msra.mxu0 %v5223
    %5766 = vmatpush.bf16.msra.mxu0 %v5217
    %5767 = vmatpush.bf16.msra.mxu0 %v5211
    %5768 = vmatpush.bf16.msra.mxu0 %v5205
    %5769 = vmatpush.bf16.msra.mxu0 %v5199
    %5770 = vmatpush.bf16.msra.mxu0 %v5193
    %5771 = vmatpush.bf16.msra.mxu0 %v5187
    %5772 = vmatmul.bf16.gmra.mxu0 %v5632
    %v5773 = vpop.f32.mrf.mxu0
    %v5774 = vadd.f32 %v4887, %v5773
    %v5775 = vpop.f32.mrf.mxu0
    %5776 = vdwg.mxu0
    %5777 = vmatpush.bf16.msra.mxu0 %v5277
    %5778 = vmatpush.bf16.msra.mxu0 %v5271
    %5779 = vmatpush.bf16.msra.mxu0 %v5265
    %5780 = vmatpush.bf16.msra.mxu0 %v5259
    %5781 = vmatpush.bf16.msra.mxu0 %v5253
    %5782 = vmatpush.bf16.msra.mxu0 %v5247
    %5783 = vmatpush.bf16.msra.mxu0 %v5241
    %5784 = vmatpush.bf16.msra.mxu0 %v5235
    %5785 = vmatmul.bf16.gmra.mxu0 %v5633
    %v5786 = vpop.f32.mrf.mxu0
    %v5787 = vadd.f32 %v5774, %v5786
    %v5788 = vpop.f32.mrf.mxu0
    %5789 = vdwg.mxu0
    %v5790 = vld [vmem:[#allocation2 + $0x30] sm:$0xff]
    %v5791 = vld [vmem:[#allocation2 + $0x38] sm:$0xff]
    %v5792 = vld [vmem:[#allocation2 + $0x40] sm:$0xff]
    %v5793 = vld [vmem:[#allocation2 + $0x138] sm:$0xff]
    %v5794 = vld [vmem:[#allocation2 + $0x140] sm:$0xff]
    %v5795 = vld [vmem:[#allocation2 + $0x148] sm:$0xff]
    %v5796 = vadd.f32 %v5790, %v5657
    %v5797 = vxor.u32 %v5796, 2147483648
    %v5798 = vmul.f32 %v5797, 1.442695
    %v5799 = vpow.pop %v5798
    %v5800 = vadd.f32 %v5799, 1.0
    %v5801 = vrcp.pop %v5800
    %v5802 = vmul.f32 %v5800, %v5801
    %v5803 = vsub.f32 1.0, %v5802
    %v5804 = vmul.f32 %v5801, %v5803
    %v5805 = vadd.f32 %v5801, %v5804
    %vm5806 = vweird.f32 %v5800
    %vm5807 = vweird.f32 %v5801
    %vm5808 = vmor %vm5806, %vm5807
    %v5809 = vsel %vm5808, %v5801, %v5805
    %v5810 = vand.u32 2147483647, %v5800
    %vm5811 = vcmp.eq.f32.partialorder %v5810, 8.507059e+37
    %v5812 = vand.u32 %v5800, 2147483648
    %v5813 = vor.u32 1.1754944e-38, %v5812
    %v5814 = vsel %vm5811, %v5813, %v5809
    %v5815 = vmul.f32 1.0, %v5814
    %v5816 = vadd.f32 %v5791, %v5683
    %v5817 = vxor.u32 %v5816, 2147483648
    %v5818 = vmul.f32 %v5817, 1.442695
    %v5819 = vpow.pop %v5818
    %v5820 = vadd.f32 %v5819, 1.0
    %v5821 = vrcp.pop %v5820
    %v5822 = vmul.f32 %v5820, %v5821
    %v5823 = vsub.f32 1.0, %v5822
    %v5824 = vmul.f32 %v5821, %v5823
    %v5825 = vadd.f32 %v5821, %v5824
    %vm5826 = vweird.f32 %v5820
    %vm5827 = vweird.f32 %v5821
    %vm5828 = vmor %vm5826, %vm5827
    %v5829 = vsel %vm5828, %v5821, %v5825
    %v5830 = vand.u32 2147483647, %v5820
    %vm5831 = vcmp.eq.f32.partialorder %v5830, 8.507059e+37
    %v5832 = vand.u32 %v5820, 2147483648
    %v5833 = vor.u32 1.1754944e-38, %v5832
    %v5834 = vsel %vm5831, %v5833, %v5829
    %v5835 = vmul.f32 1.0, %v5834
    %v5836 = vmul.f32 %v5815, %v5709
    %v5837 = vadd.f32 %v5792, %v5836
    %v5838 = vtanh.pop %v5837
    %v5839 = vsub.f32 1.0, %v5835
    %v5840 = vmul.f32 %v5839, %v5838
    %v5841 = vmul.f32 %v5835, %v5583
    %v5842 = vadd.f32 %v5840, %v5841
    %v5843 = vsel %vm705, %v5842, %v5583
    %v5844 = vadd.f32 %v5793, %v5735
    %v5845 = vxor.u32 %v5844, 2147483648
    %v5846 = vmul.f32 %v5845, 1.442695
    %v5847 = vpow.pop %v5846
    %v5848 = vadd.f32 %v5847, 1.0
    %v5849 = vrcp.pop %v5848
    %v5850 = vmul.f32 %v5848, %v5849
    %v5851 = vsub.f32 1.0, %v5850
    %v5852 = vmul.f32 %v5849, %v5851
    %v5853 = vadd.f32 %v5849, %v5852
    %vm5854 = vweird.f32 %v5848
    %vm5855 = vweird.f32 %v5849
    %vm5856 = vmor %vm5854, %vm5855
    %v5857 = vsel %vm5856, %v5849, %v5853
    %v5858 = vand.u32 2147483647, %v5848
    %vm5859 = vcmp.eq.f32.partialorder %v5858, 8.507059e+37
    %v5860 = vand.u32 %v5848, 2147483648
    %v5861 = vor.u32 1.1754944e-38, %v5860
    %v5862 = vsel %vm5859, %v5861, %v5857
    %v5863 = vmul.f32 1.0, %v5862
    %v5864 = vadd.f32 %v5794, %v5761
    %v5865 = vxor.u32 %v5864, 2147483648
    %v5866 = vmul.f32 %v5865, 1.442695
    %v5867 = vpow.pop %v5866
    %v5868 = vadd.f32 %v5867, 1.0
    %v5869 = vrcp.pop %v5868
    %v5870 = vmul.f32 %v5868, %v5869
    %v5871 = vsub.f32 1.0, %v5870
    %v5872 = vmul.f32 %v5869, %v5871
    %v5873 = vadd.f32 %v5869, %v5872
    %vm5874 = vweird.f32 %v5868
    %vm5875 = vweird.f32 %v5869
    %vm5876 = vmor %vm5874, %vm5875
    %v5877 = vsel %vm5876, %v5869, %v5873
    %v5878 = vand.u32 2147483647, %v5868
    %vm5879 = vcmp.eq.f32.partialorder %v5878, 8.507059e+37
    %v5880 = vand.u32 %v5868, 2147483648
    %v5881 = vor.u32 1.1754944e-38, %v5880
    %v5882 = vsel %vm5879, %v5881, %v5877
    %v5883 = vmul.f32 1.0, %v5882
    %v5884 = vmul.f32 %v5863, %v5787
    %v5885 = vadd.f32 %v5795, %v5884
    %v5886 = vtanh.pop %v5885
    %v5887 = vsub.f32 1.0, %v5883
    %v5888 = vmul.f32 %v5887, %v5886
    %v5889 = vmul.f32 %v5883, %v5631
    %v5890 = vadd.f32 %v5888, %v5889
    %v5891 = vsel %vm735, %v5890, %v5631
    %v5892 = vpack.c.bf16 %v5843, %v5843
    %v5893 = vpack.c.bf16 %v5891, %v5891
    %5894 = vmatpush.bf16.msra.mxu0 %v5224
    %5895 = vmatpush.bf16.msra.mxu0 %v5218
    %5896 = vmatpush.bf16.msra.mxu0 %v5212
    %5897 = vmatpush.bf16.msra.mxu0 %v5206
    %5898 = vmatpush.bf16.msra.mxu0 %v5200
    %5899 = vmatpush.bf16.msra.mxu0 %v5194
    %5900 = vmatpush.bf16.msra.mxu0 %v5188
    %5901 = vmatpush.bf16.msra.mxu0 %v5182
    %5902 = vmatmul.bf16.gmra.mxu0 %v5892
    %v5903 = vpop.f32.mrf.mxu0
    %v5904 = vadd.f32 %v4882, %v5903
    %v5905 = vpop.f32.mrf.mxu0
    %5906 = vdwg.mxu0
    %5907 = vmatpush.bf16.msra.mxu0 %v5272
    %5908 = vmatpush.bf16.msra.mxu0 %v5266
    %5909 = vmatpush.bf16.msra.mxu0 %v5260
    %5910 = vmatpush.bf16.msra.mxu0 %v5254
    %5911 = vmatpush.bf16.msra.mxu0 %v5248
    %5912 = vmatpush.bf16.msra.mxu0 %v5242
    %5913 = vmatpush.bf16.msra.mxu0 %v5236
    %5914 = vmatpush.bf16.msra.mxu0 %v5230
    %5915 = vmatmul.bf16.gmra.mxu0 %v5893
    %v5916 = vpop.f32.mrf.mxu0
    %v5917 = vadd.f32 %v5904, %v5916
    %v5918 = vpop.f32.mrf.mxu0
    %5919 = vdwg.mxu0
    %5920 = vmatpush.bf16.msra.mxu0 %v5225
    %5921 = vmatpush.bf16.msra.mxu0 %v5219
    %5922 = vmatpush.bf16.msra.mxu0 %v5213
    %5923 = vmatpush.bf16.msra.mxu0 %v5207
    %5924 = vmatpush.bf16.msra.mxu0 %v5201
    %5925 = vmatpush.bf16.msra.mxu0 %v5195
    %5926 = vmatpush.bf16.msra.mxu0 %v5189
    %5927 = vmatpush.bf16.msra.mxu0 %v5183
    %5928 = vmatmul.bf16.gmra.mxu0 %v5892
    %v5929 = vpop.f32.mrf.mxu0
    %v5930 = vadd.f32 %v4883, %v5929
    %v5931 = vpop.f32.mrf.mxu0
    %5932 = vdwg.mxu0
    %5933 = vmatpush.bf16.msra.mxu0 %v5273
    %5934 = vmatpush.bf16.msra.mxu0 %v5267
    %5935 = vmatpush.bf16.msra.mxu0 %v5261
    %5936 = vmatpush.bf16.msra.mxu0 %v5255
    %5937 = vmatpush.bf16.msra.mxu0 %v5249
    %5938 = vmatpush.bf16.msra.mxu0 %v5243
    %5939 = vmatpush.bf16.msra.mxu0 %v5237
    %5940 = vmatpush.bf16.msra.mxu0 %v5231
    %5941 = vmatmul.bf16.gmra.mxu0 %v5893
    %v5942 = vpop.f32.mrf.mxu0
    %v5943 = vadd.f32 %v5930, %v5942
    %v5944 = vpop.f32.mrf.mxu0
    %5945 = vdwg.mxu0
    %5946 = vmatpush.bf16.msra.mxu0 %v5226
    %5947 = vmatpush.bf16.msra.mxu0 %v5220
    %5948 = vmatpush.bf16.msra.mxu0 %v5214
    %5949 = vmatpush.bf16.msra.mxu0 %v5208
    %5950 = vmatpush.bf16.msra.mxu0 %v5202
    %5951 = vmatpush.bf16.msra.mxu0 %v5196
    %5952 = vmatpush.bf16.msra.mxu0 %v5190
    %5953 = vmatpush.bf16.msra.mxu0 %v5184
    %5954 = vmatmul.bf16.gmra.mxu0 %v5892
    %v5955 = vpop.f32.mrf.mxu0
    %v5956 = vadd.f32 %v4884, %v5955
    %v5957 = vpop.f32.mrf.mxu0
    %5958 = vdwg.mxu0
    %5959 = vmatpush.bf16.msra.mxu0 %v5274
    %5960 = vmatpush.bf16.msra.mxu0 %v5268
    %5961 = vmatpush.bf16.msra.mxu0 %v5262
    %5962 = vmatpush.bf16.msra.mxu0 %v5256
    %5963 = vmatpush.bf16.msra.mxu0 %v5250
    %5964 = vmatpush.bf16.msra.mxu0 %v5244
    %5965 = vmatpush.bf16.msra.mxu0 %v5238
    %5966 = vmatpush.bf16.msra.mxu0 %v5232
    %5967 = vmatmul.bf16.gmra.mxu0 %v5893
    %v5968 = vpop.f32.mrf.mxu0
    %v5969 = vadd.f32 %v5956, %v5968
    %v5970 = vpop.f32.mrf.mxu0
    %5971 = vdwg.mxu0
    %5972 = vmatpush.bf16.msra.mxu0 %v5227
    %5973 = vmatpush.bf16.msra.mxu0 %v5221
    %5974 = vmatpush.bf16.msra.mxu0 %v5215
    %5975 = vmatpush.bf16.msra.mxu0 %v5209
    %5976 = vmatpush.bf16.msra.mxu0 %v5203
    %5977 = vmatpush.bf16.msra.mxu0 %v5197
    %5978 = vmatpush.bf16.msra.mxu0 %v5191
    %5979 = vmatpush.bf16.msra.mxu0 %v5185
    %5980 = vmatmul.bf16.gmra.mxu0 %v5892
    %v5981 = vpop.f32.mrf.mxu0
    %v5982 = vadd.f32 %v4885, %v5981
    %v5983 = vpop.f32.mrf.mxu0
    %5984 = vdwg.mxu0
    %5985 = vmatpush.bf16.msra.mxu0 %v5275
    %5986 = vmatpush.bf16.msra.mxu0 %v5269
    %5987 = vmatpush.bf16.msra.mxu0 %v5263
    %5988 = vmatpush.bf16.msra.mxu0 %v5257
    %5989 = vmatpush.bf16.msra.mxu0 %v5251
    %5990 = vmatpush.bf16.msra.mxu0 %v5245
    %5991 = vmatpush.bf16.msra.mxu0 %v5239
    %5992 = vmatpush.bf16.msra.mxu0 %v5233
    %5993 = vmatmul.bf16.gmra.mxu0 %v5893
    %v5994 = vpop.f32.mrf.mxu0
    %v5995 = vadd.f32 %v5982, %v5994
    %v5996 = vpop.f32.mrf.mxu0
    %5997 = vdwg.mxu0
    %5998 = vmatpush.bf16.msra.mxu0 %v5228
    %5999 = vmatpush.bf16.msra.mxu0 %v5222
    %6000 = vmatpush.bf16.msra.mxu0 %v5216
    %6001 = vmatpush.bf16.msra.mxu0 %v5210
    %6002 = vmatpush.bf16.msra.mxu0 %v5204
    %6003 = vmatpush.bf16.msra.mxu0 %v5198
    %6004 = vmatpush.bf16.msra.mxu0 %v5192
    %6005 = vmatpush.bf16.msra.mxu0 %v5186
    %6006 = vmatmul.bf16.gmra.mxu0 %v5892
    %v6007 = vpop.f32.mrf.mxu0
    %v6008 = vadd.f32 %v4886, %v6007
    %v6009 = vpop.f32.mrf.mxu0
    %6010 = vdwg.mxu0
    %6011 = vmatpush.bf16.msra.mxu0 %v5276
    %6012 = vmatpush.bf16.msra.mxu0 %v5270
    %6013 = vmatpush.bf16.msra.mxu0 %v5264
    %6014 = vmatpush.bf16.msra.mxu0 %v5258
    %6015 = vmatpush.bf16.msra.mxu0 %v5252
    %6016 = vmatpush.bf16.msra.mxu0 %v5246
    %6017 = vmatpush.bf16.msra.mxu0 %v5240
    %6018 = vmatpush.bf16.msra.mxu0 %v5234
    %6019 = vmatmul.bf16.gmra.mxu0 %v5893
    %v6020 = vpop.f32.mrf.mxu0
    %v6021 = vadd.f32 %v6008, %v6020
    %v6022 = vpop.f32.mrf.mxu0
    %6023 = vdwg.mxu0
    %6024 = vmatpush.bf16.msra.mxu0 %v5229
    %6025 = vmatpush.bf16.msra.mxu0 %v5223
    %6026 = vmatpush.bf16.msra.mxu0 %v5217
    %6027 = vmatpush.bf16.msra.mxu0 %v5211
    %6028 = vmatpush.bf16.msra.mxu0 %v5205
    %6029 = vmatpush.bf16.msra.mxu0 %v5199
    %6030 = vmatpush.bf16.msra.mxu0 %v5193
    %6031 = vmatpush.bf16.msra.mxu0 %v5187
    %6032 = vmatmul.bf16.gmra.mxu0 %v5892
    %v6033 = vpop.f32.mrf.mxu0
    %v6034 = vadd.f32 %v4887, %v6033
    %v6035 = vpop.f32.mrf.mxu0
    %6036 = vdwg.mxu0
    %6037 = vmatpush.bf16.msra.mxu0 %v5277
    %6038 = vmatpush.bf16.msra.mxu0 %v5271
    %6039 = vmatpush.bf16.msra.mxu0 %v5265
    %6040 = vmatpush.bf16.msra.mxu0 %v5259
    %6041 = vmatpush.bf16.msra.mxu0 %v5253
    %6042 = vmatpush.bf16.msra.mxu0 %v5247
    %6043 = vmatpush.bf16.msra.mxu0 %v5241
    %6044 = vmatpush.bf16.msra.mxu0 %v5235
    %6045 = vmatmul.bf16.gmra.mxu0 %v5893
    %v6046 = vpop.f32.mrf.mxu0
    %v6047 = vadd.f32 %v6034, %v6046
    %v6048 = vpop.f32.mrf.mxu0
    %6049 = vdwg.mxu0
    %v6050 = vld [vmem:[#allocation2 + $0x60] sm:$0xff]
    %v6051 = vld [vmem:[#allocation2 + $0x68] sm:$0xff]
    %v6052 = vld [vmem:[#allocation2 + $0x70] sm:$0xff]
    %v6053 = vld [vmem:[#allocation2 + $0x108] sm:$0xff]
    %v6054 = vld [vmem:[#allocation2 + $0x110] sm:$0xff]
    %v6055 = vld [vmem:[#allocation2 + $0x118] sm:$0xff]
    %v6056 = vadd.f32 %v6050, %v5917
    %v6057 = vxor.u32 %v6056, 2147483648
    %v6058 = vmul.f32 %v6057, 1.442695
    %v6059 = vpow.pop %v6058
    %v6060 = vadd.f32 %v6059, 1.0
    %v6061 = vrcp.pop %v6060
    %v6062 = vmul.f32 %v6060, %v6061
    %v6063 = vsub.f32 1.0, %v6062
    %v6064 = vmul.f32 %v6061, %v6063
    %v6065 = vadd.f32 %v6061, %v6064
    %vm6066 = vweird.f32 %v6060
    %vm6067 = vweird.f32 %v6061
    %vm6068 = vmor %vm6066, %vm6067
    %v6069 = vsel %vm6068, %v6061, %v6065
    %v6070 = vand.u32 2147483647, %v6060
    %vm6071 = vcmp.eq.f32.partialorder %v6070, 8.507059e+37
    %v6072 = vand.u32 %v6060, 2147483648
    %v6073 = vor.u32 1.1754944e-38, %v6072
    %v6074 = vsel %vm6071, %v6073, %v6069
    %v6075 = vmul.f32 1.0, %v6074
    %v6076 = vadd.f32 %v6051, %v5943
    %v6077 = vxor.u32 %v6076, 2147483648
    %v6078 = vmul.f32 %v6077, 1.442695
    %v6079 = vpow.pop %v6078
    %v6080 = vadd.f32 %v6079, 1.0
    %v6081 = vrcp.pop %v6080
    %v6082 = vmul.f32 %v6080, %v6081
    %v6083 = vsub.f32 1.0, %v6082
    %v6084 = vmul.f32 %v6081, %v6083
    %v6085 = vadd.f32 %v6081, %v6084
    %vm6086 = vweird.f32 %v6080
    %vm6087 = vweird.f32 %v6081
    %vm6088 = vmor %vm6086, %vm6087
    %v6089 = vsel %vm6088, %v6081, %v6085
    %v6090 = vand.u32 2147483647, %v6080
    %vm6091 = vcmp.eq.f32.partialorder %v6090, 8.507059e+37
    %v6092 = vand.u32 %v6080, 2147483648
    %v6093 = vor.u32 1.1754944e-38, %v6092
    %v6094 = vsel %vm6091, %v6093, %v6089
    %v6095 = vmul.f32 1.0, %v6094
    %v6096 = vmul.f32 %v6075, %v5969
    %v6097 = vadd.f32 %v6052, %v6096
    %v6098 = vtanh.pop %v6097
    %v6099 = vsub.f32 1.0, %v6095
    %v6100 = vmul.f32 %v6099, %v6098
    %v6101 = vmul.f32 %v6095, %v5843
    %v6102 = vadd.f32 %v6100, %v6101
    %v6103 = vsel %vm711, %v6102, %v5843
    %v6104 = vadd.f32 %v6053, %v5995
    %v6105 = vxor.u32 %v6104, 2147483648
    %v6106 = vmul.f32 %v6105, 1.442695
    %v6107 = vpow.pop %v6106
    %v6108 = vadd.f32 %v6107, 1.0
    %v6109 = vrcp.pop %v6108
    %v6110 = vmul.f32 %v6108, %v6109
    %v6111 = vsub.f32 1.0, %v6110
    %v6112 = vmul.f32 %v6109, %v6111
    %v6113 = vadd.f32 %v6109, %v6112
    %vm6114 = vweird.f32 %v6108
    %vm6115 = vweird.f32 %v6109
    %vm6116 = vmor %vm6114, %vm6115
    %v6117 = vsel %vm6116, %v6109, %v6113
    %v6118 = vand.u32 2147483647, %v6108
    %vm6119 = vcmp.eq.f32.partialorder %v6118, 8.507059e+37
    %v6120 = vand.u32 %v6108, 2147483648
    %v6121 = vor.u32 1.1754944e-38, %v6120
    %v6122 = vsel %vm6119, %v6121, %v6117
    %v6123 = vmul.f32 1.0, %v6122
    %v6124 = vadd.f32 %v6054, %v6021
    %v6125 = vxor.u32 %v6124, 2147483648
    %v6126 = vmul.f32 %v6125, 1.442695
    %v6127 = vpow.pop %v6126
    %v6128 = vadd.f32 %v6127, 1.0
    %v6129 = vrcp.pop %v6128
    %v6130 = vmul.f32 %v6128, %v6129
    %v6131 = vsub.f32 1.0, %v6130
    %v6132 = vmul.f32 %v6129, %v6131
    %v6133 = vadd.f32 %v6129, %v6132
    %vm6134 = vweird.f32 %v6128
    %vm6135 = vweird.f32 %v6129
    %vm6136 = vmor %vm6134, %vm6135
    %v6137 = vsel %vm6136, %v6129, %v6133
    %v6138 = vand.u32 2147483647, %v6128
    %vm6139 = vcmp.eq.f32.partialorder %v6138, 8.507059e+37
    %v6140 = vand.u32 %v6128, 2147483648
    %v6141 = vor.u32 1.1754944e-38, %v6140
    %v6142 = vsel %vm6139, %v6141, %v6137
    %v6143 = vmul.f32 1.0, %v6142
    %v6144 = vmul.f32 %v6123, %v6047
    %v6145 = vadd.f32 %v6055, %v6144
    %v6146 = vtanh.pop %v6145
    %v6147 = vsub.f32 1.0, %v6143
    %v6148 = vmul.f32 %v6147, %v6146
    %v6149 = vmul.f32 %v6143, %v5891
    %v6150 = vadd.f32 %v6148, %v6149
    %v6151 = vsel %vm729, %v6150, %v5891
    %v6152 = vpack.c.bf16 %v6103, %v6103
    %v6153 = vpack.c.bf16 %v6151, %v6151
    %6154 = vmatpush.bf16.msra.mxu0 %v5224
    %6155 = vmatpush.bf16.msra.mxu0 %v5218
    %6156 = vmatpush.bf16.msra.mxu0 %v5212
    %6157 = vmatpush.bf16.msra.mxu0 %v5206
    %6158 = vmatpush.bf16.msra.mxu0 %v5200
    %6159 = vmatpush.bf16.msra.mxu0 %v5194
    %6160 = vmatpush.bf16.msra.mxu0 %v5188
    %6161 = vmatpush.bf16.msra.mxu0 %v5182
    %6162 = vmatmul.bf16.gmra.mxu0 %v6152
    %v6163 = vpop.f32.mrf.mxu0
    %v6164 = vadd.f32 %v4882, %v6163
    %v6165 = vpop.f32.mrf.mxu0
    %6166 = vdwg.mxu0
    %6167 = vmatpush.bf16.msra.mxu0 %v5272
    %6168 = vmatpush.bf16.msra.mxu0 %v5266
    %6169 = vmatpush.bf16.msra.mxu0 %v5260
    %6170 = vmatpush.bf16.msra.mxu0 %v5254
    %6171 = vmatpush.bf16.msra.mxu0 %v5248
    %6172 = vmatpush.bf16.msra.mxu0 %v5242
    %6173 = vmatpush.bf16.msra.mxu0 %v5236
    %6174 = vmatpush.bf16.msra.mxu0 %v5230
    %6175 = vmatmul.bf16.gmra.mxu0 %v6153
    %v6176 = vpop.f32.mrf.mxu0
    %v6177 = vadd.f32 %v6164, %v6176
    %v6178 = vpop.f32.mrf.mxu0
    %6179 = vdwg.mxu0
    %6180 = vmatpush.bf16.msra.mxu0 %v5225
    %6181 = vmatpush.bf16.msra.mxu0 %v5219
    %6182 = vmatpush.bf16.msra.mxu0 %v5213
    %6183 = vmatpush.bf16.msra.mxu0 %v5207
    %6184 = vmatpush.bf16.msra.mxu0 %v5201
    %6185 = vmatpush.bf16.msra.mxu0 %v5195
    %6186 = vmatpush.bf16.msra.mxu0 %v5189
    %6187 = vmatpush.bf16.msra.mxu0 %v5183
    %6188 = vmatmul.bf16.gmra.mxu0 %v6152
    %v6189 = vpop.f32.mrf.mxu0
    %v6190 = vadd.f32 %v4883, %v6189
    %v6191 = vpop.f32.mrf.mxu0
    %6192 = vdwg.mxu0
    %6193 = vmatpush.bf16.msra.mxu0 %v5273
    %6194 = vmatpush.bf16.msra.mxu0 %v5267
    %6195 = vmatpush.bf16.msra.mxu0 %v5261
    %6196 = vmatpush.bf16.msra.mxu0 %v5255
    %6197 = vmatpush.bf16.msra.mxu0 %v5249
    %6198 = vmatpush.bf16.msra.mxu0 %v5243
    %6199 = vmatpush.bf16.msra.mxu0 %v5237
    %6200 = vmatpush.bf16.msra.mxu0 %v5231
    %6201 = vmatmul.bf16.gmra.mxu0 %v6153
    %v6202 = vpop.f32.mrf.mxu0
    %v6203 = vadd.f32 %v6190, %v6202
    %v6204 = vpop.f32.mrf.mxu0
    %6205 = vdwg.mxu0
    %6206 = vmatpush.bf16.msra.mxu0 %v5226
    %6207 = vmatpush.bf16.msra.mxu0 %v5220
    %6208 = vmatpush.bf16.msra.mxu0 %v5214
    %6209 = vmatpush.bf16.msra.mxu0 %v5208
    %6210 = vmatpush.bf16.msra.mxu0 %v5202
    %6211 = vmatpush.bf16.msra.mxu0 %v5196
    %6212 = vmatpush.bf16.msra.mxu0 %v5190
    %6213 = vmatpush.bf16.msra.mxu0 %v5184
    %6214 = vmatmul.bf16.gmra.mxu0 %v6152
    %v6215 = vpop.f32.mrf.mxu0
    %v6216 = vadd.f32 %v4884, %v6215
    %v6217 = vpop.f32.mrf.mxu0
    %6218 = vdwg.mxu0
    %6219 = vmatpush.bf16.msra.mxu0 %v5274
    %6220 = vmatpush.bf16.msra.mxu0 %v5268
    %6221 = vmatpush.bf16.msra.mxu0 %v5262
    %6222 = vmatpush.bf16.msra.mxu0 %v5256
    %6223 = vmatpush.bf16.msra.mxu0 %v5250
    %6224 = vmatpush.bf16.msra.mxu0 %v5244
    %6225 = vmatpush.bf16.msra.mxu0 %v5238
    %6226 = vmatpush.bf16.msra.mxu0 %v5232
    %6227 = vmatmul.bf16.gmra.mxu0 %v6153
    %v6228 = vpop.f32.mrf.mxu0
    %v6229 = vadd.f32 %v6216, %v6228
    %v6230 = vpop.f32.mrf.mxu0
    %6231 = vdwg.mxu0
    %6232 = vmatpush.bf16.msra.mxu0 %v5227
    %6233 = vmatpush.bf16.msra.mxu0 %v5221
    %6234 = vmatpush.bf16.msra.mxu0 %v5215
    %6235 = vmatpush.bf16.msra.mxu0 %v5209
    %6236 = vmatpush.bf16.msra.mxu0 %v5203
    %6237 = vmatpush.bf16.msra.mxu0 %v5197
    %6238 = vmatpush.bf16.msra.mxu0 %v5191
    %6239 = vmatpush.bf16.msra.mxu0 %v5185
    %6240 = vmatmul.bf16.gmra.mxu0 %v6152
    %v6241 = vpop.f32.mrf.mxu0
    %v6242 = vadd.f32 %v4885, %v6241
    %v6243 = vpop.f32.mrf.mxu0
    %6244 = vdwg.mxu0
    %6245 = vmatpush.bf16.msra.mxu0 %v5275
    %6246 = vmatpush.bf16.msra.mxu0 %v5269
    %6247 = vmatpush.bf16.msra.mxu0 %v5263
    %6248 = vmatpush.bf16.msra.mxu0 %v5257
    %6249 = vmatpush.bf16.msra.mxu0 %v5251
    %6250 = vmatpush.bf16.msra.mxu0 %v5245
    %6251 = vmatpush.bf16.msra.mxu0 %v5239
    %6252 = vmatpush.bf16.msra.mxu0 %v5233
    %6253 = vmatmul.bf16.gmra.mxu0 %v6153
    %v6254 = vpop.f32.mrf.mxu0
    %v6255 = vadd.f32 %v6242, %v6254
    %v6256 = vpop.f32.mrf.mxu0
    %6257 = vdwg.mxu0
    %6258 = vmatpush.bf16.msra.mxu0 %v5228
    %6259 = vmatpush.bf16.msra.mxu0 %v5222
    %6260 = vmatpush.bf16.msra.mxu0 %v5216
    %6261 = vmatpush.bf16.msra.mxu0 %v5210
    %6262 = vmatpush.bf16.msra.mxu0 %v5204
    %6263 = vmatpush.bf16.msra.mxu0 %v5198
    %6264 = vmatpush.bf16.msra.mxu0 %v5192
    %6265 = vmatpush.bf16.msra.mxu0 %v5186
    %6266 = vmatmul.bf16.gmra.mxu0 %v6152
    %v6267 = vpop.f32.mrf.mxu0
    %v6268 = vadd.f32 %v4886, %v6267
    %v6269 = vpop.f32.mrf.mxu0
    %6270 = vdwg.mxu0
    %6271 = vmatpush.bf16.msra.mxu0 %v5276
    %6272 = vmatpush.bf16.msra.mxu0 %v5270
    %6273 = vmatpush.bf16.msra.mxu0 %v5264
    %6274 = vmatpush.bf16.msra.mxu0 %v5258
    %6275 = vmatpush.bf16.msra.mxu0 %v5252
    %6276 = vmatpush.bf16.msra.mxu0 %v5246
    %6277 = vmatpush.bf16.msra.mxu0 %v5240
    %6278 = vmatpush.bf16.msra.mxu0 %v5234
    %6279 = vmatmul.bf16.gmra.mxu0 %v6153
    %v6280 = vpop.f32.mrf.mxu0
    %v6281 = vadd.f32 %v6268, %v6280
    %v6282 = vpop.f32.mrf.mxu0
    %6283 = vdwg.mxu0
    %6284 = vmatpush.bf16.msra.mxu0 %v5229
    %6285 = vmatpush.bf16.msra.mxu0 %v5223
    %6286 = vmatpush.bf16.msra.mxu0 %v5217
    %6287 = vmatpush.bf16.msra.mxu0 %v5211
    %6288 = vmatpush.bf16.msra.mxu0 %v5205
    %6289 = vmatpush.bf16.msra.mxu0 %v5199
    %6290 = vmatpush.bf16.msra.mxu0 %v5193
    %6291 = vmatpush.bf16.msra.mxu0 %v5187
    %6292 = vmatmul.bf16.gmra.mxu0 %v6152
    %v6293 = vpop.f32.mrf.mxu0
    %v6294 = vadd.f32 %v4887, %v6293
    %v6295 = vpop.f32.mrf.mxu0
    %6296 = vdwg.mxu0
    %6297 = vmatpush.bf16.msra.mxu0 %v5277
    %6298 = vmatpush.bf16.msra.mxu0 %v5271
    %6299 = vmatpush.bf16.msra.mxu0 %v5265
    %6300 = vmatpush.bf16.msra.mxu0 %v5259
    %6301 = vmatpush.bf16.msra.mxu0 %v5253
    %6302 = vmatpush.bf16.msra.mxu0 %v5247
    %6303 = vmatpush.bf16.msra.mxu0 %v5241
    %6304 = vmatpush.bf16.msra.mxu0 %v5235
    %6305 = vmatmul.bf16.gmra.mxu0 %v6153
    %v6306 = vpop.f32.mrf.mxu0
    %v6307 = vadd.f32 %v6294, %v6306
    %v6308 = vpop.f32.mrf.mxu0
    %6309 = vdwg.mxu0
    %v6310 = vld [vmem:[#allocation2 + $0x90] sm:$0xff]
    %v6311 = vld [vmem:[#allocation2 + $0x98] sm:$0xff]
    %v6312 = vld [vmem:[#allocation2 + $0xa0] sm:$0xff]
    %v6313 = vld [vmem:[#allocation2 + $0xd8] sm:$0xff]
    %v6314 = vld [vmem:[#allocation2 + $0xe0] sm:$0xff]
    %v6315 = vld [vmem:[#allocation2 + $0xe8] sm:$0xff]
    %v6316 = vadd.f32 %v6310, %v6177
    %v6317 = vxor.u32 %v6316, 2147483648
    %v6318 = vmul.f32 %v6317, 1.442695
    %v6319 = vpow.pop %v6318
    %v6320 = vadd.f32 %v6319, 1.0
    %v6321 = vrcp.pop %v6320
    %v6322 = vmul.f32 %v6320, %v6321
    %v6323 = vsub.f32 1.0, %v6322
    %v6324 = vmul.f32 %v6321, %v6323
    %v6325 = vadd.f32 %v6321, %v6324
    %vm6326 = vweird.f32 %v6320
    %vm6327 = vweird.f32 %v6321
    %vm6328 = vmor %vm6326, %vm6327
    %v6329 = vsel %vm6328, %v6321, %v6325
    %v6330 = vand.u32 2147483647, %v6320
    %vm6331 = vcmp.eq.f32.partialorder %v6330, 8.507059e+37
    %v6332 = vand.u32 %v6320, 2147483648
    %v6333 = vor.u32 1.1754944e-38, %v6332
    %v6334 = vsel %vm6331, %v6333, %v6329
    %v6335 = vmul.f32 1.0, %v6334
    %v6336 = vadd.f32 %v6311, %v6203
    %v6337 = vxor.u32 %v6336, 2147483648
    %v6338 = vmul.f32 %v6337, 1.442695
    %v6339 = vpow.pop %v6338
    %v6340 = vadd.f32 %v6339, 1.0
    %v6341 = vrcp.pop %v6340
    %v6342 = vmul.f32 %v6340, %v6341
    %v6343 = vsub.f32 1.0, %v6342
    %v6344 = vmul.f32 %v6341, %v6343
    %v6345 = vadd.f32 %v6341, %v6344
    %vm6346 = vweird.f32 %v6340
    %vm6347 = vweird.f32 %v6341
    %vm6348 = vmor %vm6346, %vm6347
    %v6349 = vsel %vm6348, %v6341, %v6345
    %v6350 = vand.u32 2147483647, %v6340
    %vm6351 = vcmp.eq.f32.partialorder %v6350, 8.507059e+37
    %v6352 = vand.u32 %v6340, 2147483648
    %v6353 = vor.u32 1.1754944e-38, %v6352
    %v6354 = vsel %vm6351, %v6353, %v6349
    %v6355 = vmul.f32 1.0, %v6354
    %v6356 = vmul.f32 %v6335, %v6229
    %v6357 = vadd.f32 %v6312, %v6356
    %v6358 = vtanh.pop %v6357
    %v6359 = vsub.f32 1.0, %v6355
    %v6360 = vmul.f32 %v6359, %v6358
    %v6361 = vmul.f32 %v6355, %v6103
    %v6362 = vadd.f32 %v6360, %v6361
    %v6363 = vsel %vm717, %v6362, %v6103
    %v6364 = vadd.f32 %v6313, %v6255
    %v6365 = vxor.u32 %v6364, 2147483648
    %v6366 = vmul.f32 %v6365, 1.442695
    %v6367 = vpow.pop %v6366
    %v6368 = vadd.f32 %v6367, 1.0
    %v6369 = vrcp.pop %v6368
    %v6370 = vmul.f32 %v6368, %v6369
    %v6371 = vsub.f32 1.0, %v6370
    %v6372 = vmul.f32 %v6369, %v6371
    %v6373 = vadd.f32 %v6369, %v6372
    %vm6374 = vweird.f32 %v6368
    %vm6375 = vweird.f32 %v6369
    %vm6376 = vmor %vm6374, %vm6375
    %v6377 = vsel %vm6376, %v6369, %v6373
    %v6378 = vand.u32 2147483647, %v6368
    %vm6379 = vcmp.eq.f32.partialorder %v6378, 8.507059e+37
    %v6380 = vand.u32 %v6368, 2147483648
    %v6381 = vor.u32 1.1754944e-38, %v6380
    %v6382 = vsel %vm6379, %v6381, %v6377
    %v6383 = vmul.f32 1.0, %v6382
    %v6384 = vadd.f32 %v6314, %v6281
    %v6385 = vxor.u32 %v6384, 2147483648
    %v6386 = vmul.f32 %v6385, 1.442695
    %v6387 = vpow.pop %v6386
    %v6388 = vadd.f32 %v6387, 1.0
    %v6389 = vrcp.pop %v6388
    %v6390 = vmul.f32 %v6388, %v6389
    %v6391 = vsub.f32 1.0, %v6390
    %v6392 = vmul.f32 %v6389, %v6391
    %v6393 = vadd.f32 %v6389, %v6392
    %vm6394 = vweird.f32 %v6388
    %vm6395 = vweird.f32 %v6389
    %vm6396 = vmor %vm6394, %vm6395
    %v6397 = vsel %vm6396, %v6389, %v6393
    %v6398 = vand.u32 2147483647, %v6388
    %vm6399 = vcmp.eq.f32.partialorder %v6398, 8.507059e+37
    %v6400 = vand.u32 %v6388, 2147483648
    %v6401 = vor.u32 1.1754944e-38, %v6400
    %v6402 = vsel %vm6399, %v6401, %v6397
    %v6403 = vmul.f32 1.0, %v6402
    %v6404 = vmul.f32 %v6383, %v6307
    %v6405 = vadd.f32 %v6315, %v6404
    %v6406 = vtanh.pop %v6405
    %v6407 = vsub.f32 1.0, %v6403
    %v6408 = vmul.f32 %v6407, %v6406
    %v6409 = vmul.f32 %v6403, %v6151
    %v6410 = vadd.f32 %v6408, %v6409
    %v6411 = vsel %vm723, %v6410, %v6151
    %v6412 = vpack.c.bf16 %v6363, %v6363
    %v6413 = vpack.c.bf16 %v6411, %v6411
    %6414 = vmatpush.bf16.msra.mxu0 %v5224
    %6415 = vmatpush.bf16.msra.mxu0 %v5218
    %6416 = vmatpush.bf16.msra.mxu0 %v5212
    %6417 = vmatpush.bf16.msra.mxu0 %v5206
    %6418 = vmatpush.bf16.msra.mxu0 %v5200
    %6419 = vmatpush.bf16.msra.mxu0 %v5194
    %6420 = vmatpush.bf16.msra.mxu0 %v5188
    %6421 = vmatpush.bf16.msra.mxu0 %v5182
    %6422 = vmatmul.bf16.gmra.mxu0 %v6412
    %v6423 = vpop.f32.mrf.mxu0
    %v6424 = vadd.f32 %v4882, %v6423
    %v6425 = vpop.f32.mrf.mxu0
    %6426 = vdwg.mxu0
    %6427 = vmatpush.bf16.msra.mxu0 %v5272
    %6428 = vmatpush.bf16.msra.mxu0 %v5266
    %6429 = vmatpush.bf16.msra.mxu0 %v5260
    %6430 = vmatpush.bf16.msra.mxu0 %v5254
    %6431 = vmatpush.bf16.msra.mxu0 %v5248
    %6432 = vmatpush.bf16.msra.mxu0 %v5242
    %6433 = vmatpush.bf16.msra.mxu0 %v5236
    %6434 = vmatpush.bf16.msra.mxu0 %v5230
    %6435 = vmatmul.bf16.gmra.mxu0 %v6413
    %v6436 = vpop.f32.mrf.mxu0
    %v6437 = vadd.f32 %v6424, %v6436
    %v6438 = vpop.f32.mrf.mxu0
    %6439 = vdwg.mxu0
    %6440 = vmatpush.bf16.msra.mxu0 %v5225
    %6441 = vmatpush.bf16.msra.mxu0 %v5219
    %6442 = vmatpush.bf16.msra.mxu0 %v5213
    %6443 = vmatpush.bf16.msra.mxu0 %v5207
    %6444 = vmatpush.bf16.msra.mxu0 %v5201
    %6445 = vmatpush.bf16.msra.mxu0 %v5195
    %6446 = vmatpush.bf16.msra.mxu0 %v5189
    %6447 = vmatpush.bf16.msra.mxu0 %v5183
    %6448 = vmatmul.bf16.gmra.mxu0 %v6412
    %v6449 = vpop.f32.mrf.mxu0
    %v6450 = vadd.f32 %v4883, %v6449
    %v6451 = vpop.f32.mrf.mxu0
    %6452 = vdwg.mxu0
    %6453 = vmatpush.bf16.msra.mxu0 %v5273
    %6454 = vmatpush.bf16.msra.mxu0 %v5267
    %6455 = vmatpush.bf16.msra.mxu0 %v5261
    %6456 = vmatpush.bf16.msra.mxu0 %v5255
    %6457 = vmatpush.bf16.msra.mxu0 %v5249
    %6458 = vmatpush.bf16.msra.mxu0 %v5243
    %6459 = vmatpush.bf16.msra.mxu0 %v5237
    %6460 = vmatpush.bf16.msra.mxu0 %v5231
    %6461 = vmatmul.bf16.gmra.mxu0 %v6413
    %v6462 = vpop.f32.mrf.mxu0
    %v6463 = vadd.f32 %v6450, %v6462
    %v6464 = vpop.f32.mrf.mxu0
    %6465 = vdwg.mxu0
    %6466 = vmatpush.bf16.msra.mxu0 %v5226
    %6467 = vmatpush.bf16.msra.mxu0 %v5220
    %6468 = vmatpush.bf16.msra.mxu0 %v5214
    %6469 = vmatpush.bf16.msra.mxu0 %v5208
    %6470 = vmatpush.bf16.msra.mxu0 %v5202
    %6471 = vmatpush.bf16.msra.mxu0 %v5196
    %6472 = vmatpush.bf16.msra.mxu0 %v5190
    %6473 = vmatpush.bf16.msra.mxu0 %v5184
    %6474 = vmatmul.bf16.gmra.mxu0 %v6412
    %v6475 = vpop.f32.mrf.mxu0
    %v6476 = vadd.f32 %v4884, %v6475
    %v6477 = vpop.f32.mrf.mxu0
    %6478 = vdwg.mxu0
    %6479 = vmatpush.bf16.msra.mxu0 %v5274
    %6480 = vmatpush.bf16.msra.mxu0 %v5268
    %6481 = vmatpush.bf16.msra.mxu0 %v5262
    %6482 = vmatpush.bf16.msra.mxu0 %v5256
    %6483 = vmatpush.bf16.msra.mxu0 %v5250
    %6484 = vmatpush.bf16.msra.mxu0 %v5244
    %6485 = vmatpush.bf16.msra.mxu0 %v5238
    %6486 = vmatpush.bf16.msra.mxu0 %v5232
    %6487 = vmatmul.bf16.gmra.mxu0 %v6413
    %v6488 = vpop.f32.mrf.mxu0
    %v6489 = vadd.f32 %v6476, %v6488
    %v6490 = vpop.f32.mrf.mxu0
    %6491 = vdwg.mxu0
    %6492 = vmatpush.bf16.msra.mxu0 %v5227
    %6493 = vmatpush.bf16.msra.mxu0 %v5221
    %6494 = vmatpush.bf16.msra.mxu0 %v5215
    %6495 = vmatpush.bf16.msra.mxu0 %v5209
    %6496 = vmatpush.bf16.msra.mxu0 %v5203
    %6497 = vmatpush.bf16.msra.mxu0 %v5197
    %6498 = vmatpush.bf16.msra.mxu0 %v5191
    %6499 = vmatpush.bf16.msra.mxu0 %v5185
    %6500 = vmatmul.bf16.gmra.mxu0 %v6412
    %v6501 = vpop.f32.mrf.mxu0
    %v6502 = vadd.f32 %v4885, %v6501
    %v6503 = vpop.f32.mrf.mxu0
    %6504 = vdwg.mxu0
    %6505 = vmatpush.bf16.msra.mxu0 %v5275
    %6506 = vmatpush.bf16.msra.mxu0 %v5269
    %6507 = vmatpush.bf16.msra.mxu0 %v5263
    %6508 = vmatpush.bf16.msra.mxu0 %v5257
    %6509 = vmatpush.bf16.msra.mxu0 %v5251
    %6510 = vmatpush.bf16.msra.mxu0 %v5245
    %6511 = vmatpush.bf16.msra.mxu0 %v5239
    %6512 = vmatpush.bf16.msra.mxu0 %v5233
    %6513 = vmatmul.bf16.gmra.mxu0 %v6413
    %v6514 = vpop.f32.mrf.mxu0
    %v6515 = vadd.f32 %v6502, %v6514
    %v6516 = vpop.f32.mrf.mxu0
    %6517 = vdwg.mxu0
    %6518 = vmatpush.bf16.msra.mxu0 %v5228
    %6519 = vmatpush.bf16.msra.mxu0 %v5222
    %6520 = vmatpush.bf16.msra.mxu0 %v5216
    %6521 = vmatpush.bf16.msra.mxu0 %v5210
    %6522 = vmatpush.bf16.msra.mxu0 %v5204
    %6523 = vmatpush.bf16.msra.mxu0 %v5198
    %6524 = vmatpush.bf16.msra.mxu0 %v5192
    %6525 = vmatpush.bf16.msra.mxu0 %v5186
    %6526 = vmatmul.bf16.gmra.mxu0 %v6412
    %v6527 = vpop.f32.mrf.mxu0
    %v6528 = vadd.f32 %v4886, %v6527
    %v6529 = vpop.f32.mrf.mxu0
    %6530 = vdwg.mxu0
    %6531 = vmatpush.bf16.msra.mxu0 %v5276
    %6532 = vmatpush.bf16.msra.mxu0 %v5270
    %6533 = vmatpush.bf16.msra.mxu0 %v5264
    %6534 = vmatpush.bf16.msra.mxu0 %v5258
    %6535 = vmatpush.bf16.msra.mxu0 %v5252
    %6536 = vmatpush.bf16.msra.mxu0 %v5246
    %6537 = vmatpush.bf16.msra.mxu0 %v5240
    %6538 = vmatpush.bf16.msra.mxu0 %v5234
    %6539 = vmatmul.bf16.gmra.mxu0 %v6413
    %v6540 = vpop.f32.mrf.mxu0
    %v6541 = vadd.f32 %v6528, %v6540
    %v6542 = vpop.f32.mrf.mxu0
    %6543 = vdwg.mxu0
    %6544 = vmatpush.bf16.msra.mxu0 %v5229
    %6545 = vmatpush.bf16.msra.mxu0 %v5223
    %6546 = vmatpush.bf16.msra.mxu0 %v5217
    %6547 = vmatpush.bf16.msra.mxu0 %v5211
    %6548 = vmatpush.bf16.msra.mxu0 %v5205
    %6549 = vmatpush.bf16.msra.mxu0 %v5199
    %6550 = vmatpush.bf16.msra.mxu0 %v5193
    %6551 = vmatpush.bf16.msra.mxu0 %v5187
    %6552 = vmatmul.bf16.gmra.mxu0 %v6412
    %v6553 = vpop.f32.mrf.mxu0
    %v6554 = vadd.f32 %v4887, %v6553
    %v6555 = vpop.f32.mrf.mxu0
    %6556 = vdwg.mxu0
    %6557 = vmatpush.bf16.msra.mxu0 %v5277
    %6558 = vmatpush.bf16.msra.mxu0 %v5271
    %6559 = vmatpush.bf16.msra.mxu0 %v5265
    %6560 = vmatpush.bf16.msra.mxu0 %v5259
    %6561 = vmatpush.bf16.msra.mxu0 %v5253
    %6562 = vmatpush.bf16.msra.mxu0 %v5247
    %6563 = vmatpush.bf16.msra.mxu0 %v5241
    %6564 = vmatpush.bf16.msra.mxu0 %v5235
    %6565 = vmatmul.bf16.gmra.mxu0 %v6413
    %v6566 = vpop.f32.mrf.mxu0
    %v6567 = vadd.f32 %v6554, %v6566
    %v6568 = vpop.f32.mrf.mxu0
    %6569 = vdwg.mxu0
    %v6570 = vld [vmem:[#allocation2 + $0xc0] sm:$0xff]
    %v6571 = vld [vmem:[#allocation2 + $0xc8] sm:$0xff]
    %v6572 = vld [vmem:[#allocation2 + $0xd0] sm:$0xff]
    %v6573 = vld [vmem:[#allocation2 + $0xa8] sm:$0xff]
    %v6574 = vld [vmem:[#allocation2 + $0xb0] sm:$0xff]
    %v6575 = vld [vmem:[#allocation2 + $0xb8] sm:$0xff]
    %v6576 = vadd.f32 %v6570, %v6437
    %v6577 = vxor.u32 %v6576, 2147483648
    %v6578 = vmul.f32 %v6577, 1.442695
    %v6579 = vpow.pop %v6578
    %v6580 = vadd.f32 %v6579, 1.0
    %v6581 = vrcp.pop %v6580
    %v6582 = vmul.f32 %v6580, %v6581
    %v6583 = vsub.f32 1.0, %v6582
    %v6584 = vmul.f32 %v6581, %v6583
    %v6585 = vadd.f32 %v6581, %v6584
    %vm6586 = vweird.f32 %v6580
    %vm6587 = vweird.f32 %v6581
    %vm6588 = vmor %vm6586, %vm6587
    %v6589 = vsel %vm6588, %v6581, %v6585
    %v6590 = vand.u32 2147483647, %v6580
    %vm6591 = vcmp.eq.f32.partialorder %v6590, 8.507059e+37
    %v6592 = vand.u32 %v6580, 2147483648
    %v6593 = vor.u32 1.1754944e-38, %v6592
    %v6594 = vsel %vm6591, %v6593, %v6589
    %v6595 = vmul.f32 1.0, %v6594
    %v6596 = vadd.f32 %v6571, %v6463
    %v6597 = vxor.u32 %v6596, 2147483648
    %v6598 = vmul.f32 %v6597, 1.442695
    %v6599 = vpow.pop %v6598
    %v6600 = vadd.f32 %v6599, 1.0
    %v6601 = vrcp.pop %v6600
    %v6602 = vmul.f32 %v6600, %v6601
    %v6603 = vsub.f32 1.0, %v6602
    %v6604 = vmul.f32 %v6601, %v6603
    %v6605 = vadd.f32 %v6601, %v6604
    %vm6606 = vweird.f32 %v6600
    %vm6607 = vweird.f32 %v6601
    %vm6608 = vmor %vm6606, %vm6607
    %v6609 = vsel %vm6608, %v6601, %v6605
    %v6610 = vand.u32 2147483647, %v6600
    %vm6611 = vcmp.eq.f32.partialorder %v6610, 8.507059e+37
    %v6612 = vand.u32 %v6600, 2147483648
    %v6613 = vor.u32 1.1754944e-38, %v6612
    %v6614 = vsel %vm6611, %v6613, %v6609
    %v6615 = vmul.f32 1.0, %v6614
    %v6616 = vmul.f32 %v6595, %v6489
    %v6617 = vadd.f32 %v6572, %v6616
    %v6618 = vtanh.pop %v6617
    %v6619 = vsub.f32 1.0, %v6615
    %v6620 = vmul.f32 %v6619, %v6618
    %v6621 = vmul.f32 %v6615, %v6363
    %v6622 = vadd.f32 %v6620, %v6621
    %v6623 = vsel %vm723, %v6622, %v6363
    %v6624 = vadd.f32 %v6573, %v6515
    %v6625 = vxor.u32 %v6624, 2147483648
    %v6626 = vmul.f32 %v6625, 1.442695
    %v6627 = vpow.pop %v6626
    %v6628 = vadd.f32 %v6627, 1.0
    %v6629 = vrcp.pop %v6628
    %v6630 = vmul.f32 %v6628, %v6629
    %v6631 = vsub.f32 1.0, %v6630
    %v6632 = vmul.f32 %v6629, %v6631
    %v6633 = vadd.f32 %v6629, %v6632
    %vm6634 = vweird.f32 %v6628
    %vm6635 = vweird.f32 %v6629
    %vm6636 = vmor %vm6634, %vm6635
    %v6637 = vsel %vm6636, %v6629, %v6633
    %v6638 = vand.u32 2147483647, %v6628
    %vm6639 = vcmp.eq.f32.partialorder %v6638, 8.507059e+37
    %v6640 = vand.u32 %v6628, 2147483648
    %v6641 = vor.u32 1.1754944e-38, %v6640
    %v6642 = vsel %vm6639, %v6641, %v6637
    %v6643 = vmul.f32 1.0, %v6642
    %v6644 = vadd.f32 %v6574, %v6541
    %v6645 = vxor.u32 %v6644, 2147483648
    %v6646 = vmul.f32 %v6645, 1.442695
    %v6647 = vpow.pop %v6646
    %v6648 = vadd.f32 %v6647, 1.0
    %v6649 = vrcp.pop %v6648
    %v6650 = vmul.f32 %v6648, %v6649
    %v6651 = vsub.f32 1.0, %v6650
    %v6652 = vmul.f32 %v6649, %v6651
    %v6653 = vadd.f32 %v6649, %v6652
    %vm6654 = vweird.f32 %v6648
    %vm6655 = vweird.f32 %v6649
    %vm6656 = vmor %vm6654, %vm6655
    %v6657 = vsel %vm6656, %v6649, %v6653
    %v6658 = vand.u32 2147483647, %v6648
    %vm6659 = vcmp.eq.f32.partialorder %v6658, 8.507059e+37
    %v6660 = vand.u32 %v6648, 2147483648
    %v6661 = vor.u32 1.1754944e-38, %v6660
    %v6662 = vsel %vm6659, %v6661, %v6657
    %v6663 = vmul.f32 1.0, %v6662
    %v6664 = vmul.f32 %v6643, %v6567
    %v6665 = vadd.f32 %v6575, %v6664
    %v6666 = vtanh.pop %v6665
    %v6667 = vsub.f32 1.0, %v6663
    %v6668 = vmul.f32 %v6667, %v6666
    %v6669 = vmul.f32 %v6663, %v6411
    %v6670 = vadd.f32 %v6668, %v6669
    %v6671 = vsel %vm717, %v6670, %v6411
    %v6672 = vpack.c.bf16 %v6623, %v6623
    %v6673 = vpack.c.bf16 %v6671, %v6671
    %6674 = vmatpush.bf16.msra.mxu0 %v5224
    %6675 = vmatpush.bf16.msra.mxu0 %v5218
    %6676 = vmatpush.bf16.msra.mxu0 %v5212
    %6677 = vmatpush.bf16.msra.mxu0 %v5206
    %6678 = vmatpush.bf16.msra.mxu0 %v5200
    %6679 = vmatpush.bf16.msra.mxu0 %v5194
    %6680 = vmatpush.bf16.msra.mxu0 %v5188
    %6681 = vmatpush.bf16.msra.mxu0 %v5182
    %6682 = vmatmul.bf16.gmra.mxu0 %v6672
    %v6683 = vpop.f32.mrf.mxu0
    %v6684 = vadd.f32 %v4882, %v6683
    %v6685 = vpop.f32.mrf.mxu0
    %6686 = vdwg.mxu0
    %6687 = vmatpush.bf16.msra.mxu0 %v5272
    %6688 = vmatpush.bf16.msra.mxu0 %v5266
    %6689 = vmatpush.bf16.msra.mxu0 %v5260
    %6690 = vmatpush.bf16.msra.mxu0 %v5254
    %6691 = vmatpush.bf16.msra.mxu0 %v5248
    %6692 = vmatpush.bf16.msra.mxu0 %v5242
    %6693 = vmatpush.bf16.msra.mxu0 %v5236
    %6694 = vmatpush.bf16.msra.mxu0 %v5230
    %6695 = vmatmul.bf16.gmra.mxu0 %v6673
    %v6696 = vpop.f32.mrf.mxu0
    %v6697 = vadd.f32 %v6684, %v6696
    %v6698 = vpop.f32.mrf.mxu0
    %6699 = vdwg.mxu0
    %6700 = vmatpush.bf16.msra.mxu0 %v5225
    %6701 = vmatpush.bf16.msra.mxu0 %v5219
    %6702 = vmatpush.bf16.msra.mxu0 %v5213
    %6703 = vmatpush.bf16.msra.mxu0 %v5207
    %6704 = vmatpush.bf16.msra.mxu0 %v5201
    %6705 = vmatpush.bf16.msra.mxu0 %v5195
    %6706 = vmatpush.bf16.msra.mxu0 %v5189
    %6707 = vmatpush.bf16.msra.mxu0 %v5183
    %6708 = vmatmul.bf16.gmra.mxu0 %v6672
    %v6709 = vpop.f32.mrf.mxu0
    %v6710 = vadd.f32 %v4883, %v6709
    %v6711 = vpop.f32.mrf.mxu0
    %6712 = vdwg.mxu0
    %6713 = vmatpush.bf16.msra.mxu0 %v5273
    %6714 = vmatpush.bf16.msra.mxu0 %v5267
    %6715 = vmatpush.bf16.msra.mxu0 %v5261
    %6716 = vmatpush.bf16.msra.mxu0 %v5255
    %6717 = vmatpush.bf16.msra.mxu0 %v5249
    %6718 = vmatpush.bf16.msra.mxu0 %v5243
    %6719 = vmatpush.bf16.msra.mxu0 %v5237
    %6720 = vmatpush.bf16.msra.mxu0 %v5231
    %6721 = vmatmul.bf16.gmra.mxu0 %v6673
    %v6722 = vpop.f32.mrf.mxu0
    %v6723 = vadd.f32 %v6710, %v6722
    %v6724 = vpop.f32.mrf.mxu0
    %6725 = vdwg.mxu0
    %6726 = vmatpush.bf16.msra.mxu0 %v5226
    %6727 = vmatpush.bf16.msra.mxu0 %v5220
    %6728 = vmatpush.bf16.msra.mxu0 %v5214
    %6729 = vmatpush.bf16.msra.mxu0 %v5208
    %6730 = vmatpush.bf16.msra.mxu0 %v5202
    %6731 = vmatpush.bf16.msra.mxu0 %v5196
    %6732 = vmatpush.bf16.msra.mxu0 %v5190
    %6733 = vmatpush.bf16.msra.mxu0 %v5184
    %6734 = vmatmul.bf16.gmra.mxu0 %v6672
    %v6735 = vpop.f32.mrf.mxu0
    %v6736 = vadd.f32 %v4884, %v6735
    %v6737 = vpop.f32.mrf.mxu0
    %6738 = vdwg.mxu0
    %6739 = vmatpush.bf16.msra.mxu0 %v5274
    %6740 = vmatpush.bf16.msra.mxu0 %v5268
    %6741 = vmatpush.bf16.msra.mxu0 %v5262
    %6742 = vmatpush.bf16.msra.mxu0 %v5256
    %6743 = vmatpush.bf16.msra.mxu0 %v5250
    %6744 = vmatpush.bf16.msra.mxu0 %v5244
    %6745 = vmatpush.bf16.msra.mxu0 %v5238
    %6746 = vmatpush.bf16.msra.mxu0 %v5232
    %6747 = vmatmul.bf16.gmra.mxu0 %v6673
    %v6748 = vpop.f32.mrf.mxu0
    %v6749 = vadd.f32 %v6736, %v6748
    %v6750 = vpop.f32.mrf.mxu0
    %6751 = vdwg.mxu0
    %6752 = vmatpush.bf16.msra.mxu0 %v5227
    %6753 = vmatpush.bf16.msra.mxu0 %v5221
    %6754 = vmatpush.bf16.msra.mxu0 %v5215
    %6755 = vmatpush.bf16.msra.mxu0 %v5209
    %6756 = vmatpush.bf16.msra.mxu0 %v5203
    %6757 = vmatpush.bf16.msra.mxu0 %v5197
    %6758 = vmatpush.bf16.msra.mxu0 %v5191
    %6759 = vmatpush.bf16.msra.mxu0 %v5185
    %6760 = vmatmul.bf16.gmra.mxu0 %v6672
    %v6761 = vpop.f32.mrf.mxu0
    %v6762 = vadd.f32 %v4885, %v6761
    %v6763 = vpop.f32.mrf.mxu0
    %6764 = vdwg.mxu0
    %6765 = vmatpush.bf16.msra.mxu0 %v5275
    %6766 = vmatpush.bf16.msra.mxu0 %v5269
    %6767 = vmatpush.bf16.msra.mxu0 %v5263
    %6768 = vmatpush.bf16.msra.mxu0 %v5257
    %6769 = vmatpush.bf16.msra.mxu0 %v5251
    %6770 = vmatpush.bf16.msra.mxu0 %v5245
    %6771 = vmatpush.bf16.msra.mxu0 %v5239
    %6772 = vmatpush.bf16.msra.mxu0 %v5233
    %6773 = vmatmul.bf16.gmra.mxu0 %v6673
    %v6774 = vpop.f32.mrf.mxu0
    %v6775 = vadd.f32 %v6762, %v6774
    %v6776 = vpop.f32.mrf.mxu0
    %6777 = vdwg.mxu0
    %6778 = vmatpush.bf16.msra.mxu0 %v5228
    %6779 = vmatpush.bf16.msra.mxu0 %v5222
    %6780 = vmatpush.bf16.msra.mxu0 %v5216
    %6781 = vmatpush.bf16.msra.mxu0 %v5210
    %6782 = vmatpush.bf16.msra.mxu0 %v5204
    %6783 = vmatpush.bf16.msra.mxu0 %v5198
    %6784 = vmatpush.bf16.msra.mxu0 %v5192
    %6785 = vmatpush.bf16.msra.mxu0 %v5186
    %6786 = vmatmul.bf16.gmra.mxu0 %v6672
    %v6787 = vpop.f32.mrf.mxu0
    %v6788 = vadd.f32 %v4886, %v6787
    %v6789 = vpop.f32.mrf.mxu0
    %6790 = vdwg.mxu0
    %6791 = vmatpush.bf16.msra.mxu0 %v5276
    %6792 = vmatpush.bf16.msra.mxu0 %v5270
    %6793 = vmatpush.bf16.msra.mxu0 %v5264
    %6794 = vmatpush.bf16.msra.mxu0 %v5258
    %6795 = vmatpush.bf16.msra.mxu0 %v5252
    %6796 = vmatpush.bf16.msra.mxu0 %v5246
    %6797 = vmatpush.bf16.msra.mxu0 %v5240
    %6798 = vmatpush.bf16.msra.mxu0 %v5234
    %6799 = vmatmul.bf16.gmra.mxu0 %v6673
    %v6800 = vpop.f32.mrf.mxu0
    %v6801 = vadd.f32 %v6788, %v6800
    %v6802 = vpop.f32.mrf.mxu0
    %6803 = vdwg.mxu0
    %6804 = vmatpush.bf16.msra.mxu0 %v5229
    %6805 = vmatpush.bf16.msra.mxu0 %v5223
    %6806 = vmatpush.bf16.msra.mxu0 %v5217
    %6807 = vmatpush.bf16.msra.mxu0 %v5211
    %6808 = vmatpush.bf16.msra.mxu0 %v5205
    %6809 = vmatpush.bf16.msra.mxu0 %v5199
    %6810 = vmatpush.bf16.msra.mxu0 %v5193
    %6811 = vmatpush.bf16.msra.mxu0 %v5187
    %6812 = vmatmul.bf16.gmra.mxu0 %v6672
    %v6813 = vpop.f32.mrf.mxu0
    %v6814 = vadd.f32 %v4887, %v6813
    %v6815 = vpop.f32.mrf.mxu0
    %6816 = vdwg.mxu0
    %6817 = vmatpush.bf16.msra.mxu0 %v5277
    %6818 = vmatpush.bf16.msra.mxu0 %v5271
    %6819 = vmatpush.bf16.msra.mxu0 %v5265
    %6820 = vmatpush.bf16.msra.mxu0 %v5259
    %6821 = vmatpush.bf16.msra.mxu0 %v5253
    %6822 = vmatpush.bf16.msra.mxu0 %v5247
    %6823 = vmatpush.bf16.msra.mxu0 %v5241
    %6824 = vmatpush.bf16.msra.mxu0 %v5235
    %6825 = vmatmul.bf16.gmra.mxu0 %v6673
    %v6826 = vpop.f32.mrf.mxu0
    %v6827 = vadd.f32 %v6814, %v6826
    %v6828 = vpop.f32.mrf.mxu0
    %6829 = vdwg.mxu0
    %v6830 = vld [vmem:[#allocation2 + $0xf0] sm:$0xff]
    %v6831 = vld [vmem:[#allocation2 + $0xf8] sm:$0xff]
    %v6832 = vld [vmem:[#allocation2 + $0x100] sm:$0xff]
    %v6833 = vld [vmem:[#allocation2 + $0x78] sm:$0xff]
    %v6834 = vld [vmem:[#allocation2 + $0x80] sm:$0xff]
    %v6835 = vld [vmem:[#allocation2 + $0x88] sm:$0xff]
    %v6836 = vadd.f32 %v6830, %v6697
    %v6837 = vxor.u32 %v6836, 2147483648
    %v6838 = vmul.f32 %v6837, 1.442695
    %v6839 = vpow.pop %v6838
    %v6840 = vadd.f32 %v6839, 1.0
    %v6841 = vrcp.pop %v6840
    %v6842 = vmul.f32 %v6840, %v6841
    %v6843 = vsub.f32 1.0, %v6842
    %v6844 = vmul.f32 %v6841, %v6843
    %v6845 = vadd.f32 %v6841, %v6844
    %vm6846 = vweird.f32 %v6840
    %vm6847 = vweird.f32 %v6841
    %vm6848 = vmor %vm6846, %vm6847
    %v6849 = vsel %vm6848, %v6841, %v6845
    %v6850 = vand.u32 2147483647, %v6840
    %vm6851 = vcmp.eq.f32.partialorder %v6850, 8.507059e+37
    %v6852 = vand.u32 %v6840, 2147483648
    %v6853 = vor.u32 1.1754944e-38, %v6852
    %v6854 = vsel %vm6851, %v6853, %v6849
    %v6855 = vmul.f32 1.0, %v6854
    %v6856 = vadd.f32 %v6831, %v6723
    %v6857 = vxor.u32 %v6856, 2147483648
    %v6858 = vmul.f32 %v6857, 1.442695
    %v6859 = vpow.pop %v6858
    %v6860 = vadd.f32 %v6859, 1.0
    %v6861 = vrcp.pop %v6860
    %v6862 = vmul.f32 %v6860, %v6861
    %v6863 = vsub.f32 1.0, %v6862
    %v6864 = vmul.f32 %v6861, %v6863
    %v6865 = vadd.f32 %v6861, %v6864
    %vm6866 = vweird.f32 %v6860
    %vm6867 = vweird.f32 %v6861
    %vm6868 = vmor %vm6866, %vm6867
    %v6869 = vsel %vm6868, %v6861, %v6865
    %v6870 = vand.u32 2147483647, %v6860
    %vm6871 = vcmp.eq.f32.partialorder %v6870, 8.507059e+37
    %v6872 = vand.u32 %v6860, 2147483648
    %v6873 = vor.u32 1.1754944e-38, %v6872
    %v6874 = vsel %vm6871, %v6873, %v6869
    %v6875 = vmul.f32 1.0, %v6874
    %v6876 = vmul.f32 %v6855, %v6749
    %v6877 = vadd.f32 %v6832, %v6876
    %v6878 = vtanh.pop %v6877
    %v6879 = vsub.f32 1.0, %v6875
    %v6880 = vmul.f32 %v6879, %v6878
    %v6881 = vmul.f32 %v6875, %v6623
    %v6882 = vadd.f32 %v6880, %v6881
    %v6883 = vsel %vm729, %v6882, %v6623
    %v6884 = vadd.f32 %v6833, %v6775
    %v6885 = vxor.u32 %v6884, 2147483648
    %v6886 = vmul.f32 %v6885, 1.442695
    %v6887 = vpow.pop %v6886
    %v6888 = vadd.f32 %v6887, 1.0
    %v6889 = vrcp.pop %v6888
    %v6890 = vmul.f32 %v6888, %v6889
    %v6891 = vsub.f32 1.0, %v6890
    %v6892 = vmul.f32 %v6889, %v6891
    %v6893 = vadd.f32 %v6889, %v6892
    %vm6894 = vweird.f32 %v6888
    %vm6895 = vweird.f32 %v6889
    %vm6896 = vmor %vm6894, %vm6895
    %v6897 = vsel %vm6896, %v6889, %v6893
    %v6898 = vand.u32 2147483647, %v6888
    %vm6899 = vcmp.eq.f32.partialorder %v6898, 8.507059e+37
    %v6900 = vand.u32 %v6888, 2147483648
    %v6901 = vor.u32 1.1754944e-38, %v6900
    %v6902 = vsel %vm6899, %v6901, %v6897
    %v6903 = vmul.f32 1.0, %v6902
    %v6904 = vadd.f32 %v6834, %v6801
    %v6905 = vxor.u32 %v6904, 2147483648
    %v6906 = vmul.f32 %v6905, 1.442695
    %v6907 = vpow.pop %v6906
    %v6908 = vadd.f32 %v6907, 1.0
    %v6909 = vrcp.pop %v6908
    %v6910 = vmul.f32 %v6908, %v6909
    %v6911 = vsub.f32 1.0, %v6910
    %v6912 = vmul.f32 %v6909, %v6911
    %v6913 = vadd.f32 %v6909, %v6912
    %vm6914 = vweird.f32 %v6908
    %vm6915 = vweird.f32 %v6909
    %vm6916 = vmor %vm6914, %vm6915
    %v6917 = vsel %vm6916, %v6909, %v6913
    %v6918 = vand.u32 2147483647, %v6908
    %vm6919 = vcmp.eq.f32.partialorder %v6918, 8.507059e+37
    %v6920 = vand.u32 %v6908, 2147483648
    %v6921 = vor.u32 1.1754944e-38, %v6920
    %v6922 = vsel %vm6919, %v6921, %v6917
    %v6923 = vmul.f32 1.0, %v6922
    %v6924 = vmul.f32 %v6903, %v6827
    %v6925 = vadd.f32 %v6835, %v6924
    %v6926 = vtanh.pop %v6925
    %v6927 = vsub.f32 1.0, %v6923
    %v6928 = vmul.f32 %v6927, %v6926
    %v6929 = vmul.f32 %v6923, %v6671
    %v6930 = vadd.f32 %v6928, %v6929
    %v6931 = vsel %vm711, %v6930, %v6671
    %v6932 = vpack.c.bf16 %v6883, %v6883
    %v6933 = vpack.c.bf16 %v6931, %v6931
    %6934 = vmatpush.bf16.msra.mxu0 %v5224
    %6935 = vmatpush.bf16.msra.mxu0 %v5218
    %6936 = vmatpush.bf16.msra.mxu0 %v5212
    %6937 = vmatpush.bf16.msra.mxu0 %v5206
    %6938 = vmatpush.bf16.msra.mxu0 %v5200
    %6939 = vmatpush.bf16.msra.mxu0 %v5194
    %6940 = vmatpush.bf16.msra.mxu0 %v5188
    %6941 = vmatpush.bf16.msra.mxu0 %v5182
    %6942 = vmatmul.bf16.gmra.mxu0 %v6932
    %v6943 = vpop.f32.mrf.mxu0
    %v6944 = vadd.f32 %v4882, %v6943
    %v6945 = vpop.f32.mrf.mxu0
    %6946 = vdwg.mxu0
    %6947 = vmatpush.bf16.msra.mxu0 %v5272
    %6948 = vmatpush.bf16.msra.mxu0 %v5266
    %6949 = vmatpush.bf16.msra.mxu0 %v5260
    %6950 = vmatpush.bf16.msra.mxu0 %v5254
    %6951 = vmatpush.bf16.msra.mxu0 %v5248
    %6952 = vmatpush.bf16.msra.mxu0 %v5242
    %6953 = vmatpush.bf16.msra.mxu0 %v5236
    %6954 = vmatpush.bf16.msra.mxu0 %v5230
    %6955 = vmatmul.bf16.gmra.mxu0 %v6933
    %v6956 = vpop.f32.mrf.mxu0
    %v6957 = vadd.f32 %v6944, %v6956
    %v6958 = vpop.f32.mrf.mxu0
    %6959 = vdwg.mxu0
    %6960 = vmatpush.bf16.msra.mxu0 %v5225
    %6961 = vmatpush.bf16.msra.mxu0 %v5219
    %6962 = vmatpush.bf16.msra.mxu0 %v5213
    %6963 = vmatpush.bf16.msra.mxu0 %v5207
    %6964 = vmatpush.bf16.msra.mxu0 %v5201
    %6965 = vmatpush.bf16.msra.mxu0 %v5195
    %6966 = vmatpush.bf16.msra.mxu0 %v5189
    %6967 = vmatpush.bf16.msra.mxu0 %v5183
    %6968 = vmatmul.bf16.gmra.mxu0 %v6932
    %v6969 = vpop.f32.mrf.mxu0
    %v6970 = vadd.f32 %v4883, %v6969
    %v6971 = vpop.f32.mrf.mxu0
    %6972 = vdwg.mxu0
    %6973 = vmatpush.bf16.msra.mxu0 %v5273
    %6974 = vmatpush.bf16.msra.mxu0 %v5267
    %6975 = vmatpush.bf16.msra.mxu0 %v5261
    %6976 = vmatpush.bf16.msra.mxu0 %v5255
    %6977 = vmatpush.bf16.msra.mxu0 %v5249
    %6978 = vmatpush.bf16.msra.mxu0 %v5243
    %6979 = vmatpush.bf16.msra.mxu0 %v5237
    %6980 = vmatpush.bf16.msra.mxu0 %v5231
    %6981 = vmatmul.bf16.gmra.mxu0 %v6933
    %v6982 = vpop.f32.mrf.mxu0
    %v6983 = vadd.f32 %v6970, %v6982
    %v6984 = vpop.f32.mrf.mxu0
    %6985 = vdwg.mxu0
    %6986 = vmatpush.bf16.msra.mxu0 %v5226
    %6987 = vmatpush.bf16.msra.mxu0 %v5220
    %6988 = vmatpush.bf16.msra.mxu0 %v5214
    %6989 = vmatpush.bf16.msra.mxu0 %v5208
    %6990 = vmatpush.bf16.msra.mxu0 %v5202
    %6991 = vmatpush.bf16.msra.mxu0 %v5196
    %6992 = vmatpush.bf16.msra.mxu0 %v5190
    %6993 = vmatpush.bf16.msra.mxu0 %v5184
    %6994 = vmatmul.bf16.gmra.mxu0 %v6932
    %v6995 = vpop.f32.mrf.mxu0
    %v6996 = vadd.f32 %v4884, %v6995
    %v6997 = vpop.f32.mrf.mxu0
    %6998 = vdwg.mxu0
    %6999 = vmatpush.bf16.msra.mxu0 %v5274
    %7000 = vmatpush.bf16.msra.mxu0 %v5268
    %7001 = vmatpush.bf16.msra.mxu0 %v5262
    %7002 = vmatpush.bf16.msra.mxu0 %v5256
    %7003 = vmatpush.bf16.msra.mxu0 %v5250
    %7004 = vmatpush.bf16.msra.mxu0 %v5244
    %7005 = vmatpush.bf16.msra.mxu0 %v5238
    %7006 = vmatpush.bf16.msra.mxu0 %v5232
    %7007 = vmatmul.bf16.gmra.mxu0 %v6933
    %v7008 = vpop.f32.mrf.mxu0
    %v7009 = vadd.f32 %v6996, %v7008
    %v7010 = vpop.f32.mrf.mxu0
    %7011 = vdwg.mxu0
    %7012 = vmatpush.bf16.msra.mxu0 %v5227
    %7013 = vmatpush.bf16.msra.mxu0 %v5221
    %7014 = vmatpush.bf16.msra.mxu0 %v5215
    %7015 = vmatpush.bf16.msra.mxu0 %v5209
    %7016 = vmatpush.bf16.msra.mxu0 %v5203
    %7017 = vmatpush.bf16.msra.mxu0 %v5197
    %7018 = vmatpush.bf16.msra.mxu0 %v5191
    %7019 = vmatpush.bf16.msra.mxu0 %v5185
    %7020 = vmatmul.bf16.gmra.mxu0 %v6932
    %v7021 = vpop.f32.mrf.mxu0
    %v7022 = vadd.f32 %v4885, %v7021
    %v7023 = vpop.f32.mrf.mxu0
    %7024 = vdwg.mxu0
    %7025 = vmatpush.bf16.msra.mxu0 %v5275
    %7026 = vmatpush.bf16.msra.mxu0 %v5269
    %7027 = vmatpush.bf16.msra.mxu0 %v5263
    %7028 = vmatpush.bf16.msra.mxu0 %v5257
    %7029 = vmatpush.bf16.msra.mxu0 %v5251
    %7030 = vmatpush.bf16.msra.mxu0 %v5245
    %7031 = vmatpush.bf16.msra.mxu0 %v5239
    %7032 = vmatpush.bf16.msra.mxu0 %v5233
    %7033 = vmatmul.bf16.gmra.mxu0 %v6933
    %v7034 = vpop.f32.mrf.mxu0
    %v7035 = vadd.f32 %v7022, %v7034
    %v7036 = vpop.f32.mrf.mxu0
    %7037 = vdwg.mxu0
    %7038 = vmatpush.bf16.msra.mxu0 %v5228
    %7039 = vmatpush.bf16.msra.mxu0 %v5222
    %7040 = vmatpush.bf16.msra.mxu0 %v5216
    %7041 = vmatpush.bf16.msra.mxu0 %v5210
    %7042 = vmatpush.bf16.msra.mxu0 %v5204
    %7043 = vmatpush.bf16.msra.mxu0 %v5198
    %7044 = vmatpush.bf16.msra.mxu0 %v5192
    %7045 = vmatpush.bf16.msra.mxu0 %v5186
    %7046 = vmatmul.bf16.gmra.mxu0 %v6932
    %v7047 = vpop.f32.mrf.mxu0
    %v7048 = vadd.f32 %v4886, %v7047
    %v7049 = vpop.f32.mrf.mxu0
    %7050 = vdwg.mxu0
    %7051 = vmatpush.bf16.msra.mxu0 %v5276
    %7052 = vmatpush.bf16.msra.mxu0 %v5270
    %7053 = vmatpush.bf16.msra.mxu0 %v5264
    %7054 = vmatpush.bf16.msra.mxu0 %v5258
    %7055 = vmatpush.bf16.msra.mxu0 %v5252
    %7056 = vmatpush.bf16.msra.mxu0 %v5246
    %7057 = vmatpush.bf16.msra.mxu0 %v5240
    %7058 = vmatpush.bf16.msra.mxu0 %v5234
    %7059 = vmatmul.bf16.gmra.mxu0 %v6933
    %v7060 = vpop.f32.mrf.mxu0
    %v7061 = vadd.f32 %v7048, %v7060
    %v7062 = vpop.f32.mrf.mxu0
    %7063 = vdwg.mxu0
    %7064 = vmatpush.bf16.msra.mxu0 %v5229
    %7065 = vmatpush.bf16.msra.mxu0 %v5223
    %7066 = vmatpush.bf16.msra.mxu0 %v5217
    %7067 = vmatpush.bf16.msra.mxu0 %v5211
    %7068 = vmatpush.bf16.msra.mxu0 %v5205
    %7069 = vmatpush.bf16.msra.mxu0 %v5199
    %7070 = vmatpush.bf16.msra.mxu0 %v5193
    %7071 = vmatpush.bf16.msra.mxu0 %v5187
    %7072 = vmatmul.bf16.gmra.mxu0 %v6932
    %v7073 = vpop.f32.mrf.mxu0
    %v7074 = vadd.f32 %v4887, %v7073
    %v7075 = vpop.f32.mrf.mxu0
    %7076 = vdwg.mxu0
    %7077 = vmatpush.bf16.msra.mxu0 %v5277
    %7078 = vmatpush.bf16.msra.mxu0 %v5271
    %7079 = vmatpush.bf16.msra.mxu0 %v5265
    %7080 = vmatpush.bf16.msra.mxu0 %v5259
    %7081 = vmatpush.bf16.msra.mxu0 %v5253
    %7082 = vmatpush.bf16.msra.mxu0 %v5247
    %7083 = vmatpush.bf16.msra.mxu0 %v5241
    %7084 = vmatpush.bf16.msra.mxu0 %v5235
    %7085 = vmatmul.bf16.gmra.mxu0 %v6933
    %v7086 = vpop.f32.mrf.mxu0
    %v7087 = vadd.f32 %v7074, %v7086
    %v7088 = vpop.f32.mrf.mxu0
    %7089 = vdwg.mxu0
    %v7090 = vld [vmem:[#allocation2 + $0x120] sm:$0xff]
    %v7091 = vld [vmem:[#allocation2 + $0x128] sm:$0xff]
    %v7092 = vld [vmem:[#allocation2 + $0x130] sm:$0xff]
    %v7093 = vld [vmem:[#allocation2 + $0x48] sm:$0xff]
    %v7094 = vld [vmem:[#allocation2 + $0x50] sm:$0xff]
    %v7095 = vld [vmem:[#allocation2 + $0x58] sm:$0xff]
    %v7096 = vadd.f32 %v7090, %v6957
    %v7097 = vxor.u32 %v7096, 2147483648
    %v7098 = vmul.f32 %v7097, 1.442695
    %v7099 = vpow.pop %v7098
    %v7100 = vadd.f32 %v7099, 1.0
    %v7101 = vrcp.pop %v7100
    %v7102 = vmul.f32 %v7100, %v7101
    %v7103 = vsub.f32 1.0, %v7102
    %v7104 = vmul.f32 %v7101, %v7103
    %v7105 = vadd.f32 %v7101, %v7104
    %vm7106 = vweird.f32 %v7100
    %vm7107 = vweird.f32 %v7101
    %vm7108 = vmor %vm7106, %vm7107
    %v7109 = vsel %vm7108, %v7101, %v7105
    %v7110 = vand.u32 2147483647, %v7100
    %vm7111 = vcmp.eq.f32.partialorder %v7110, 8.507059e+37
    %v7112 = vand.u32 %v7100, 2147483648
    %v7113 = vor.u32 1.1754944e-38, %v7112
    %v7114 = vsel %vm7111, %v7113, %v7109
    %v7115 = vmul.f32 1.0, %v7114
    %v7116 = vadd.f32 %v7091, %v6983
    %v7117 = vxor.u32 %v7116, 2147483648
    %v7118 = vmul.f32 %v7117, 1.442695
    %v7119 = vpow.pop %v7118
    %v7120 = vadd.f32 %v7119, 1.0
    %v7121 = vrcp.pop %v7120
    %v7122 = vmul.f32 %v7120, %v7121
    %v7123 = vsub.f32 1.0, %v7122
    %v7124 = vmul.f32 %v7121, %v7123
    %v7125 = vadd.f32 %v7121, %v7124
    %vm7126 = vweird.f32 %v7120
    %vm7127 = vweird.f32 %v7121
    %vm7128 = vmor %vm7126, %vm7127
    %v7129 = vsel %vm7128, %v7121, %v7125
    %v7130 = vand.u32 2147483647, %v7120
    %vm7131 = vcmp.eq.f32.partialorder %v7130, 8.507059e+37
    %v7132 = vand.u32 %v7120, 2147483648
    %v7133 = vor.u32 1.1754944e-38, %v7132
    %v7134 = vsel %vm7131, %v7133, %v7129
    %v7135 = vmul.f32 1.0, %v7134
    %v7136 = vmul.f32 %v7115, %v7009
    %v7137 = vadd.f32 %v7092, %v7136
    %v7138 = vtanh.pop %v7137
    %v7139 = vsub.f32 1.0, %v7135
    %v7140 = vmul.f32 %v7139, %v7138
    %v7141 = vmul.f32 %v7135, %v6883
    %v7142 = vadd.f32 %v7140, %v7141
    %v7143 = vsel %vm735, %v7142, %v6883
    %v7144 = vadd.f32 %v7093, %v7035
    %v7145 = vxor.u32 %v7144, 2147483648
    %v7146 = vmul.f32 %v7145, 1.442695
    %v7147 = vpow.pop %v7146
    %v7148 = vadd.f32 %v7147, 1.0
    %v7149 = vrcp.pop %v7148
    %v7150 = vmul.f32 %v7148, %v7149
    %v7151 = vsub.f32 1.0, %v7150
    %v7152 = vmul.f32 %v7149, %v7151
    %v7153 = vadd.f32 %v7149, %v7152
    %vm7154 = vweird.f32 %v7148
    %vm7155 = vweird.f32 %v7149
    %vm7156 = vmor %vm7154, %vm7155
    %v7157 = vsel %vm7156, %v7149, %v7153
    %v7158 = vand.u32 2147483647, %v7148
    %vm7159 = vcmp.eq.f32.partialorder %v7158, 8.507059e+37
    %v7160 = vand.u32 %v7148, 2147483648
    %v7161 = vor.u32 1.1754944e-38, %v7160
    %v7162 = vsel %vm7159, %v7161, %v7157
    %v7163 = vmul.f32 1.0, %v7162
    %v7164 = vadd.f32 %v7094, %v7061
    %v7165 = vxor.u32 %v7164, 2147483648
    %v7166 = vmul.f32 %v7165, 1.442695
    %v7167 = vpow.pop %v7166
    %v7168 = vadd.f32 %v7167, 1.0
    %v7169 = vrcp.pop %v7168
    %v7170 = vmul.f32 %v7168, %v7169
    %v7171 = vsub.f32 1.0, %v7170
    %v7172 = vmul.f32 %v7169, %v7171
    %v7173 = vadd.f32 %v7169, %v7172
    %vm7174 = vweird.f32 %v7168
    %vm7175 = vweird.f32 %v7169
    %vm7176 = vmor %vm7174, %vm7175
    %v7177 = vsel %vm7176, %v7169, %v7173
    %v7178 = vand.u32 2147483647, %v7168
    %vm7179 = vcmp.eq.f32.partialorder %v7178, 8.507059e+37
    %v7180 = vand.u32 %v7168, 2147483648
    %v7181 = vor.u32 1.1754944e-38, %v7180
    %v7182 = vsel %vm7179, %v7181, %v7177
    %v7183 = vmul.f32 1.0, %v7182
    %v7184 = vmul.f32 %v7163, %v7087
    %v7185 = vadd.f32 %v7095, %v7184
    %v7186 = vtanh.pop %v7185
    %v7187 = vsub.f32 1.0, %v7183
    %v7188 = vmul.f32 %v7187, %v7186
    %v7189 = vmul.f32 %v7183, %v6931
    %v7190 = vadd.f32 %v7188, %v7189
    %v7191 = vsel %vm705, %v7190, %v6931
    %v7192 = vpack.c.bf16 %v7143, %v7143
    %v7193 = vpack.c.bf16 %v7191, %v7191
    %7194 = vmatpush.bf16.msra.mxu0 %v5224
    %7195 = vmatpush.bf16.msra.mxu0 %v5218
    %7196 = vmatpush.bf16.msra.mxu0 %v5212
    %7197 = vmatpush.bf16.msra.mxu0 %v5206
    %7198 = vmatpush.bf16.msra.mxu0 %v5200
    %7199 = vmatpush.bf16.msra.mxu0 %v5194
    %7200 = vmatpush.bf16.msra.mxu0 %v5188
    %7201 = vmatpush.bf16.msra.mxu0 %v5182
    %7202 = vmatmul.bf16.gmra.mxu0 %v7192
    %v7203 = vpop.f32.mrf.mxu0
    %v7204 = vadd.f32 %v4882, %v7203
    %v7205 = vpop.f32.mrf.mxu0
    %7206 = vdwg.mxu0
    %7207 = vmatpush.bf16.msra.mxu0 %v5272
    %7208 = vmatpush.bf16.msra.mxu0 %v5266
    %7209 = vmatpush.bf16.msra.mxu0 %v5260
    %7210 = vmatpush.bf16.msra.mxu0 %v5254
    %7211 = vmatpush.bf16.msra.mxu0 %v5248
    %7212 = vmatpush.bf16.msra.mxu0 %v5242
    %7213 = vmatpush.bf16.msra.mxu0 %v5236
    %7214 = vmatpush.bf16.msra.mxu0 %v5230
    %7215 = vmatmul.bf16.gmra.mxu0 %v7193
    %v7216 = vpop.f32.mrf.mxu0
    %v7217 = vadd.f32 %v7204, %v7216
    %v7218 = vpop.f32.mrf.mxu0
    %7219 = vdwg.mxu0
    %7220 = vmatpush.bf16.msra.mxu0 %v5225
    %7221 = vmatpush.bf16.msra.mxu0 %v5219
    %7222 = vmatpush.bf16.msra.mxu0 %v5213
    %7223 = vmatpush.bf16.msra.mxu0 %v5207
    %7224 = vmatpush.bf16.msra.mxu0 %v5201
    %7225 = vmatpush.bf16.msra.mxu0 %v5195
    %7226 = vmatpush.bf16.msra.mxu0 %v5189
    %7227 = vmatpush.bf16.msra.mxu0 %v5183
    %7228 = vmatmul.bf16.gmra.mxu0 %v7192
    %v7229 = vpop.f32.mrf.mxu0
    %v7230 = vadd.f32 %v4883, %v7229
    %v7231 = vpop.f32.mrf.mxu0
    %7232 = vdwg.mxu0
    %7233 = vmatpush.bf16.msra.mxu0 %v5273
    %7234 = vmatpush.bf16.msra.mxu0 %v5267
    %7235 = vmatpush.bf16.msra.mxu0 %v5261
    %7236 = vmatpush.bf16.msra.mxu0 %v5255
    %7237 = vmatpush.bf16.msra.mxu0 %v5249
    %7238 = vmatpush.bf16.msra.mxu0 %v5243
    %7239 = vmatpush.bf16.msra.mxu0 %v5237
    %7240 = vmatpush.bf16.msra.mxu0 %v5231
    %7241 = vmatmul.bf16.gmra.mxu0 %v7193
    %v7242 = vpop.f32.mrf.mxu0
    %v7243 = vadd.f32 %v7230, %v7242
    %v7244 = vpop.f32.mrf.mxu0
    %7245 = vdwg.mxu0
    %7246 = vmatpush.bf16.msra.mxu0 %v5226
    %7247 = vmatpush.bf16.msra.mxu0 %v5220
    %7248 = vmatpush.bf16.msra.mxu0 %v5214
    %7249 = vmatpush.bf16.msra.mxu0 %v5208
    %7250 = vmatpush.bf16.msra.mxu0 %v5202
    %7251 = vmatpush.bf16.msra.mxu0 %v5196
    %7252 = vmatpush.bf16.msra.mxu0 %v5190
    %7253 = vmatpush.bf16.msra.mxu0 %v5184
    %7254 = vmatmul.bf16.gmra.mxu0 %v7192
    %v7255 = vpop.f32.mrf.mxu0
    %v7256 = vadd.f32 %v4884, %v7255
    %v7257 = vpop.f32.mrf.mxu0
    %7258 = vdwg.mxu0
    %7259 = vmatpush.bf16.msra.mxu0 %v5274
    %7260 = vmatpush.bf16.msra.mxu0 %v5268
    %7261 = vmatpush.bf16.msra.mxu0 %v5262
    %7262 = vmatpush.bf16.msra.mxu0 %v5256
    %7263 = vmatpush.bf16.msra.mxu0 %v5250
    %7264 = vmatpush.bf16.msra.mxu0 %v5244
    %7265 = vmatpush.bf16.msra.mxu0 %v5238
    %7266 = vmatpush.bf16.msra.mxu0 %v5232
    %7267 = vmatmul.bf16.gmra.mxu0 %v7193
    %v7268 = vpop.f32.mrf.mxu0
    %v7269 = vadd.f32 %v7256, %v7268
    %v7270 = vpop.f32.mrf.mxu0
    %7271 = vdwg.mxu0
    %7272 = vmatpush.bf16.msra.mxu0 %v5227
    %7273 = vmatpush.bf16.msra.mxu0 %v5221
    %7274 = vmatpush.bf16.msra.mxu0 %v5215
    %7275 = vmatpush.bf16.msra.mxu0 %v5209
    %7276 = vmatpush.bf16.msra.mxu0 %v5203
    %7277 = vmatpush.bf16.msra.mxu0 %v5197
    %7278 = vmatpush.bf16.msra.mxu0 %v5191
    %7279 = vmatpush.bf16.msra.mxu0 %v5185
    %7280 = vmatmul.bf16.gmra.mxu0 %v7192
    %v7281 = vpop.f32.mrf.mxu0
    %v7282 = vadd.f32 %v4885, %v7281
    %v7283 = vpop.f32.mrf.mxu0
    %7284 = vdwg.mxu0
    %7285 = vmatpush.bf16.msra.mxu0 %v5275
    %7286 = vmatpush.bf16.msra.mxu0 %v5269
    %7287 = vmatpush.bf16.msra.mxu0 %v5263
    %7288 = vmatpush.bf16.msra.mxu0 %v5257
    %7289 = vmatpush.bf16.msra.mxu0 %v5251
    %7290 = vmatpush.bf16.msra.mxu0 %v5245
    %7291 = vmatpush.bf16.msra.mxu0 %v5239
    %7292 = vmatpush.bf16.msra.mxu0 %v5233
    %7293 = vmatmul.bf16.gmra.mxu0 %v7193
    %v7294 = vpop.f32.mrf.mxu0
    %v7295 = vadd.f32 %v7282, %v7294
    %v7296 = vpop.f32.mrf.mxu0
    %7297 = vdwg.mxu0
    %7298 = vmatpush.bf16.msra.mxu0 %v5228
    %7299 = vmatpush.bf16.msra.mxu0 %v5222
    %7300 = vmatpush.bf16.msra.mxu0 %v5216
    %7301 = vmatpush.bf16.msra.mxu0 %v5210
    %7302 = vmatpush.bf16.msra.mxu0 %v5204
    %7303 = vmatpush.bf16.msra.mxu0 %v5198
    %7304 = vmatpush.bf16.msra.mxu0 %v5192
    %7305 = vmatpush.bf16.msra.mxu0 %v5186
    %7306 = vmatmul.bf16.gmra.mxu0 %v7192
    %v7307 = vpop.f32.mrf.mxu0
    %v7308 = vadd.f32 %v4886, %v7307
    %v7309 = vpop.f32.mrf.mxu0
    %7310 = vdwg.mxu0
    %7311 = vmatpush.bf16.msra.mxu0 %v5276
    %7312 = vmatpush.bf16.msra.mxu0 %v5270
    %7313 = vmatpush.bf16.msra.mxu0 %v5264
    %7314 = vmatpush.bf16.msra.mxu0 %v5258
    %7315 = vmatpush.bf16.msra.mxu0 %v5252
    %7316 = vmatpush.bf16.msra.mxu0 %v5246
    %7317 = vmatpush.bf16.msra.mxu0 %v5240
    %7318 = vmatpush.bf16.msra.mxu0 %v5234
    %7319 = vmatmul.bf16.gmra.mxu0 %v7193
    %v7320 = vpop.f32.mrf.mxu0
    %v7321 = vadd.f32 %v7308, %v7320
    %v7322 = vpop.f32.mrf.mxu0
    %7323 = vdwg.mxu0
    %7324 = vmatpush.bf16.msra.mxu0 %v5229
    %7325 = vmatpush.bf16.msra.mxu0 %v5223
    %7326 = vmatpush.bf16.msra.mxu0 %v5217
    %7327 = vmatpush.bf16.msra.mxu0 %v5211
    %7328 = vmatpush.bf16.msra.mxu0 %v5205
    %7329 = vmatpush.bf16.msra.mxu0 %v5199
    %7330 = vmatpush.bf16.msra.mxu0 %v5193
    %7331 = vmatpush.bf16.msra.mxu0 %v5187
    %7332 = vmatmul.bf16.gmra.mxu0 %v7192
    %v7333 = vpop.f32.mrf.mxu0
    %v7334 = vadd.f32 %v4887, %v7333
    %v7335 = vpop.f32.mrf.mxu0
    %7336 = vdwg.mxu0
    %7337 = vmatpush.bf16.msra.mxu0 %v5277
    %7338 = vmatpush.bf16.msra.mxu0 %v5271
    %7339 = vmatpush.bf16.msra.mxu0 %v5265
    %7340 = vmatpush.bf16.msra.mxu0 %v5259
    %7341 = vmatpush.bf16.msra.mxu0 %v5253
    %7342 = vmatpush.bf16.msra.mxu0 %v5247
    %7343 = vmatpush.bf16.msra.mxu0 %v5241
    %7344 = vmatpush.bf16.msra.mxu0 %v5235
    %7345 = vmatmul.bf16.gmra.mxu0 %v7193
    %v7346 = vpop.f32.mrf.mxu0
    %v7347 = vadd.f32 %v7334, %v7346
    %v7348 = vpop.f32.mrf.mxu0
    %7349 = vdwg.mxu0
    %v7350 = vld [vmem:[#allocation2 + $0x150] sm:$0xff]
    %v7351 = vld [vmem:[#allocation2 + $0x158] sm:$0xff]
    %v7352 = vld [vmem:[#allocation2 + $0x160] sm:$0xff]
    %v7353 = vld [vmem:[#allocation2 + $0x18] sm:$0xff]
    %v7354 = vld [vmem:[#allocation2 + $0x20] sm:$0xff]
    %v7355 = vld [vmem:[#allocation2 + $0x28] sm:$0xff]
    %v7356 = vadd.f32 %v7350, %v7217
    %v7357 = vxor.u32 %v7356, 2147483648
    %v7358 = vmul.f32 %v7357, 1.442695
    %v7359 = vpow.pop %v7358
    %v7360 = vadd.f32 %v7359, 1.0
    %v7361 = vrcp.pop %v7360
    %v7362 = vmul.f32 %v7360, %v7361
    %v7363 = vsub.f32 1.0, %v7362
    %v7364 = vmul.f32 %v7361, %v7363
    %v7365 = vadd.f32 %v7361, %v7364
    %vm7366 = vweird.f32 %v7360
    %vm7367 = vweird.f32 %v7361
    %vm7368 = vmor %vm7366, %vm7367
    %v7369 = vsel %vm7368, %v7361, %v7365
    %v7370 = vand.u32 2147483647, %v7360
    %vm7371 = vcmp.eq.f32.partialorder %v7370, 8.507059e+37
    %v7372 = vand.u32 %v7360, 2147483648
    %v7373 = vor.u32 1.1754944e-38, %v7372
    %v7374 = vsel %vm7371, %v7373, %v7369
    %v7375 = vmul.f32 1.0, %v7374
    %v7376 = vadd.f32 %v7351, %v7243
    %v7377 = vxor.u32 %v7376, 2147483648
    %v7378 = vmul.f32 %v7377, 1.442695
    %v7379 = vpow.pop %v7378
    %v7380 = vadd.f32 %v7379, 1.0
    %v7381 = vrcp.pop %v7380
    %v7382 = vmul.f32 %v7380, %v7381
    %v7383 = vsub.f32 1.0, %v7382
    %v7384 = vmul.f32 %v7381, %v7383
    %v7385 = vadd.f32 %v7381, %v7384
    %vm7386 = vweird.f32 %v7380
    %vm7387 = vweird.f32 %v7381
    %vm7388 = vmor %vm7386, %vm7387
    %v7389 = vsel %vm7388, %v7381, %v7385
    %v7390 = vand.u32 2147483647, %v7380
    %vm7391 = vcmp.eq.f32.partialorder %v7390, 8.507059e+37
    %v7392 = vand.u32 %v7380, 2147483648
    %v7393 = vor.u32 1.1754944e-38, %v7392
    %v7394 = vsel %vm7391, %v7393, %v7389
    %v7395 = vmul.f32 1.0, %v7394
    %v7396 = vmul.f32 %v7375, %v7269
    %v7397 = vadd.f32 %v7352, %v7396
    %v7398 = vtanh.pop %v7397
    %v7399 = vsub.f32 1.0, %v7395
    %v7400 = vmul.f32 %v7399, %v7398
    %v7401 = vmul.f32 %v7395, %v7143
    %v7402 = vadd.f32 %v7400, %v7401
    %v7403 = vsel %vm741, %v7402, %v7143
    %v7404 = vadd.f32 %v7353, %v7295
    %v7405 = vxor.u32 %v7404, 2147483648
    %v7406 = vmul.f32 %v7405, 1.442695
    %v7407 = vpow.pop %v7406
    %v7408 = vadd.f32 %v7407, 1.0
    %v7409 = vrcp.pop %v7408
    %v7410 = vmul.f32 %v7408, %v7409
    %v7411 = vsub.f32 1.0, %v7410
    %v7412 = vmul.f32 %v7409, %v7411
    %v7413 = vadd.f32 %v7409, %v7412
    %vm7414 = vweird.f32 %v7408
    %vm7415 = vweird.f32 %v7409
    %vm7416 = vmor %vm7414, %vm7415
    %v7417 = vsel %vm7416, %v7409, %v7413
    %v7418 = vand.u32 2147483647, %v7408
    %vm7419 = vcmp.eq.f32.partialorder %v7418, 8.507059e+37
    %v7420 = vand.u32 %v7408, 2147483648
    %v7421 = vor.u32 1.1754944e-38, %v7420
    %v7422 = vsel %vm7419, %v7421, %v7417
    %v7423 = vmul.f32 1.0, %v7422
    %v7424 = vadd.f32 %v7354, %v7321
    %v7425 = vxor.u32 %v7424, 2147483648
    %v7426 = vmul.f32 %v7425, 1.442695
    %v7427 = vpow.pop %v7426
    %v7428 = vadd.f32 %v7427, 1.0
    %v7429 = vrcp.pop %v7428
    %v7430 = vmul.f32 %v7428, %v7429
    %v7431 = vsub.f32 1.0, %v7430
    %v7432 = vmul.f32 %v7429, %v7431
    %v7433 = vadd.f32 %v7429, %v7432
    %vm7434 = vweird.f32 %v7428
    %vm7435 = vweird.f32 %v7429
    %vm7436 = vmor %vm7434, %vm7435
    %v7437 = vsel %vm7436, %v7429, %v7433
    %v7438 = vand.u32 2147483647, %v7428
    %vm7439 = vcmp.eq.f32.partialorder %v7438, 8.507059e+37
    %v7440 = vand.u32 %v7428, 2147483648
    %v7441 = vor.u32 1.1754944e-38, %v7440
    %v7442 = vsel %vm7439, %v7441, %v7437
    %v7443 = vmul.f32 1.0, %v7442
    %v7444 = vmul.f32 %v7423, %v7347
    %v7445 = vadd.f32 %v7355, %v7444
    %v7446 = vtanh.pop %v7445
    %v7447 = vsub.f32 1.0, %v7443
    %v7448 = vmul.f32 %v7447, %v7446
    %v7449 = vmul.f32 %v7443, %v7191
    %v7450 = vadd.f32 %v7448, %v7449
    %v7451 = vsel %vm699, %v7450, %v7191
    %v7452 = vpack.c.bf16 %v7403, %v7403
    %v7453 = vpack.c.bf16 %v7451, %v7451
    %v7454 = vld [vmem:[#allocation8] sm:$0xf]
    %v7455 = vld [vmem:[#allocation8 + $0x4] sm:$0xf]
    %v7456 = vld [vmem:[#allocation8 + $0x8] sm:$0xf]
    %v7457 = vld [vmem:[#allocation8 + $0xc] sm:$0xf]
    %v7458 = vld [vmem:[#allocation8 + $0x10] sm:$0xf]
    %v7459 = vld [vmem:[#allocation8 + $0x14] sm:$0xf]
    %v7460 = vld [vmem:[#allocation8 + $0x18] sm:$0xf]
    %v7461 = vld [vmem:[#allocation8 + $0x1c] sm:$0xf]
    %v7462 = vld [vmem:[#allocation8 + $0x20] sm:$0xf]
    %v7463 = vld [vmem:[#allocation8 + $0x24] sm:$0xf]
    %v7464 = vld [vmem:[#allocation8 + $0x28] sm:$0xf]
    %v7465 = vld [vmem:[#allocation8 + $0x2c] sm:$0xf]
    %v7466 = vld [vmem:[#allocation8 + $0x30] sm:$0xf]
    %v7467 = vld [vmem:[#allocation8 + $0x34] sm:$0xf]
    %v7468 = vld [vmem:[#allocation8 + $0x38] sm:$0xf]
    %v7469 = vld [vmem:[#allocation8 + $0x3c] sm:$0xf]
    %v7470 = vld [vmem:[#allocation8 + $0x40] sm:$0xf]
    %v7471 = vld [vmem:[#allocation8 + $0x44] sm:$0xf]
    %v7472 = vld [vmem:[#allocation8 + $0x48] sm:$0xf]
    %v7473 = vld [vmem:[#allocation8 + $0x4c] sm:$0xf]
    %v7474 = vld [vmem:[#allocation8 + $0x50] sm:$0xf]
    %v7475 = vld [vmem:[#allocation8 + $0x54] sm:$0xf]
    %v7476 = vld [vmem:[#allocation8 + $0x58] sm:$0xf]
    %v7477 = vld [vmem:[#allocation8 + $0x5c] sm:$0xf]
    %v7478 = vld [vmem:[#allocation8 + $0x60] sm:$0xf]
    %v7479 = vld [vmem:[#allocation8 + $0x64] sm:$0xf]
    %v7480 = vld [vmem:[#allocation8 + $0x68] sm:$0xf]
    %v7481 = vld [vmem:[#allocation8 + $0x6c] sm:$0xf]
    %v7482 = vld [vmem:[#allocation8 + $0x70] sm:$0xf]
    %v7483 = vld [vmem:[#allocation8 + $0x74] sm:$0xf]
    %v7484 = vld [vmem:[#allocation8 + $0x78] sm:$0xf]
    %v7485 = vld [vmem:[#allocation8 + $0x7c] sm:$0xf]
    %v7486 = vld [vmem:[%s11] sm:$0x1]
    %v7488 = vperm.slane %v7486, 0
    %v7522 = vunpack.c.l.b16 %v7454
    %v7523 = vunpack.c.l.b16 %v7455
    %v7524 = vunpack.c.l.b16 %v7456
    %v7525 = vunpack.c.l.b16 %v7457
    %v7526 = vunpack.c.l.b16 %v7458
    %v7527 = vunpack.c.l.b16 %v7459
    %v7528 = vunpack.c.l.b16 %v7460
    %v7529 = vunpack.c.l.b16 %v7461
    %v7530 = vunpack.c.l.b16 %v7462
    %v7531 = vunpack.c.l.b16 %v7463
    %v7532 = vunpack.c.l.b16 %v7464
    %v7533 = vunpack.c.l.b16 %v7465
    %v7534 = vunpack.c.l.b16 %v7466
    %v7535 = vunpack.c.l.b16 %v7467
    %v7536 = vunpack.c.l.b16 %v7468
    %v7537 = vunpack.c.l.b16 %v7469
    %v7538 = vunpack.c.l.b16 %v7470
    %v7539 = vunpack.c.l.b16 %v7471
    %v7540 = vunpack.c.l.b16 %v7472
    %v7541 = vunpack.c.l.b16 %v7473
    %v7542 = vunpack.c.l.b16 %v7474
    %v7543 = vunpack.c.l.b16 %v7475
    %v7544 = vunpack.c.l.b16 %v7476
    %v7545 = vunpack.c.l.b16 %v7477
    %v7546 = vunpack.c.l.b16 %v7478
    %v7547 = vunpack.c.l.b16 %v7479
    %v7548 = vunpack.c.l.b16 %v7480
    %v7549 = vunpack.c.l.b16 %v7481
    %v7550 = vunpack.c.l.b16 %v7482
    %v7551 = vunpack.c.l.b16 %v7483
    %v7552 = vunpack.c.l.b16 %v7484
    %v7553 = vunpack.c.l.b16 %v7485
    %v7554 = vpack.c.b16 %v7523, %v7522
    %v7555 = vpack.c.b16 %v7525, %v7524
    %v7556 = vpack.c.b16 %v7527, %v7526
    %v7557 = vpack.c.b16 %v7529, %v7528
    %v7558 = vpack.c.b16 %v7531, %v7530
    %v7559 = vpack.c.b16 %v7533, %v7532
    %v7560 = vpack.c.b16 %v7535, %v7534
    %v7561 = vpack.c.b16 %v7537, %v7536
    %v7562 = vpack.c.b16 %v7539, %v7538
    %v7563 = vpack.c.b16 %v7541, %v7540
    %v7564 = vpack.c.b16 %v7543, %v7542
    %v7565 = vpack.c.b16 %v7545, %v7544
    %v7566 = vpack.c.b16 %v7547, %v7546
    %v7567 = vpack.c.b16 %v7549, %v7548
    %v7568 = vpack.c.b16 %v7551, %v7550
    %v7569 = vpack.c.b16 %v7553, %v7552
    %7586 = vmatpush.bf16.msra.mxu0 %v7561
    %7587 = vmatpush.bf16.msra.mxu0 %v7560
    %7588 = vmatpush.bf16.msra.mxu0 %v7559
    %7589 = vmatpush.bf16.msra.mxu0 %v7558
    %7590 = vmatpush.bf16.msra.mxu0 %v7557
    %7591 = vmatpush.bf16.msra.mxu0 %v7556
    %7592 = vmatpush.bf16.msra.mxu0 %v7555
    %7593 = vmatpush.bf16.msra.mxu0 %v7554
    %7594 = vmatmul.bf16.gmra.mxu0 %v7452
    %v7595 = vpop.f32.mrf.mxu0
    %v7596 = vadd.f32 %v7488, %v7595
    %v7597 = vpop.f32.mrf.mxu0
    %7598 = vdwg.mxu0
    %7599 = vmatpush.bf16.msra.mxu0 %v7569
    %7600 = vmatpush.bf16.msra.mxu0 %v7568
    %7601 = vmatpush.bf16.msra.mxu0 %v7567
    %7602 = vmatpush.bf16.msra.mxu0 %v7566
    %7603 = vmatpush.bf16.msra.mxu0 %v7565
    %7604 = vmatpush.bf16.msra.mxu0 %v7564
    %7605 = vmatpush.bf16.msra.mxu0 %v7563
    %7606 = vmatpush.bf16.msra.mxu0 %v7562
    %7607 = vmatmul.bf16.gmra.mxu0 %v7453
    %v7608 = vpop.f32.mrf.mxu0
    %v7609 = vadd.f32 %v7596, %v7608
    %v7610 = vpop.f32.mrf.mxu0
    %7611 = vdwg.mxu0
    %7612 = vst [vmem:[#allocation18] sm:$0xff] %v7609
    // Predicated region
    $region70: #{tpu_custom_call.1} parent=1 // pred_check
      _
    $region71: #{tpu_custom_call.1} parent=1 // pred_check_branch
      %7614 = sbr.rel (0) target = $region73
    $region72: #{tpu_custom_call.1} parent=1 // pred_region
      %7616 = vsyncadd [#allocation11], 0
      %s7618 = sshll.u32 [#allocation18], 4
      %s7619 = int_to_ptr.vmem [resolvable:$true] %s7618
      %s7620 = sshll.u32 %s12, 4
      %s7621 = int_to_ptr.hbm [resolvable:$true] %s7620
      %7623 = dma.vmem_to_hbm [thread:$0]  %s7619, 128, %s7621, [#allocation11]
    $region73: #{tpu_custom_call.1} parent=1 // pred_fallthru
      _
    // Predicated region
    $region74: #{tpu_custom_call.1} parent=1 // pred_check
      _
    $region75: #{tpu_custom_call.1} parent=1 // pred_check_branch
      %7625 = sbr.rel (0) target = $region77
    $region76: #{tpu_custom_call.1} parent=1 // pred_region
      %7627 = dma.done [#allocation11], 128
    $region77: #{tpu_custom_call.1} parent=1 // pred_fallthru
      _
    %7628 = vsyncpa [#allocation10], 1
    %7629 = vsyncpa [#allocation13], 1
    %7630 = vsyncpa [#allocation16], 1
    %7631 = vsyncpa [#allocation11], 1

</llo_original>
